<compile_context>
chip_gen: v5e
topology: v5e:2x2
jax: 0.10.0
libtpu: 0.0.40
codegen_flags: <defaults>
</compile_context>

<pallas_src>
import numpy as np
import jax
import jax.numpy as jnp
from jax import lax
from jax.experimental import pallas as pl
from jax.experimental.pallas import tpu as pltpu


def _magic_div(S, L):
    """Find (M, k) with (p * M) >> k == p // S exactly for every 0 <= p < L (trace time)."""
    p = np.arange(L, dtype=np.int64)
    want = p // S
    for k in range(16, 31):
        M = -((-(1 << k)) // S)                      # ceil(2^k / S)
        if (L - 1) * M < 2**31 and np.array_equal((p * M) >> k, want):
            return int(M), int(k)
    raise ValueError("no exact magic divisor found for S=%d, L=%d" % (S, L))


def _make_decoder_kernel(H, W, L, negative_slope=0.01, eps=1e-7):
    """Fused 4-layer decoder kernel for an (H, W) image; L = padded flat length."""
    S = W + 2            # row stride of the flat layout
    n = H * W            # number of valid pixels (norm statistics count)
    MAGIC, KSH = _magic_div(S, L)

    # Layout / wraparound invariant (do not change L rounding or shift amounts
    # without re-checking): valid data lives only at rows p = h*S + w (h<H, w<W);
    # taps read rows p + (dy-1)*S + (dx-1).  The most negative offset -(S+1) wraps
    # (mod L) to rows >= L - S - 1 >= H*S, which are all zero because L >= (H+2)*S;
    # the most positive offset reaches at most H*S + S - 2 <= L - 1, also zero.
    assert L >= (H + 2) * S and L % 8 == 0

    def shift_rows(x, k):
        # result[p] = x[(p + k) % L]; k is a static Python int (may be negative).
        k = k % L
        if k == 0:
            return x
        return pltpu.roll(x, shift=L - k, axis=0)

    def conv3x3(a, w_ref, b_ref):
        # a: (L, Cin) f32, origin layout, zeros outside valid rows.
        # w_ref: (3, 3*Cin, Cout) bf16 with w_ref[dy, dx*Cin + ci, co] = W[dy, dx, ci, co].
        # b_ref: (1, Cout) f32.
        # Returns (L, Cout) f32; rows p = h*S + w hold the conv output (others: garbage).
        a3 = jnp.concatenate(
            [shift_rows(a, dx - 1) for dx in range(3)], axis=1
        ).astype(jnp.bfloat16)                                    # (L, 3*Cin)
        acc = b_ref[...]                                          # bias, broadcasts
        for dy in range(3):
            t = jnp.dot(a3, w_ref[dy], preferred_element_type=jnp.float32)
            acc = acc + shift_rows(t, (dy - 1) * S)
        return acc

    def act_norm(acc, valid):
        # LeakyReLU(0.01) + per-channel mean / unbiased std (eps added to std),
        # one-pass statistics; invalid rows are forced to exactly zero so the next
        # layer's implicit zero padding holds.
        z = jnp.where(acc >= 0.0, acc, negative_slope * acc)
        z = jnp.where(valid, z, 0.0)
        s1 = jnp.sum(z, axis=0, keepdims=True)                    # (1, C)
        s2 = jnp.sum(z * z, axis=0, keepdims=True)                # (1, C)
        mean = s1 * (1.0 / n)
        var = jnp.maximum(s2 - mean * s1, 0.0) * (1.0 / (n - 1))  # unbiased, >= 0
        inv_std = pl.reciprocal(jnp.sqrt(var) + eps, approx=True)
        return jnp.where(valid, (z - mean) * inv_std, 0.0)

    def kernel(x_ref, w0_ref, b0_ref, w1_ref, b1_ref, w2_ref, b2_ref,
               w3_ref, b3_ref, o_ref):
        # Compile-time-constant validity mask, built in-kernel (no extra input DMA).
        p = lax.broadcasted_iota(jnp.int32, (L, 1), 0)
        h = (p * MAGIC) >> KSH                       # exact p // S via magic multiply
        col = p - h * S
        valid = (col < W) & (h < H)                  # (L, 1) bool

        a = x_ref[...]                               # (L, 3) f32, origin layout
        a = act_norm(conv3x3(a, w0_ref, b0_ref), valid)
        a = act_norm(conv3x3(a, w1_ref, b1_ref), valid)
        a = act_norm(conv3x3(a, w2_ref, b2_ref), valid)
        o_ref[...] = conv3x3(a, w3_ref, b3_ref)      # final layer: no act / norm

    return kernel


def init_params(key, data_depth, hidden_size):
    """Deterministic PyTorch-like (kaiming-uniform-ish) conv init, weights in HWIO.

    NOTE: real PyTorch Conv2d weights are OIHW; transpose to HWIO (3, 3, Cin, Cout)
    before passing them here.
    """
    channels = [(3, hidden_size),
                (hidden_size, hidden_size),
                (hidden_size, hidden_size),
                (hidden_size, data_depth)]
    params = []
    for i, (cin, cout) in enumerate(channels):
        kw, kb = jax.random.split(jax.random.fold_in(key, i))
        bound = 1.0 / jnp.sqrt(float(cin * 3 * 3))
        w = jax.random.uniform(kw, (3, 3, cin, cout), jnp.float32, -bound, bound)
        b = jax.random.uniform(kb, (cout,), jnp.float32, -bound, bound)
        params.append((w, b))
    return params


def prepare_params(params):
    """Host-side (run once, outside jit): HWIO weights -> kernel operand form.

    Each layer becomes ((3, 3*Cin, Cout) bf16 dy-slabs, (1, Cout) f32 bias) so the
    kernel only takes one static leading-dim index per dy -- no in-kernel 4-D slicing.
    """
    prepped = []
    for w, b in params:
        kh, kw_, cin, cout = w.shape
        assert (kh, kw_) == (3, 3)
        w_slab = jnp.asarray(w, jnp.float32).reshape(3, 3 * cin, cout).astype(jnp.bfloat16)
        b_row = jnp.asarray(b, jnp.float32).reshape(1, cout)
        prepped.append((w_slab, b_row))
    return prepped


@jax.jit
def basic_decoder_forward(x_nchw, prepped_params):
    """x_nchw: (1, 3, H, W) f32 -> (1, data_depth, H, W) f32.  Batch must be 1."""
    n_batch, cin, H, W = x_nchw.shape
    assert n_batch == 1, "normLayer requires batch == 1"
    S = W + 2
    L = (((H + 2) * S + 7) // 8) * 8                  # flat length, sublane multiple

    (w0, b0), (w1, b1), (w2, b2), (w3, b3) = prepped_params
    dout = w3.shape[-1]

    # Origin flat layout: row p = h*S + w holds pixel (h, w); the two trailing columns
    # of each row and every row >= H*S are zero (implicit conv zero padding).
    x_hwc = jnp.transpose(x_nchw[0], (1, 2, 0))                          # (H, W, 3)
    x_flat = jnp.pad(x_hwc, ((0, 0), (0, 2), (0, 0))).reshape(H * S, cin)
    x_flat = jnp.pad(x_flat, ((0, L - H * S), (0, 0)))                   # zero tail

    # Whole-problem, un-gridded call: every operand lives fully in VMEM (default
    # BlockSpecs), working set < 1 MiB at these sizes.
    y_flat = pl.pallas_call(
        _make_decoder_kernel(H, W, L),
        out_shape=jax.ShapeDtypeStruct((L, dout), jnp.float32),
    )(x_flat, w0, b0, w1, b1, w2, b2, w3, b3)

    # Rows p = h*S + w (h < H, w < W) hold the final conv output.
    y = y_flat[: H * S].reshape(H, S, dout)[:, :W, :]
    return jnp.transpose(y, (2, 0, 1))[None]                             # back to NCHW


@jax.jit
def _reference_forward(x_nchw, params):
    """Pure-JAX reference (bf16 matmul inputs, f32 accumulation -- same as the kernel)."""
    def conv(x, w_hwio, b):
        y = jax.lax.conv_general_dilated(
            x.astype(jnp.bfloat16), w_hwio.astype(jnp.bfloat16),
            window_strides=(1, 1), padding=((1, 1), (1, 1)),
            dimension_numbers=("NHWC", "HWIO", "NHWC"),
            preferred_element_type=jnp.float32)
        return y + b.reshape(1, 1, 1, -1)

    def act_norm(x):
        x = jnp.where(x >= 0.0, x, 0.01 * x)
        c = x.shape[-1]
        flat = x.reshape(-1, c)
        mean = jnp.mean(flat, axis=0)
        std = jnp.std(flat, axis=0, ddof=1)                 # unbiased, like torch.std
        return (x - mean) / (std + 1e-7)

    (w0, b0), (w1, b1), (w2, b2), (w3, b3) = params
    x = jnp.transpose(x_nchw[0], (1, 2, 0))[None]           # NHWC, batch 1
    x = act_norm(conv(x, w0, b0))
    x = act_norm(conv(x, w1, b1))
    x = act_norm(conv(x, w2, b2))
    x = conv(x, w3, b3)
    return jnp.transpose(x[0], (2, 0, 1))[None]


if __name__ == "__main__":
    key = jax.random.PRNGKey(0)
    data_depth = 6
    hidden_size = 32
    H = W = 16

    k_x, k_p = jax.random.split(key)
    x = jax.random.normal(k_x, (1, 3, H, W), jnp.float32)   # batch must be 1 (normLayer)
    params = init_params(k_p, data_depth, hidden_size)
    prepped = prepare_params(params)                        # host-side weight relayout

    out = jax.block_until_ready(basic_decoder_forward(x, prepped))
    assert out.shape == (1, data_depth, H, W), out.shape
    assert bool(jnp.all(jnp.isfinite(out)))

    # Sanity check vs. a pure-JAX reference (loose tol: bf16 matmuls + approx reciprocal).
    ref = jax.block_until_ready(_reference_forward(x, params))
    max_err = float(jnp.max(jnp.abs(out - ref)))
    assert max_err < 0.1, f"max abs error vs reference: {max_err}"
    print("KERNEL_OK")
</pallas_src>

<mosaic_0001>
module attributes {stable_mosaic.version = 11 : i64} {
  func.func @kernel(%arg0: memref<328x3xf32, #tpu.memory_space<vmem>>, %arg1: memref<3x9x32xbf16, #tpu.memory_space<vmem>>, %arg2: memref<1x32xf32, #tpu.memory_space<vmem>>, %arg3: memref<3x96x32xbf16, #tpu.memory_space<vmem>>, %arg4: memref<1x32xf32, #tpu.memory_space<vmem>>, %arg5: memref<3x96x32xbf16, #tpu.memory_space<vmem>>, %arg6: memref<1x32xf32, #tpu.memory_space<vmem>>, %arg7: memref<3x96x6xbf16, #tpu.memory_space<vmem>>, %arg8: memref<1x6xf32, #tpu.memory_space<vmem>>, %arg9: memref<328x6xf32, #tpu.memory_space<vmem>>) attributes {dimension_semantics = [], scalar_prefetch = 0 : i64, scratch_operands = 0 : i64, tpu.core_type = #tpu.core_type<tc>} {
    %0 = tpu.iota {dimensions = array<i32: 0>} : vector<328x1xi32>
    %c3641_i32 = arith.constant 3641 : i32
    %1 = vector.broadcast %c3641_i32 : i32 to vector<328x1xi32>
    %2 = arith.muli %0, %1 : vector<328x1xi32>
    %c16_i32 = arith.constant 16 : i32
    %3 = vector.broadcast %c16_i32 : i32 to vector<328x1xi32>
    %4 = arith.shrsi %2, %3 : vector<328x1xi32>
    %c18_i32 = arith.constant 18 : i32
    %5 = vector.broadcast %c18_i32 : i32 to vector<328x1xi32>
    %6 = arith.muli %4, %5 : vector<328x1xi32>
    %7 = arith.subi %0, %6 : vector<328x1xi32>
    %c16_i32_0 = arith.constant 16 : i32
    %8 = vector.broadcast %c16_i32_0 : i32 to vector<328x1xi32>
    %9 = arith.cmpi slt, %7, %8 : vector<328x1xi32>
    %c16_i32_1 = arith.constant 16 : i32
    %10 = vector.broadcast %c16_i32_1 : i32 to vector<328x1xi32>
    %11 = arith.cmpi slt, %4, %10 : vector<328x1xi32>
    %12 = arith.andi %9, %11 : vector<328x1xi1>
    %c0 = arith.constant 0 : index
    %c0_2 = arith.constant 0 : index
    %13 = vector.load %arg0[%c0, %c0_2] : memref<328x3xf32, #tpu.memory_space<vmem>>, vector<328x3xf32>
    %c1_i32 = arith.constant 1 : i32
    %14 = tpu.dynamic_rotate %13 by %c1_i32 dim 0 : vector<328x3xf32>, i32 -> vector<328x3xf32>
    %c327_i32 = arith.constant 327 : i32
    %15 = tpu.dynamic_rotate %13 by %c327_i32 dim 0 : vector<328x3xf32>, i32 -> vector<328x3xf32>
    %16 = tpu.concatenate %14, %13, %15 in 1 : vector<328x3xf32>, vector<328x3xf32>, vector<328x3xf32> -> vector<328x9xf32>
    %17 = arith.truncf %16 : vector<328x9xf32> to vector<328x9xbf16>
    %c0_3 = arith.constant 0 : index
    %c0_4 = arith.constant 0 : index
    %18 = vector.load %arg2[%c0_3, %c0_4] : memref<1x32xf32, #tpu.memory_space<vmem>>, vector<1x32xf32>
    %c0_5 = arith.constant 0 : index
    %c0_6 = arith.constant 0 : index
    %c0_7 = arith.constant 0 : index
    %19 = vector.load %arg1[%c0_5, %c0_6, %c0_7] : memref<3x9x32xbf16, #tpu.memory_space<vmem>>, vector<1x9x32xbf16>
    %20 = vector.shape_cast %19 : vector<1x9x32xbf16> to vector<9x32xbf16>
    %cst = arith.constant dense<0.000000e+00> : vector<328x32xf32>
    %21 = tpu.matmul %17, %20, %cst {dimension_numbers = #tpu.dot_dimension_numbers<[1], [0], [0], [1], [0, 0, 1, 1], [], []>} : vector<328x9xbf16>, vector<9x32xbf16>, vector<328x32xf32> -> vector<328x32xf32>
    %c18_i32_8 = arith.constant 18 : i32
    %22 = tpu.dynamic_rotate %21 by %c18_i32_8 dim 0 : vector<328x32xf32>, i32 -> vector<328x32xf32>
    %23 = vector.broadcast %18 : vector<1x32xf32> to vector<328x32xf32>
    %24 = arith.addf %23, %22 : vector<328x32xf32>
    %c1 = arith.constant 1 : index
    %c0_9 = arith.constant 0 : index
    %c0_10 = arith.constant 0 : index
    %25 = vector.load %arg1[%c1, %c0_9, %c0_10] : memref<3x9x32xbf16, #tpu.memory_space<vmem>>, vector<1x9x32xbf16>
    %26 = vector.shape_cast %25 : vector<1x9x32xbf16> to vector<9x32xbf16>
    %cst_11 = arith.constant dense<0.000000e+00> : vector<328x32xf32>
    %27 = tpu.matmul %17, %26, %cst_11 {dimension_numbers = #tpu.dot_dimension_numbers<[1], [0], [0], [1], [0, 0, 1, 1], [], []>} : vector<328x9xbf16>, vector<9x32xbf16>, vector<328x32xf32> -> vector<328x32xf32>
    %28 = arith.addf %24, %27 : vector<328x32xf32>
    %c2 = arith.constant 2 : index
    %c0_12 = arith.constant 0 : index
    %c0_13 = arith.constant 0 : index
    %29 = vector.load %arg1[%c2, %c0_12, %c0_13] : memref<3x9x32xbf16, #tpu.memory_space<vmem>>, vector<1x9x32xbf16>
    %30 = vector.shape_cast %29 : vector<1x9x32xbf16> to vector<9x32xbf16>
    %cst_14 = arith.constant dense<0.000000e+00> : vector<328x32xf32>
    %31 = tpu.matmul %17, %30, %cst_14 {dimension_numbers = #tpu.dot_dimension_numbers<[1], [0], [0], [1], [0, 0, 1, 1], [], []>} : vector<328x9xbf16>, vector<9x32xbf16>, vector<328x32xf32> -> vector<328x32xf32>
    %c310_i32 = arith.constant 310 : i32
    %32 = tpu.dynamic_rotate %31 by %c310_i32 dim 0 : vector<328x32xf32>, i32 -> vector<328x32xf32>
    %33 = arith.addf %28, %32 : vector<328x32xf32>
    %cst_15 = arith.constant 0.000000e+00 : f32
    %34 = vector.broadcast %cst_15 : f32 to vector<328x32xf32>
    %35 = arith.cmpf oge, %33, %34 : vector<328x32xf32>
    %cst_16 = arith.constant 0.00999999977 : f32
    %36 = vector.broadcast %cst_16 : f32 to vector<328x32xf32>
    %37 = arith.mulf %36, %33 : vector<328x32xf32>
    %38 = arith.select %35, %33, %37 : vector<328x32xi1>, vector<328x32xf32>
    %cst_17 = arith.constant 0.000000e+00 : f32
    %39 = vector.shape_cast %12 : vector<328x1xi1> to vector<328x1xi1>
    %40 = vector.broadcast %39 : vector<328x1xi1> to vector<328x32xi1>
    %41 = vector.broadcast %cst_17 : f32 to vector<328x32xf32>
    %42 = arith.select %40, %38, %41 : vector<328x32xi1>, vector<328x32xf32>
    %cst_18 = arith.constant dense<0.000000e+00> : vector<32xf32>
    %43 = vector.multi_reduction <add>, %42, %cst_18 [0] : vector<328x32xf32> to vector<32xf32>
    %44 = vector.shape_cast %43 : vector<32xf32> to vector<1x32xf32>
    %45 = arith.mulf %42, %42 : vector<328x32xf32>
    %cst_19 = arith.constant dense<0.000000e+00> : vector<32xf32>
    %46 = vector.multi_reduction <add>, %45, %cst_19 [0] : vector<328x32xf32> to vector<32xf32>
    %47 = vector.shape_cast %46 : vector<32xf32> to vector<1x32xf32>
    %cst_20 = arith.constant 3.906250e-03 : f32
    %48 = vector.broadcast %cst_20 : f32 to vector<1x32xf32>
    %49 = arith.mulf %44, %48 : vector<1x32xf32>
    %50 = arith.mulf %49, %44 : vector<1x32xf32>
    %51 = arith.subf %47, %50 : vector<1x32xf32>
    %cst_21 = arith.constant 0.000000e+00 : f32
    %52 = vector.broadcast %cst_21 : f32 to vector<1x32xf32>
    %53 = arith.maximumf %51, %52 : vector<1x32xf32>
    %cst_22 = arith.constant 0.00392156886 : f32
    %54 = vector.broadcast %cst_22 : f32 to vector<1x32xf32>
    %55 = arith.mulf %53, %54 : vector<1x32xf32>
    %56 = math.sqrt %55 : vector<1x32xf32>
    %cst_23 = arith.constant 1.000000e-07 : f32
    %57 = vector.broadcast %cst_23 : f32 to vector<1x32xf32>
    %58 = arith.addf %56, %57 : vector<1x32xf32>
    %59 = tpu.reciprocal %58 {approx = true} : vector<1x32xf32> -> vector<1x32xf32>
    %60 = vector.broadcast %49 : vector<1x32xf32> to vector<328x32xf32>
    %61 = arith.subf %42, %60 : vector<328x32xf32>
    %62 = vector.broadcast %59 : vector<1x32xf32> to vector<328x32xf32>
    %63 = arith.mulf %61, %62 : vector<328x32xf32>
    %cst_24 = arith.constant 0.000000e+00 : f32
    %64 = vector.shape_cast %12 : vector<328x1xi1> to vector<328x1xi1>
    %65 = vector.broadcast %64 : vector<328x1xi1> to vector<328x32xi1>
    %66 = vector.broadcast %cst_24 : f32 to vector<328x32xf32>
    %67 = arith.select %65, %63, %66 : vector<328x32xi1>, vector<328x32xf32>
    %c1_i32_25 = arith.constant 1 : i32
    %68 = tpu.dynamic_rotate %67 by %c1_i32_25 dim 0 : vector<328x32xf32>, i32 -> vector<328x32xf32>
    %c327_i32_26 = arith.constant 327 : i32
    %69 = tpu.dynamic_rotate %67 by %c327_i32_26 dim 0 : vector<328x32xf32>, i32 -> vector<328x32xf32>
    %70 = tpu.concatenate %68, %67, %69 in 1 : vector<328x32xf32>, vector<328x32xf32>, vector<328x32xf32> -> vector<328x96xf32>
    %71 = arith.truncf %70 : vector<328x96xf32> to vector<328x96xbf16>
    %c0_27 = arith.constant 0 : index
    %c0_28 = arith.constant 0 : index
    %72 = vector.load %arg4[%c0_27, %c0_28] : memref<1x32xf32, #tpu.memory_space<vmem>>, vector<1x32xf32>
    %c0_29 = arith.constant 0 : index
    %c0_30 = arith.constant 0 : index
    %c0_31 = arith.constant 0 : index
    %73 = vector.load %arg3[%c0_29, %c0_30, %c0_31] : memref<3x96x32xbf16, #tpu.memory_space<vmem>>, vector<1x96x32xbf16>
    %74 = vector.shape_cast %73 : vector<1x96x32xbf16> to vector<96x32xbf16>
    %cst_32 = arith.constant dense<0.000000e+00> : vector<328x32xf32>
    %75 = tpu.matmul %71, %74, %cst_32 {dimension_numbers = #tpu.dot_dimension_numbers<[1], [0], [0], [1], [0, 0, 1, 1], [], []>} : vector<328x96xbf16>, vector<96x32xbf16>, vector<328x32xf32> -> vector<328x32xf32>
    %c18_i32_33 = arith.constant 18 : i32
    %76 = tpu.dynamic_rotate %75 by %c18_i32_33 dim 0 : vector<328x32xf32>, i32 -> vector<328x32xf32>
    %77 = vector.broadcast %72 : vector<1x32xf32> to vector<328x32xf32>
    %78 = arith.addf %77, %76 : vector<328x32xf32>
    %c1_34 = arith.constant 1 : index
    %c0_35 = arith.constant 0 : index
    %c0_36 = arith.constant 0 : index
    %79 = vector.load %arg3[%c1_34, %c0_35, %c0_36] : memref<3x96x32xbf16, #tpu.memory_space<vmem>>, vector<1x96x32xbf16>
    %80 = vector.shape_cast %79 : vector<1x96x32xbf16> to vector<96x32xbf16>
    %cst_37 = arith.constant dense<0.000000e+00> : vector<328x32xf32>
    %81 = tpu.matmul %71, %80, %cst_37 {dimension_numbers = #tpu.dot_dimension_numbers<[1], [0], [0], [1], [0, 0, 1, 1], [], []>} : vector<328x96xbf16>, vector<96x32xbf16>, vector<328x32xf32> -> vector<328x32xf32>
    %82 = arith.addf %78, %81 : vector<328x32xf32>
    %c2_38 = arith.constant 2 : index
    %c0_39 = arith.constant 0 : index
    %c0_40 = arith.constant 0 : index
    %83 = vector.load %arg3[%c2_38, %c0_39, %c0_40] : memref<3x96x32xbf16, #tpu.memory_space<vmem>>, vector<1x96x32xbf16>
    %84 = vector.shape_cast %83 : vector<1x96x32xbf16> to vector<96x32xbf16>
    %cst_41 = arith.constant dense<0.000000e+00> : vector<328x32xf32>
    %85 = tpu.matmul %71, %84, %cst_41 {dimension_numbers = #tpu.dot_dimension_numbers<[1], [0], [0], [1], [0, 0, 1, 1], [], []>} : vector<328x96xbf16>, vector<96x32xbf16>, vector<328x32xf32> -> vector<328x32xf32>
    %c310_i32_42 = arith.constant 310 : i32
    %86 = tpu.dynamic_rotate %85 by %c310_i32_42 dim 0 : vector<328x32xf32>, i32 -> vector<328x32xf32>
    %87 = arith.addf %82, %86 : vector<328x32xf32>
    %cst_43 = arith.constant 0.000000e+00 : f32
    %88 = vector.broadcast %cst_43 : f32 to vector<328x32xf32>
    %89 = arith.cmpf oge, %87, %88 : vector<328x32xf32>
    %cst_44 = arith.constant 0.00999999977 : f32
    %90 = vector.broadcast %cst_44 : f32 to vector<328x32xf32>
    %91 = arith.mulf %90, %87 : vector<328x32xf32>
    %92 = arith.select %89, %87, %91 : vector<328x32xi1>, vector<328x32xf32>
    %cst_45 = arith.constant 0.000000e+00 : f32
    %93 = vector.shape_cast %12 : vector<328x1xi1> to vector<328x1xi1>
    %94 = vector.broadcast %93 : vector<328x1xi1> to vector<328x32xi1>
    %95 = vector.broadcast %cst_45 : f32 to vector<328x32xf32>
    %96 = arith.select %94, %92, %95 : vector<328x32xi1>, vector<328x32xf32>
    %cst_46 = arith.constant dense<0.000000e+00> : vector<32xf32>
    %97 = vector.multi_reduction <add>, %96, %cst_46 [0] : vector<328x32xf32> to vector<32xf32>
    %98 = vector.shape_cast %97 : vector<32xf32> to vector<1x32xf32>
    %99 = arith.mulf %96, %96 : vector<328x32xf32>
    %cst_47 = arith.constant dense<0.000000e+00> : vector<32xf32>
    %100 = vector.multi_reduction <add>, %99, %cst_47 [0] : vector<328x32xf32> to vector<32xf32>
    %101 = vector.shape_cast %100 : vector<32xf32> to vector<1x32xf32>
    %cst_48 = arith.constant 3.906250e-03 : f32
    %102 = vector.broadcast %cst_48 : f32 to vector<1x32xf32>
    %103 = arith.mulf %98, %102 : vector<1x32xf32>
    %104 = arith.mulf %103, %98 : vector<1x32xf32>
    %105 = arith.subf %101, %104 : vector<1x32xf32>
    %cst_49 = arith.constant 0.000000e+00 : f32
    %106 = vector.broadcast %cst_49 : f32 to vector<1x32xf32>
    %107 = arith.maximumf %105, %106 : vector<1x32xf32>
    %cst_50 = arith.constant 0.00392156886 : f32
    %108 = vector.broadcast %cst_50 : f32 to vector<1x32xf32>
    %109 = arith.mulf %107, %108 : vector<1x32xf32>
    %110 = math.sqrt %109 : vector<1x32xf32>
    %cst_51 = arith.constant 1.000000e-07 : f32
    %111 = vector.broadcast %cst_51 : f32 to vector<1x32xf32>
    %112 = arith.addf %110, %111 : vector<1x32xf32>
    %113 = tpu.reciprocal %112 {approx = true} : vector<1x32xf32> -> vector<1x32xf32>
    %114 = vector.broadcast %103 : vector<1x32xf32> to vector<328x32xf32>
    %115 = arith.subf %96, %114 : vector<328x32xf32>
    %116 = vector.broadcast %113 : vector<1x32xf32> to vector<328x32xf32>
    %117 = arith.mulf %115, %116 : vector<328x32xf32>
    %cst_52 = arith.constant 0.000000e+00 : f32
    %118 = vector.shape_cast %12 : vector<328x1xi1> to vector<328x1xi1>
    %119 = vector.broadcast %118 : vector<328x1xi1> to vector<328x32xi1>
    %120 = vector.broadcast %cst_52 : f32 to vector<328x32xf32>
    %121 = arith.select %119, %117, %120 : vector<328x32xi1>, vector<328x32xf32>
    %c1_i32_53 = arith.constant 1 : i32
    %122 = tpu.dynamic_rotate %121 by %c1_i32_53 dim 0 : vector<328x32xf32>, i32 -> vector<328x32xf32>
    %c327_i32_54 = arith.constant 327 : i32
    %123 = tpu.dynamic_rotate %121 by %c327_i32_54 dim 0 : vector<328x32xf32>, i32 -> vector<328x32xf32>
    %124 = tpu.concatenate %122, %121, %123 in 1 : vector<328x32xf32>, vector<328x32xf32>, vector<328x32xf32> -> vector<328x96xf32>
    %125 = arith.truncf %124 : vector<328x96xf32> to vector<328x96xbf16>
    %c0_55 = arith.constant 0 : index
    %c0_56 = arith.constant 0 : index
    %126 = vector.load %arg6[%c0_55, %c0_56] : memref<1x32xf32, #tpu.memory_space<vmem>>, vector<1x32xf32>
    %c0_57 = arith.constant 0 : index
    %c0_58 = arith.constant 0 : index
    %c0_59 = arith.constant 0 : index
    %127 = vector.load %arg5[%c0_57, %c0_58, %c0_59] : memref<3x96x32xbf16, #tpu.memory_space<vmem>>, vector<1x96x32xbf16>
    %128 = vector.shape_cast %127 : vector<1x96x32xbf16> to vector<96x32xbf16>
    %cst_60 = arith.constant dense<0.000000e+00> : vector<328x32xf32>
    %129 = tpu.matmul %125, %128, %cst_60 {dimension_numbers = #tpu.dot_dimension_numbers<[1], [0], [0], [1], [0, 0, 1, 1], [], []>} : vector<328x96xbf16>, vector<96x32xbf16>, vector<328x32xf32> -> vector<328x32xf32>
    %c18_i32_61 = arith.constant 18 : i32
    %130 = tpu.dynamic_rotate %129 by %c18_i32_61 dim 0 : vector<328x32xf32>, i32 -> vector<328x32xf32>
    %131 = vector.broadcast %126 : vector<1x32xf32> to vector<328x32xf32>
    %132 = arith.addf %131, %130 : vector<328x32xf32>
    %c1_62 = arith.constant 1 : index
    %c0_63 = arith.constant 0 : index
    %c0_64 = arith.constant 0 : index
    %133 = vector.load %arg5[%c1_62, %c0_63, %c0_64] : memref<3x96x32xbf16, #tpu.memory_space<vmem>>, vector<1x96x32xbf16>
    %134 = vector.shape_cast %133 : vector<1x96x32xbf16> to vector<96x32xbf16>
    %cst_65 = arith.constant dense<0.000000e+00> : vector<328x32xf32>
    %135 = tpu.matmul %125, %134, %cst_65 {dimension_numbers = #tpu.dot_dimension_numbers<[1], [0], [0], [1], [0, 0, 1, 1], [], []>} : vector<328x96xbf16>, vector<96x32xbf16>, vector<328x32xf32> -> vector<328x32xf32>
    %136 = arith.addf %132, %135 : vector<328x32xf32>
    %c2_66 = arith.constant 2 : index
    %c0_67 = arith.constant 0 : index
    %c0_68 = arith.constant 0 : index
    %137 = vector.load %arg5[%c2_66, %c0_67, %c0_68] : memref<3x96x32xbf16, #tpu.memory_space<vmem>>, vector<1x96x32xbf16>
    %138 = vector.shape_cast %137 : vector<1x96x32xbf16> to vector<96x32xbf16>
    %cst_69 = arith.constant dense<0.000000e+00> : vector<328x32xf32>
    %139 = tpu.matmul %125, %138, %cst_69 {dimension_numbers = #tpu.dot_dimension_numbers<[1], [0], [0], [1], [0, 0, 1, 1], [], []>} : vector<328x96xbf16>, vector<96x32xbf16>, vector<328x32xf32> -> vector<328x32xf32>
    %c310_i32_70 = arith.constant 310 : i32
    %140 = tpu.dynamic_rotate %139 by %c310_i32_70 dim 0 : vector<328x32xf32>, i32 -> vector<328x32xf32>
    %141 = arith.addf %136, %140 : vector<328x32xf32>
    %cst_71 = arith.constant 0.000000e+00 : f32
    %142 = vector.broadcast %cst_71 : f32 to vector<328x32xf32>
    %143 = arith.cmpf oge, %141, %142 : vector<328x32xf32>
    %cst_72 = arith.constant 0.00999999977 : f32
    %144 = vector.broadcast %cst_72 : f32 to vector<328x32xf32>
    %145 = arith.mulf %144, %141 : vector<328x32xf32>
    %146 = arith.select %143, %141, %145 : vector<328x32xi1>, vector<328x32xf32>
    %cst_73 = arith.constant 0.000000e+00 : f32
    %147 = vector.shape_cast %12 : vector<328x1xi1> to vector<328x1xi1>
    %148 = vector.broadcast %147 : vector<328x1xi1> to vector<328x32xi1>
    %149 = vector.broadcast %cst_73 : f32 to vector<328x32xf32>
    %150 = arith.select %148, %146, %149 : vector<328x32xi1>, vector<328x32xf32>
    %cst_74 = arith.constant dense<0.000000e+00> : vector<32xf32>
    %151 = vector.multi_reduction <add>, %150, %cst_74 [0] : vector<328x32xf32> to vector<32xf32>
    %152 = vector.shape_cast %151 : vector<32xf32> to vector<1x32xf32>
    %153 = arith.mulf %150, %150 : vector<328x32xf32>
    %cst_75 = arith.constant dense<0.000000e+00> : vector<32xf32>
    %154 = vector.multi_reduction <add>, %153, %cst_75 [0] : vector<328x32xf32> to vector<32xf32>
    %155 = vector.shape_cast %154 : vector<32xf32> to vector<1x32xf32>
    %cst_76 = arith.constant 3.906250e-03 : f32
    %156 = vector.broadcast %cst_76 : f32 to vector<1x32xf32>
    %157 = arith.mulf %152, %156 : vector<1x32xf32>
    %158 = arith.mulf %157, %152 : vector<1x32xf32>
    %159 = arith.subf %155, %158 : vector<1x32xf32>
    %cst_77 = arith.constant 0.000000e+00 : f32
    %160 = vector.broadcast %cst_77 : f32 to vector<1x32xf32>
    %161 = arith.maximumf %159, %160 : vector<1x32xf32>
    %cst_78 = arith.constant 0.00392156886 : f32
    %162 = vector.broadcast %cst_78 : f32 to vector<1x32xf32>
    %163 = arith.mulf %161, %162 : vector<1x32xf32>
    %164 = math.sqrt %163 : vector<1x32xf32>
    %cst_79 = arith.constant 1.000000e-07 : f32
    %165 = vector.broadcast %cst_79 : f32 to vector<1x32xf32>
    %166 = arith.addf %164, %165 : vector<1x32xf32>
    %167 = tpu.reciprocal %166 {approx = true} : vector<1x32xf32> -> vector<1x32xf32>
    %168 = vector.broadcast %157 : vector<1x32xf32> to vector<328x32xf32>
    %169 = arith.subf %150, %168 : vector<328x32xf32>
    %170 = vector.broadcast %167 : vector<1x32xf32> to vector<328x32xf32>
    %171 = arith.mulf %169, %170 : vector<328x32xf32>
    %cst_80 = arith.constant 0.000000e+00 : f32
    %172 = vector.shape_cast %12 : vector<328x1xi1> to vector<328x1xi1>
    %173 = vector.broadcast %172 : vector<328x1xi1> to vector<328x32xi1>
    %174 = vector.broadcast %cst_80 : f32 to vector<328x32xf32>
    %175 = arith.select %173, %171, %174 : vector<328x32xi1>, vector<328x32xf32>
    %c1_i32_81 = arith.constant 1 : i32
    %176 = tpu.dynamic_rotate %175 by %c1_i32_81 dim 0 : vector<328x32xf32>, i32 -> vector<328x32xf32>
    %c327_i32_82 = arith.constant 327 : i32
    %177 = tpu.dynamic_rotate %175 by %c327_i32_82 dim 0 : vector<328x32xf32>, i32 -> vector<328x32xf32>
    %178 = tpu.concatenate %176, %175, %177 in 1 : vector<328x32xf32>, vector<328x32xf32>, vector<328x32xf32> -> vector<328x96xf32>
    %179 = arith.truncf %178 : vector<328x96xf32> to vector<328x96xbf16>
    %c0_83 = arith.constant 0 : index
    %c0_84 = arith.constant 0 : index
    %180 = vector.load %arg8[%c0_83, %c0_84] : memref<1x6xf32, #tpu.memory_space<vmem>>, vector<1x6xf32>
    %c0_85 = arith.constant 0 : index
    %c0_86 = arith.constant 0 : index
    %c0_87 = arith.constant 0 : index
    %181 = vector.load %arg7[%c0_85, %c0_86, %c0_87] : memref<3x96x6xbf16, #tpu.memory_space<vmem>>, vector<1x96x6xbf16>
    %182 = vector.shape_cast %181 : vector<1x96x6xbf16> to vector<96x6xbf16>
    %cst_88 = arith.constant dense<0.000000e+00> : vector<328x6xf32>
    %183 = tpu.matmul %179, %182, %cst_88 {dimension_numbers = #tpu.dot_dimension_numbers<[1], [0], [0], [1], [0, 0, 1, 1], [], []>} : vector<328x96xbf16>, vector<96x6xbf16>, vector<328x6xf32> -> vector<328x6xf32>
    %c18_i32_89 = arith.constant 18 : i32
    %184 = tpu.dynamic_rotate %183 by %c18_i32_89 dim 0 : vector<328x6xf32>, i32 -> vector<328x6xf32>
    %185 = vector.broadcast %180 : vector<1x6xf32> to vector<328x6xf32>
    %186 = arith.addf %185, %184 : vector<328x6xf32>
    %c1_90 = arith.constant 1 : index
    %c0_91 = arith.constant 0 : index
    %c0_92 = arith.constant 0 : index
    %187 = vector.load %arg7[%c1_90, %c0_91, %c0_92] : memref<3x96x6xbf16, #tpu.memory_space<vmem>>, vector<1x96x6xbf16>
    %188 = vector.shape_cast %187 : vector<1x96x6xbf16> to vector<96x6xbf16>
    %cst_93 = arith.constant dense<0.000000e+00> : vector<328x6xf32>
    %189 = tpu.matmul %179, %188, %cst_93 {dimension_numbers = #tpu.dot_dimension_numbers<[1], [0], [0], [1], [0, 0, 1, 1], [], []>} : vector<328x96xbf16>, vector<96x6xbf16>, vector<328x6xf32> -> vector<328x6xf32>
    %190 = arith.addf %186, %189 : vector<328x6xf32>
    %c2_94 = arith.constant 2 : index
    %c0_95 = arith.constant 0 : index
    %c0_96 = arith.constant 0 : index
    %191 = vector.load %arg7[%c2_94, %c0_95, %c0_96] : memref<3x96x6xbf16, #tpu.memory_space<vmem>>, vector<1x96x6xbf16>
    %192 = vector.shape_cast %191 : vector<1x96x6xbf16> to vector<96x6xbf16>
    %cst_97 = arith.constant dense<0.000000e+00> : vector<328x6xf32>
    %193 = tpu.matmul %179, %192, %cst_97 {dimension_numbers = #tpu.dot_dimension_numbers<[1], [0], [0], [1], [0, 0, 1, 1], [], []>} : vector<328x96xbf16>, vector<96x6xbf16>, vector<328x6xf32> -> vector<328x6xf32>
    %c310_i32_98 = arith.constant 310 : i32
    %194 = tpu.dynamic_rotate %193 by %c310_i32_98 dim 0 : vector<328x6xf32>, i32 -> vector<328x6xf32>
    %195 = arith.addf %190, %194 : vector<328x6xf32>
    %c0_99 = arith.constant 0 : index
    %c0_100 = arith.constant 0 : index
    %196 = vector.load %arg9[%c0_99, %c0_100] : memref<328x6xf32, #tpu.memory_space<vmem>>, vector<328x6xf32>
    tpu.vector_store %arg9[%c0_99, %c0_100], %195 {strides = array<i32>} : memref<328x6xf32, #tpu.memory_space<vmem>>, vector<328x6xf32>,
    return
  }
}

</mosaic_0001>

<llo_original>
// kernel: basic_decoder_forward.1
$region0: #{basic_decoder_forward.1}
  #allocation0 [shape = 'u32[]', space=smem, size = 0x4, offset = 0x4, fixed_abs, tag = 'smem constant byte address 0x4 - core index']
  #allocation1 [shape = 'u32[72,128]{1,0:T(1,128)}', space=vmem, size = 0x9000, scoped, tag = 'internal scratch']
  %s0 = inlined_call_operand.vmem [shape: f32[328,3], index: 0, kind: input, shape index: {}]
  %s1 = inlined_call_operand.vmem [shape: bf16[3,9,32], index: 1, kind: input, shape index: {}]
  %s2 = inlined_call_operand.vmem [shape: f32[1,32], index: 2, kind: input, shape index: {}]
  %s3 = inlined_call_operand.vmem [shape: bf16[3,96,32], index: 3, kind: input, shape index: {}]
  %s4 = inlined_call_operand.vmem [shape: f32[1,32], index: 4, kind: input, shape index: {}]
  %s5 = inlined_call_operand.vmem [shape: bf16[3,96,32], index: 5, kind: input, shape index: {}]
  %s6 = inlined_call_operand.vmem [shape: f32[1,32], index: 6, kind: input, shape index: {}]
  %s7 = inlined_call_operand.vmem [shape: bf16[3,96,6], index: 7, kind: input, shape index: {}]
  %s8 = inlined_call_operand.vmem [shape: f32[1,6], index: 8, kind: input, shape index: {}]
  %s9 = inlined_call_operand.vmem [shape: f32[328,6], index: 9, kind: output, shape index: {}]
  %s10 = sld [smem:[#allocation0]]
  $region46: #{basic_decoder_forward.1} parent=0
    _
  %s12 = ssub.s32 1, %s10
  %s13 = scalar_select 0, %s12, %s10
  // Predicated region
  $region2: #{basic_decoder_forward.1} parent=0 // pred_check
    _
  $region3: #{basic_decoder_forward.1} parent=0 // pred_check_branch
    %15 = sbr.rel (0) target = $region5
  $region4: #{basic_decoder_forward.1} parent=0 // pred_region
    _
  $region5: #{basic_decoder_forward.1} parent=0 // pred_fallthru
    _
  // Predicated region
  $region6: #{basic_decoder_forward.1} parent=0 // pred_check
    _
  $region7: #{basic_decoder_forward.1} parent=0 // pred_check_branch
    %17 = sbr.rel (0) target = $region9
  $region8: #{basic_decoder_forward.1} parent=0 // pred_region
    _
  $region9: #{basic_decoder_forward.1} parent=0 // pred_fallthru
    _
  // Predicated region
  $region10: #{basic_decoder_forward.1} parent=0 // pred_check
    _
  $region11: #{basic_decoder_forward.1} parent=0 // pred_check_branch
    %19 = sbr.rel (0) target = $region13
  $region12: #{basic_decoder_forward.1} parent=0 // pred_region
    _
  $region13: #{basic_decoder_forward.1} parent=0 // pred_fallthru
    _
  // Predicated region
  $region14: #{basic_decoder_forward.1} parent=0 // pred_check
    _
  $region15: #{basic_decoder_forward.1} parent=0 // pred_check_branch
    %21 = sbr.rel (0) target = $region17
  $region16: #{basic_decoder_forward.1} parent=0 // pred_region
    _
  $region17: #{basic_decoder_forward.1} parent=0 // pred_fallthru
    _
  // Predicated region
  $region18: #{basic_decoder_forward.1} parent=0 // pred_check
    _
  $region19: #{basic_decoder_forward.1} parent=0 // pred_check_branch
    %23 = sbr.rel (0) target = $region21
  $region20: #{basic_decoder_forward.1} parent=0 // pred_region
    _
  $region21: #{basic_decoder_forward.1} parent=0 // pred_fallthru
    _
  // Predicated region
  $region22: #{basic_decoder_forward.1} parent=0 // pred_check
    _
  $region23: #{basic_decoder_forward.1} parent=0 // pred_check_branch
    %25 = sbr.rel (0) target = $region25
  $region24: #{basic_decoder_forward.1} parent=0 // pred_region
    _
  $region25: #{basic_decoder_forward.1} parent=0 // pred_fallthru
    _
  // Predicated region
  $region26: #{basic_decoder_forward.1} parent=0 // pred_check
    _
  $region27: #{basic_decoder_forward.1} parent=0 // pred_check_branch
    %27 = sbr.rel (0) target = $region29
  $region28: #{basic_decoder_forward.1} parent=0 // pred_region
    _
  $region29: #{basic_decoder_forward.1} parent=0 // pred_fallthru
    _
  // Predicated region
  $region30: #{basic_decoder_forward.1} parent=0 // pred_check
    _
  $region31: #{basic_decoder_forward.1} parent=0 // pred_check_branch
    %29 = sbr.rel (0) target = $region33
  $region32: #{basic_decoder_forward.1} parent=0 // pred_region
    _
  $region33: #{basic_decoder_forward.1} parent=0 // pred_fallthru
    _
  // Predicated region
  $region34: #{basic_decoder_forward.1} parent=0 // pred_check
    _
  $region35: #{basic_decoder_forward.1} parent=0 // pred_check_branch
    %31 = sbr.rel (0) target = $region37
  $region36: #{basic_decoder_forward.1} parent=0 // pred_region
    _
  $region37: #{basic_decoder_forward.1} parent=0 // pred_fallthru
    _
  %v33 = vlaneseq
  %v34 = vshrl.u32 %v33, 7
  %v35 = vadd.s32 %v34, 8
  %v36 = vadd.s32 %v34, 16
  %v37 = vadd.s32 %v34, 24
  %v38 = vadd.s32 %v34, 32
  %v39 = vadd.s32 %v34, 40
  %v40 = vadd.s32 %v34, 48
  %v41 = vadd.s32 %v34, 56
  %v42 = vadd.s32 %v34, 64
  %v43 = vadd.s32 %v34, 72
  %v44 = vadd.s32 %v34, 80
  %v45 = vadd.s32 %v34, 88
  %v46 = vadd.s32 %v34, 96
  %v47 = vadd.s32 %v34, 104
  %v48 = vadd.s32 %v34, 112
  %v49 = vadd.s32 %v34, 120
  %v50 = vadd.s32 %v34, 128
  %v51 = vadd.s32 %v34, 136
  %v52 = vadd.s32 %v34, 144
  %v53 = vadd.s32 %v34, 152
  %v54 = vadd.s32 %v34, 160
  %v55 = vadd.s32 %v34, 168
  %v56 = vadd.s32 %v34, 176
  %v57 = vadd.s32 %v34, 184
  %v58 = vadd.s32 %v34, 192
  %v59 = vadd.s32 %v34, 200
  %v60 = vadd.s32 %v34, 208
  %v61 = vadd.s32 %v34, 216
  %v62 = vadd.s32 %v34, 224
  %v63 = vadd.s32 %v34, 232
  %v64 = vadd.s32 %v34, 240
  %v65 = vadd.s32 %v34, 248
  %v66 = vadd.s32 %v34, 256
  %v67 = vadd.s32 %v34, 264
  %v68 = vadd.s32 %v34, 272
  %v69 = vadd.s32 %v34, 280
  %v70 = vadd.s32 %v34, 288
  %v71 = vadd.s32 %v34, 296
  %v72 = vadd.s32 %v34, 304
  %v73 = vadd.s32 %v34, 312
  %v74 = vadd.s32 %v34, 320
  %v75 = vmul.u32 %v34, 3641
  %v76 = vmul.u32 %v35, 3641
  %v77 = vmul.u32 %v36, 3641
  %v78 = vmul.u32 %v37, 3641
  %v79 = vmul.u32 %v38, 3641
  %v80 = vmul.u32 %v39, 3641
  %v81 = vmul.u32 %v40, 3641
  %v82 = vmul.u32 %v41, 3641
  %v83 = vmul.u32 %v42, 3641
  %v84 = vmul.u32 %v43, 3641
  %v85 = vmul.u32 %v44, 3641
  %v86 = vmul.u32 %v45, 3641
  %v87 = vmul.u32 %v46, 3641
  %v88 = vmul.u32 %v47, 3641
  %v89 = vmul.u32 %v48, 3641
  %v90 = vmul.u32 %v49, 3641
  %v91 = vmul.u32 %v50, 3641
  %v92 = vmul.u32 %v51, 3641
  %v93 = vmul.u32 %v52, 3641
  %v94 = vmul.u32 %v53, 3641
  %v95 = vmul.u32 %v54, 3641
  %v96 = vmul.u32 %v55, 3641
  %v97 = vmul.u32 %v56, 3641
  %v98 = vmul.u32 %v57, 3641
  %v99 = vmul.u32 %v58, 3641
  %v100 = vmul.u32 %v59, 3641
  %v101 = vmul.u32 %v60, 3641
  %v102 = vmul.u32 %v61, 3641
  %v103 = vmul.u32 %v62, 3641
  %v104 = vmul.u32 %v63, 3641
  %v105 = vmul.u32 %v64, 3641
  %v106 = vmul.u32 %v65, 3641
  %v107 = vmul.u32 %v66, 3641
  %v108 = vmul.u32 %v67, 3641
  %v109 = vmul.u32 %v68, 3641
  %v110 = vmul.u32 %v69, 3641
  %v111 = vmul.u32 %v70, 3641
  %v112 = vmul.u32 %v71, 3641
  %v113 = vmul.u32 %v72, 3641
  %v114 = vmul.u32 %v73, 3641
  %v115 = vmul.u32 %v74, 3641
  %v116 = vshra.s32 %v75, 16
  %v117 = vshra.s32 %v76, 16
  %v118 = vshra.s32 %v77, 16
  %v119 = vshra.s32 %v78, 16
  %v120 = vshra.s32 %v79, 16
  %v121 = vshra.s32 %v80, 16
  %v122 = vshra.s32 %v81, 16
  %v123 = vshra.s32 %v82, 16
  %v124 = vshra.s32 %v83, 16
  %v125 = vshra.s32 %v84, 16
  %v126 = vshra.s32 %v85, 16
  %v127 = vshra.s32 %v86, 16
  %v128 = vshra.s32 %v87, 16
  %v129 = vshra.s32 %v88, 16
  %v130 = vshra.s32 %v89, 16
  %v131 = vshra.s32 %v90, 16
  %v132 = vshra.s32 %v91, 16
  %v133 = vshra.s32 %v92, 16
  %v134 = vshra.s32 %v93, 16
  %v135 = vshra.s32 %v94, 16
  %v136 = vshra.s32 %v95, 16
  %v137 = vshra.s32 %v96, 16
  %v138 = vshra.s32 %v97, 16
  %v139 = vshra.s32 %v98, 16
  %v140 = vshra.s32 %v99, 16
  %v141 = vshra.s32 %v100, 16
  %v142 = vshra.s32 %v101, 16
  %v143 = vshra.s32 %v102, 16
  %v144 = vshra.s32 %v103, 16
  %v145 = vshra.s32 %v104, 16
  %v146 = vshra.s32 %v105, 16
  %v147 = vshra.s32 %v106, 16
  %v148 = vshra.s32 %v107, 16
  %v149 = vshra.s32 %v108, 16
  %v150 = vshra.s32 %v109, 16
  %v151 = vshra.s32 %v110, 16
  %v152 = vshra.s32 %v111, 16
  %v153 = vshra.s32 %v112, 16
  %v154 = vshra.s32 %v113, 16
  %v155 = vshra.s32 %v114, 16
  %v156 = vshra.s32 %v115, 16
  %v157 = vmul.u32 %v116, 18
  %v158 = vmul.u32 %v117, 18
  %v159 = vmul.u32 %v118, 18
  %v160 = vmul.u32 %v119, 18
  %v161 = vmul.u32 %v120, 18
  %v162 = vmul.u32 %v121, 18
  %v163 = vmul.u32 %v122, 18
  %v164 = vmul.u32 %v123, 18
  %v165 = vmul.u32 %v124, 18
  %v166 = vmul.u32 %v125, 18
  %v167 = vmul.u32 %v126, 18
  %v168 = vmul.u32 %v127, 18
  %v169 = vmul.u32 %v128, 18
  %v170 = vmul.u32 %v129, 18
  %v171 = vmul.u32 %v130, 18
  %v172 = vmul.u32 %v131, 18
  %v173 = vmul.u32 %v132, 18
  %v174 = vmul.u32 %v133, 18
  %v175 = vmul.u32 %v134, 18
  %v176 = vmul.u32 %v135, 18
  %v177 = vmul.u32 %v136, 18
  %v178 = vmul.u32 %v137, 18
  %v179 = vmul.u32 %v138, 18
  %v180 = vmul.u32 %v139, 18
  %v181 = vmul.u32 %v140, 18
  %v182 = vmul.u32 %v141, 18
  %v183 = vmul.u32 %v142, 18
  %v184 = vmul.u32 %v143, 18
  %v185 = vmul.u32 %v144, 18
  %v186 = vmul.u32 %v145, 18
  %v187 = vmul.u32 %v146, 18
  %v188 = vmul.u32 %v147, 18
  %v189 = vmul.u32 %v148, 18
  %v190 = vmul.u32 %v149, 18
  %v191 = vmul.u32 %v150, 18
  %v192 = vmul.u32 %v151, 18
  %v193 = vmul.u32 %v152, 18
  %v194 = vmul.u32 %v153, 18
  %v195 = vmul.u32 %v154, 18
  %v196 = vmul.u32 %v155, 18
  %v197 = vmul.u32 %v156, 18
  %v198 = vsub.s32 %v34, %v157
  %v199 = vsub.s32 %v35, %v158
  %v200 = vsub.s32 %v36, %v159
  %v201 = vsub.s32 %v37, %v160
  %v202 = vsub.s32 %v38, %v161
  %v203 = vsub.s32 %v39, %v162
  %v204 = vsub.s32 %v40, %v163
  %v205 = vsub.s32 %v41, %v164
  %v206 = vsub.s32 %v42, %v165
  %v207 = vsub.s32 %v43, %v166
  %v208 = vsub.s32 %v44, %v167
  %v209 = vsub.s32 %v45, %v168
  %v210 = vsub.s32 %v46, %v169
  %v211 = vsub.s32 %v47, %v170
  %v212 = vsub.s32 %v48, %v171
  %v213 = vsub.s32 %v49, %v172
  %v214 = vsub.s32 %v50, %v173
  %v215 = vsub.s32 %v51, %v174
  %v216 = vsub.s32 %v52, %v175
  %v217 = vsub.s32 %v53, %v176
  %v218 = vsub.s32 %v54, %v177
  %v219 = vsub.s32 %v55, %v178
  %v220 = vsub.s32 %v56, %v179
  %v221 = vsub.s32 %v57, %v180
  %v222 = vsub.s32 %v58, %v181
  %v223 = vsub.s32 %v59, %v182
  %v224 = vsub.s32 %v60, %v183
  %v225 = vsub.s32 %v61, %v184
  %v226 = vsub.s32 %v62, %v185
  %v227 = vsub.s32 %v63, %v186
  %v228 = vsub.s32 %v64, %v187
  %v229 = vsub.s32 %v65, %v188
  %v230 = vsub.s32 %v66, %v189
  %v231 = vsub.s32 %v67, %v190
  %v232 = vsub.s32 %v68, %v191
  %v233 = vsub.s32 %v69, %v192
  %v234 = vsub.s32 %v70, %v193
  %v235 = vsub.s32 %v71, %v194
  %v236 = vsub.s32 %v72, %v195
  %v237 = vsub.s32 %v73, %v196
  %v238 = vsub.s32 %v74, %v197
  %vm239 = vcmp.lt.s32.totalorder %v198, 16
  %vm240 = vcmp.lt.s32.totalorder %v199, 16
  %vm241 = vcmp.lt.s32.totalorder %v200, 16
  %vm242 = vcmp.lt.s32.totalorder %v201, 16
  %vm243 = vcmp.lt.s32.totalorder %v202, 16
  %vm244 = vcmp.lt.s32.totalorder %v203, 16
  %vm245 = vcmp.lt.s32.totalorder %v204, 16
  %vm246 = vcmp.lt.s32.totalorder %v205, 16
  %vm247 = vcmp.lt.s32.totalorder %v206, 16
  %vm248 = vcmp.lt.s32.totalorder %v207, 16
  %vm249 = vcmp.lt.s32.totalorder %v208, 16
  %vm250 = vcmp.lt.s32.totalorder %v209, 16
  %vm251 = vcmp.lt.s32.totalorder %v210, 16
  %vm252 = vcmp.lt.s32.totalorder %v211, 16
  %vm253 = vcmp.lt.s32.totalorder %v212, 16
  %vm254 = vcmp.lt.s32.totalorder %v213, 16
  %vm255 = vcmp.lt.s32.totalorder %v214, 16
  %vm256 = vcmp.lt.s32.totalorder %v215, 16
  %vm257 = vcmp.lt.s32.totalorder %v216, 16
  %vm258 = vcmp.lt.s32.totalorder %v217, 16
  %vm259 = vcmp.lt.s32.totalorder %v218, 16
  %vm260 = vcmp.lt.s32.totalorder %v219, 16
  %vm261 = vcmp.lt.s32.totalorder %v220, 16
  %vm262 = vcmp.lt.s32.totalorder %v221, 16
  %vm263 = vcmp.lt.s32.totalorder %v222, 16
  %vm264 = vcmp.lt.s32.totalorder %v223, 16
  %vm265 = vcmp.lt.s32.totalorder %v224, 16
  %vm266 = vcmp.lt.s32.totalorder %v225, 16
  %vm267 = vcmp.lt.s32.totalorder %v226, 16
  %vm268 = vcmp.lt.s32.totalorder %v227, 16
  %vm269 = vcmp.lt.s32.totalorder %v228, 16
  %vm270 = vcmp.lt.s32.totalorder %v229, 16
  %vm271 = vcmp.lt.s32.totalorder %v230, 16
  %vm272 = vcmp.lt.s32.totalorder %v231, 16
  %vm273 = vcmp.lt.s32.totalorder %v232, 16
  %vm274 = vcmp.lt.s32.totalorder %v233, 16
  %vm275 = vcmp.lt.s32.totalorder %v234, 16
  %vm276 = vcmp.lt.s32.totalorder %v235, 16
  %vm277 = vcmp.lt.s32.totalorder %v236, 16
  %vm278 = vcmp.lt.s32.totalorder %v237, 16
  %vm279 = vcmp.lt.s32.totalorder %v238, 16
  %vm280 = vcmp.lt.s32.totalorder %v116, 16
  %vm281 = vcmp.lt.s32.totalorder %v117, 16
  %vm282 = vcmp.lt.s32.totalorder %v118, 16
  %vm283 = vcmp.lt.s32.totalorder %v119, 16
  %vm284 = vcmp.lt.s32.totalorder %v120, 16
  %vm285 = vcmp.lt.s32.totalorder %v121, 16
  %vm286 = vcmp.lt.s32.totalorder %v122, 16
  %vm287 = vcmp.lt.s32.totalorder %v123, 16
  %vm288 = vcmp.lt.s32.totalorder %v124, 16
  %vm289 = vcmp.lt.s32.totalorder %v125, 16
  %vm290 = vcmp.lt.s32.totalorder %v126, 16
  %vm291 = vcmp.lt.s32.totalorder %v127, 16
  %vm292 = vcmp.lt.s32.totalorder %v128, 16
  %vm293 = vcmp.lt.s32.totalorder %v129, 16
  %vm294 = vcmp.lt.s32.totalorder %v130, 16
  %vm295 = vcmp.lt.s32.totalorder %v131, 16
  %vm296 = vcmp.lt.s32.totalorder %v132, 16
  %vm297 = vcmp.lt.s32.totalorder %v133, 16
  %vm298 = vcmp.lt.s32.totalorder %v134, 16
  %vm299 = vcmp.lt.s32.totalorder %v135, 16
  %vm300 = vcmp.lt.s32.totalorder %v136, 16
  %vm301 = vcmp.lt.s32.totalorder %v137, 16
  %vm302 = vcmp.lt.s32.totalorder %v138, 16
  %vm303 = vcmp.lt.s32.totalorder %v139, 16
  %vm304 = vcmp.lt.s32.totalorder %v140, 16
  %vm305 = vcmp.lt.s32.totalorder %v141, 16
  %vm306 = vcmp.lt.s32.totalorder %v142, 16
  %vm307 = vcmp.lt.s32.totalorder %v143, 16
  %vm308 = vcmp.lt.s32.totalorder %v144, 16
  %vm309 = vcmp.lt.s32.totalorder %v145, 16
  %vm310 = vcmp.lt.s32.totalorder %v146, 16
  %vm311 = vcmp.lt.s32.totalorder %v147, 16
  %vm312 = vcmp.lt.s32.totalorder %v148, 16
  %vm313 = vcmp.lt.s32.totalorder %v149, 16
  %vm314 = vcmp.lt.s32.totalorder %v150, 16
  %vm315 = vcmp.lt.s32.totalorder %v151, 16
  %vm316 = vcmp.lt.s32.totalorder %v152, 16
  %vm317 = vcmp.lt.s32.totalorder %v153, 16
  %vm318 = vcmp.lt.s32.totalorder %v154, 16
  %vm319 = vcmp.lt.s32.totalorder %v155, 16
  %vm320 = vcmp.lt.s32.totalorder %v156, 16
  %vm321 = vmand %vm239, %vm280
  %vm322 = vmand %vm240, %vm281
  %vm323 = vmand %vm241, %vm282
  %vm324 = vmand %vm242, %vm283
  %vm325 = vmand %vm243, %vm284
  %vm326 = vmand %vm244, %vm285
  %vm327 = vmand %vm245, %vm286
  %vm328 = vmand %vm246, %vm287
  %vm329 = vmand %vm247, %vm288
  %vm330 = vmand %vm248, %vm289
  %vm331 = vmand %vm249, %vm290
  %vm332 = vmand %vm250, %vm291
  %vm333 = vmand %vm251, %vm292
  %vm334 = vmand %vm252, %vm293
  %vm335 = vmand %vm253, %vm294
  %vm336 = vmand %vm254, %vm295
  %vm337 = vmand %vm255, %vm296
  %vm338 = vmand %vm256, %vm297
  %vm339 = vmand %vm257, %vm298
  %vm340 = vmand %vm258, %vm299
  %vm341 = vmand %vm259, %vm300
  %vm342 = vmand %vm260, %vm301
  %vm343 = vmand %vm261, %vm302
  %vm344 = vmand %vm262, %vm303
  %vm345 = vmand %vm263, %vm304
  %vm346 = vmand %vm264, %vm305
  %vm347 = vmand %vm265, %vm306
  %vm348 = vmand %vm266, %vm307
  %vm349 = vmand %vm267, %vm308
  %vm350 = vmand %vm268, %vm309
  %vm351 = vmand %vm269, %vm310
  %vm352 = vmand %vm270, %vm311
  %vm353 = vmand %vm271, %vm312
  %vm354 = vmand %vm272, %vm313
  %vm355 = vmand %vm273, %vm314
  %vm356 = vmand %vm274, %vm315
  %vm357 = vmand %vm275, %vm316
  %vm358 = vmand %vm276, %vm317
  %vm359 = vmand %vm277, %vm318
  %vm360 = vmand %vm278, %vm319
  %vm361 = vmand %vm279, %vm320
  %v362 = vld [vmem:[%s0] sm:$0xff]
  %v363 = vld [vmem:[%s0 + $0x8] sm:$0xff]
  %v364 = vld [vmem:[%s0 + $0x10] sm:$0xff]
  %v365 = vld [vmem:[%s0 + $0x18] sm:$0xff]
  %v366 = vld [vmem:[%s0 + $0x20] sm:$0xff]
  %v367 = vld [vmem:[%s0 + $0x28] sm:$0xff]
  %v368 = vld [vmem:[%s0 + $0x30] sm:$0xff]
  %v369 = vld [vmem:[%s0 + $0x38] sm:$0xff]
  %v370 = vld [vmem:[%s0 + $0x40] sm:$0xff]
  %v371 = vld [vmem:[%s0 + $0x48] sm:$0xff]
  %v372 = vld [vmem:[%s0 + $0x50] sm:$0xff]
  %v373 = vld [vmem:[%s0 + $0x58] sm:$0xff]
  %v374 = vld [vmem:[%s0 + $0x60] sm:$0xff]
  %v375 = vld [vmem:[%s0 + $0x68] sm:$0xff]
  %v376 = vld [vmem:[%s0 + $0x70] sm:$0xff]
  %v377 = vld [vmem:[%s0 + $0x78] sm:$0xff]
  %v378 = vld [vmem:[%s0 + $0x80] sm:$0xff]
  %v379 = vld [vmem:[%s0 + $0x88] sm:$0xff]
  %v380 = vld [vmem:[%s0 + $0x90] sm:$0xff]
  %v381 = vld [vmem:[%s0 + $0x98] sm:$0xff]
  %v382 = vld [vmem:[%s0 + $0xa0] sm:$0xff]
  %v383 = vld [vmem:[%s0 + $0xa8] sm:$0xff]
  %v384 = vld [vmem:[%s0 + $0xb0] sm:$0xff]
  %v385 = vld [vmem:[%s0 + $0xb8] sm:$0xff]
  %v386 = vld [vmem:[%s0 + $0xc0] sm:$0xff]
  %v387 = vld [vmem:[%s0 + $0xc8] sm:$0xff]
  %v388 = vld [vmem:[%s0 + $0xd0] sm:$0xff]
  %v389 = vld [vmem:[%s0 + $0xd8] sm:$0xff]
  %v390 = vld [vmem:[%s0 + $0xe0] sm:$0xff]
  %v391 = vld [vmem:[%s0 + $0xe8] sm:$0xff]
  %v392 = vld [vmem:[%s0 + $0xf0] sm:$0xff]
  %v393 = vld [vmem:[%s0 + $0xf8] sm:$0xff]
  %v394 = vld [vmem:[%s0 + $0x100] sm:$0xff]
  %v395 = vld [vmem:[%s0 + $0x108] sm:$0xff]
  %v396 = vld [vmem:[%s0 + $0x110] sm:$0xff]
  %v397 = vld [vmem:[%s0 + $0x118] sm:$0xff]
  %v398 = vld [vmem:[%s0 + $0x120] sm:$0xff]
  %v399 = vld [vmem:[%s0 + $0x128] sm:$0xff]
  %v400 = vld [vmem:[%s0 + $0x130] sm:$0xff]
  %v401 = vld [vmem:[%s0 + $0x138] sm:$0xff]
  %v402 = vld [vmem:[%s0 + $0x140] sm:$0xff]
  %v403 = vrot.slane %v362, 7
  %v404 = vrot.slane %v363, 7
  %v405 = vrot.slane %v364, 7
  %v406 = vrot.slane %v365, 7
  %v407 = vrot.slane %v366, 7
  %v408 = vrot.slane %v367, 7
  %v409 = vrot.slane %v368, 7
  %v410 = vrot.slane %v369, 7
  %v411 = vrot.slane %v370, 7
  %v412 = vrot.slane %v371, 7
  %v413 = vrot.slane %v372, 7
  %v414 = vrot.slane %v373, 7
  %v415 = vrot.slane %v374, 7
  %v416 = vrot.slane %v375, 7
  %v417 = vrot.slane %v376, 7
  %v418 = vrot.slane %v377, 7
  %v419 = vrot.slane %v378, 7
  %v420 = vrot.slane %v379, 7
  %v421 = vrot.slane %v380, 7
  %v422 = vrot.slane %v381, 7
  %v423 = vrot.slane %v382, 7
  %v424 = vrot.slane %v383, 7
  %v425 = vrot.slane %v384, 7
  %v426 = vrot.slane %v385, 7
  %v427 = vrot.slane %v386, 7
  %v428 = vrot.slane %v387, 7
  %v429 = vrot.slane %v388, 7
  %v430 = vrot.slane %v389, 7
  %v431 = vrot.slane %v390, 7
  %v432 = vrot.slane %v391, 7
  %v433 = vrot.slane %v392, 7
  %v434 = vrot.slane %v393, 7
  %v435 = vrot.slane %v394, 7
  %v436 = vrot.slane %v395, 7
  %v437 = vrot.slane %v396, 7
  %v438 = vrot.slane %v397, 7
  %v439 = vrot.slane %v398, 7
  %v440 = vrot.slane %v399, 7
  %v441 = vrot.slane %v400, 7
  %v442 = vrot.slane %v401, 7
  %v443 = vrot.slane %v402, 7
  %vm444 = vcmp.lt.s32.totalorder %v34, 1
  %v445 = vsel %vm444, %v442, %v443
  %v446 = vsel %vm444, %v441, %v442
  %v447 = vsel %vm444, %v440, %v441
  %v448 = vsel %vm444, %v439, %v440
  %v449 = vsel %vm444, %v438, %v439
  %v450 = vsel %vm444, %v437, %v438
  %v451 = vsel %vm444, %v436, %v437
  %v452 = vsel %vm444, %v435, %v436
  %v453 = vsel %vm444, %v434, %v435
  %v454 = vsel %vm444, %v433, %v434
  %v455 = vsel %vm444, %v432, %v433
  %v456 = vsel %vm444, %v431, %v432
  %v457 = vsel %vm444, %v430, %v431
  %v458 = vsel %vm444, %v429, %v430
  %v459 = vsel %vm444, %v428, %v429
  %v460 = vsel %vm444, %v427, %v428
  %v461 = vsel %vm444, %v426, %v427
  %v462 = vsel %vm444, %v425, %v426
  %v463 = vsel %vm444, %v424, %v425
  %v464 = vsel %vm444, %v423, %v424
  %v465 = vsel %vm444, %v422, %v423
  %v466 = vsel %vm444, %v421, %v422
  %v467 = vsel %vm444, %v420, %v421
  %v468 = vsel %vm444, %v419, %v420
  %v469 = vsel %vm444, %v418, %v419
  %v470 = vsel %vm444, %v417, %v418
  %v471 = vsel %vm444, %v416, %v417
  %v472 = vsel %vm444, %v415, %v416
  %v473 = vsel %vm444, %v414, %v415
  %v474 = vsel %vm444, %v413, %v414
  %v475 = vsel %vm444, %v412, %v413
  %v476 = vsel %vm444, %v411, %v412
  %v477 = vsel %vm444, %v410, %v411
  %v478 = vsel %vm444, %v409, %v410
  %v479 = vsel %vm444, %v408, %v409
  %v480 = vsel %vm444, %v407, %v408
  %v481 = vsel %vm444, %v406, %v407
  %v482 = vsel %vm444, %v405, %v406
  %v483 = vsel %vm444, %v404, %v405
  %v484 = vsel %vm444, %v403, %v404
  %v485 = vsel %vm444, %v443, %v403
  %v486 = vrot.slane %v362, 1
  %v487 = vrot.slane %v363, 1
  %v488 = vrot.slane %v364, 1
  %v489 = vrot.slane %v365, 1
  %v490 = vrot.slane %v366, 1
  %v491 = vrot.slane %v367, 1
  %v492 = vrot.slane %v368, 1
  %v493 = vrot.slane %v369, 1
  %v494 = vrot.slane %v370, 1
  %v495 = vrot.slane %v371, 1
  %v496 = vrot.slane %v372, 1
  %v497 = vrot.slane %v373, 1
  %v498 = vrot.slane %v374, 1
  %v499 = vrot.slane %v375, 1
  %v500 = vrot.slane %v376, 1
  %v501 = vrot.slane %v377, 1
  %v502 = vrot.slane %v378, 1
  %v503 = vrot.slane %v379, 1
  %v504 = vrot.slane %v380, 1
  %v505 = vrot.slane %v381, 1
  %v506 = vrot.slane %v382, 1
  %v507 = vrot.slane %v383, 1
  %v508 = vrot.slane %v384, 1
  %v509 = vrot.slane %v385, 1
  %v510 = vrot.slane %v386, 1
  %v511 = vrot.slane %v387, 1
  %v512 = vrot.slane %v388, 1
  %v513 = vrot.slane %v389, 1
  %v514 = vrot.slane %v390, 1
  %v515 = vrot.slane %v391, 1
  %v516 = vrot.slane %v392, 1
  %v517 = vrot.slane %v393, 1
  %v518 = vrot.slane %v394, 1
  %v519 = vrot.slane %v395, 1
  %v520 = vrot.slane %v396, 1
  %v521 = vrot.slane %v397, 1
  %v522 = vrot.slane %v398, 1
  %v523 = vrot.slane %v399, 1
  %v524 = vrot.slane %v400, 1
  %v525 = vrot.slane %v401, 1
  %v526 = vrot.slane %v402, 1
  %vm527 = vcmp.lt.s32.totalorder %v34, 7
  %v528 = vsel %vm527, %v525, %v526
  %v529 = vsel %vm527, %v524, %v525
  %v530 = vsel %vm527, %v523, %v524
  %v531 = vsel %vm527, %v522, %v523
  %v532 = vsel %vm527, %v521, %v522
  %v533 = vsel %vm527, %v520, %v521
  %v534 = vsel %vm527, %v519, %v520
  %v535 = vsel %vm527, %v518, %v519
  %v536 = vsel %vm527, %v517, %v518
  %v537 = vsel %vm527, %v516, %v517
  %v538 = vsel %vm527, %v515, %v516
  %v539 = vsel %vm527, %v514, %v515
  %v540 = vsel %vm527, %v513, %v514
  %v541 = vsel %vm527, %v512, %v513
  %v542 = vsel %vm527, %v511, %v512
  %v543 = vsel %vm527, %v510, %v511
  %v544 = vsel %vm527, %v509, %v510
  %v545 = vsel %vm527, %v508, %v509
  %v546 = vsel %vm527, %v507, %v508
  %v547 = vsel %vm527, %v506, %v507
  %v548 = vsel %vm527, %v505, %v506
  %v549 = vsel %vm527, %v504, %v505
  %v550 = vsel %vm527, %v503, %v504
  %v551 = vsel %vm527, %v502, %v503
  %v552 = vsel %vm527, %v501, %v502
  %v553 = vsel %vm527, %v500, %v501
  %v554 = vsel %vm527, %v499, %v500
  %v555 = vsel %vm527, %v498, %v499
  %v556 = vsel %vm527, %v497, %v498
  %v557 = vsel %vm527, %v496, %v497
  %v558 = vsel %vm527, %v495, %v496
  %v559 = vsel %vm527, %v494, %v495
  %v560 = vsel %vm527, %v493, %v494
  %v561 = vsel %vm527, %v492, %v493
  %v562 = vsel %vm527, %v491, %v492
  %v563 = vsel %vm527, %v490, %v491
  %v564 = vsel %vm527, %v489, %v490
  %v565 = vsel %vm527, %v488, %v489
  %v566 = vsel %vm527, %v487, %v488
  %v567 = vsel %vm527, %v486, %v487
  %v568 = vsel %vm527, %v526, %v486
  %610 = vrot.lane.b32.xlu0 %v362, 3
  %v611 = vpop.permute.xlu0 %610
  %612 = vrot.lane.b32.xlu0 %v363, 3
  %v613 = vpop.permute.xlu0 %612
  %614 = vrot.lane.b32.xlu0 %v364, 3
  %v615 = vpop.permute.xlu0 %614
  %616 = vrot.lane.b32.xlu0 %v365, 3
  %v617 = vpop.permute.xlu0 %616
  %618 = vrot.lane.b32.xlu0 %v366, 3
  %v619 = vpop.permute.xlu0 %618
  %620 = vrot.lane.b32.xlu0 %v367, 3
  %v621 = vpop.permute.xlu0 %620
  %622 = vrot.lane.b32.xlu0 %v368, 3
  %v623 = vpop.permute.xlu0 %622
  %624 = vrot.lane.b32.xlu0 %v369, 3
  %v625 = vpop.permute.xlu0 %624
  %626 = vrot.lane.b32.xlu0 %v370, 3
  %v627 = vpop.permute.xlu0 %626
  %628 = vrot.lane.b32.xlu0 %v371, 3
  %v629 = vpop.permute.xlu0 %628
  %630 = vrot.lane.b32.xlu0 %v372, 3
  %v631 = vpop.permute.xlu0 %630
  %632 = vrot.lane.b32.xlu0 %v373, 3
  %v633 = vpop.permute.xlu0 %632
  %634 = vrot.lane.b32.xlu0 %v374, 3
  %v635 = vpop.permute.xlu0 %634
  %636 = vrot.lane.b32.xlu0 %v375, 3
  %v637 = vpop.permute.xlu0 %636
  %638 = vrot.lane.b32.xlu0 %v376, 3
  %v639 = vpop.permute.xlu0 %638
  %640 = vrot.lane.b32.xlu0 %v377, 3
  %v641 = vpop.permute.xlu0 %640
  %642 = vrot.lane.b32.xlu0 %v378, 3
  %v643 = vpop.permute.xlu0 %642
  %644 = vrot.lane.b32.xlu0 %v379, 3
  %v645 = vpop.permute.xlu0 %644
  %646 = vrot.lane.b32.xlu0 %v380, 3
  %v647 = vpop.permute.xlu0 %646
  %648 = vrot.lane.b32.xlu0 %v381, 3
  %v649 = vpop.permute.xlu0 %648
  %650 = vrot.lane.b32.xlu0 %v382, 3
  %v651 = vpop.permute.xlu0 %650
  %652 = vrot.lane.b32.xlu0 %v383, 3
  %v653 = vpop.permute.xlu0 %652
  %654 = vrot.lane.b32.xlu0 %v384, 3
  %v655 = vpop.permute.xlu0 %654
  %656 = vrot.lane.b32.xlu0 %v385, 3
  %v657 = vpop.permute.xlu0 %656
  %658 = vrot.lane.b32.xlu0 %v386, 3
  %v659 = vpop.permute.xlu0 %658
  %660 = vrot.lane.b32.xlu0 %v387, 3
  %v661 = vpop.permute.xlu0 %660
  %662 = vrot.lane.b32.xlu0 %v388, 3
  %v663 = vpop.permute.xlu0 %662
  %664 = vrot.lane.b32.xlu0 %v389, 3
  %v665 = vpop.permute.xlu0 %664
  %666 = vrot.lane.b32.xlu0 %v390, 3
  %v667 = vpop.permute.xlu0 %666
  %668 = vrot.lane.b32.xlu0 %v391, 3
  %v669 = vpop.permute.xlu0 %668
  %670 = vrot.lane.b32.xlu0 %v392, 3
  %v671 = vpop.permute.xlu0 %670
  %672 = vrot.lane.b32.xlu0 %v393, 3
  %v673 = vpop.permute.xlu0 %672
  %674 = vrot.lane.b32.xlu0 %v394, 3
  %v675 = vpop.permute.xlu0 %674
  %676 = vrot.lane.b32.xlu0 %v395, 3
  %v677 = vpop.permute.xlu0 %676
  %678 = vrot.lane.b32.xlu0 %v396, 3
  %v679 = vpop.permute.xlu0 %678
  %680 = vrot.lane.b32.xlu0 %v397, 3
  %v681 = vpop.permute.xlu0 %680
  %682 = vrot.lane.b32.xlu0 %v398, 3
  %v683 = vpop.permute.xlu0 %682
  %684 = vrot.lane.b32.xlu0 %v399, 3
  %v685 = vpop.permute.xlu0 %684
  %686 = vrot.lane.b32.xlu0 %v400, 3
  %v687 = vpop.permute.xlu0 %686
  %688 = vrot.lane.b32.xlu0 %v401, 3
  %v689 = vpop.permute.xlu0 %688
  %690 = vrot.lane.b32.xlu0 %v402, 3
  %v691 = vpop.permute.xlu0 %690
  %774 = vrot.lane.b32.xlu0 %v567, 6
  %v775 = vpop.permute.xlu0 %774
  %776 = vrot.lane.b32.xlu0 %v566, 6
  %v777 = vpop.permute.xlu0 %776
  %778 = vrot.lane.b32.xlu0 %v565, 6
  %v779 = vpop.permute.xlu0 %778
  %780 = vrot.lane.b32.xlu0 %v564, 6
  %v781 = vpop.permute.xlu0 %780
  %782 = vrot.lane.b32.xlu0 %v563, 6
  %v783 = vpop.permute.xlu0 %782
  %784 = vrot.lane.b32.xlu0 %v562, 6
  %v785 = vpop.permute.xlu0 %784
  %786 = vrot.lane.b32.xlu0 %v561, 6
  %v787 = vpop.permute.xlu0 %786
  %788 = vrot.lane.b32.xlu0 %v560, 6
  %v789 = vpop.permute.xlu0 %788
  %790 = vrot.lane.b32.xlu0 %v559, 6
  %v791 = vpop.permute.xlu0 %790
  %792 = vrot.lane.b32.xlu0 %v558, 6
  %v793 = vpop.permute.xlu0 %792
  %794 = vrot.lane.b32.xlu0 %v557, 6
  %v795 = vpop.permute.xlu0 %794
  %796 = vrot.lane.b32.xlu0 %v556, 6
  %v797 = vpop.permute.xlu0 %796
  %798 = vrot.lane.b32.xlu0 %v555, 6
  %v799 = vpop.permute.xlu0 %798
  %800 = vrot.lane.b32.xlu0 %v554, 6
  %v801 = vpop.permute.xlu0 %800
  %802 = vrot.lane.b32.xlu0 %v553, 6
  %v803 = vpop.permute.xlu0 %802
  %804 = vrot.lane.b32.xlu0 %v552, 6
  %v805 = vpop.permute.xlu0 %804
  %806 = vrot.lane.b32.xlu0 %v551, 6
  %v807 = vpop.permute.xlu0 %806
  %808 = vrot.lane.b32.xlu0 %v550, 6
  %v809 = vpop.permute.xlu0 %808
  %810 = vrot.lane.b32.xlu0 %v549, 6
  %v811 = vpop.permute.xlu0 %810
  %812 = vrot.lane.b32.xlu0 %v548, 6
  %v813 = vpop.permute.xlu0 %812
  %814 = vrot.lane.b32.xlu0 %v547, 6
  %v815 = vpop.permute.xlu0 %814
  %816 = vrot.lane.b32.xlu0 %v546, 6
  %v817 = vpop.permute.xlu0 %816
  %818 = vrot.lane.b32.xlu0 %v545, 6
  %v819 = vpop.permute.xlu0 %818
  %820 = vrot.lane.b32.xlu0 %v544, 6
  %v821 = vpop.permute.xlu0 %820
  %822 = vrot.lane.b32.xlu0 %v543, 6
  %v823 = vpop.permute.xlu0 %822
  %824 = vrot.lane.b32.xlu0 %v542, 6
  %v825 = vpop.permute.xlu0 %824
  %826 = vrot.lane.b32.xlu0 %v541, 6
  %v827 = vpop.permute.xlu0 %826
  %828 = vrot.lane.b32.xlu0 %v540, 6
  %v829 = vpop.permute.xlu0 %828
  %830 = vrot.lane.b32.xlu0 %v539, 6
  %v831 = vpop.permute.xlu0 %830
  %832 = vrot.lane.b32.xlu0 %v538, 6
  %v833 = vpop.permute.xlu0 %832
  %834 = vrot.lane.b32.xlu0 %v537, 6
  %v835 = vpop.permute.xlu0 %834
  %836 = vrot.lane.b32.xlu0 %v536, 6
  %v837 = vpop.permute.xlu0 %836
  %838 = vrot.lane.b32.xlu0 %v535, 6
  %v839 = vpop.permute.xlu0 %838
  %840 = vrot.lane.b32.xlu0 %v534, 6
  %v841 = vpop.permute.xlu0 %840
  %842 = vrot.lane.b32.xlu0 %v533, 6
  %v843 = vpop.permute.xlu0 %842
  %844 = vrot.lane.b32.xlu0 %v532, 6
  %v845 = vpop.permute.xlu0 %844
  %846 = vrot.lane.b32.xlu0 %v531, 6
  %v847 = vpop.permute.xlu0 %846
  %848 = vrot.lane.b32.xlu0 %v530, 6
  %v849 = vpop.permute.xlu0 %848
  %850 = vrot.lane.b32.xlu0 %v529, 6
  %v851 = vpop.permute.xlu0 %850
  %852 = vrot.lane.b32.xlu0 %v528, 6
  %v853 = vpop.permute.xlu0 %852
  %854 = vrot.lane.b32.xlu0 %v568, 6
  %v855 = vpop.permute.xlu0 %854
  %vm897 = vcmask 23552
  %v898 = vsel %vm897, %v485, %v611
  %v899 = vsel %vm897, %v484, %v613
  %v900 = vsel %vm897, %v483, %v615
  %v901 = vsel %vm897, %v482, %v617
  %v902 = vsel %vm897, %v481, %v619
  %v903 = vsel %vm897, %v480, %v621
  %v904 = vsel %vm897, %v479, %v623
  %v905 = vsel %vm897, %v478, %v625
  %v906 = vsel %vm897, %v477, %v627
  %v907 = vsel %vm897, %v476, %v629
  %v908 = vsel %vm897, %v475, %v631
  %v909 = vsel %vm897, %v474, %v633
  %v910 = vsel %vm897, %v473, %v635
  %v911 = vsel %vm897, %v472, %v637
  %v912 = vsel %vm897, %v471, %v639
  %v913 = vsel %vm897, %v470, %v641
  %v914 = vsel %vm897, %v469, %v643
  %v915 = vsel %vm897, %v468, %v645
  %v916 = vsel %vm897, %v467, %v647
  %v917 = vsel %vm897, %v466, %v649
  %v918 = vsel %vm897, %v465, %v651
  %v919 = vsel %vm897, %v464, %v653
  %v920 = vsel %vm897, %v463, %v655
  %v921 = vsel %vm897, %v462, %v657
  %v922 = vsel %vm897, %v461, %v659
  %v923 = vsel %vm897, %v460, %v661
  %v924 = vsel %vm897, %v459, %v663
  %v925 = vsel %vm897, %v458, %v665
  %v926 = vsel %vm897, %v457, %v667
  %v927 = vsel %vm897, %v456, %v669
  %v928 = vsel %vm897, %v455, %v671
  %v929 = vsel %vm897, %v454, %v673
  %v930 = vsel %vm897, %v453, %v675
  %v931 = vsel %vm897, %v452, %v677
  %v932 = vsel %vm897, %v451, %v679
  %v933 = vsel %vm897, %v450, %v681
  %v934 = vsel %vm897, %v449, %v683
  %v935 = vsel %vm897, %v448, %v685
  %v936 = vsel %vm897, %v447, %v687
  %v937 = vsel %vm897, %v446, %v689
  %v938 = vsel %vm897, %v445, %v691
  %vm939 = vcmask 48128
  %v940 = vsel %vm939, %v898, %v775
  %v941 = vsel %vm939, %v899, %v777
  %v942 = vsel %vm939, %v900, %v779
  %v943 = vsel %vm939, %v901, %v781
  %v944 = vsel %vm939, %v902, %v783
  %v945 = vsel %vm939, %v903, %v785
  %v946 = vsel %vm939, %v904, %v787
  %v947 = vsel %vm939, %v905, %v789
  %v948 = vsel %vm939, %v906, %v791
  %v949 = vsel %vm939, %v907, %v793
  %v950 = vsel %vm939, %v908, %v795
  %v951 = vsel %vm939, %v909, %v797
  %v952 = vsel %vm939, %v910, %v799
  %v953 = vsel %vm939, %v911, %v801
  %v954 = vsel %vm939, %v912, %v803
  %v955 = vsel %vm939, %v913, %v805
  %v956 = vsel %vm939, %v914, %v807
  %v957 = vsel %vm939, %v915, %v809
  %v958 = vsel %vm939, %v916, %v811
  %v959 = vsel %vm939, %v917, %v813
  %v960 = vsel %vm939, %v918, %v815
  %v961 = vsel %vm939, %v919, %v817
  %v962 = vsel %vm939, %v920, %v819
  %v963 = vsel %vm939, %v921, %v821
  %v964 = vsel %vm939, %v922, %v823
  %v965 = vsel %vm939, %v923, %v825
  %v966 = vsel %vm939, %v924, %v827
  %v967 = vsel %vm939, %v925, %v829
  %v968 = vsel %vm939, %v926, %v831
  %v969 = vsel %vm939, %v927, %v833
  %v970 = vsel %vm939, %v928, %v835
  %v971 = vsel %vm939, %v929, %v837
  %v972 = vsel %vm939, %v930, %v839
  %v973 = vsel %vm939, %v931, %v841
  %v974 = vsel %vm939, %v932, %v843
  %v975 = vsel %vm939, %v933, %v845
  %v976 = vsel %vm939, %v934, %v847
  %v977 = vsel %vm939, %v935, %v849
  %v978 = vsel %vm939, %v936, %v851
  %v979 = vsel %vm939, %v937, %v853
  %v980 = vsel %vm939, %v938, %v855
  %v981 = vpack.c.bf16 %v941, %v940
  %v982 = vpack.c.bf16 %v943, %v942
  %v983 = vpack.c.bf16 %v945, %v944
  %v984 = vpack.c.bf16 %v947, %v946
  %v985 = vpack.c.bf16 %v949, %v948
  %v986 = vpack.c.bf16 %v951, %v950
  %v987 = vpack.c.bf16 %v953, %v952
  %v988 = vpack.c.bf16 %v955, %v954
  %v989 = vpack.c.bf16 %v957, %v956
  %v990 = vpack.c.bf16 %v959, %v958
  %v991 = vpack.c.bf16 %v961, %v960
  %v992 = vpack.c.bf16 %v963, %v962
  %v993 = vpack.c.bf16 %v965, %v964
  %v994 = vpack.c.bf16 %v967, %v966
  %v995 = vpack.c.bf16 %v969, %v968
  %v996 = vpack.c.bf16 %v971, %v970
  %v997 = vpack.c.bf16 %v973, %v972
  %v998 = vpack.c.bf16 %v975, %v974
  %v999 = vpack.c.bf16 %v977, %v976
  %v1000 = vpack.c.bf16 %v979, %v978
  %v1001 = vpack.c.bf16 %v980, %v980
  %v1002 = vld [vmem:[%s2] sm:$0x1]
  %v1003 = vld [vmem:[%s1] sm:$0xf]
  %v1004 = vld [vmem:[%s1 + $0x4] sm:$0x1]
  %v1007 = vunpack.c.l.b16 %v1003
  %v1008 = vunpack.c.l.b16 %v1004
  %v1009 = vpack.c.b16 %v1008, %v1007
  %vm1010 = vcmask 72704
  %v1012 = vsel %vm1010, %v981, 0
  %v1015 = vsel %vm1010, %v982, 0
  %v1018 = vsel %vm1010, %v983, 0
  %v1021 = vsel %vm1010, %v984, 0
  %v1024 = vsel %vm1010, %v985, 0
  %v1027 = vsel %vm1010, %v986, 0
  %v1030 = vsel %vm1010, %v987, 0
  %v1033 = vsel %vm1010, %v988, 0
  %v1036 = vsel %vm1010, %v989, 0
  %v1039 = vsel %vm1010, %v990, 0
  %v1042 = vsel %vm1010, %v991, 0
  %v1045 = vsel %vm1010, %v992, 0
  %v1048 = vsel %vm1010, %v993, 0
  %v1051 = vsel %vm1010, %v994, 0
  %v1054 = vsel %vm1010, %v995, 0
  %v1057 = vsel %vm1010, %v996, 0
  %v1060 = vsel %vm1010, %v997, 0
  %v1063 = vsel %vm1010, %v998, 0
  %v1066 = vsel %vm1010, %v999, 0
  %v1069 = vsel %vm1010, %v1000, 0
  %v1072 = vsel %vm1010, %v1001, 0
  %vm1074 = vcmask 1043456
  %vm1075 = vcmask 1044480
  %v1076 = vsel %vm1074, 4294967295, 65535
  %v1077 = vsel %vm1075, %v1076, 0
  %v1079 = vand.u32 %v1009, %v1077
  %1081 = vmatpush.bf16.msra.mxu0 0
  %1082 = vmatpush.bf16.msra.mxu0 0
  %1083 = vmatpush.bf16.msra.mxu0 0
  %1084 = vmatpush.bf16.msra.mxu0 0
  %1085 = vmatpush.bf16.msra.mxu0 0
  %1086 = vmatpush.bf16.msra.mxu0 0
  %1087 = vmatpush.bf16.msra.mxu0 0
  %1088 = vmatpush.bf16.msra.mxu0 %v1079
  %1089 = vmatmul.bf16.gmra.mxu0 %v1012
  %v1090 = vpop.f32.mrf.mxu0
  %v1091 = vadd.f32 0.0, %v1090
  %v1092 = vpop.f32.mrf.mxu0
  %v1093 = vadd.f32 0.0, %v1092
  %1094 = vmatmul.bf16.gmra.mxu0 %v1015
  %v1095 = vpop.f32.mrf.mxu0
  %v1096 = vadd.f32 0.0, %v1095
  %v1097 = vpop.f32.mrf.mxu0
  %v1098 = vadd.f32 0.0, %v1097
  %1099 = vmatmul.bf16.gmra.mxu0 %v1018
  %v1100 = vpop.f32.mrf.mxu0
  %v1101 = vadd.f32 0.0, %v1100
  %v1102 = vpop.f32.mrf.mxu0
  %v1103 = vadd.f32 0.0, %v1102
  %1104 = vmatmul.bf16.gmra.mxu0 %v1021
  %v1105 = vpop.f32.mrf.mxu0
  %v1106 = vadd.f32 0.0, %v1105
  %v1107 = vpop.f32.mrf.mxu0
  %v1108 = vadd.f32 0.0, %v1107
  %1109 = vmatmul.bf16.gmra.mxu0 %v1024
  %v1110 = vpop.f32.mrf.mxu0
  %v1111 = vadd.f32 0.0, %v1110
  %v1112 = vpop.f32.mrf.mxu0
  %v1113 = vadd.f32 0.0, %v1112
  %1114 = vmatmul.bf16.gmra.mxu0 %v1027
  %v1115 = vpop.f32.mrf.mxu0
  %v1116 = vadd.f32 0.0, %v1115
  %v1117 = vpop.f32.mrf.mxu0
  %v1118 = vadd.f32 0.0, %v1117
  %1119 = vmatmul.bf16.gmra.mxu0 %v1030
  %v1120 = vpop.f32.mrf.mxu0
  %v1121 = vadd.f32 0.0, %v1120
  %v1122 = vpop.f32.mrf.mxu0
  %v1123 = vadd.f32 0.0, %v1122
  %1124 = vmatmul.bf16.gmra.mxu0 %v1033
  %v1125 = vpop.f32.mrf.mxu0
  %v1126 = vadd.f32 0.0, %v1125
  %v1127 = vpop.f32.mrf.mxu0
  %v1128 = vadd.f32 0.0, %v1127
  %1129 = vmatmul.bf16.gmra.mxu0 %v1036
  %v1130 = vpop.f32.mrf.mxu0
  %v1131 = vadd.f32 0.0, %v1130
  %v1132 = vpop.f32.mrf.mxu0
  %v1133 = vadd.f32 0.0, %v1132
  %1134 = vmatmul.bf16.gmra.mxu0 %v1039
  %v1135 = vpop.f32.mrf.mxu0
  %v1136 = vadd.f32 0.0, %v1135
  %v1137 = vpop.f32.mrf.mxu0
  %v1138 = vadd.f32 0.0, %v1137
  %1139 = vmatmul.bf16.gmra.mxu0 %v1042
  %v1140 = vpop.f32.mrf.mxu0
  %v1141 = vadd.f32 0.0, %v1140
  %v1142 = vpop.f32.mrf.mxu0
  %v1143 = vadd.f32 0.0, %v1142
  %1144 = vmatmul.bf16.gmra.mxu0 %v1045
  %v1145 = vpop.f32.mrf.mxu0
  %v1146 = vadd.f32 0.0, %v1145
  %v1147 = vpop.f32.mrf.mxu0
  %v1148 = vadd.f32 0.0, %v1147
  %1149 = vmatmul.bf16.gmra.mxu0 %v1048
  %v1150 = vpop.f32.mrf.mxu0
  %v1151 = vadd.f32 0.0, %v1150
  %v1152 = vpop.f32.mrf.mxu0
  %v1153 = vadd.f32 0.0, %v1152
  %1154 = vmatmul.bf16.gmra.mxu0 %v1051
  %v1155 = vpop.f32.mrf.mxu0
  %v1156 = vadd.f32 0.0, %v1155
  %v1157 = vpop.f32.mrf.mxu0
  %v1158 = vadd.f32 0.0, %v1157
  %1159 = vmatmul.bf16.gmra.mxu0 %v1054
  %v1160 = vpop.f32.mrf.mxu0
  %v1161 = vadd.f32 0.0, %v1160
  %v1162 = vpop.f32.mrf.mxu0
  %v1163 = vadd.f32 0.0, %v1162
  %1164 = vmatmul.bf16.gmra.mxu0 %v1057
  %v1165 = vpop.f32.mrf.mxu0
  %v1166 = vadd.f32 0.0, %v1165
  %v1167 = vpop.f32.mrf.mxu0
  %v1168 = vadd.f32 0.0, %v1167
  %1169 = vmatmul.bf16.gmra.mxu0 %v1060
  %v1170 = vpop.f32.mrf.mxu0
  %v1171 = vadd.f32 0.0, %v1170
  %v1172 = vpop.f32.mrf.mxu0
  %v1173 = vadd.f32 0.0, %v1172
  %1174 = vmatmul.bf16.gmra.mxu0 %v1063
  %v1175 = vpop.f32.mrf.mxu0
  %v1176 = vadd.f32 0.0, %v1175
  %v1177 = vpop.f32.mrf.mxu0
  %v1178 = vadd.f32 0.0, %v1177
  %1179 = vmatmul.bf16.gmra.mxu0 %v1066
  %v1180 = vpop.f32.mrf.mxu0
  %v1181 = vadd.f32 0.0, %v1180
  %v1182 = vpop.f32.mrf.mxu0
  %v1183 = vadd.f32 0.0, %v1182
  %1184 = vmatmul.bf16.gmra.mxu0 %v1069
  %v1185 = vpop.f32.mrf.mxu0
  %v1186 = vadd.f32 0.0, %v1185
  %v1187 = vpop.f32.mrf.mxu0
  %v1188 = vadd.f32 0.0, %v1187
  %1189 = vmatmul.bf16.gmra.mxu0 %v1072
  %v1190 = vpop.f32.mrf.mxu0
  %v1191 = vadd.f32 0.0, %v1190
  %v1192 = vpop.f32.mrf.mxu0
  %1193 = vdwg.mxu0
  %v1194 = vrot.slane %v1091, 6
  %v1195 = vrot.slane %v1093, 6
  %v1196 = vrot.slane %v1096, 6
  %v1197 = vrot.slane %v1098, 6
  %v1198 = vrot.slane %v1101, 6
  %v1199 = vrot.slane %v1103, 6
  %v1200 = vrot.slane %v1106, 6
  %v1201 = vrot.slane %v1108, 6
  %v1202 = vrot.slane %v1111, 6
  %v1203 = vrot.slane %v1113, 6
  %v1204 = vrot.slane %v1116, 6
  %v1205 = vrot.slane %v1118, 6
  %v1206 = vrot.slane %v1121, 6
  %v1207 = vrot.slane %v1123, 6
  %v1208 = vrot.slane %v1126, 6
  %v1209 = vrot.slane %v1128, 6
  %v1210 = vrot.slane %v1131, 6
  %v1211 = vrot.slane %v1133, 6
  %v1212 = vrot.slane %v1136, 6
  %v1213 = vrot.slane %v1138, 6
  %v1214 = vrot.slane %v1141, 6
  %v1215 = vrot.slane %v1143, 6
  %v1216 = vrot.slane %v1146, 6
  %v1217 = vrot.slane %v1148, 6
  %v1218 = vrot.slane %v1151, 6
  %v1219 = vrot.slane %v1153, 6
  %v1220 = vrot.slane %v1156, 6
  %v1221 = vrot.slane %v1158, 6
  %v1222 = vrot.slane %v1161, 6
  %v1223 = vrot.slane %v1163, 6
  %v1224 = vrot.slane %v1166, 6
  %v1225 = vrot.slane %v1168, 6
  %v1226 = vrot.slane %v1171, 6
  %v1227 = vrot.slane %v1173, 6
  %v1228 = vrot.slane %v1176, 6
  %v1229 = vrot.slane %v1178, 6
  %v1230 = vrot.slane %v1181, 6
  %v1231 = vrot.slane %v1183, 6
  %v1232 = vrot.slane %v1186, 6
  %v1233 = vrot.slane %v1188, 6
  %v1234 = vrot.slane %v1191, 6
  %vm1235 = vcmp.lt.s32.totalorder %v34, 2
  %v1236 = vsel %vm1235, %v1233, %v1234
  %v1237 = vsel %vm1235, %v1232, %v1233
  %v1238 = vsel %vm1235, %v1231, %v1232
  %v1239 = vsel %vm1235, %v1230, %v1231
  %v1240 = vsel %vm1235, %v1229, %v1230
  %v1241 = vsel %vm1235, %v1228, %v1229
  %v1242 = vsel %vm1235, %v1227, %v1228
  %v1243 = vsel %vm1235, %v1226, %v1227
  %v1244 = vsel %vm1235, %v1225, %v1226
  %v1245 = vsel %vm1235, %v1224, %v1225
  %v1246 = vsel %vm1235, %v1223, %v1224
  %v1247 = vsel %vm1235, %v1222, %v1223
  %v1248 = vsel %vm1235, %v1221, %v1222
  %v1249 = vsel %vm1235, %v1220, %v1221
  %v1250 = vsel %vm1235, %v1219, %v1220
  %v1251 = vsel %vm1235, %v1218, %v1219
  %v1252 = vsel %vm1235, %v1217, %v1218
  %v1253 = vsel %vm1235, %v1216, %v1217
  %v1254 = vsel %vm1235, %v1215, %v1216
  %v1255 = vsel %vm1235, %v1214, %v1215
  %v1256 = vsel %vm1235, %v1213, %v1214
  %v1257 = vsel %vm1235, %v1212, %v1213
  %v1258 = vsel %vm1235, %v1211, %v1212
  %v1259 = vsel %vm1235, %v1210, %v1211
  %v1260 = vsel %vm1235, %v1209, %v1210
  %v1261 = vsel %vm1235, %v1208, %v1209
  %v1262 = vsel %vm1235, %v1207, %v1208
  %v1263 = vsel %vm1235, %v1206, %v1207
  %v1264 = vsel %vm1235, %v1205, %v1206
  %v1265 = vsel %vm1235, %v1204, %v1205
  %v1266 = vsel %vm1235, %v1203, %v1204
  %v1267 = vsel %vm1235, %v1202, %v1203
  %v1268 = vsel %vm1235, %v1201, %v1202
  %v1269 = vsel %vm1235, %v1200, %v1201
  %v1270 = vsel %vm1235, %v1199, %v1200
  %v1271 = vsel %vm1235, %v1198, %v1199
  %v1272 = vsel %vm1235, %v1197, %v1198
  %v1273 = vsel %vm1235, %v1196, %v1197
  %v1274 = vsel %vm1235, %v1195, %v1196
  %v1275 = vsel %vm1235, %v1194, %v1195
  %v1276 = vsel %vm1235, %v1234, %v1194
  %v1278 = vperm.slane %v1002, 0
  %v1280 = vadd.f32 %v1278, %v1237
  %v1281 = vadd.f32 %v1278, %v1236
  %v1282 = vadd.f32 %v1278, %v1276
  %v1283 = vadd.f32 %v1278, %v1275
  %v1284 = vadd.f32 %v1278, %v1274
  %v1285 = vadd.f32 %v1278, %v1273
  %v1286 = vadd.f32 %v1278, %v1272
  %v1287 = vadd.f32 %v1278, %v1271
  %v1288 = vadd.f32 %v1278, %v1270
  %v1289 = vadd.f32 %v1278, %v1269
  %v1290 = vadd.f32 %v1278, %v1268
  %v1291 = vadd.f32 %v1278, %v1267
  %v1292 = vadd.f32 %v1278, %v1266
  %v1293 = vadd.f32 %v1278, %v1265
  %v1294 = vadd.f32 %v1278, %v1264
  %v1295 = vadd.f32 %v1278, %v1263
  %v1296 = vadd.f32 %v1278, %v1262
  %v1297 = vadd.f32 %v1278, %v1261
  %v1298 = vadd.f32 %v1278, %v1260
  %v1299 = vadd.f32 %v1278, %v1259
  %v1300 = vadd.f32 %v1278, %v1258
  %v1301 = vadd.f32 %v1278, %v1257
  %v1302 = vadd.f32 %v1278, %v1256
  %v1303 = vadd.f32 %v1278, %v1255
  %v1304 = vadd.f32 %v1278, %v1254
  %v1305 = vadd.f32 %v1278, %v1253
  %v1306 = vadd.f32 %v1278, %v1252
  %v1307 = vadd.f32 %v1278, %v1251
  %v1308 = vadd.f32 %v1278, %v1250
  %v1309 = vadd.f32 %v1278, %v1249
  %v1310 = vadd.f32 %v1278, %v1248
  %v1311 = vadd.f32 %v1278, %v1247
  %v1312 = vadd.f32 %v1278, %v1246
  %v1313 = vadd.f32 %v1278, %v1245
  %v1314 = vadd.f32 %v1278, %v1244
  %v1315 = vadd.f32 %v1278, %v1243
  %v1316 = vadd.f32 %v1278, %v1242
  %v1317 = vadd.f32 %v1278, %v1241
  %v1318 = vadd.f32 %v1278, %v1240
  %v1319 = vadd.f32 %v1278, %v1239
  %v1320 = vadd.f32 %v1278, %v1238
  %s1321 = scalar_lea.vmem %s1, 8
  %v1322 = vld [vmem:[%s1321] sm:$0xf]
  %v1323 = vld [vmem:[%s1321 + $0x4] sm:$0x1]
  %v1326 = vunpack.c.l.b16 %v1322
  %v1327 = vunpack.c.l.b16 %v1323
  %v1328 = vpack.c.b16 %v1327, %v1326
  %v1330 = vand.u32 %v1328, %v1077
  %1332 = vmatpush.bf16.msra.mxu0 0
  %1333 = vmatpush.bf16.msra.mxu0 0
  %1334 = vmatpush.bf16.msra.mxu0 0
  %1335 = vmatpush.bf16.msra.mxu0 0
  %1336 = vmatpush.bf16.msra.mxu0 0
  %1337 = vmatpush.bf16.msra.mxu0 0
  %1338 = vmatpush.bf16.msra.mxu0 0
  %1339 = vmatpush.bf16.msra.mxu0 %v1330
  %1340 = vmatmul.bf16.gmra.mxu0 %v1012
  %v1341 = vpop.f32.mrf.mxu0
  %v1342 = vadd.f32 0.0, %v1341
  %v1343 = vpop.f32.mrf.mxu0
  %v1344 = vadd.f32 0.0, %v1343
  %1345 = vmatmul.bf16.gmra.mxu0 %v1015
  %v1346 = vpop.f32.mrf.mxu0
  %v1347 = vadd.f32 0.0, %v1346
  %v1348 = vpop.f32.mrf.mxu0
  %v1349 = vadd.f32 0.0, %v1348
  %1350 = vmatmul.bf16.gmra.mxu0 %v1018
  %v1351 = vpop.f32.mrf.mxu0
  %v1352 = vadd.f32 0.0, %v1351
  %v1353 = vpop.f32.mrf.mxu0
  %v1354 = vadd.f32 0.0, %v1353
  %1355 = vmatmul.bf16.gmra.mxu0 %v1021
  %v1356 = vpop.f32.mrf.mxu0
  %v1357 = vadd.f32 0.0, %v1356
  %v1358 = vpop.f32.mrf.mxu0
  %v1359 = vadd.f32 0.0, %v1358
  %1360 = vmatmul.bf16.gmra.mxu0 %v1024
  %v1361 = vpop.f32.mrf.mxu0
  %v1362 = vadd.f32 0.0, %v1361
  %v1363 = vpop.f32.mrf.mxu0
  %v1364 = vadd.f32 0.0, %v1363
  %1365 = vmatmul.bf16.gmra.mxu0 %v1027
  %v1366 = vpop.f32.mrf.mxu0
  %v1367 = vadd.f32 0.0, %v1366
  %v1368 = vpop.f32.mrf.mxu0
  %v1369 = vadd.f32 0.0, %v1368
  %1370 = vmatmul.bf16.gmra.mxu0 %v1030
  %v1371 = vpop.f32.mrf.mxu0
  %v1372 = vadd.f32 0.0, %v1371
  %v1373 = vpop.f32.mrf.mxu0
  %v1374 = vadd.f32 0.0, %v1373
  %1375 = vmatmul.bf16.gmra.mxu0 %v1033
  %v1376 = vpop.f32.mrf.mxu0
  %v1377 = vadd.f32 0.0, %v1376
  %v1378 = vpop.f32.mrf.mxu0
  %v1379 = vadd.f32 0.0, %v1378
  %1380 = vmatmul.bf16.gmra.mxu0 %v1036
  %v1381 = vpop.f32.mrf.mxu0
  %v1382 = vadd.f32 0.0, %v1381
  %v1383 = vpop.f32.mrf.mxu0
  %v1384 = vadd.f32 0.0, %v1383
  %1385 = vmatmul.bf16.gmra.mxu0 %v1039
  %v1386 = vpop.f32.mrf.mxu0
  %v1387 = vadd.f32 0.0, %v1386
  %v1388 = vpop.f32.mrf.mxu0
  %v1389 = vadd.f32 0.0, %v1388
  %1390 = vmatmul.bf16.gmra.mxu0 %v1042
  %v1391 = vpop.f32.mrf.mxu0
  %v1392 = vadd.f32 0.0, %v1391
  %v1393 = vpop.f32.mrf.mxu0
  %v1394 = vadd.f32 0.0, %v1393
  %1395 = vmatmul.bf16.gmra.mxu0 %v1045
  %v1396 = vpop.f32.mrf.mxu0
  %v1397 = vadd.f32 0.0, %v1396
  %v1398 = vpop.f32.mrf.mxu0
  %v1399 = vadd.f32 0.0, %v1398
  %1400 = vmatmul.bf16.gmra.mxu0 %v1048
  %v1401 = vpop.f32.mrf.mxu0
  %v1402 = vadd.f32 0.0, %v1401
  %v1403 = vpop.f32.mrf.mxu0
  %v1404 = vadd.f32 0.0, %v1403
  %1405 = vmatmul.bf16.gmra.mxu0 %v1051
  %v1406 = vpop.f32.mrf.mxu0
  %v1407 = vadd.f32 0.0, %v1406
  %v1408 = vpop.f32.mrf.mxu0
  %v1409 = vadd.f32 0.0, %v1408
  %1410 = vmatmul.bf16.gmra.mxu0 %v1054
  %v1411 = vpop.f32.mrf.mxu0
  %v1412 = vadd.f32 0.0, %v1411
  %v1413 = vpop.f32.mrf.mxu0
  %v1414 = vadd.f32 0.0, %v1413
  %1415 = vmatmul.bf16.gmra.mxu0 %v1057
  %v1416 = vpop.f32.mrf.mxu0
  %v1417 = vadd.f32 0.0, %v1416
  %v1418 = vpop.f32.mrf.mxu0
  %v1419 = vadd.f32 0.0, %v1418
  %1420 = vmatmul.bf16.gmra.mxu0 %v1060
  %v1421 = vpop.f32.mrf.mxu0
  %v1422 = vadd.f32 0.0, %v1421
  %v1423 = vpop.f32.mrf.mxu0
  %v1424 = vadd.f32 0.0, %v1423
  %1425 = vmatmul.bf16.gmra.mxu0 %v1063
  %v1426 = vpop.f32.mrf.mxu0
  %v1427 = vadd.f32 0.0, %v1426
  %v1428 = vpop.f32.mrf.mxu0
  %v1429 = vadd.f32 0.0, %v1428
  %1430 = vmatmul.bf16.gmra.mxu0 %v1066
  %v1431 = vpop.f32.mrf.mxu0
  %v1432 = vadd.f32 0.0, %v1431
  %v1433 = vpop.f32.mrf.mxu0
  %v1434 = vadd.f32 0.0, %v1433
  %1435 = vmatmul.bf16.gmra.mxu0 %v1069
  %v1436 = vpop.f32.mrf.mxu0
  %v1437 = vadd.f32 0.0, %v1436
  %v1438 = vpop.f32.mrf.mxu0
  %v1439 = vadd.f32 0.0, %v1438
  %1440 = vmatmul.bf16.gmra.mxu0 %v1072
  %v1441 = vpop.f32.mrf.mxu0
  %v1442 = vadd.f32 0.0, %v1441
  %v1443 = vpop.f32.mrf.mxu0
  %1444 = vdwg.mxu0
  %v1445 = vadd.f32 %v1280, %v1342
  %v1446 = vadd.f32 %v1281, %v1344
  %v1447 = vadd.f32 %v1282, %v1347
  %v1448 = vadd.f32 %v1283, %v1349
  %v1449 = vadd.f32 %v1284, %v1352
  %v1450 = vadd.f32 %v1285, %v1354
  %v1451 = vadd.f32 %v1286, %v1357
  %v1452 = vadd.f32 %v1287, %v1359
  %v1453 = vadd.f32 %v1288, %v1362
  %v1454 = vadd.f32 %v1289, %v1364
  %v1455 = vadd.f32 %v1290, %v1367
  %v1456 = vadd.f32 %v1291, %v1369
  %v1457 = vadd.f32 %v1292, %v1372
  %v1458 = vadd.f32 %v1293, %v1374
  %v1459 = vadd.f32 %v1294, %v1377
  %v1460 = vadd.f32 %v1295, %v1379
  %v1461 = vadd.f32 %v1296, %v1382
  %v1462 = vadd.f32 %v1297, %v1384
  %v1463 = vadd.f32 %v1298, %v1387
  %v1464 = vadd.f32 %v1299, %v1389
  %v1465 = vadd.f32 %v1300, %v1392
  %v1466 = vadd.f32 %v1301, %v1394
  %v1467 = vadd.f32 %v1302, %v1397
  %v1468 = vadd.f32 %v1303, %v1399
  %v1469 = vadd.f32 %v1304, %v1402
  %v1470 = vadd.f32 %v1305, %v1404
  %v1471 = vadd.f32 %v1306, %v1407
  %v1472 = vadd.f32 %v1307, %v1409
  %v1473 = vadd.f32 %v1308, %v1412
  %v1474 = vadd.f32 %v1309, %v1414
  %v1475 = vadd.f32 %v1310, %v1417
  %v1476 = vadd.f32 %v1311, %v1419
  %v1477 = vadd.f32 %v1312, %v1422
  %v1478 = vadd.f32 %v1313, %v1424
  %v1479 = vadd.f32 %v1314, %v1427
  %v1480 = vadd.f32 %v1315, %v1429
  %v1481 = vadd.f32 %v1316, %v1432
  %v1482 = vadd.f32 %v1317, %v1434
  %v1483 = vadd.f32 %v1318, %v1437
  %v1484 = vadd.f32 %v1319, %v1439
  %v1485 = vadd.f32 %v1320, %v1442
  %s1486 = scalar_lea.vmem %s1, 16
  %v1487 = vld [vmem:[%s1486] sm:$0xf]
  %v1488 = vld [vmem:[%s1486 + $0x4] sm:$0x1]
  %v1491 = vunpack.c.l.b16 %v1487
  %v1492 = vunpack.c.l.b16 %v1488
  %v1493 = vpack.c.b16 %v1492, %v1491
  %v1495 = vand.u32 %v1493, %v1077
  %1497 = vmatpush.bf16.msra.mxu0 0
  %1498 = vmatpush.bf16.msra.mxu0 0
  %1499 = vmatpush.bf16.msra.mxu0 0
  %1500 = vmatpush.bf16.msra.mxu0 0
  %1501 = vmatpush.bf16.msra.mxu0 0
  %1502 = vmatpush.bf16.msra.mxu0 0
  %1503 = vmatpush.bf16.msra.mxu0 0
  %1504 = vmatpush.bf16.msra.mxu0 %v1495
  %1505 = vmatmul.bf16.gmra.mxu0 %v1012
  %v1506 = vpop.f32.mrf.mxu0
  %v1507 = vadd.f32 0.0, %v1506
  %v1508 = vpop.f32.mrf.mxu0
  %v1509 = vadd.f32 0.0, %v1508
  %1510 = vmatmul.bf16.gmra.mxu0 %v1015
  %v1511 = vpop.f32.mrf.mxu0
  %v1512 = vadd.f32 0.0, %v1511
  %v1513 = vpop.f32.mrf.mxu0
  %v1514 = vadd.f32 0.0, %v1513
  %1515 = vmatmul.bf16.gmra.mxu0 %v1018
  %v1516 = vpop.f32.mrf.mxu0
  %v1517 = vadd.f32 0.0, %v1516
  %v1518 = vpop.f32.mrf.mxu0
  %v1519 = vadd.f32 0.0, %v1518
  %1520 = vmatmul.bf16.gmra.mxu0 %v1021
  %v1521 = vpop.f32.mrf.mxu0
  %v1522 = vadd.f32 0.0, %v1521
  %v1523 = vpop.f32.mrf.mxu0
  %v1524 = vadd.f32 0.0, %v1523
  %1525 = vmatmul.bf16.gmra.mxu0 %v1024
  %v1526 = vpop.f32.mrf.mxu0
  %v1527 = vadd.f32 0.0, %v1526
  %v1528 = vpop.f32.mrf.mxu0
  %v1529 = vadd.f32 0.0, %v1528
  %1530 = vmatmul.bf16.gmra.mxu0 %v1027
  %v1531 = vpop.f32.mrf.mxu0
  %v1532 = vadd.f32 0.0, %v1531
  %v1533 = vpop.f32.mrf.mxu0
  %v1534 = vadd.f32 0.0, %v1533
  %1535 = vmatmul.bf16.gmra.mxu0 %v1030
  %v1536 = vpop.f32.mrf.mxu0
  %v1537 = vadd.f32 0.0, %v1536
  %v1538 = vpop.f32.mrf.mxu0
  %v1539 = vadd.f32 0.0, %v1538
  %1540 = vmatmul.bf16.gmra.mxu0 %v1033
  %v1541 = vpop.f32.mrf.mxu0
  %v1542 = vadd.f32 0.0, %v1541
  %v1543 = vpop.f32.mrf.mxu0
  %v1544 = vadd.f32 0.0, %v1543
  %1545 = vmatmul.bf16.gmra.mxu0 %v1036
  %v1546 = vpop.f32.mrf.mxu0
  %v1547 = vadd.f32 0.0, %v1546
  %v1548 = vpop.f32.mrf.mxu0
  %v1549 = vadd.f32 0.0, %v1548
  %1550 = vmatmul.bf16.gmra.mxu0 %v1039
  %v1551 = vpop.f32.mrf.mxu0
  %v1552 = vadd.f32 0.0, %v1551
  %v1553 = vpop.f32.mrf.mxu0
  %v1554 = vadd.f32 0.0, %v1553
  %1555 = vmatmul.bf16.gmra.mxu0 %v1042
  %v1556 = vpop.f32.mrf.mxu0
  %v1557 = vadd.f32 0.0, %v1556
  %v1558 = vpop.f32.mrf.mxu0
  %v1559 = vadd.f32 0.0, %v1558
  %1560 = vmatmul.bf16.gmra.mxu0 %v1045
  %v1561 = vpop.f32.mrf.mxu0
  %v1562 = vadd.f32 0.0, %v1561
  %v1563 = vpop.f32.mrf.mxu0
  %v1564 = vadd.f32 0.0, %v1563
  %1565 = vmatmul.bf16.gmra.mxu0 %v1048
  %v1566 = vpop.f32.mrf.mxu0
  %v1567 = vadd.f32 0.0, %v1566
  %v1568 = vpop.f32.mrf.mxu0
  %v1569 = vadd.f32 0.0, %v1568
  %1570 = vmatmul.bf16.gmra.mxu0 %v1051
  %v1571 = vpop.f32.mrf.mxu0
  %v1572 = vadd.f32 0.0, %v1571
  %v1573 = vpop.f32.mrf.mxu0
  %v1574 = vadd.f32 0.0, %v1573
  %1575 = vmatmul.bf16.gmra.mxu0 %v1054
  %v1576 = vpop.f32.mrf.mxu0
  %v1577 = vadd.f32 0.0, %v1576
  %v1578 = vpop.f32.mrf.mxu0
  %v1579 = vadd.f32 0.0, %v1578
  %1580 = vmatmul.bf16.gmra.mxu0 %v1057
  %v1581 = vpop.f32.mrf.mxu0
  %v1582 = vadd.f32 0.0, %v1581
  %v1583 = vpop.f32.mrf.mxu0
  %v1584 = vadd.f32 0.0, %v1583
  %1585 = vmatmul.bf16.gmra.mxu0 %v1060
  %v1586 = vpop.f32.mrf.mxu0
  %v1587 = vadd.f32 0.0, %v1586
  %v1588 = vpop.f32.mrf.mxu0
  %v1589 = vadd.f32 0.0, %v1588
  %1590 = vmatmul.bf16.gmra.mxu0 %v1063
  %v1591 = vpop.f32.mrf.mxu0
  %v1592 = vadd.f32 0.0, %v1591
  %v1593 = vpop.f32.mrf.mxu0
  %v1594 = vadd.f32 0.0, %v1593
  %1595 = vmatmul.bf16.gmra.mxu0 %v1066
  %v1596 = vpop.f32.mrf.mxu0
  %v1597 = vadd.f32 0.0, %v1596
  %v1598 = vpop.f32.mrf.mxu0
  %v1599 = vadd.f32 0.0, %v1598
  %1600 = vmatmul.bf16.gmra.mxu0 %v1069
  %v1601 = vpop.f32.mrf.mxu0
  %v1602 = vadd.f32 0.0, %v1601
  %v1603 = vpop.f32.mrf.mxu0
  %v1604 = vadd.f32 0.0, %v1603
  %1605 = vmatmul.bf16.gmra.mxu0 %v1072
  %v1606 = vpop.f32.mrf.mxu0
  %v1607 = vadd.f32 0.0, %v1606
  %v1608 = vpop.f32.mrf.mxu0
  %1609 = vdwg.mxu0
  %v1610 = vrot.slane %v1507, 2
  %v1611 = vrot.slane %v1509, 2
  %v1612 = vrot.slane %v1512, 2
  %v1613 = vrot.slane %v1514, 2
  %v1614 = vrot.slane %v1517, 2
  %v1615 = vrot.slane %v1519, 2
  %v1616 = vrot.slane %v1522, 2
  %v1617 = vrot.slane %v1524, 2
  %v1618 = vrot.slane %v1527, 2
  %v1619 = vrot.slane %v1529, 2
  %v1620 = vrot.slane %v1532, 2
  %v1621 = vrot.slane %v1534, 2
  %v1622 = vrot.slane %v1537, 2
  %v1623 = vrot.slane %v1539, 2
  %v1624 = vrot.slane %v1542, 2
  %v1625 = vrot.slane %v1544, 2
  %v1626 = vrot.slane %v1547, 2
  %v1627 = vrot.slane %v1549, 2
  %v1628 = vrot.slane %v1552, 2
  %v1629 = vrot.slane %v1554, 2
  %v1630 = vrot.slane %v1557, 2
  %v1631 = vrot.slane %v1559, 2
  %v1632 = vrot.slane %v1562, 2
  %v1633 = vrot.slane %v1564, 2
  %v1634 = vrot.slane %v1567, 2
  %v1635 = vrot.slane %v1569, 2
  %v1636 = vrot.slane %v1572, 2
  %v1637 = vrot.slane %v1574, 2
  %v1638 = vrot.slane %v1577, 2
  %v1639 = vrot.slane %v1579, 2
  %v1640 = vrot.slane %v1582, 2
  %v1641 = vrot.slane %v1584, 2
  %v1642 = vrot.slane %v1587, 2
  %v1643 = vrot.slane %v1589, 2
  %v1644 = vrot.slane %v1592, 2
  %v1645 = vrot.slane %v1594, 2
  %v1646 = vrot.slane %v1597, 2
  %v1647 = vrot.slane %v1599, 2
  %v1648 = vrot.slane %v1602, 2
  %v1649 = vrot.slane %v1604, 2
  %v1650 = vrot.slane %v1607, 2
  %vm1651 = vcmp.lt.s32.totalorder %v34, 6
  %v1652 = vsel %vm1651, %v1649, %v1650
  %v1653 = vsel %vm1651, %v1648, %v1649
  %v1654 = vsel %vm1651, %v1647, %v1648
  %v1655 = vsel %vm1651, %v1646, %v1647
  %v1656 = vsel %vm1651, %v1645, %v1646
  %v1657 = vsel %vm1651, %v1644, %v1645
  %v1658 = vsel %vm1651, %v1643, %v1644
  %v1659 = vsel %vm1651, %v1642, %v1643
  %v1660 = vsel %vm1651, %v1641, %v1642
  %v1661 = vsel %vm1651, %v1640, %v1641
  %v1662 = vsel %vm1651, %v1639, %v1640
  %v1663 = vsel %vm1651, %v1638, %v1639
  %v1664 = vsel %vm1651, %v1637, %v1638
  %v1665 = vsel %vm1651, %v1636, %v1637
  %v1666 = vsel %vm1651, %v1635, %v1636
  %v1667 = vsel %vm1651, %v1634, %v1635
  %v1668 = vsel %vm1651, %v1633, %v1634
  %v1669 = vsel %vm1651, %v1632, %v1633
  %v1670 = vsel %vm1651, %v1631, %v1632
  %v1671 = vsel %vm1651, %v1630, %v1631
  %v1672 = vsel %vm1651, %v1629, %v1630
  %v1673 = vsel %vm1651, %v1628, %v1629
  %v1674 = vsel %vm1651, %v1627, %v1628
  %v1675 = vsel %vm1651, %v1626, %v1627
  %v1676 = vsel %vm1651, %v1625, %v1626
  %v1677 = vsel %vm1651, %v1624, %v1625
  %v1678 = vsel %vm1651, %v1623, %v1624
  %v1679 = vsel %vm1651, %v1622, %v1623
  %v1680 = vsel %vm1651, %v1621, %v1622
  %v1681 = vsel %vm1651, %v1620, %v1621
  %v1682 = vsel %vm1651, %v1619, %v1620
  %v1683 = vsel %vm1651, %v1618, %v1619
  %v1684 = vsel %vm1651, %v1617, %v1618
  %v1685 = vsel %vm1651, %v1616, %v1617
  %v1686 = vsel %vm1651, %v1615, %v1616
  %v1687 = vsel %vm1651, %v1614, %v1615
  %v1688 = vsel %vm1651, %v1613, %v1614
  %v1689 = vsel %vm1651, %v1612, %v1613
  %v1690 = vsel %vm1651, %v1611, %v1612
  %v1691 = vsel %vm1651, %v1610, %v1611
  %v1692 = vsel %vm1651, %v1650, %v1610
  %v1693 = vadd.f32 %v1445, %v1689
  %v1694 = vadd.f32 %v1446, %v1688
  %v1695 = vadd.f32 %v1447, %v1687
  %v1696 = vadd.f32 %v1448, %v1686
  %v1697 = vadd.f32 %v1449, %v1685
  %v1698 = vadd.f32 %v1450, %v1684
  %v1699 = vadd.f32 %v1451, %v1683
  %v1700 = vadd.f32 %v1452, %v1682
  %v1701 = vadd.f32 %v1453, %v1681
  %v1702 = vadd.f32 %v1454, %v1680
  %v1703 = vadd.f32 %v1455, %v1679
  %v1704 = vadd.f32 %v1456, %v1678
  %v1705 = vadd.f32 %v1457, %v1677
  %v1706 = vadd.f32 %v1458, %v1676
  %v1707 = vadd.f32 %v1459, %v1675
  %v1708 = vadd.f32 %v1460, %v1674
  %v1709 = vadd.f32 %v1461, %v1673
  %v1710 = vadd.f32 %v1462, %v1672
  %v1711 = vadd.f32 %v1463, %v1671
  %v1712 = vadd.f32 %v1464, %v1670
  %v1713 = vadd.f32 %v1465, %v1669
  %v1714 = vadd.f32 %v1466, %v1668
  %v1715 = vadd.f32 %v1467, %v1667
  %v1716 = vadd.f32 %v1468, %v1666
  %v1717 = vadd.f32 %v1469, %v1665
  %v1718 = vadd.f32 %v1470, %v1664
  %v1719 = vadd.f32 %v1471, %v1663
  %v1720 = vadd.f32 %v1472, %v1662
  %v1721 = vadd.f32 %v1473, %v1661
  %v1722 = vadd.f32 %v1474, %v1660
  %v1723 = vadd.f32 %v1475, %v1659
  %v1724 = vadd.f32 %v1476, %v1658
  %v1725 = vadd.f32 %v1477, %v1657
  %v1726 = vadd.f32 %v1478, %v1656
  %v1727 = vadd.f32 %v1479, %v1655
  %v1728 = vadd.f32 %v1480, %v1654
  %v1729 = vadd.f32 %v1481, %v1653
  %v1730 = vadd.f32 %v1482, %v1652
  %v1731 = vadd.f32 %v1483, %v1692
  %v1732 = vadd.f32 %v1484, %v1691
  %v1733 = vadd.f32 %v1485, %v1690
  %vm1734 = vcmp.ge.f32.partialorder %v1693, 0.0
  %vm1735 = vcmp.ge.f32.partialorder %v1694, 0.0
  %vm1736 = vcmp.ge.f32.partialorder %v1695, 0.0
  %vm1737 = vcmp.ge.f32.partialorder %v1696, 0.0
  %vm1738 = vcmp.ge.f32.partialorder %v1697, 0.0
  %vm1739 = vcmp.ge.f32.partialorder %v1698, 0.0
  %vm1740 = vcmp.ge.f32.partialorder %v1699, 0.0
  %vm1741 = vcmp.ge.f32.partialorder %v1700, 0.0
  %vm1742 = vcmp.ge.f32.partialorder %v1701, 0.0
  %vm1743 = vcmp.ge.f32.partialorder %v1702, 0.0
  %vm1744 = vcmp.ge.f32.partialorder %v1703, 0.0
  %vm1745 = vcmp.ge.f32.partialorder %v1704, 0.0
  %vm1746 = vcmp.ge.f32.partialorder %v1705, 0.0
  %vm1747 = vcmp.ge.f32.partialorder %v1706, 0.0
  %vm1748 = vcmp.ge.f32.partialorder %v1707, 0.0
  %vm1749 = vcmp.ge.f32.partialorder %v1708, 0.0
  %vm1750 = vcmp.ge.f32.partialorder %v1709, 0.0
  %vm1751 = vcmp.ge.f32.partialorder %v1710, 0.0
  %vm1752 = vcmp.ge.f32.partialorder %v1711, 0.0
  %vm1753 = vcmp.ge.f32.partialorder %v1712, 0.0
  %vm1754 = vcmp.ge.f32.partialorder %v1713, 0.0
  %vm1755 = vcmp.ge.f32.partialorder %v1714, 0.0
  %vm1756 = vcmp.ge.f32.partialorder %v1715, 0.0
  %vm1757 = vcmp.ge.f32.partialorder %v1716, 0.0
  %vm1758 = vcmp.ge.f32.partialorder %v1717, 0.0
  %vm1759 = vcmp.ge.f32.partialorder %v1718, 0.0
  %vm1760 = vcmp.ge.f32.partialorder %v1719, 0.0
  %vm1761 = vcmp.ge.f32.partialorder %v1720, 0.0
  %vm1762 = vcmp.ge.f32.partialorder %v1721, 0.0
  %vm1763 = vcmp.ge.f32.partialorder %v1722, 0.0
  %vm1764 = vcmp.ge.f32.partialorder %v1723, 0.0
  %vm1765 = vcmp.ge.f32.partialorder %v1724, 0.0
  %vm1766 = vcmp.ge.f32.partialorder %v1725, 0.0
  %vm1767 = vcmp.ge.f32.partialorder %v1726, 0.0
  %vm1768 = vcmp.ge.f32.partialorder %v1727, 0.0
  %vm1769 = vcmp.ge.f32.partialorder %v1728, 0.0
  %vm1770 = vcmp.ge.f32.partialorder %v1729, 0.0
  %vm1771 = vcmp.ge.f32.partialorder %v1730, 0.0
  %vm1772 = vcmp.ge.f32.partialorder %v1731, 0.0
  %vm1773 = vcmp.ge.f32.partialorder %v1732, 0.0
  %vm1774 = vcmp.ge.f32.partialorder %v1733, 0.0
  %v1775 = vmul.f32 %v1693, 0.01
  %v1776 = vmul.f32 %v1694, 0.01
  %v1777 = vmul.f32 %v1695, 0.01
  %v1778 = vmul.f32 %v1696, 0.01
  %v1779 = vmul.f32 %v1697, 0.01
  %v1780 = vmul.f32 %v1698, 0.01
  %v1781 = vmul.f32 %v1699, 0.01
  %v1782 = vmul.f32 %v1700, 0.01
  %v1783 = vmul.f32 %v1701, 0.01
  %v1784 = vmul.f32 %v1702, 0.01
  %v1785 = vmul.f32 %v1703, 0.01
  %v1786 = vmul.f32 %v1704, 0.01
  %v1787 = vmul.f32 %v1705, 0.01
  %v1788 = vmul.f32 %v1706, 0.01
  %v1789 = vmul.f32 %v1707, 0.01
  %v1790 = vmul.f32 %v1708, 0.01
  %v1791 = vmul.f32 %v1709, 0.01
  %v1792 = vmul.f32 %v1710, 0.01
  %v1793 = vmul.f32 %v1711, 0.01
  %v1794 = vmul.f32 %v1712, 0.01
  %v1795 = vmul.f32 %v1713, 0.01
  %v1796 = vmul.f32 %v1714, 0.01
  %v1797 = vmul.f32 %v1715, 0.01
  %v1798 = vmul.f32 %v1716, 0.01
  %v1799 = vmul.f32 %v1717, 0.01
  %v1800 = vmul.f32 %v1718, 0.01
  %v1801 = vmul.f32 %v1719, 0.01
  %v1802 = vmul.f32 %v1720, 0.01
  %v1803 = vmul.f32 %v1721, 0.01
  %v1804 = vmul.f32 %v1722, 0.01
  %v1805 = vmul.f32 %v1723, 0.01
  %v1806 = vmul.f32 %v1724, 0.01
  %v1807 = vmul.f32 %v1725, 0.01
  %v1808 = vmul.f32 %v1726, 0.01
  %v1809 = vmul.f32 %v1727, 0.01
  %v1810 = vmul.f32 %v1728, 0.01
  %v1811 = vmul.f32 %v1729, 0.01
  %v1812 = vmul.f32 %v1730, 0.01
  %v1813 = vmul.f32 %v1731, 0.01
  %v1814 = vmul.f32 %v1732, 0.01
  %v1815 = vmul.f32 %v1733, 0.01
  %v1816 = vsel %vm1734, %v1693, %v1775
  %v1817 = vsel %vm1735, %v1694, %v1776
  %v1818 = vsel %vm1736, %v1695, %v1777
  %v1819 = vsel %vm1737, %v1696, %v1778
  %v1820 = vsel %vm1738, %v1697, %v1779
  %v1821 = vsel %vm1739, %v1698, %v1780
  %v1822 = vsel %vm1740, %v1699, %v1781
  %v1823 = vsel %vm1741, %v1700, %v1782
  %v1824 = vsel %vm1742, %v1701, %v1783
  %v1825 = vsel %vm1743, %v1702, %v1784
  %v1826 = vsel %vm1744, %v1703, %v1785
  %v1827 = vsel %vm1745, %v1704, %v1786
  %v1828 = vsel %vm1746, %v1705, %v1787
  %v1829 = vsel %vm1747, %v1706, %v1788
  %v1830 = vsel %vm1748, %v1707, %v1789
  %v1831 = vsel %vm1749, %v1708, %v1790
  %v1832 = vsel %vm1750, %v1709, %v1791
  %v1833 = vsel %vm1751, %v1710, %v1792
  %v1834 = vsel %vm1752, %v1711, %v1793
  %v1835 = vsel %vm1753, %v1712, %v1794
  %v1836 = vsel %vm1754, %v1713, %v1795
  %v1837 = vsel %vm1755, %v1714, %v1796
  %v1838 = vsel %vm1756, %v1715, %v1797
  %v1839 = vsel %vm1757, %v1716, %v1798
  %v1840 = vsel %vm1758, %v1717, %v1799
  %v1841 = vsel %vm1759, %v1718, %v1800
  %v1842 = vsel %vm1760, %v1719, %v1801
  %v1843 = vsel %vm1761, %v1720, %v1802
  %v1844 = vsel %vm1762, %v1721, %v1803
  %v1845 = vsel %vm1763, %v1722, %v1804
  %v1846 = vsel %vm1764, %v1723, %v1805
  %v1847 = vsel %vm1765, %v1724, %v1806
  %v1848 = vsel %vm1766, %v1725, %v1807
  %v1849 = vsel %vm1767, %v1726, %v1808
  %v1850 = vsel %vm1768, %v1727, %v1809
  %v1851 = vsel %vm1769, %v1728, %v1810
  %v1852 = vsel %vm1770, %v1729, %v1811
  %v1853 = vsel %vm1771, %v1730, %v1812
  %v1854 = vsel %vm1772, %v1731, %v1813
  %v1855 = vsel %vm1773, %v1732, %v1814
  %v1856 = vsel %vm1774, %v1733, %v1815
  %v1857 = vsel %vm321, 1, 0
  %v1858 = vsel %vm322, 1, 0
  %v1859 = vsel %vm323, 1, 0
  %v1860 = vsel %vm324, 1, 0
  %v1861 = vsel %vm325, 1, 0
  %v1862 = vsel %vm326, 1, 0
  %v1863 = vsel %vm327, 1, 0
  %v1864 = vsel %vm328, 1, 0
  %v1865 = vsel %vm329, 1, 0
  %v1866 = vsel %vm330, 1, 0
  %v1867 = vsel %vm331, 1, 0
  %v1868 = vsel %vm332, 1, 0
  %v1869 = vsel %vm333, 1, 0
  %v1870 = vsel %vm334, 1, 0
  %v1871 = vsel %vm335, 1, 0
  %v1872 = vsel %vm336, 1, 0
  %v1873 = vsel %vm337, 1, 0
  %v1874 = vsel %vm338, 1, 0
  %v1875 = vsel %vm339, 1, 0
  %v1876 = vsel %vm340, 1, 0
  %v1877 = vsel %vm341, 1, 0
  %v1878 = vsel %vm342, 1, 0
  %v1879 = vsel %vm343, 1, 0
  %v1880 = vsel %vm344, 1, 0
  %v1881 = vsel %vm345, 1, 0
  %v1882 = vsel %vm346, 1, 0
  %v1883 = vsel %vm347, 1, 0
  %v1884 = vsel %vm348, 1, 0
  %v1885 = vsel %vm349, 1, 0
  %v1886 = vsel %vm350, 1, 0
  %v1887 = vsel %vm351, 1, 0
  %v1888 = vsel %vm352, 1, 0
  %v1889 = vsel %vm353, 1, 0
  %v1890 = vsel %vm354, 1, 0
  %v1891 = vsel %vm355, 1, 0
  %v1892 = vsel %vm356, 1, 0
  %v1893 = vsel %vm357, 1, 0
  %v1894 = vsel %vm358, 1, 0
  %v1895 = vsel %vm359, 1, 0
  %v1896 = vsel %vm360, 1, 0
  %v1897 = vsel %vm361, 1, 0
  %vm1898 = vcmp.eq.s32.totalorder %v1857, 1
  %vm1899 = vcmp.eq.s32.totalorder %v1858, 1
  %vm1900 = vcmp.eq.s32.totalorder %v1859, 1
  %vm1901 = vcmp.eq.s32.totalorder %v1860, 1
  %vm1902 = vcmp.eq.s32.totalorder %v1861, 1
  %vm1903 = vcmp.eq.s32.totalorder %v1862, 1
  %vm1904 = vcmp.eq.s32.totalorder %v1863, 1
  %vm1905 = vcmp.eq.s32.totalorder %v1864, 1
  %vm1906 = vcmp.eq.s32.totalorder %v1865, 1
  %vm1907 = vcmp.eq.s32.totalorder %v1866, 1
  %vm1908 = vcmp.eq.s32.totalorder %v1867, 1
  %vm1909 = vcmp.eq.s32.totalorder %v1868, 1
  %vm1910 = vcmp.eq.s32.totalorder %v1869, 1
  %vm1911 = vcmp.eq.s32.totalorder %v1870, 1
  %vm1912 = vcmp.eq.s32.totalorder %v1871, 1
  %vm1913 = vcmp.eq.s32.totalorder %v1872, 1
  %vm1914 = vcmp.eq.s32.totalorder %v1873, 1
  %vm1915 = vcmp.eq.s32.totalorder %v1874, 1
  %vm1916 = vcmp.eq.s32.totalorder %v1875, 1
  %vm1917 = vcmp.eq.s32.totalorder %v1876, 1
  %vm1918 = vcmp.eq.s32.totalorder %v1877, 1
  %vm1919 = vcmp.eq.s32.totalorder %v1878, 1
  %vm1920 = vcmp.eq.s32.totalorder %v1879, 1
  %vm1921 = vcmp.eq.s32.totalorder %v1880, 1
  %vm1922 = vcmp.eq.s32.totalorder %v1881, 1
  %vm1923 = vcmp.eq.s32.totalorder %v1882, 1
  %vm1924 = vcmp.eq.s32.totalorder %v1883, 1
  %vm1925 = vcmp.eq.s32.totalorder %v1884, 1
  %vm1926 = vcmp.eq.s32.totalorder %v1885, 1
  %vm1927 = vcmp.eq.s32.totalorder %v1886, 1
  %vm1928 = vcmp.eq.s32.totalorder %v1887, 1
  %vm1929 = vcmp.eq.s32.totalorder %v1888, 1
  %vm1930 = vcmp.eq.s32.totalorder %v1889, 1
  %vm1931 = vcmp.eq.s32.totalorder %v1890, 1
  %vm1932 = vcmp.eq.s32.totalorder %v1891, 1
  %vm1933 = vcmp.eq.s32.totalorder %v1892, 1
  %vm1934 = vcmp.eq.s32.totalorder %v1893, 1
  %vm1935 = vcmp.eq.s32.totalorder %v1894, 1
  %vm1936 = vcmp.eq.s32.totalorder %v1895, 1
  %vm1937 = vcmp.eq.s32.totalorder %v1896, 1
  %vm1938 = vcmp.eq.s32.totalorder %v1897, 1
  %v1939 = vsel %vm1898, %v1816, 0.0
  %v1940 = vsel %vm1899, %v1817, 0.0
  %v1941 = vsel %vm1900, %v1818, 0.0
  %v1942 = vsel %vm1901, %v1819, 0.0
  %v1943 = vsel %vm1902, %v1820, 0.0
  %v1944 = vsel %vm1903, %v1821, 0.0
  %v1945 = vsel %vm1904, %v1822, 0.0
  %v1946 = vsel %vm1905, %v1823, 0.0
  %v1947 = vsel %vm1906, %v1824, 0.0
  %v1948 = vsel %vm1907, %v1825, 0.0
  %v1949 = vsel %vm1908, %v1826, 0.0
  %v1950 = vsel %vm1909, %v1827, 0.0
  %v1951 = vsel %vm1910, %v1828, 0.0
  %v1952 = vsel %vm1911, %v1829, 0.0
  %v1953 = vsel %vm1912, %v1830, 0.0
  %v1954 = vsel %vm1913, %v1831, 0.0
  %v1955 = vsel %vm1914, %v1832, 0.0
  %v1956 = vsel %vm1915, %v1833, 0.0
  %v1957 = vsel %vm1916, %v1834, 0.0
  %v1958 = vsel %vm1917, %v1835, 0.0
  %v1959 = vsel %vm1918, %v1836, 0.0
  %v1960 = vsel %vm1919, %v1837, 0.0
  %v1961 = vsel %vm1920, %v1838, 0.0
  %v1962 = vsel %vm1921, %v1839, 0.0
  %v1963 = vsel %vm1922, %v1840, 0.0
  %v1964 = vsel %vm1923, %v1841, 0.0
  %v1965 = vsel %vm1924, %v1842, 0.0
  %v1966 = vsel %vm1925, %v1843, 0.0
  %v1967 = vsel %vm1926, %v1844, 0.0
  %v1968 = vsel %vm1927, %v1845, 0.0
  %v1969 = vsel %vm1928, %v1846, 0.0
  %v1970 = vsel %vm1929, %v1847, 0.0
  %v1971 = vsel %vm1930, %v1848, 0.0
  %v1972 = vsel %vm1931, %v1849, 0.0
  %v1973 = vsel %vm1932, %v1850, 0.0
  %v1974 = vsel %vm1933, %v1851, 0.0
  %v1975 = vsel %vm1934, %v1852, 0.0
  %v1976 = vsel %vm1935, %v1853, 0.0
  %v1977 = vsel %vm1936, %v1854, 0.0
  %v1978 = vsel %vm1937, %v1855, 0.0
  %v1979 = vsel %vm1938, %v1856, 0.0
  %vm1980 = vcmask 261120
  %v1981 = vsel %vm1980, %v1939, 0.0
  %v1982 = vsel %vm1980, %v1940, 0.0
  %v1983 = vadd.f32 %v1981, %v1982
  %v1984 = vsel %vm1980, %v1941, 0.0
  %v1985 = vadd.f32 %v1983, %v1984
  %v1986 = vsel %vm1980, %v1942, 0.0
  %v1987 = vadd.f32 %v1985, %v1986
  %v1988 = vsel %vm1980, %v1943, 0.0
  %v1989 = vadd.f32 %v1987, %v1988
  %v1990 = vsel %vm1980, %v1944, 0.0
  %v1991 = vadd.f32 %v1989, %v1990
  %v1992 = vsel %vm1980, %v1945, 0.0
  %v1993 = vadd.f32 %v1991, %v1992
  %v1994 = vsel %vm1980, %v1946, 0.0
  %v1995 = vadd.f32 %v1993, %v1994
  %v1996 = vsel %vm1980, %v1947, 0.0
  %v1997 = vadd.f32 %v1995, %v1996
  %v1998 = vsel %vm1980, %v1948, 0.0
  %v1999 = vadd.f32 %v1997, %v1998
  %v2000 = vsel %vm1980, %v1949, 0.0
  %v2001 = vadd.f32 %v1999, %v2000
  %v2002 = vsel %vm1980, %v1950, 0.0
  %v2003 = vadd.f32 %v2001, %v2002
  %v2004 = vsel %vm1980, %v1951, 0.0
  %v2005 = vadd.f32 %v2003, %v2004
  %v2006 = vsel %vm1980, %v1952, 0.0
  %v2007 = vadd.f32 %v2005, %v2006
  %v2008 = vsel %vm1980, %v1953, 0.0
  %v2009 = vadd.f32 %v2007, %v2008
  %v2010 = vsel %vm1980, %v1954, 0.0
  %v2011 = vadd.f32 %v2009, %v2010
  %v2012 = vsel %vm1980, %v1955, 0.0
  %v2013 = vadd.f32 %v2011, %v2012
  %v2014 = vsel %vm1980, %v1956, 0.0
  %v2015 = vadd.f32 %v2013, %v2014
  %v2016 = vsel %vm1980, %v1957, 0.0
  %v2017 = vadd.f32 %v2015, %v2016
  %v2018 = vsel %vm1980, %v1958, 0.0
  %v2019 = vadd.f32 %v2017, %v2018
  %v2020 = vsel %vm1980, %v1959, 0.0
  %v2021 = vadd.f32 %v2019, %v2020
  %v2022 = vsel %vm1980, %v1960, 0.0
  %v2023 = vadd.f32 %v2021, %v2022
  %v2024 = vsel %vm1980, %v1961, 0.0
  %v2025 = vadd.f32 %v2023, %v2024
  %v2026 = vsel %vm1980, %v1962, 0.0
  %v2027 = vadd.f32 %v2025, %v2026
  %v2028 = vsel %vm1980, %v1963, 0.0
  %v2029 = vadd.f32 %v2027, %v2028
  %v2030 = vsel %vm1980, %v1964, 0.0
  %v2031 = vadd.f32 %v2029, %v2030
  %v2032 = vsel %vm1980, %v1965, 0.0
  %v2033 = vadd.f32 %v2031, %v2032
  %v2034 = vsel %vm1980, %v1966, 0.0
  %v2035 = vadd.f32 %v2033, %v2034
  %v2036 = vsel %vm1980, %v1967, 0.0
  %v2037 = vadd.f32 %v2035, %v2036
  %v2038 = vsel %vm1980, %v1968, 0.0
  %v2039 = vadd.f32 %v2037, %v2038
  %v2040 = vsel %vm1980, %v1969, 0.0
  %v2041 = vadd.f32 %v2039, %v2040
  %v2042 = vsel %vm1980, %v1970, 0.0
  %v2043 = vadd.f32 %v2041, %v2042
  %v2044 = vsel %vm1980, %v1971, 0.0
  %v2045 = vadd.f32 %v2043, %v2044
  %v2046 = vsel %vm1980, %v1972, 0.0
  %v2047 = vadd.f32 %v2045, %v2046
  %v2048 = vsel %vm1980, %v1973, 0.0
  %v2049 = vadd.f32 %v2047, %v2048
  %v2050 = vsel %vm1980, %v1974, 0.0
  %v2051 = vadd.f32 %v2049, %v2050
  %v2052 = vsel %vm1980, %v1975, 0.0
  %v2053 = vadd.f32 %v2051, %v2052
  %v2054 = vsel %vm1980, %v1976, 0.0
  %v2055 = vadd.f32 %v2053, %v2054
  %v2056 = vsel %vm1980, %v1977, 0.0
  %v2057 = vadd.f32 %v2055, %v2056
  %v2058 = vsel %vm1980, %v1978, 0.0
  %v2059 = vadd.f32 %v2057, %v2058
  %v2060 = vsel %vm1980, %v1979, 0.0
  %v2061 = vadd.f32 %v2059, %v2060
  %v2062 = vrot.slane %v2061, 4
  %v2063 = vadd.f32 %v2061, %v2062
  %v2064 = vrot.slane %v2063, 2
  %v2065 = vadd.f32 %v2063, %v2064
  %v2066 = vrot.slane %v2065, 1
  %v2067 = vadd.f32 %v2065, %v2066
  %v2068 = vmul.f32 %v1939, %v1939
  %v2069 = vmul.f32 %v1940, %v1940
  %v2070 = vmul.f32 %v1941, %v1941
  %v2071 = vmul.f32 %v1942, %v1942
  %v2072 = vmul.f32 %v1943, %v1943
  %v2073 = vmul.f32 %v1944, %v1944
  %v2074 = vmul.f32 %v1945, %v1945
  %v2075 = vmul.f32 %v1946, %v1946
  %v2076 = vmul.f32 %v1947, %v1947
  %v2077 = vmul.f32 %v1948, %v1948
  %v2078 = vmul.f32 %v1949, %v1949
  %v2079 = vmul.f32 %v1950, %v1950
  %v2080 = vmul.f32 %v1951, %v1951
  %v2081 = vmul.f32 %v1952, %v1952
  %v2082 = vmul.f32 %v1953, %v1953
  %v2083 = vmul.f32 %v1954, %v1954
  %v2084 = vmul.f32 %v1955, %v1955
  %v2085 = vmul.f32 %v1956, %v1956
  %v2086 = vmul.f32 %v1957, %v1957
  %v2087 = vmul.f32 %v1958, %v1958
  %v2088 = vmul.f32 %v1959, %v1959
  %v2089 = vmul.f32 %v1960, %v1960
  %v2090 = vmul.f32 %v1961, %v1961
  %v2091 = vmul.f32 %v1962, %v1962
  %v2092 = vmul.f32 %v1963, %v1963
  %v2093 = vmul.f32 %v1964, %v1964
  %v2094 = vmul.f32 %v1965, %v1965
  %v2095 = vmul.f32 %v1966, %v1966
  %v2096 = vmul.f32 %v1967, %v1967
  %v2097 = vmul.f32 %v1968, %v1968
  %v2098 = vmul.f32 %v1969, %v1969
  %v2099 = vmul.f32 %v1970, %v1970
  %v2100 = vmul.f32 %v1971, %v1971
  %v2101 = vmul.f32 %v1972, %v1972
  %v2102 = vmul.f32 %v1973, %v1973
  %v2103 = vmul.f32 %v1974, %v1974
  %v2104 = vmul.f32 %v1975, %v1975
  %v2105 = vmul.f32 %v1976, %v1976
  %v2106 = vmul.f32 %v1977, %v1977
  %v2107 = vmul.f32 %v1978, %v1978
  %v2108 = vmul.f32 %v1979, %v1979
  %v2109 = vsel %vm1980, %v2068, 0.0
  %v2110 = vsel %vm1980, %v2069, 0.0
  %v2111 = vadd.f32 %v2109, %v2110
  %v2112 = vsel %vm1980, %v2070, 0.0
  %v2113 = vadd.f32 %v2111, %v2112
  %v2114 = vsel %vm1980, %v2071, 0.0
  %v2115 = vadd.f32 %v2113, %v2114
  %v2116 = vsel %vm1980, %v2072, 0.0
  %v2117 = vadd.f32 %v2115, %v2116
  %v2118 = vsel %vm1980, %v2073, 0.0
  %v2119 = vadd.f32 %v2117, %v2118
  %v2120 = vsel %vm1980, %v2074, 0.0
  %v2121 = vadd.f32 %v2119, %v2120
  %v2122 = vsel %vm1980, %v2075, 0.0
  %v2123 = vadd.f32 %v2121, %v2122
  %v2124 = vsel %vm1980, %v2076, 0.0
  %v2125 = vadd.f32 %v2123, %v2124
  %v2126 = vsel %vm1980, %v2077, 0.0
  %v2127 = vadd.f32 %v2125, %v2126
  %v2128 = vsel %vm1980, %v2078, 0.0
  %v2129 = vadd.f32 %v2127, %v2128
  %v2130 = vsel %vm1980, %v2079, 0.0
  %v2131 = vadd.f32 %v2129, %v2130
  %v2132 = vsel %vm1980, %v2080, 0.0
  %v2133 = vadd.f32 %v2131, %v2132
  %v2134 = vsel %vm1980, %v2081, 0.0
  %v2135 = vadd.f32 %v2133, %v2134
  %v2136 = vsel %vm1980, %v2082, 0.0
  %v2137 = vadd.f32 %v2135, %v2136
  %v2138 = vsel %vm1980, %v2083, 0.0
  %v2139 = vadd.f32 %v2137, %v2138
  %v2140 = vsel %vm1980, %v2084, 0.0
  %v2141 = vadd.f32 %v2139, %v2140
  %v2142 = vsel %vm1980, %v2085, 0.0
  %v2143 = vadd.f32 %v2141, %v2142
  %v2144 = vsel %vm1980, %v2086, 0.0
  %v2145 = vadd.f32 %v2143, %v2144
  %v2146 = vsel %vm1980, %v2087, 0.0
  %v2147 = vadd.f32 %v2145, %v2146
  %v2148 = vsel %vm1980, %v2088, 0.0
  %v2149 = vadd.f32 %v2147, %v2148
  %v2150 = vsel %vm1980, %v2089, 0.0
  %v2151 = vadd.f32 %v2149, %v2150
  %v2152 = vsel %vm1980, %v2090, 0.0
  %v2153 = vadd.f32 %v2151, %v2152
  %v2154 = vsel %vm1980, %v2091, 0.0
  %v2155 = vadd.f32 %v2153, %v2154
  %v2156 = vsel %vm1980, %v2092, 0.0
  %v2157 = vadd.f32 %v2155, %v2156
  %v2158 = vsel %vm1980, %v2093, 0.0
  %v2159 = vadd.f32 %v2157, %v2158
  %v2160 = vsel %vm1980, %v2094, 0.0
  %v2161 = vadd.f32 %v2159, %v2160
  %v2162 = vsel %vm1980, %v2095, 0.0
  %v2163 = vadd.f32 %v2161, %v2162
  %v2164 = vsel %vm1980, %v2096, 0.0
  %v2165 = vadd.f32 %v2163, %v2164
  %v2166 = vsel %vm1980, %v2097, 0.0
  %v2167 = vadd.f32 %v2165, %v2166
  %v2168 = vsel %vm1980, %v2098, 0.0
  %v2169 = vadd.f32 %v2167, %v2168
  %v2170 = vsel %vm1980, %v2099, 0.0
  %v2171 = vadd.f32 %v2169, %v2170
  %v2172 = vsel %vm1980, %v2100, 0.0
  %v2173 = vadd.f32 %v2171, %v2172
  %v2174 = vsel %vm1980, %v2101, 0.0
  %v2175 = vadd.f32 %v2173, %v2174
  %v2176 = vsel %vm1980, %v2102, 0.0
  %v2177 = vadd.f32 %v2175, %v2176
  %v2178 = vsel %vm1980, %v2103, 0.0
  %v2179 = vadd.f32 %v2177, %v2178
  %v2180 = vsel %vm1980, %v2104, 0.0
  %v2181 = vadd.f32 %v2179, %v2180
  %v2182 = vsel %vm1980, %v2105, 0.0
  %v2183 = vadd.f32 %v2181, %v2182
  %v2184 = vsel %vm1980, %v2106, 0.0
  %v2185 = vadd.f32 %v2183, %v2184
  %v2186 = vsel %vm1980, %v2107, 0.0
  %v2187 = vadd.f32 %v2185, %v2186
  %v2188 = vsel %vm1980, %v2108, 0.0
  %v2189 = vadd.f32 %v2187, %v2188
  %v2190 = vrot.slane %v2189, 4
  %v2191 = vadd.f32 %v2189, %v2190
  %v2192 = vrot.slane %v2191, 2
  %v2193 = vadd.f32 %v2191, %v2192
  %v2194 = vrot.slane %v2193, 1
  %v2195 = vadd.f32 %v2193, %v2194
  %v2196 = vmul.f32 %v2067, 0.00390625
  %v2197 = vmul.f32 %v2196, %v2067
  %v2198 = vsub.f32 %v2195, %v2197
  %v2199 = vmax.f32 %v2198, 0.0
  %v2200 = vmul.f32 %v2199, 0.003921569
  %v2201 = vrsqrt.pop %v2200
  %v2202 = vmul.f32 %v2201, %v2200
  %v2203 = vmul.f32 %v2202, %v2201
  %v2204 = vmul.f32 0.5, %v2203
  %v2205 = vsub.f32 1.5, %v2204
  %v2206 = vmul.f32 %v2201, %v2205
  %v2207 = vmul.f32 %v2200, %v2206
  %vm2208 = vcmp.eq.f32.partialorder %v2200, inf
  %v2209 = vsel %vm2208, %v2200, %v2207
  %vm2210 = vcmp.eq.f32.partialorder %v2200, 0.0
  %v2211 = vand.u32 %v2200, 2147483648
  %v2212 = vsel %vm2210, %v2211, %v2209
  %v2213 = vadd.f32 %v2212, 1e-07
  %v2214 = vrcp.pop %v2213
  %v2215 = vsub.f32 %v1939, %v2196
  %v2216 = vsub.f32 %v1940, %v2196
  %v2217 = vsub.f32 %v1941, %v2196
  %v2218 = vsub.f32 %v1942, %v2196
  %v2219 = vsub.f32 %v1943, %v2196
  %v2220 = vsub.f32 %v1944, %v2196
  %v2221 = vsub.f32 %v1945, %v2196
  %v2222 = vsub.f32 %v1946, %v2196
  %v2223 = vsub.f32 %v1947, %v2196
  %v2224 = vsub.f32 %v1948, %v2196
  %v2225 = vsub.f32 %v1949, %v2196
  %v2226 = vsub.f32 %v1950, %v2196
  %v2227 = vsub.f32 %v1951, %v2196
  %v2228 = vsub.f32 %v1952, %v2196
  %v2229 = vsub.f32 %v1953, %v2196
  %v2230 = vsub.f32 %v1954, %v2196
  %v2231 = vsub.f32 %v1955, %v2196
  %v2232 = vsub.f32 %v1956, %v2196
  %v2233 = vsub.f32 %v1957, %v2196
  %v2234 = vsub.f32 %v1958, %v2196
  %v2235 = vsub.f32 %v1959, %v2196
  %v2236 = vsub.f32 %v1960, %v2196
  %v2237 = vsub.f32 %v1961, %v2196
  %v2238 = vsub.f32 %v1962, %v2196
  %v2239 = vsub.f32 %v1963, %v2196
  %v2240 = vsub.f32 %v1964, %v2196
  %v2241 = vsub.f32 %v1965, %v2196
  %v2242 = vsub.f32 %v1966, %v2196
  %v2243 = vsub.f32 %v1967, %v2196
  %v2244 = vsub.f32 %v1968, %v2196
  %v2245 = vsub.f32 %v1969, %v2196
  %v2246 = vsub.f32 %v1970, %v2196
  %v2247 = vsub.f32 %v1971, %v2196
  %v2248 = vsub.f32 %v1972, %v2196
  %v2249 = vsub.f32 %v1973, %v2196
  %v2250 = vsub.f32 %v1974, %v2196
  %v2251 = vsub.f32 %v1975, %v2196
  %v2252 = vsub.f32 %v1976, %v2196
  %v2253 = vsub.f32 %v1977, %v2196
  %v2254 = vsub.f32 %v1978, %v2196
  %v2255 = vsub.f32 %v1979, %v2196
  %v2256 = vmul.f32 %v2215, %v2214
  %v2257 = vmul.f32 %v2216, %v2214
  %v2258 = vmul.f32 %v2217, %v2214
  %v2259 = vmul.f32 %v2218, %v2214
  %v2260 = vmul.f32 %v2219, %v2214
  %v2261 = vmul.f32 %v2220, %v2214
  %v2262 = vmul.f32 %v2221, %v2214
  %v2263 = vmul.f32 %v2222, %v2214
  %v2264 = vmul.f32 %v2223, %v2214
  %v2265 = vmul.f32 %v2224, %v2214
  %v2266 = vmul.f32 %v2225, %v2214
  %v2267 = vmul.f32 %v2226, %v2214
  %v2268 = vmul.f32 %v2227, %v2214
  %v2269 = vmul.f32 %v2228, %v2214
  %v2270 = vmul.f32 %v2229, %v2214
  %v2271 = vmul.f32 %v2230, %v2214
  %v2272 = vmul.f32 %v2231, %v2214
  %v2273 = vmul.f32 %v2232, %v2214
  %v2274 = vmul.f32 %v2233, %v2214
  %v2275 = vmul.f32 %v2234, %v2214
  %v2276 = vmul.f32 %v2235, %v2214
  %v2277 = vmul.f32 %v2236, %v2214
  %v2278 = vmul.f32 %v2237, %v2214
  %v2279 = vmul.f32 %v2238, %v2214
  %v2280 = vmul.f32 %v2239, %v2214
  %v2281 = vmul.f32 %v2240, %v2214
  %v2282 = vmul.f32 %v2241, %v2214
  %v2283 = vmul.f32 %v2242, %v2214
  %v2284 = vmul.f32 %v2243, %v2214
  %v2285 = vmul.f32 %v2244, %v2214
  %v2286 = vmul.f32 %v2245, %v2214
  %v2287 = vmul.f32 %v2246, %v2214
  %v2288 = vmul.f32 %v2247, %v2214
  %v2289 = vmul.f32 %v2248, %v2214
  %v2290 = vmul.f32 %v2249, %v2214
  %v2291 = vmul.f32 %v2250, %v2214
  %v2292 = vmul.f32 %v2251, %v2214
  %v2293 = vmul.f32 %v2252, %v2214
  %v2294 = vmul.f32 %v2253, %v2214
  %v2295 = vmul.f32 %v2254, %v2214
  %v2296 = vmul.f32 %v2255, %v2214
  %v2297 = vsel %vm1898, %v2256, 0.0
  %v2298 = vsel %vm1899, %v2257, 0.0
  %v2299 = vsel %vm1900, %v2258, 0.0
  %v2300 = vsel %vm1901, %v2259, 0.0
  %v2301 = vsel %vm1902, %v2260, 0.0
  %v2302 = vsel %vm1903, %v2261, 0.0
  %v2303 = vsel %vm1904, %v2262, 0.0
  %v2304 = vsel %vm1905, %v2263, 0.0
  %v2305 = vsel %vm1906, %v2264, 0.0
  %v2306 = vsel %vm1907, %v2265, 0.0
  %v2307 = vsel %vm1908, %v2266, 0.0
  %v2308 = vsel %vm1909, %v2267, 0.0
  %v2309 = vsel %vm1910, %v2268, 0.0
  %v2310 = vsel %vm1911, %v2269, 0.0
  %v2311 = vsel %vm1912, %v2270, 0.0
  %v2312 = vsel %vm1913, %v2271, 0.0
  %v2313 = vsel %vm1914, %v2272, 0.0
  %v2314 = vsel %vm1915, %v2273, 0.0
  %v2315 = vsel %vm1916, %v2274, 0.0
  %v2316 = vsel %vm1917, %v2275, 0.0
  %v2317 = vsel %vm1918, %v2276, 0.0
  %v2318 = vsel %vm1919, %v2277, 0.0
  %v2319 = vsel %vm1920, %v2278, 0.0
  %v2320 = vsel %vm1921, %v2279, 0.0
  %v2321 = vsel %vm1922, %v2280, 0.0
  %v2322 = vsel %vm1923, %v2281, 0.0
  %v2323 = vsel %vm1924, %v2282, 0.0
  %v2324 = vsel %vm1925, %v2283, 0.0
  %v2325 = vsel %vm1926, %v2284, 0.0
  %v2326 = vsel %vm1927, %v2285, 0.0
  %v2327 = vsel %vm1928, %v2286, 0.0
  %v2328 = vsel %vm1929, %v2287, 0.0
  %v2329 = vsel %vm1930, %v2288, 0.0
  %v2330 = vsel %vm1931, %v2289, 0.0
  %v2331 = vsel %vm1932, %v2290, 0.0
  %v2332 = vsel %vm1933, %v2291, 0.0
  %v2333 = vsel %vm1934, %v2292, 0.0
  %v2334 = vsel %vm1935, %v2293, 0.0
  %v2335 = vsel %vm1936, %v2294, 0.0
  %v2336 = vsel %vm1937, %v2295, 0.0
  %v2337 = vsel %vm1938, %v2296, 0.0
  %v2338 = vrot.slane %v2297, 7
  %v2339 = vrot.slane %v2298, 7
  %v2340 = vrot.slane %v2299, 7
  %v2341 = vrot.slane %v2300, 7
  %v2342 = vrot.slane %v2301, 7
  %v2343 = vrot.slane %v2302, 7
  %v2344 = vrot.slane %v2303, 7
  %v2345 = vrot.slane %v2304, 7
  %v2346 = vrot.slane %v2305, 7
  %v2347 = vrot.slane %v2306, 7
  %v2348 = vrot.slane %v2307, 7
  %v2349 = vrot.slane %v2308, 7
  %v2350 = vrot.slane %v2309, 7
  %v2351 = vrot.slane %v2310, 7
  %v2352 = vrot.slane %v2311, 7
  %v2353 = vrot.slane %v2312, 7
  %v2354 = vrot.slane %v2313, 7
  %v2355 = vrot.slane %v2314, 7
  %v2356 = vrot.slane %v2315, 7
  %v2357 = vrot.slane %v2316, 7
  %v2358 = vrot.slane %v2317, 7
  %v2359 = vrot.slane %v2318, 7
  %v2360 = vrot.slane %v2319, 7
  %v2361 = vrot.slane %v2320, 7
  %v2362 = vrot.slane %v2321, 7
  %v2363 = vrot.slane %v2322, 7
  %v2364 = vrot.slane %v2323, 7
  %v2365 = vrot.slane %v2324, 7
  %v2366 = vrot.slane %v2325, 7
  %v2367 = vrot.slane %v2326, 7
  %v2368 = vrot.slane %v2327, 7
  %v2369 = vrot.slane %v2328, 7
  %v2370 = vrot.slane %v2329, 7
  %v2371 = vrot.slane %v2330, 7
  %v2372 = vrot.slane %v2331, 7
  %v2373 = vrot.slane %v2332, 7
  %v2374 = vrot.slane %v2333, 7
  %v2375 = vrot.slane %v2334, 7
  %v2376 = vrot.slane %v2335, 7
  %v2377 = vrot.slane %v2336, 7
  %v2378 = vrot.slane %v2337, 7
  %v2379 = vsel %vm444, %v2377, %v2378
  %v2380 = vsel %vm444, %v2376, %v2377
  %v2381 = vsel %vm444, %v2375, %v2376
  %v2382 = vsel %vm444, %v2374, %v2375
  %v2383 = vsel %vm444, %v2373, %v2374
  %v2384 = vsel %vm444, %v2372, %v2373
  %v2385 = vsel %vm444, %v2371, %v2372
  %v2386 = vsel %vm444, %v2370, %v2371
  %v2387 = vsel %vm444, %v2369, %v2370
  %v2388 = vsel %vm444, %v2368, %v2369
  %v2389 = vsel %vm444, %v2367, %v2368
  %v2390 = vsel %vm444, %v2366, %v2367
  %v2391 = vsel %vm444, %v2365, %v2366
  %v2392 = vsel %vm444, %v2364, %v2365
  %v2393 = vsel %vm444, %v2363, %v2364
  %v2394 = vsel %vm444, %v2362, %v2363
  %v2395 = vsel %vm444, %v2361, %v2362
  %v2396 = vsel %vm444, %v2360, %v2361
  %v2397 = vsel %vm444, %v2359, %v2360
  %v2398 = vsel %vm444, %v2358, %v2359
  %v2399 = vsel %vm444, %v2357, %v2358
  %v2400 = vsel %vm444, %v2356, %v2357
  %v2401 = vsel %vm444, %v2355, %v2356
  %v2402 = vsel %vm444, %v2354, %v2355
  %v2403 = vsel %vm444, %v2353, %v2354
  %v2404 = vsel %vm444, %v2352, %v2353
  %v2405 = vsel %vm444, %v2351, %v2352
  %v2406 = vsel %vm444, %v2350, %v2351
  %v2407 = vsel %vm444, %v2349, %v2350
  %v2408 = vsel %vm444, %v2348, %v2349
  %v2409 = vsel %vm444, %v2347, %v2348
  %v2410 = vsel %vm444, %v2346, %v2347
  %v2411 = vsel %vm444, %v2345, %v2346
  %v2412 = vsel %vm444, %v2344, %v2345
  %v2413 = vsel %vm444, %v2343, %v2344
  %v2414 = vsel %vm444, %v2342, %v2343
  %v2415 = vsel %vm444, %v2341, %v2342
  %v2416 = vsel %vm444, %v2340, %v2341
  %v2417 = vsel %vm444, %v2339, %v2340
  %v2418 = vsel %vm444, %v2338, %v2339
  %v2419 = vsel %vm444, %v2378, %v2338
  %v2420 = vrot.slane %v2297, 1
  %v2421 = vrot.slane %v2298, 1
  %v2422 = vrot.slane %v2299, 1
  %v2423 = vrot.slane %v2300, 1
  %v2424 = vrot.slane %v2301, 1
  %v2425 = vrot.slane %v2302, 1
  %v2426 = vrot.slane %v2303, 1
  %v2427 = vrot.slane %v2304, 1
  %v2428 = vrot.slane %v2305, 1
  %v2429 = vrot.slane %v2306, 1
  %v2430 = vrot.slane %v2307, 1
  %v2431 = vrot.slane %v2308, 1
  %v2432 = vrot.slane %v2309, 1
  %v2433 = vrot.slane %v2310, 1
  %v2434 = vrot.slane %v2311, 1
  %v2435 = vrot.slane %v2312, 1
  %v2436 = vrot.slane %v2313, 1
  %v2437 = vrot.slane %v2314, 1
  %v2438 = vrot.slane %v2315, 1
  %v2439 = vrot.slane %v2316, 1
  %v2440 = vrot.slane %v2317, 1
  %v2441 = vrot.slane %v2318, 1
  %v2442 = vrot.slane %v2319, 1
  %v2443 = vrot.slane %v2320, 1
  %v2444 = vrot.slane %v2321, 1
  %v2445 = vrot.slane %v2322, 1
  %v2446 = vrot.slane %v2323, 1
  %v2447 = vrot.slane %v2324, 1
  %v2448 = vrot.slane %v2325, 1
  %v2449 = vrot.slane %v2326, 1
  %v2450 = vrot.slane %v2327, 1
  %v2451 = vrot.slane %v2328, 1
  %v2452 = vrot.slane %v2329, 1
  %v2453 = vrot.slane %v2330, 1
  %v2454 = vrot.slane %v2331, 1
  %v2455 = vrot.slane %v2332, 1
  %v2456 = vrot.slane %v2333, 1
  %v2457 = vrot.slane %v2334, 1
  %v2458 = vrot.slane %v2335, 1
  %v2459 = vrot.slane %v2336, 1
  %v2460 = vrot.slane %v2337, 1
  %v2461 = vsel %vm527, %v2459, %v2460
  %v2462 = vsel %vm527, %v2458, %v2459
  %v2463 = vsel %vm527, %v2457, %v2458
  %v2464 = vsel %vm527, %v2456, %v2457
  %v2465 = vsel %vm527, %v2455, %v2456
  %v2466 = vsel %vm527, %v2454, %v2455
  %v2467 = vsel %vm527, %v2453, %v2454
  %v2468 = vsel %vm527, %v2452, %v2453
  %v2469 = vsel %vm527, %v2451, %v2452
  %v2470 = vsel %vm527, %v2450, %v2451
  %v2471 = vsel %vm527, %v2449, %v2450
  %v2472 = vsel %vm527, %v2448, %v2449
  %v2473 = vsel %vm527, %v2447, %v2448
  %v2474 = vsel %vm527, %v2446, %v2447
  %v2475 = vsel %vm527, %v2445, %v2446
  %v2476 = vsel %vm527, %v2444, %v2445
  %v2477 = vsel %vm527, %v2443, %v2444
  %v2478 = vsel %vm527, %v2442, %v2443
  %v2479 = vsel %vm527, %v2441, %v2442
  %v2480 = vsel %vm527, %v2440, %v2441
  %v2481 = vsel %vm527, %v2439, %v2440
  %v2482 = vsel %vm527, %v2438, %v2439
  %v2483 = vsel %vm527, %v2437, %v2438
  %v2484 = vsel %vm527, %v2436, %v2437
  %v2485 = vsel %vm527, %v2435, %v2436
  %v2486 = vsel %vm527, %v2434, %v2435
  %v2487 = vsel %vm527, %v2433, %v2434
  %v2488 = vsel %vm527, %v2432, %v2433
  %v2489 = vsel %vm527, %v2431, %v2432
  %v2490 = vsel %vm527, %v2430, %v2431
  %v2491 = vsel %vm527, %v2429, %v2430
  %v2492 = vsel %vm527, %v2428, %v2429
  %v2493 = vsel %vm527, %v2427, %v2428
  %v2494 = vsel %vm527, %v2426, %v2427
  %v2495 = vsel %vm527, %v2425, %v2426
  %v2496 = vsel %vm527, %v2424, %v2425
  %v2497 = vsel %vm527, %v2423, %v2424
  %v2498 = vsel %vm527, %v2422, %v2423
  %v2499 = vsel %vm527, %v2421, %v2422
  %v2500 = vsel %vm527, %v2420, %v2421
  %v2501 = vsel %vm527, %v2460, %v2420
  %2543 = vrot.lane.b32.xlu0 %v2297, 32
  %v2544 = vpop.permute.xlu0 %2543
  %2545 = vrot.lane.b32.xlu0 %v2298, 32
  %v2546 = vpop.permute.xlu0 %2545
  %2547 = vrot.lane.b32.xlu0 %v2299, 32
  %v2548 = vpop.permute.xlu0 %2547
  %2549 = vrot.lane.b32.xlu0 %v2300, 32
  %v2550 = vpop.permute.xlu0 %2549
  %2551 = vrot.lane.b32.xlu0 %v2301, 32
  %v2552 = vpop.permute.xlu0 %2551
  %2553 = vrot.lane.b32.xlu0 %v2302, 32
  %v2554 = vpop.permute.xlu0 %2553
  %2555 = vrot.lane.b32.xlu0 %v2303, 32
  %v2556 = vpop.permute.xlu0 %2555
  %2557 = vrot.lane.b32.xlu0 %v2304, 32
  %v2558 = vpop.permute.xlu0 %2557
  %2559 = vrot.lane.b32.xlu0 %v2305, 32
  %v2560 = vpop.permute.xlu0 %2559
  %2561 = vrot.lane.b32.xlu0 %v2306, 32
  %v2562 = vpop.permute.xlu0 %2561
  %2563 = vrot.lane.b32.xlu0 %v2307, 32
  %v2564 = vpop.permute.xlu0 %2563
  %2565 = vrot.lane.b32.xlu0 %v2308, 32
  %v2566 = vpop.permute.xlu0 %2565
  %2567 = vrot.lane.b32.xlu0 %v2309, 32
  %v2568 = vpop.permute.xlu0 %2567
  %2569 = vrot.lane.b32.xlu0 %v2310, 32
  %v2570 = vpop.permute.xlu0 %2569
  %2571 = vrot.lane.b32.xlu0 %v2311, 32
  %v2572 = vpop.permute.xlu0 %2571
  %2573 = vrot.lane.b32.xlu0 %v2312, 32
  %v2574 = vpop.permute.xlu0 %2573
  %2575 = vrot.lane.b32.xlu0 %v2313, 32
  %v2576 = vpop.permute.xlu0 %2575
  %2577 = vrot.lane.b32.xlu0 %v2314, 32
  %v2578 = vpop.permute.xlu0 %2577
  %2579 = vrot.lane.b32.xlu0 %v2315, 32
  %v2580 = vpop.permute.xlu0 %2579
  %2581 = vrot.lane.b32.xlu0 %v2316, 32
  %v2582 = vpop.permute.xlu0 %2581
  %2583 = vrot.lane.b32.xlu0 %v2317, 32
  %v2584 = vpop.permute.xlu0 %2583
  %2585 = vrot.lane.b32.xlu0 %v2318, 32
  %v2586 = vpop.permute.xlu0 %2585
  %2587 = vrot.lane.b32.xlu0 %v2319, 32
  %v2588 = vpop.permute.xlu0 %2587
  %2589 = vrot.lane.b32.xlu0 %v2320, 32
  %v2590 = vpop.permute.xlu0 %2589
  %2591 = vrot.lane.b32.xlu0 %v2321, 32
  %v2592 = vpop.permute.xlu0 %2591
  %2593 = vrot.lane.b32.xlu0 %v2322, 32
  %v2594 = vpop.permute.xlu0 %2593
  %2595 = vrot.lane.b32.xlu0 %v2323, 32
  %v2596 = vpop.permute.xlu0 %2595
  %2597 = vrot.lane.b32.xlu0 %v2324, 32
  %v2598 = vpop.permute.xlu0 %2597
  %2599 = vrot.lane.b32.xlu0 %v2325, 32
  %v2600 = vpop.permute.xlu0 %2599
  %2601 = vrot.lane.b32.xlu0 %v2326, 32
  %v2602 = vpop.permute.xlu0 %2601
  %2603 = vrot.lane.b32.xlu0 %v2327, 32
  %v2604 = vpop.permute.xlu0 %2603
  %2605 = vrot.lane.b32.xlu0 %v2328, 32
  %v2606 = vpop.permute.xlu0 %2605
  %2607 = vrot.lane.b32.xlu0 %v2329, 32
  %v2608 = vpop.permute.xlu0 %2607
  %2609 = vrot.lane.b32.xlu0 %v2330, 32
  %v2610 = vpop.permute.xlu0 %2609
  %2611 = vrot.lane.b32.xlu0 %v2331, 32
  %v2612 = vpop.permute.xlu0 %2611
  %2613 = vrot.lane.b32.xlu0 %v2332, 32
  %v2614 = vpop.permute.xlu0 %2613
  %2615 = vrot.lane.b32.xlu0 %v2333, 32
  %v2616 = vpop.permute.xlu0 %2615
  %2617 = vrot.lane.b32.xlu0 %v2334, 32
  %v2618 = vpop.permute.xlu0 %2617
  %2619 = vrot.lane.b32.xlu0 %v2335, 32
  %v2620 = vpop.permute.xlu0 %2619
  %2621 = vrot.lane.b32.xlu0 %v2336, 32
  %v2622 = vpop.permute.xlu0 %2621
  %2623 = vrot.lane.b32.xlu0 %v2337, 32
  %v2624 = vpop.permute.xlu0 %2623
  %2707 = vrot.lane.b32.xlu0 %v2500, 64
  %v2708 = vpop.permute.xlu0 %2707
  %2709 = vrot.lane.b32.xlu0 %v2499, 64
  %v2710 = vpop.permute.xlu0 %2709
  %2711 = vrot.lane.b32.xlu0 %v2498, 64
  %v2712 = vpop.permute.xlu0 %2711
  %2713 = vrot.lane.b32.xlu0 %v2497, 64
  %v2714 = vpop.permute.xlu0 %2713
  %2715 = vrot.lane.b32.xlu0 %v2496, 64
  %v2716 = vpop.permute.xlu0 %2715
  %2717 = vrot.lane.b32.xlu0 %v2495, 64
  %v2718 = vpop.permute.xlu0 %2717
  %2719 = vrot.lane.b32.xlu0 %v2494, 64
  %v2720 = vpop.permute.xlu0 %2719
  %2721 = vrot.lane.b32.xlu0 %v2493, 64
  %v2722 = vpop.permute.xlu0 %2721
  %2723 = vrot.lane.b32.xlu0 %v2492, 64
  %v2724 = vpop.permute.xlu0 %2723
  %2725 = vrot.lane.b32.xlu0 %v2491, 64
  %v2726 = vpop.permute.xlu0 %2725
  %2727 = vrot.lane.b32.xlu0 %v2490, 64
  %v2728 = vpop.permute.xlu0 %2727
  %2729 = vrot.lane.b32.xlu0 %v2489, 64
  %v2730 = vpop.permute.xlu0 %2729
  %2731 = vrot.lane.b32.xlu0 %v2488, 64
  %v2732 = vpop.permute.xlu0 %2731
  %2733 = vrot.lane.b32.xlu0 %v2487, 64
  %v2734 = vpop.permute.xlu0 %2733
  %2735 = vrot.lane.b32.xlu0 %v2486, 64
  %v2736 = vpop.permute.xlu0 %2735
  %2737 = vrot.lane.b32.xlu0 %v2485, 64
  %v2738 = vpop.permute.xlu0 %2737
  %2739 = vrot.lane.b32.xlu0 %v2484, 64
  %v2740 = vpop.permute.xlu0 %2739
  %2741 = vrot.lane.b32.xlu0 %v2483, 64
  %v2742 = vpop.permute.xlu0 %2741
  %2743 = vrot.lane.b32.xlu0 %v2482, 64
  %v2744 = vpop.permute.xlu0 %2743
  %2745 = vrot.lane.b32.xlu0 %v2481, 64
  %v2746 = vpop.permute.xlu0 %2745
  %2747 = vrot.lane.b32.xlu0 %v2480, 64
  %v2748 = vpop.permute.xlu0 %2747
  %2749 = vrot.lane.b32.xlu0 %v2479, 64
  %v2750 = vpop.permute.xlu0 %2749
  %2751 = vrot.lane.b32.xlu0 %v2478, 64
  %v2752 = vpop.permute.xlu0 %2751
  %2753 = vrot.lane.b32.xlu0 %v2477, 64
  %v2754 = vpop.permute.xlu0 %2753
  %2755 = vrot.lane.b32.xlu0 %v2476, 64
  %v2756 = vpop.permute.xlu0 %2755
  %2757 = vrot.lane.b32.xlu0 %v2475, 64
  %v2758 = vpop.permute.xlu0 %2757
  %2759 = vrot.lane.b32.xlu0 %v2474, 64
  %v2760 = vpop.permute.xlu0 %2759
  %2761 = vrot.lane.b32.xlu0 %v2473, 64
  %v2762 = vpop.permute.xlu0 %2761
  %2763 = vrot.lane.b32.xlu0 %v2472, 64
  %v2764 = vpop.permute.xlu0 %2763
  %2765 = vrot.lane.b32.xlu0 %v2471, 64
  %v2766 = vpop.permute.xlu0 %2765
  %2767 = vrot.lane.b32.xlu0 %v2470, 64
  %v2768 = vpop.permute.xlu0 %2767
  %2769 = vrot.lane.b32.xlu0 %v2469, 64
  %v2770 = vpop.permute.xlu0 %2769
  %2771 = vrot.lane.b32.xlu0 %v2468, 64
  %v2772 = vpop.permute.xlu0 %2771
  %2773 = vrot.lane.b32.xlu0 %v2467, 64
  %v2774 = vpop.permute.xlu0 %2773
  %2775 = vrot.lane.b32.xlu0 %v2466, 64
  %v2776 = vpop.permute.xlu0 %2775
  %2777 = vrot.lane.b32.xlu0 %v2465, 64
  %v2778 = vpop.permute.xlu0 %2777
  %2779 = vrot.lane.b32.xlu0 %v2464, 64
  %v2780 = vpop.permute.xlu0 %2779
  %2781 = vrot.lane.b32.xlu0 %v2463, 64
  %v2782 = vpop.permute.xlu0 %2781
  %2783 = vrot.lane.b32.xlu0 %v2462, 64
  %v2784 = vpop.permute.xlu0 %2783
  %2785 = vrot.lane.b32.xlu0 %v2461, 64
  %v2786 = vpop.permute.xlu0 %2785
  %2787 = vrot.lane.b32.xlu0 %v2501, 64
  %v2788 = vpop.permute.xlu0 %2787
  %v2830 = vsel %vm1980, %v2419, %v2544
  %v2831 = vsel %vm1980, %v2418, %v2546
  %v2832 = vsel %vm1980, %v2417, %v2548
  %v2833 = vsel %vm1980, %v2416, %v2550
  %v2834 = vsel %vm1980, %v2415, %v2552
  %v2835 = vsel %vm1980, %v2414, %v2554
  %v2836 = vsel %vm1980, %v2413, %v2556
  %v2837 = vsel %vm1980, %v2412, %v2558
  %v2838 = vsel %vm1980, %v2411, %v2560
  %v2839 = vsel %vm1980, %v2410, %v2562
  %v2840 = vsel %vm1980, %v2409, %v2564
  %v2841 = vsel %vm1980, %v2408, %v2566
  %v2842 = vsel %vm1980, %v2407, %v2568
  %v2843 = vsel %vm1980, %v2406, %v2570
  %v2844 = vsel %vm1980, %v2405, %v2572
  %v2845 = vsel %vm1980, %v2404, %v2574
  %v2846 = vsel %vm1980, %v2403, %v2576
  %v2847 = vsel %vm1980, %v2402, %v2578
  %v2848 = vsel %vm1980, %v2401, %v2580
  %v2849 = vsel %vm1980, %v2400, %v2582
  %v2850 = vsel %vm1980, %v2399, %v2584
  %v2851 = vsel %vm1980, %v2398, %v2586
  %v2852 = vsel %vm1980, %v2397, %v2588
  %v2853 = vsel %vm1980, %v2396, %v2590
  %v2854 = vsel %vm1980, %v2395, %v2592
  %v2855 = vsel %vm1980, %v2394, %v2594
  %v2856 = vsel %vm1980, %v2393, %v2596
  %v2857 = vsel %vm1980, %v2392, %v2598
  %v2858 = vsel %vm1980, %v2391, %v2600
  %v2859 = vsel %vm1980, %v2390, %v2602
  %v2860 = vsel %vm1980, %v2389, %v2604
  %v2861 = vsel %vm1980, %v2388, %v2606
  %v2862 = vsel %vm1980, %v2387, %v2608
  %v2863 = vsel %vm1980, %v2386, %v2610
  %v2864 = vsel %vm1980, %v2385, %v2612
  %v2865 = vsel %vm1980, %v2384, %v2614
  %v2866 = vsel %vm1980, %v2383, %v2616
  %v2867 = vsel %vm1980, %v2382, %v2618
  %v2868 = vsel %vm1980, %v2381, %v2620
  %v2869 = vsel %vm1980, %v2380, %v2622
  %v2870 = vsel %vm1980, %v2379, %v2624
  %vm2871 = vcmask 523264
  %v2872 = vsel %vm2871, %v2830, %v2708
  %v2873 = vsel %vm2871, %v2831, %v2710
  %v2874 = vsel %vm2871, %v2832, %v2712
  %v2875 = vsel %vm2871, %v2833, %v2714
  %v2876 = vsel %vm2871, %v2834, %v2716
  %v2877 = vsel %vm2871, %v2835, %v2718
  %v2878 = vsel %vm2871, %v2836, %v2720
  %v2879 = vsel %vm2871, %v2837, %v2722
  %v2880 = vsel %vm2871, %v2838, %v2724
  %v2881 = vsel %vm2871, %v2839, %v2726
  %v2882 = vsel %vm2871, %v2840, %v2728
  %v2883 = vsel %vm2871, %v2841, %v2730
  %v2884 = vsel %vm2871, %v2842, %v2732
  %v2885 = vsel %vm2871, %v2843, %v2734
  %v2886 = vsel %vm2871, %v2844, %v2736
  %v2887 = vsel %vm2871, %v2845, %v2738
  %v2888 = vsel %vm2871, %v2846, %v2740
  %v2889 = vsel %vm2871, %v2847, %v2742
  %v2890 = vsel %vm2871, %v2848, %v2744
  %v2891 = vsel %vm2871, %v2849, %v2746
  %v2892 = vsel %vm2871, %v2850, %v2748
  %v2893 = vsel %vm2871, %v2851, %v2750
  %v2894 = vsel %vm2871, %v2852, %v2752
  %v2895 = vsel %vm2871, %v2853, %v2754
  %v2896 = vsel %vm2871, %v2854, %v2756
  %v2897 = vsel %vm2871, %v2855, %v2758
  %v2898 = vsel %vm2871, %v2856, %v2760
  %v2899 = vsel %vm2871, %v2857, %v2762
  %v2900 = vsel %vm2871, %v2858, %v2764
  %v2901 = vsel %vm2871, %v2859, %v2766
  %v2902 = vsel %vm2871, %v2860, %v2768
  %v2903 = vsel %vm2871, %v2861, %v2770
  %v2904 = vsel %vm2871, %v2862, %v2772
  %v2905 = vsel %vm2871, %v2863, %v2774
  %v2906 = vsel %vm2871, %v2864, %v2776
  %v2907 = vsel %vm2871, %v2865, %v2778
  %v2908 = vsel %vm2871, %v2866, %v2780
  %v2909 = vsel %vm2871, %v2867, %v2782
  %v2910 = vsel %vm2871, %v2868, %v2784
  %v2911 = vsel %vm2871, %v2869, %v2786
  %v2912 = vsel %vm2871, %v2870, %v2788
  %v2913 = vpack.c.bf16 %v2873, %v2872
  %v2914 = vpack.c.bf16 %v2875, %v2874
  %v2915 = vpack.c.bf16 %v2877, %v2876
  %v2916 = vpack.c.bf16 %v2879, %v2878
  %v2917 = vpack.c.bf16 %v2881, %v2880
  %v2918 = vpack.c.bf16 %v2883, %v2882
  %v2919 = vpack.c.bf16 %v2885, %v2884
  %v2920 = vpack.c.bf16 %v2887, %v2886
  %v2921 = vpack.c.bf16 %v2889, %v2888
  %v2922 = vpack.c.bf16 %v2891, %v2890
  %v2923 = vpack.c.bf16 %v2893, %v2892
  %v2924 = vpack.c.bf16 %v2895, %v2894
  %v2925 = vpack.c.bf16 %v2897, %v2896
  %v2926 = vpack.c.bf16 %v2899, %v2898
  %v2927 = vpack.c.bf16 %v2901, %v2900
  %v2928 = vpack.c.bf16 %v2903, %v2902
  %v2929 = vpack.c.bf16 %v2905, %v2904
  %v2930 = vpack.c.bf16 %v2907, %v2906
  %v2931 = vpack.c.bf16 %v2909, %v2908
  %v2932 = vpack.c.bf16 %v2911, %v2910
  %v2933 = vpack.c.bf16 %v2912, %v2912
  %v2934 = vld [vmem:[%s4] sm:$0x1]
  %v2935 = vld [vmem:[%s3] sm:$0xf]
  %v2936 = vld [vmem:[%s3 + $0x4] sm:$0xf]
  %v2937 = vld [vmem:[%s3 + $0x8] sm:$0xf]
  %v2938 = vld [vmem:[%s3 + $0xc] sm:$0xf]
  %v2939 = vld [vmem:[%s3 + $0x10] sm:$0xf]
  %v2940 = vld [vmem:[%s3 + $0x14] sm:$0xf]
  %v2941 = vld [vmem:[%s3 + $0x18] sm:$0xf]
  %v2942 = vld [vmem:[%s3 + $0x1c] sm:$0xf]
  %v2943 = vld [vmem:[%s3 + $0x20] sm:$0xf]
  %v2944 = vld [vmem:[%s3 + $0x24] sm:$0xf]
  %v2945 = vld [vmem:[%s3 + $0x28] sm:$0xf]
  %v2946 = vld [vmem:[%s3 + $0x2c] sm:$0xf]
  %v2959 = vunpack.c.l.b16 %v2935
  %v2960 = vunpack.c.l.b16 %v2936
  %v2961 = vunpack.c.l.b16 %v2937
  %v2962 = vunpack.c.l.b16 %v2938
  %v2963 = vunpack.c.l.b16 %v2939
  %v2964 = vunpack.c.l.b16 %v2940
  %v2965 = vunpack.c.l.b16 %v2941
  %v2966 = vunpack.c.l.b16 %v2942
  %v2967 = vunpack.c.l.b16 %v2943
  %v2968 = vunpack.c.l.b16 %v2944
  %v2969 = vunpack.c.l.b16 %v2945
  %v2970 = vunpack.c.l.b16 %v2946
  %v2971 = vpack.c.b16 %v2960, %v2959
  %v2972 = vpack.c.b16 %v2962, %v2961
  %v2973 = vpack.c.b16 %v2964, %v2963
  %v2974 = vpack.c.b16 %v2966, %v2965
  %v2975 = vpack.c.b16 %v2968, %v2967
  %v2976 = vpack.c.b16 %v2970, %v2969
  %vm2983 = vcmask 785408
  %v2985 = vsel %vm2983, %v2913, 0
  %v2988 = vsel %vm2983, %v2914, 0
  %v2991 = vsel %vm2983, %v2915, 0
  %v2994 = vsel %vm2983, %v2916, 0
  %v2997 = vsel %vm2983, %v2917, 0
  %v3000 = vsel %vm2983, %v2918, 0
  %v3003 = vsel %vm2983, %v2919, 0
  %v3006 = vsel %vm2983, %v2920, 0
  %v3009 = vsel %vm2983, %v2921, 0
  %v3012 = vsel %vm2983, %v2922, 0
  %v3015 = vsel %vm2983, %v2923, 0
  %v3018 = vsel %vm2983, %v2924, 0
  %v3021 = vsel %vm2983, %v2925, 0
  %v3024 = vsel %vm2983, %v2926, 0
  %v3027 = vsel %vm2983, %v2927, 0
  %v3030 = vsel %vm2983, %v2928, 0
  %v3033 = vsel %vm2983, %v2929, 0
  %v3036 = vsel %vm2983, %v2930, 0
  %v3039 = vsel %vm2983, %v2931, 0
  %v3042 = vsel %vm2983, %v2932, 0
  %v3045 = vsel %vm2983, %v2933, 0
  %3047 = vmatpush.bf16.msra.mxu0 0
  %3048 = vmatpush.bf16.msra.mxu0 0
  %3049 = vmatpush.bf16.msra.mxu0 %v2976
  %3050 = vmatpush.bf16.msra.mxu0 %v2975
  %3051 = vmatpush.bf16.msra.mxu0 %v2974
  %3052 = vmatpush.bf16.msra.mxu0 %v2973
  %3053 = vmatpush.bf16.msra.mxu0 %v2972
  %3054 = vmatpush.bf16.msra.mxu0 %v2971
  %3055 = vmatmul.bf16.gmra.mxu0 %v2985
  %v3056 = vpop.f32.mrf.mxu0
  %v3057 = vadd.f32 0.0, %v3056
  %v3058 = vpop.f32.mrf.mxu0
  %v3059 = vadd.f32 0.0, %v3058
  %3060 = vmatmul.bf16.gmra.mxu0 %v2988
  %v3061 = vpop.f32.mrf.mxu0
  %v3062 = vadd.f32 0.0, %v3061
  %v3063 = vpop.f32.mrf.mxu0
  %v3064 = vadd.f32 0.0, %v3063
  %3065 = vmatmul.bf16.gmra.mxu0 %v2991
  %v3066 = vpop.f32.mrf.mxu0
  %v3067 = vadd.f32 0.0, %v3066
  %v3068 = vpop.f32.mrf.mxu0
  %v3069 = vadd.f32 0.0, %v3068
  %3070 = vmatmul.bf16.gmra.mxu0 %v2994
  %v3071 = vpop.f32.mrf.mxu0
  %v3072 = vadd.f32 0.0, %v3071
  %v3073 = vpop.f32.mrf.mxu0
  %v3074 = vadd.f32 0.0, %v3073
  %3075 = vmatmul.bf16.gmra.mxu0 %v2997
  %v3076 = vpop.f32.mrf.mxu0
  %v3077 = vadd.f32 0.0, %v3076
  %v3078 = vpop.f32.mrf.mxu0
  %v3079 = vadd.f32 0.0, %v3078
  %3080 = vmatmul.bf16.gmra.mxu0 %v3000
  %v3081 = vpop.f32.mrf.mxu0
  %v3082 = vadd.f32 0.0, %v3081
  %v3083 = vpop.f32.mrf.mxu0
  %v3084 = vadd.f32 0.0, %v3083
  %3085 = vmatmul.bf16.gmra.mxu0 %v3003
  %v3086 = vpop.f32.mrf.mxu0
  %v3087 = vadd.f32 0.0, %v3086
  %v3088 = vpop.f32.mrf.mxu0
  %v3089 = vadd.f32 0.0, %v3088
  %3090 = vmatmul.bf16.gmra.mxu0 %v3006
  %v3091 = vpop.f32.mrf.mxu0
  %v3092 = vadd.f32 0.0, %v3091
  %v3093 = vpop.f32.mrf.mxu0
  %v3094 = vadd.f32 0.0, %v3093
  %3095 = vmatmul.bf16.gmra.mxu0 %v3009
  %v3096 = vpop.f32.mrf.mxu0
  %v3097 = vadd.f32 0.0, %v3096
  %v3098 = vpop.f32.mrf.mxu0
  %v3099 = vadd.f32 0.0, %v3098
  %3100 = vmatmul.bf16.gmra.mxu0 %v3012
  %v3101 = vpop.f32.mrf.mxu0
  %v3102 = vadd.f32 0.0, %v3101
  %v3103 = vpop.f32.mrf.mxu0
  %v3104 = vadd.f32 0.0, %v3103
  %3105 = vmatmul.bf16.gmra.mxu0 %v3015
  %v3106 = vpop.f32.mrf.mxu0
  %v3107 = vadd.f32 0.0, %v3106
  %v3108 = vpop.f32.mrf.mxu0
  %v3109 = vadd.f32 0.0, %v3108
  %3110 = vmatmul.bf16.gmra.mxu0 %v3018
  %v3111 = vpop.f32.mrf.mxu0
  %v3112 = vadd.f32 0.0, %v3111
  %v3113 = vpop.f32.mrf.mxu0
  %v3114 = vadd.f32 0.0, %v3113
  %3115 = vmatmul.bf16.gmra.mxu0 %v3021
  %v3116 = vpop.f32.mrf.mxu0
  %v3117 = vadd.f32 0.0, %v3116
  %v3118 = vpop.f32.mrf.mxu0
  %v3119 = vadd.f32 0.0, %v3118
  %3120 = vmatmul.bf16.gmra.mxu0 %v3024
  %v3121 = vpop.f32.mrf.mxu0
  %v3122 = vadd.f32 0.0, %v3121
  %v3123 = vpop.f32.mrf.mxu0
  %v3124 = vadd.f32 0.0, %v3123
  %3125 = vmatmul.bf16.gmra.mxu0 %v3027
  %v3126 = vpop.f32.mrf.mxu0
  %v3127 = vadd.f32 0.0, %v3126
  %v3128 = vpop.f32.mrf.mxu0
  %v3129 = vadd.f32 0.0, %v3128
  %3130 = vmatmul.bf16.gmra.mxu0 %v3030
  %v3131 = vpop.f32.mrf.mxu0
  %v3132 = vadd.f32 0.0, %v3131
  %v3133 = vpop.f32.mrf.mxu0
  %v3134 = vadd.f32 0.0, %v3133
  %3135 = vmatmul.bf16.gmra.mxu0 %v3033
  %v3136 = vpop.f32.mrf.mxu0
  %v3137 = vadd.f32 0.0, %v3136
  %v3138 = vpop.f32.mrf.mxu0
  %v3139 = vadd.f32 0.0, %v3138
  %3140 = vmatmul.bf16.gmra.mxu0 %v3036
  %v3141 = vpop.f32.mrf.mxu0
  %v3142 = vadd.f32 0.0, %v3141
  %v3143 = vpop.f32.mrf.mxu0
  %v3144 = vadd.f32 0.0, %v3143
  %3145 = vmatmul.bf16.gmra.mxu0 %v3039
  %v3146 = vpop.f32.mrf.mxu0
  %v3147 = vadd.f32 0.0, %v3146
  %v3148 = vpop.f32.mrf.mxu0
  %v3149 = vadd.f32 0.0, %v3148
  %3150 = vmatmul.bf16.gmra.mxu0 %v3042
  %v3151 = vpop.f32.mrf.mxu0
  %v3152 = vadd.f32 0.0, %v3151
  %v3153 = vpop.f32.mrf.mxu0
  %v3154 = vadd.f32 0.0, %v3153
  %3155 = vmatmul.bf16.gmra.mxu0 %v3045
  %v3156 = vpop.f32.mrf.mxu0
  %v3157 = vadd.f32 0.0, %v3156
  %v3158 = vpop.f32.mrf.mxu0
  %3159 = vdwg.mxu0
  %v3160 = vrot.slane %v3057, 6
  %v3161 = vrot.slane %v3059, 6
  %v3162 = vrot.slane %v3062, 6
  %v3163 = vrot.slane %v3064, 6
  %v3164 = vrot.slane %v3067, 6
  %v3165 = vrot.slane %v3069, 6
  %v3166 = vrot.slane %v3072, 6
  %v3167 = vrot.slane %v3074, 6
  %v3168 = vrot.slane %v3077, 6
  %v3169 = vrot.slane %v3079, 6
  %v3170 = vrot.slane %v3082, 6
  %v3171 = vrot.slane %v3084, 6
  %v3172 = vrot.slane %v3087, 6
  %v3173 = vrot.slane %v3089, 6
  %v3174 = vrot.slane %v3092, 6
  %v3175 = vrot.slane %v3094, 6
  %v3176 = vrot.slane %v3097, 6
  %v3177 = vrot.slane %v3099, 6
  %v3178 = vrot.slane %v3102, 6
  %v3179 = vrot.slane %v3104, 6
  %v3180 = vrot.slane %v3107, 6
  %v3181 = vrot.slane %v3109, 6
  %v3182 = vrot.slane %v3112, 6
  %v3183 = vrot.slane %v3114, 6
  %v3184 = vrot.slane %v3117, 6
  %v3185 = vrot.slane %v3119, 6
  %v3186 = vrot.slane %v3122, 6
  %v3187 = vrot.slane %v3124, 6
  %v3188 = vrot.slane %v3127, 6
  %v3189 = vrot.slane %v3129, 6
  %v3190 = vrot.slane %v3132, 6
  %v3191 = vrot.slane %v3134, 6
  %v3192 = vrot.slane %v3137, 6
  %v3193 = vrot.slane %v3139, 6
  %v3194 = vrot.slane %v3142, 6
  %v3195 = vrot.slane %v3144, 6
  %v3196 = vrot.slane %v3147, 6
  %v3197 = vrot.slane %v3149, 6
  %v3198 = vrot.slane %v3152, 6
  %v3199 = vrot.slane %v3154, 6
  %v3200 = vrot.slane %v3157, 6
  %v3201 = vsel %vm1235, %v3199, %v3200
  %v3202 = vsel %vm1235, %v3198, %v3199
  %v3203 = vsel %vm1235, %v3197, %v3198
  %v3204 = vsel %vm1235, %v3196, %v3197
  %v3205 = vsel %vm1235, %v3195, %v3196
  %v3206 = vsel %vm1235, %v3194, %v3195
  %v3207 = vsel %vm1235, %v3193, %v3194
  %v3208 = vsel %vm1235, %v3192, %v3193
  %v3209 = vsel %vm1235, %v3191, %v3192
  %v3210 = vsel %vm1235, %v3190, %v3191
  %v3211 = vsel %vm1235, %v3189, %v3190
  %v3212 = vsel %vm1235, %v3188, %v3189
  %v3213 = vsel %vm1235, %v3187, %v3188
  %v3214 = vsel %vm1235, %v3186, %v3187
  %v3215 = vsel %vm1235, %v3185, %v3186
  %v3216 = vsel %vm1235, %v3184, %v3185
  %v3217 = vsel %vm1235, %v3183, %v3184
  %v3218 = vsel %vm1235, %v3182, %v3183
  %v3219 = vsel %vm1235, %v3181, %v3182
  %v3220 = vsel %vm1235, %v3180, %v3181
  %v3221 = vsel %vm1235, %v3179, %v3180
  %v3222 = vsel %vm1235, %v3178, %v3179
  %v3223 = vsel %vm1235, %v3177, %v3178
  %v3224 = vsel %vm1235, %v3176, %v3177
  %v3225 = vsel %vm1235, %v3175, %v3176
  %v3226 = vsel %vm1235, %v3174, %v3175
  %v3227 = vsel %vm1235, %v3173, %v3174
  %v3228 = vsel %vm1235, %v3172, %v3173
  %v3229 = vsel %vm1235, %v3171, %v3172
  %v3230 = vsel %vm1235, %v3170, %v3171
  %v3231 = vsel %vm1235, %v3169, %v3170
  %v3232 = vsel %vm1235, %v3168, %v3169
  %v3233 = vsel %vm1235, %v3167, %v3168
  %v3234 = vsel %vm1235, %v3166, %v3167
  %v3235 = vsel %vm1235, %v3165, %v3166
  %v3236 = vsel %vm1235, %v3164, %v3165
  %v3237 = vsel %vm1235, %v3163, %v3164
  %v3238 = vsel %vm1235, %v3162, %v3163
  %v3239 = vsel %vm1235, %v3161, %v3162
  %v3240 = vsel %vm1235, %v3160, %v3161
  %v3241 = vsel %vm1235, %v3200, %v3160
  %v3243 = vperm.slane %v2934, 0
  %v3245 = vadd.f32 %v3243, %v3202
  %v3246 = vadd.f32 %v3243, %v3201
  %v3247 = vadd.f32 %v3243, %v3241
  %v3248 = vadd.f32 %v3243, %v3240
  %v3249 = vadd.f32 %v3243, %v3239
  %v3250 = vadd.f32 %v3243, %v3238
  %v3251 = vadd.f32 %v3243, %v3237
  %v3252 = vadd.f32 %v3243, %v3236
  %v3253 = vadd.f32 %v3243, %v3235
  %v3254 = vadd.f32 %v3243, %v3234
  %v3255 = vadd.f32 %v3243, %v3233
  %v3256 = vadd.f32 %v3243, %v3232
  %v3257 = vadd.f32 %v3243, %v3231
  %v3258 = vadd.f32 %v3243, %v3230
  %v3259 = vadd.f32 %v3243, %v3229
  %v3260 = vadd.f32 %v3243, %v3228
  %v3261 = vadd.f32 %v3243, %v3227
  %v3262 = vadd.f32 %v3243, %v3226
  %v3263 = vadd.f32 %v3243, %v3225
  %v3264 = vadd.f32 %v3243, %v3224
  %v3265 = vadd.f32 %v3243, %v3223
  %v3266 = vadd.f32 %v3243, %v3222
  %v3267 = vadd.f32 %v3243, %v3221
  %v3268 = vadd.f32 %v3243, %v3220
  %v3269 = vadd.f32 %v3243, %v3219
  %v3270 = vadd.f32 %v3243, %v3218
  %v3271 = vadd.f32 %v3243, %v3217
  %v3272 = vadd.f32 %v3243, %v3216
  %v3273 = vadd.f32 %v3243, %v3215
  %v3274 = vadd.f32 %v3243, %v3214
  %v3275 = vadd.f32 %v3243, %v3213
  %v3276 = vadd.f32 %v3243, %v3212
  %v3277 = vadd.f32 %v3243, %v3211
  %v3278 = vadd.f32 %v3243, %v3210
  %v3279 = vadd.f32 %v3243, %v3209
  %v3280 = vadd.f32 %v3243, %v3208
  %v3281 = vadd.f32 %v3243, %v3207
  %v3282 = vadd.f32 %v3243, %v3206
  %v3283 = vadd.f32 %v3243, %v3205
  %v3284 = vadd.f32 %v3243, %v3204
  %v3285 = vadd.f32 %v3243, %v3203
  %s3286 = scalar_lea.vmem %s3, 48
  %v3287 = vld [vmem:[%s3286] sm:$0xf]
  %v3288 = vld [vmem:[%s3286 + $0x4] sm:$0xf]
  %v3289 = vld [vmem:[%s3286 + $0x8] sm:$0xf]
  %v3290 = vld [vmem:[%s3286 + $0xc] sm:$0xf]
  %v3291 = vld [vmem:[%s3286 + $0x10] sm:$0xf]
  %v3292 = vld [vmem:[%s3286 + $0x14] sm:$0xf]
  %v3293 = vld [vmem:[%s3286 + $0x18] sm:$0xf]
  %v3294 = vld [vmem:[%s3286 + $0x1c] sm:$0xf]
  %v3295 = vld [vmem:[%s3286 + $0x20] sm:$0xf]
  %v3296 = vld [vmem:[%s3286 + $0x24] sm:$0xf]
  %v3297 = vld [vmem:[%s3286 + $0x28] sm:$0xf]
  %v3298 = vld [vmem:[%s3286 + $0x2c] sm:$0xf]
  %v3311 = vunpack.c.l.b16 %v3287
  %v3312 = vunpack.c.l.b16 %v3288
  %v3313 = vunpack.c.l.b16 %v3289
  %v3314 = vunpack.c.l.b16 %v3290
  %v3315 = vunpack.c.l.b16 %v3291
  %v3316 = vunpack.c.l.b16 %v3292
  %v3317 = vunpack.c.l.b16 %v3293
  %v3318 = vunpack.c.l.b16 %v3294
  %v3319 = vunpack.c.l.b16 %v3295
  %v3320 = vunpack.c.l.b16 %v3296
  %v3321 = vunpack.c.l.b16 %v3297
  %v3322 = vunpack.c.l.b16 %v3298
  %v3323 = vpack.c.b16 %v3312, %v3311
  %v3324 = vpack.c.b16 %v3314, %v3313
  %v3325 = vpack.c.b16 %v3316, %v3315
  %v3326 = vpack.c.b16 %v3318, %v3317
  %v3327 = vpack.c.b16 %v3320, %v3319
  %v3328 = vpack.c.b16 %v3322, %v3321
  %3335 = vmatpush.bf16.msra.mxu0 0
  %3336 = vmatpush.bf16.msra.mxu0 0
  %3337 = vmatpush.bf16.msra.mxu0 %v3328
  %3338 = vmatpush.bf16.msra.mxu0 %v3327
  %3339 = vmatpush.bf16.msra.mxu0 %v3326
  %3340 = vmatpush.bf16.msra.mxu0 %v3325
  %3341 = vmatpush.bf16.msra.mxu0 %v3324
  %3342 = vmatpush.bf16.msra.mxu0 %v3323
  %3343 = vmatmul.bf16.gmra.mxu0 %v2985
  %v3344 = vpop.f32.mrf.mxu0
  %v3345 = vadd.f32 0.0, %v3344
  %v3346 = vpop.f32.mrf.mxu0
  %v3347 = vadd.f32 0.0, %v3346
  %3348 = vmatmul.bf16.gmra.mxu0 %v2988
  %v3349 = vpop.f32.mrf.mxu0
  %v3350 = vadd.f32 0.0, %v3349
  %v3351 = vpop.f32.mrf.mxu0
  %v3352 = vadd.f32 0.0, %v3351
  %3353 = vmatmul.bf16.gmra.mxu0 %v2991
  %v3354 = vpop.f32.mrf.mxu0
  %v3355 = vadd.f32 0.0, %v3354
  %v3356 = vpop.f32.mrf.mxu0
  %v3357 = vadd.f32 0.0, %v3356
  %3358 = vmatmul.bf16.gmra.mxu0 %v2994
  %v3359 = vpop.f32.mrf.mxu0
  %v3360 = vadd.f32 0.0, %v3359
  %v3361 = vpop.f32.mrf.mxu0
  %v3362 = vadd.f32 0.0, %v3361
  %3363 = vmatmul.bf16.gmra.mxu0 %v2997
  %v3364 = vpop.f32.mrf.mxu0
  %v3365 = vadd.f32 0.0, %v3364
  %v3366 = vpop.f32.mrf.mxu0
  %v3367 = vadd.f32 0.0, %v3366
  %3368 = vmatmul.bf16.gmra.mxu0 %v3000
  %v3369 = vpop.f32.mrf.mxu0
  %v3370 = vadd.f32 0.0, %v3369
  %v3371 = vpop.f32.mrf.mxu0
  %v3372 = vadd.f32 0.0, %v3371
  %3373 = vmatmul.bf16.gmra.mxu0 %v3003
  %v3374 = vpop.f32.mrf.mxu0
  %v3375 = vadd.f32 0.0, %v3374
  %v3376 = vpop.f32.mrf.mxu0
  %v3377 = vadd.f32 0.0, %v3376
  %3378 = vmatmul.bf16.gmra.mxu0 %v3006
  %v3379 = vpop.f32.mrf.mxu0
  %v3380 = vadd.f32 0.0, %v3379
  %v3381 = vpop.f32.mrf.mxu0
  %v3382 = vadd.f32 0.0, %v3381
  %3383 = vmatmul.bf16.gmra.mxu0 %v3009
  %v3384 = vpop.f32.mrf.mxu0
  %v3385 = vadd.f32 0.0, %v3384
  %v3386 = vpop.f32.mrf.mxu0
  %v3387 = vadd.f32 0.0, %v3386
  %3388 = vmatmul.bf16.gmra.mxu0 %v3012
  %v3389 = vpop.f32.mrf.mxu0
  %v3390 = vadd.f32 0.0, %v3389
  %v3391 = vpop.f32.mrf.mxu0
  %v3392 = vadd.f32 0.0, %v3391
  %3393 = vmatmul.bf16.gmra.mxu0 %v3015
  %v3394 = vpop.f32.mrf.mxu0
  %v3395 = vadd.f32 0.0, %v3394
  %v3396 = vpop.f32.mrf.mxu0
  %v3397 = vadd.f32 0.0, %v3396
  %3398 = vmatmul.bf16.gmra.mxu0 %v3018
  %v3399 = vpop.f32.mrf.mxu0
  %v3400 = vadd.f32 0.0, %v3399
  %v3401 = vpop.f32.mrf.mxu0
  %v3402 = vadd.f32 0.0, %v3401
  %3403 = vmatmul.bf16.gmra.mxu0 %v3021
  %v3404 = vpop.f32.mrf.mxu0
  %v3405 = vadd.f32 0.0, %v3404
  %v3406 = vpop.f32.mrf.mxu0
  %v3407 = vadd.f32 0.0, %v3406
  %3408 = vmatmul.bf16.gmra.mxu0 %v3024
  %v3409 = vpop.f32.mrf.mxu0
  %v3410 = vadd.f32 0.0, %v3409
  %v3411 = vpop.f32.mrf.mxu0
  %v3412 = vadd.f32 0.0, %v3411
  %3413 = vmatmul.bf16.gmra.mxu0 %v3027
  %v3414 = vpop.f32.mrf.mxu0
  %v3415 = vadd.f32 0.0, %v3414
  %v3416 = vpop.f32.mrf.mxu0
  %v3417 = vadd.f32 0.0, %v3416
  %3418 = vmatmul.bf16.gmra.mxu0 %v3030
  %v3419 = vpop.f32.mrf.mxu0
  %v3420 = vadd.f32 0.0, %v3419
  %v3421 = vpop.f32.mrf.mxu0
  %v3422 = vadd.f32 0.0, %v3421
  %3423 = vmatmul.bf16.gmra.mxu0 %v3033
  %v3424 = vpop.f32.mrf.mxu0
  %v3425 = vadd.f32 0.0, %v3424
  %v3426 = vpop.f32.mrf.mxu0
  %v3427 = vadd.f32 0.0, %v3426
  %3428 = vmatmul.bf16.gmra.mxu0 %v3036
  %v3429 = vpop.f32.mrf.mxu0
  %v3430 = vadd.f32 0.0, %v3429
  %v3431 = vpop.f32.mrf.mxu0
  %v3432 = vadd.f32 0.0, %v3431
  %3433 = vmatmul.bf16.gmra.mxu0 %v3039
  %v3434 = vpop.f32.mrf.mxu0
  %v3435 = vadd.f32 0.0, %v3434
  %v3436 = vpop.f32.mrf.mxu0
  %v3437 = vadd.f32 0.0, %v3436
  %3438 = vmatmul.bf16.gmra.mxu0 %v3042
  %v3439 = vpop.f32.mrf.mxu0
  %v3440 = vadd.f32 0.0, %v3439
  %v3441 = vpop.f32.mrf.mxu0
  %v3442 = vadd.f32 0.0, %v3441
  %3443 = vmatmul.bf16.gmra.mxu0 %v3045
  %v3444 = vpop.f32.mrf.mxu0
  %v3445 = vadd.f32 0.0, %v3444
  %v3446 = vpop.f32.mrf.mxu0
  %3447 = vdwg.mxu0
  %v3448 = vadd.f32 %v3245, %v3345
  %v3449 = vadd.f32 %v3246, %v3347
  %v3450 = vadd.f32 %v3247, %v3350
  %v3451 = vadd.f32 %v3248, %v3352
  %v3452 = vadd.f32 %v3249, %v3355
  %v3453 = vadd.f32 %v3250, %v3357
  %v3454 = vadd.f32 %v3251, %v3360
  %v3455 = vadd.f32 %v3252, %v3362
  %v3456 = vadd.f32 %v3253, %v3365
  %v3457 = vadd.f32 %v3254, %v3367
  %v3458 = vadd.f32 %v3255, %v3370
  %v3459 = vadd.f32 %v3256, %v3372
  %v3460 = vadd.f32 %v3257, %v3375
  %v3461 = vadd.f32 %v3258, %v3377
  %v3462 = vadd.f32 %v3259, %v3380
  %v3463 = vadd.f32 %v3260, %v3382
  %v3464 = vadd.f32 %v3261, %v3385
  %v3465 = vadd.f32 %v3262, %v3387
  %v3466 = vadd.f32 %v3263, %v3390
  %v3467 = vadd.f32 %v3264, %v3392
  %v3468 = vadd.f32 %v3265, %v3395
  %v3469 = vadd.f32 %v3266, %v3397
  %v3470 = vadd.f32 %v3267, %v3400
  %v3471 = vadd.f32 %v3268, %v3402
  %v3472 = vadd.f32 %v3269, %v3405
  %v3473 = vadd.f32 %v3270, %v3407
  %v3474 = vadd.f32 %v3271, %v3410
  %v3475 = vadd.f32 %v3272, %v3412
  %v3476 = vadd.f32 %v3273, %v3415
  %v3477 = vadd.f32 %v3274, %v3417
  %v3478 = vadd.f32 %v3275, %v3420
  %v3479 = vadd.f32 %v3276, %v3422
  %v3480 = vadd.f32 %v3277, %v3425
  %v3481 = vadd.f32 %v3278, %v3427
  %v3482 = vadd.f32 %v3279, %v3430
  %v3483 = vadd.f32 %v3280, %v3432
  %v3484 = vadd.f32 %v3281, %v3435
  %v3485 = vadd.f32 %v3282, %v3437
  %v3486 = vadd.f32 %v3283, %v3440
  %v3487 = vadd.f32 %v3284, %v3442
  %v3488 = vadd.f32 %v3285, %v3445
  %s3489 = scalar_lea.vmem %s3, 96
  %v3490 = vld [vmem:[%s3489] sm:$0xf]
  %v3491 = vld [vmem:[%s3489 + $0x4] sm:$0xf]
  %v3492 = vld [vmem:[%s3489 + $0x8] sm:$0xf]
  %v3493 = vld [vmem:[%s3489 + $0xc] sm:$0xf]
  %v3494 = vld [vmem:[%s3489 + $0x10] sm:$0xf]
  %v3495 = vld [vmem:[%s3489 + $0x14] sm:$0xf]
  %v3496 = vld [vmem:[%s3489 + $0x18] sm:$0xf]
  %v3497 = vld [vmem:[%s3489 + $0x1c] sm:$0xf]
  %v3498 = vld [vmem:[%s3489 + $0x20] sm:$0xf]
  %v3499 = vld [vmem:[%s3489 + $0x24] sm:$0xf]
  %v3500 = vld [vmem:[%s3489 + $0x28] sm:$0xf]
  %v3501 = vld [vmem:[%s3489 + $0x2c] sm:$0xf]
  %v3514 = vunpack.c.l.b16 %v3490
  %v3515 = vunpack.c.l.b16 %v3491
  %v3516 = vunpack.c.l.b16 %v3492
  %v3517 = vunpack.c.l.b16 %v3493
  %v3518 = vunpack.c.l.b16 %v3494
  %v3519 = vunpack.c.l.b16 %v3495
  %v3520 = vunpack.c.l.b16 %v3496
  %v3521 = vunpack.c.l.b16 %v3497
  %v3522 = vunpack.c.l.b16 %v3498
  %v3523 = vunpack.c.l.b16 %v3499
  %v3524 = vunpack.c.l.b16 %v3500
  %v3525 = vunpack.c.l.b16 %v3501
  %v3526 = vpack.c.b16 %v3515, %v3514
  %v3527 = vpack.c.b16 %v3517, %v3516
  %v3528 = vpack.c.b16 %v3519, %v3518
  %v3529 = vpack.c.b16 %v3521, %v3520
  %v3530 = vpack.c.b16 %v3523, %v3522
  %v3531 = vpack.c.b16 %v3525, %v3524
  %3538 = vmatpush.bf16.msra.mxu0 0
  %3539 = vmatpush.bf16.msra.mxu0 0
  %3540 = vmatpush.bf16.msra.mxu0 %v3531
  %3541 = vmatpush.bf16.msra.mxu0 %v3530
  %3542 = vmatpush.bf16.msra.mxu0 %v3529
  %3543 = vmatpush.bf16.msra.mxu0 %v3528
  %3544 = vmatpush.bf16.msra.mxu0 %v3527
  %3545 = vmatpush.bf16.msra.mxu0 %v3526
  %3546 = vmatmul.bf16.gmra.mxu0 %v2985
  %v3547 = vpop.f32.mrf.mxu0
  %v3548 = vadd.f32 0.0, %v3547
  %v3549 = vpop.f32.mrf.mxu0
  %v3550 = vadd.f32 0.0, %v3549
  %3551 = vmatmul.bf16.gmra.mxu0 %v2988
  %v3552 = vpop.f32.mrf.mxu0
  %v3553 = vadd.f32 0.0, %v3552
  %v3554 = vpop.f32.mrf.mxu0
  %v3555 = vadd.f32 0.0, %v3554
  %3556 = vmatmul.bf16.gmra.mxu0 %v2991
  %v3557 = vpop.f32.mrf.mxu0
  %v3558 = vadd.f32 0.0, %v3557
  %v3559 = vpop.f32.mrf.mxu0
  %v3560 = vadd.f32 0.0, %v3559
  %3561 = vmatmul.bf16.gmra.mxu0 %v2994
  %v3562 = vpop.f32.mrf.mxu0
  %v3563 = vadd.f32 0.0, %v3562
  %v3564 = vpop.f32.mrf.mxu0
  %v3565 = vadd.f32 0.0, %v3564
  %3566 = vmatmul.bf16.gmra.mxu0 %v2997
  %v3567 = vpop.f32.mrf.mxu0
  %v3568 = vadd.f32 0.0, %v3567
  %v3569 = vpop.f32.mrf.mxu0
  %v3570 = vadd.f32 0.0, %v3569
  %3571 = vmatmul.bf16.gmra.mxu0 %v3000
  %v3572 = vpop.f32.mrf.mxu0
  %v3573 = vadd.f32 0.0, %v3572
  %v3574 = vpop.f32.mrf.mxu0
  %v3575 = vadd.f32 0.0, %v3574
  %3576 = vmatmul.bf16.gmra.mxu0 %v3003
  %v3577 = vpop.f32.mrf.mxu0
  %v3578 = vadd.f32 0.0, %v3577
  %v3579 = vpop.f32.mrf.mxu0
  %v3580 = vadd.f32 0.0, %v3579
  %3581 = vmatmul.bf16.gmra.mxu0 %v3006
  %v3582 = vpop.f32.mrf.mxu0
  %v3583 = vadd.f32 0.0, %v3582
  %v3584 = vpop.f32.mrf.mxu0
  %v3585 = vadd.f32 0.0, %v3584
  %3586 = vmatmul.bf16.gmra.mxu0 %v3009
  %v3587 = vpop.f32.mrf.mxu0
  %v3588 = vadd.f32 0.0, %v3587
  %v3589 = vpop.f32.mrf.mxu0
  %v3590 = vadd.f32 0.0, %v3589
  %3591 = vmatmul.bf16.gmra.mxu0 %v3012
  %v3592 = vpop.f32.mrf.mxu0
  %v3593 = vadd.f32 0.0, %v3592
  %v3594 = vpop.f32.mrf.mxu0
  %v3595 = vadd.f32 0.0, %v3594
  %3596 = vmatmul.bf16.gmra.mxu0 %v3015
  %v3597 = vpop.f32.mrf.mxu0
  %v3598 = vadd.f32 0.0, %v3597
  %v3599 = vpop.f32.mrf.mxu0
  %v3600 = vadd.f32 0.0, %v3599
  %3601 = vmatmul.bf16.gmra.mxu0 %v3018
  %v3602 = vpop.f32.mrf.mxu0
  %v3603 = vadd.f32 0.0, %v3602
  %v3604 = vpop.f32.mrf.mxu0
  %v3605 = vadd.f32 0.0, %v3604
  %3606 = vmatmul.bf16.gmra.mxu0 %v3021
  %v3607 = vpop.f32.mrf.mxu0
  %v3608 = vadd.f32 0.0, %v3607
  %v3609 = vpop.f32.mrf.mxu0
  %v3610 = vadd.f32 0.0, %v3609
  %3611 = vmatmul.bf16.gmra.mxu0 %v3024
  %v3612 = vpop.f32.mrf.mxu0
  %v3613 = vadd.f32 0.0, %v3612
  %v3614 = vpop.f32.mrf.mxu0
  %v3615 = vadd.f32 0.0, %v3614
  %3616 = vmatmul.bf16.gmra.mxu0 %v3027
  %v3617 = vpop.f32.mrf.mxu0
  %v3618 = vadd.f32 0.0, %v3617
  %v3619 = vpop.f32.mrf.mxu0
  %v3620 = vadd.f32 0.0, %v3619
  %3621 = vmatmul.bf16.gmra.mxu0 %v3030
  %v3622 = vpop.f32.mrf.mxu0
  %v3623 = vadd.f32 0.0, %v3622
  %v3624 = vpop.f32.mrf.mxu0
  %v3625 = vadd.f32 0.0, %v3624
  %3626 = vmatmul.bf16.gmra.mxu0 %v3033
  %v3627 = vpop.f32.mrf.mxu0
  %v3628 = vadd.f32 0.0, %v3627
  %v3629 = vpop.f32.mrf.mxu0
  %v3630 = vadd.f32 0.0, %v3629
  %3631 = vmatmul.bf16.gmra.mxu0 %v3036
  %v3632 = vpop.f32.mrf.mxu0
  %v3633 = vadd.f32 0.0, %v3632
  %v3634 = vpop.f32.mrf.mxu0
  %v3635 = vadd.f32 0.0, %v3634
  %3636 = vmatmul.bf16.gmra.mxu0 %v3039
  %v3637 = vpop.f32.mrf.mxu0
  %v3638 = vadd.f32 0.0, %v3637
  %v3639 = vpop.f32.mrf.mxu0
  %v3640 = vadd.f32 0.0, %v3639
  %3641 = vmatmul.bf16.gmra.mxu0 %v3042
  %v3642 = vpop.f32.mrf.mxu0
  %v3643 = vadd.f32 0.0, %v3642
  %v3644 = vpop.f32.mrf.mxu0
  %v3645 = vadd.f32 0.0, %v3644
  %3646 = vmatmul.bf16.gmra.mxu0 %v3045
  %v3647 = vpop.f32.mrf.mxu0
  %v3648 = vadd.f32 0.0, %v3647
  %v3649 = vpop.f32.mrf.mxu0
  %3650 = vdwg.mxu0
  %v3651 = vrot.slane %v3548, 2
  %v3652 = vrot.slane %v3550, 2
  %v3653 = vrot.slane %v3553, 2
  %v3654 = vrot.slane %v3555, 2
  %v3655 = vrot.slane %v3558, 2
  %v3656 = vrot.slane %v3560, 2
  %v3657 = vrot.slane %v3563, 2
  %v3658 = vrot.slane %v3565, 2
  %v3659 = vrot.slane %v3568, 2
  %v3660 = vrot.slane %v3570, 2
  %v3661 = vrot.slane %v3573, 2
  %v3662 = vrot.slane %v3575, 2
  %v3663 = vrot.slane %v3578, 2
  %v3664 = vrot.slane %v3580, 2
  %v3665 = vrot.slane %v3583, 2
  %v3666 = vrot.slane %v3585, 2
  %v3667 = vrot.slane %v3588, 2
  %v3668 = vrot.slane %v3590, 2
  %v3669 = vrot.slane %v3593, 2
  %v3670 = vrot.slane %v3595, 2
  %v3671 = vrot.slane %v3598, 2
  %v3672 = vrot.slane %v3600, 2
  %v3673 = vrot.slane %v3603, 2
  %v3674 = vrot.slane %v3605, 2
  %v3675 = vrot.slane %v3608, 2
  %v3676 = vrot.slane %v3610, 2
  %v3677 = vrot.slane %v3613, 2
  %v3678 = vrot.slane %v3615, 2
  %v3679 = vrot.slane %v3618, 2
  %v3680 = vrot.slane %v3620, 2
  %v3681 = vrot.slane %v3623, 2
  %v3682 = vrot.slane %v3625, 2
  %v3683 = vrot.slane %v3628, 2
  %v3684 = vrot.slane %v3630, 2
  %v3685 = vrot.slane %v3633, 2
  %v3686 = vrot.slane %v3635, 2
  %v3687 = vrot.slane %v3638, 2
  %v3688 = vrot.slane %v3640, 2
  %v3689 = vrot.slane %v3643, 2
  %v3690 = vrot.slane %v3645, 2
  %v3691 = vrot.slane %v3648, 2
  %v3692 = vsel %vm1651, %v3690, %v3691
  %v3693 = vsel %vm1651, %v3689, %v3690
  %v3694 = vsel %vm1651, %v3688, %v3689
  %v3695 = vsel %vm1651, %v3687, %v3688
  %v3696 = vsel %vm1651, %v3686, %v3687
  %v3697 = vsel %vm1651, %v3685, %v3686
  %v3698 = vsel %vm1651, %v3684, %v3685
  %v3699 = vsel %vm1651, %v3683, %v3684
  %v3700 = vsel %vm1651, %v3682, %v3683
  %v3701 = vsel %vm1651, %v3681, %v3682
  %v3702 = vsel %vm1651, %v3680, %v3681
  %v3703 = vsel %vm1651, %v3679, %v3680
  %v3704 = vsel %vm1651, %v3678, %v3679
  %v3705 = vsel %vm1651, %v3677, %v3678
  %v3706 = vsel %vm1651, %v3676, %v3677
  %v3707 = vsel %vm1651, %v3675, %v3676
  %v3708 = vsel %vm1651, %v3674, %v3675
  %v3709 = vsel %vm1651, %v3673, %v3674
  %v3710 = vsel %vm1651, %v3672, %v3673
  %v3711 = vsel %vm1651, %v3671, %v3672
  %v3712 = vsel %vm1651, %v3670, %v3671
  %v3713 = vsel %vm1651, %v3669, %v3670
  %v3714 = vsel %vm1651, %v3668, %v3669
  %v3715 = vsel %vm1651, %v3667, %v3668
  %v3716 = vsel %vm1651, %v3666, %v3667
  %v3717 = vsel %vm1651, %v3665, %v3666
  %v3718 = vsel %vm1651, %v3664, %v3665
  %v3719 = vsel %vm1651, %v3663, %v3664
  %v3720 = vsel %vm1651, %v3662, %v3663
  %v3721 = vsel %vm1651, %v3661, %v3662
  %v3722 = vsel %vm1651, %v3660, %v3661
  %v3723 = vsel %vm1651, %v3659, %v3660
  %v3724 = vsel %vm1651, %v3658, %v3659
  %v3725 = vsel %vm1651, %v3657, %v3658
  %v3726 = vsel %vm1651, %v3656, %v3657
  %v3727 = vsel %vm1651, %v3655, %v3656
  %v3728 = vsel %vm1651, %v3654, %v3655
  %v3729 = vsel %vm1651, %v3653, %v3654
  %v3730 = vsel %vm1651, %v3652, %v3653
  %v3731 = vsel %vm1651, %v3651, %v3652
  %v3732 = vsel %vm1651, %v3691, %v3651
  %v3733 = vadd.f32 %v3448, %v3729
  %v3734 = vadd.f32 %v3449, %v3728
  %v3735 = vadd.f32 %v3450, %v3727
  %v3736 = vadd.f32 %v3451, %v3726
  %v3737 = vadd.f32 %v3452, %v3725
  %v3738 = vadd.f32 %v3453, %v3724
  %v3739 = vadd.f32 %v3454, %v3723
  %v3740 = vadd.f32 %v3455, %v3722
  %v3741 = vadd.f32 %v3456, %v3721
  %v3742 = vadd.f32 %v3457, %v3720
  %v3743 = vadd.f32 %v3458, %v3719
  %v3744 = vadd.f32 %v3459, %v3718
  %v3745 = vadd.f32 %v3460, %v3717
  %v3746 = vadd.f32 %v3461, %v3716
  %v3747 = vadd.f32 %v3462, %v3715
  %v3748 = vadd.f32 %v3463, %v3714
  %v3749 = vadd.f32 %v3464, %v3713
  %v3750 = vadd.f32 %v3465, %v3712
  %v3751 = vadd.f32 %v3466, %v3711
  %v3752 = vadd.f32 %v3467, %v3710
  %v3753 = vadd.f32 %v3468, %v3709
  %v3754 = vadd.f32 %v3469, %v3708
  %v3755 = vadd.f32 %v3470, %v3707
  %v3756 = vadd.f32 %v3471, %v3706
  %v3757 = vadd.f32 %v3472, %v3705
  %v3758 = vadd.f32 %v3473, %v3704
  %v3759 = vadd.f32 %v3474, %v3703
  %v3760 = vadd.f32 %v3475, %v3702
  %v3761 = vadd.f32 %v3476, %v3701
  %v3762 = vadd.f32 %v3477, %v3700
  %v3763 = vadd.f32 %v3478, %v3699
  %v3764 = vadd.f32 %v3479, %v3698
  %v3765 = vadd.f32 %v3480, %v3697
  %v3766 = vadd.f32 %v3481, %v3696
  %v3767 = vadd.f32 %v3482, %v3695
  %v3768 = vadd.f32 %v3483, %v3694
  %v3769 = vadd.f32 %v3484, %v3693
  %v3770 = vadd.f32 %v3485, %v3692
  %v3771 = vadd.f32 %v3486, %v3732
  %v3772 = vadd.f32 %v3487, %v3731
  %v3773 = vadd.f32 %v3488, %v3730
  %vm3774 = vcmp.ge.f32.partialorder %v3733, 0.0
  %vm3775 = vcmp.ge.f32.partialorder %v3734, 0.0
  %vm3776 = vcmp.ge.f32.partialorder %v3735, 0.0
  %vm3777 = vcmp.ge.f32.partialorder %v3736, 0.0
  %vm3778 = vcmp.ge.f32.partialorder %v3737, 0.0
  %vm3779 = vcmp.ge.f32.partialorder %v3738, 0.0
  %vm3780 = vcmp.ge.f32.partialorder %v3739, 0.0
  %vm3781 = vcmp.ge.f32.partialorder %v3740, 0.0
  %vm3782 = vcmp.ge.f32.partialorder %v3741, 0.0
  %vm3783 = vcmp.ge.f32.partialorder %v3742, 0.0
  %vm3784 = vcmp.ge.f32.partialorder %v3743, 0.0
  %vm3785 = vcmp.ge.f32.partialorder %v3744, 0.0
  %vm3786 = vcmp.ge.f32.partialorder %v3745, 0.0
  %vm3787 = vcmp.ge.f32.partialorder %v3746, 0.0
  %vm3788 = vcmp.ge.f32.partialorder %v3747, 0.0
  %vm3789 = vcmp.ge.f32.partialorder %v3748, 0.0
  %vm3790 = vcmp.ge.f32.partialorder %v3749, 0.0
  %vm3791 = vcmp.ge.f32.partialorder %v3750, 0.0
  %vm3792 = vcmp.ge.f32.partialorder %v3751, 0.0
  %vm3793 = vcmp.ge.f32.partialorder %v3752, 0.0
  %vm3794 = vcmp.ge.f32.partialorder %v3753, 0.0
  %vm3795 = vcmp.ge.f32.partialorder %v3754, 0.0
  %vm3796 = vcmp.ge.f32.partialorder %v3755, 0.0
  %vm3797 = vcmp.ge.f32.partialorder %v3756, 0.0
  %vm3798 = vcmp.ge.f32.partialorder %v3757, 0.0
  %vm3799 = vcmp.ge.f32.partialorder %v3758, 0.0
  %vm3800 = vcmp.ge.f32.partialorder %v3759, 0.0
  %vm3801 = vcmp.ge.f32.partialorder %v3760, 0.0
  %vm3802 = vcmp.ge.f32.partialorder %v3761, 0.0
  %vm3803 = vcmp.ge.f32.partialorder %v3762, 0.0
  %vm3804 = vcmp.ge.f32.partialorder %v3763, 0.0
  %vm3805 = vcmp.ge.f32.partialorder %v3764, 0.0
  %vm3806 = vcmp.ge.f32.partialorder %v3765, 0.0
  %vm3807 = vcmp.ge.f32.partialorder %v3766, 0.0
  %vm3808 = vcmp.ge.f32.partialorder %v3767, 0.0
  %vm3809 = vcmp.ge.f32.partialorder %v3768, 0.0
  %vm3810 = vcmp.ge.f32.partialorder %v3769, 0.0
  %vm3811 = vcmp.ge.f32.partialorder %v3770, 0.0
  %vm3812 = vcmp.ge.f32.partialorder %v3771, 0.0
  %vm3813 = vcmp.ge.f32.partialorder %v3772, 0.0
  %vm3814 = vcmp.ge.f32.partialorder %v3773, 0.0
  %v3815 = vmul.f32 %v3733, 0.01
  %v3816 = vmul.f32 %v3734, 0.01
  %v3817 = vmul.f32 %v3735, 0.01
  %v3818 = vmul.f32 %v3736, 0.01
  %v3819 = vmul.f32 %v3737, 0.01
  %v3820 = vmul.f32 %v3738, 0.01
  %v3821 = vmul.f32 %v3739, 0.01
  %v3822 = vmul.f32 %v3740, 0.01
  %v3823 = vmul.f32 %v3741, 0.01
  %v3824 = vmul.f32 %v3742, 0.01
  %v3825 = vmul.f32 %v3743, 0.01
  %v3826 = vmul.f32 %v3744, 0.01
  %v3827 = vmul.f32 %v3745, 0.01
  %v3828 = vmul.f32 %v3746, 0.01
  %v3829 = vmul.f32 %v3747, 0.01
  %v3830 = vmul.f32 %v3748, 0.01
  %v3831 = vmul.f32 %v3749, 0.01
  %v3832 = vmul.f32 %v3750, 0.01
  %v3833 = vmul.f32 %v3751, 0.01
  %v3834 = vmul.f32 %v3752, 0.01
  %v3835 = vmul.f32 %v3753, 0.01
  %v3836 = vmul.f32 %v3754, 0.01
  %v3837 = vmul.f32 %v3755, 0.01
  %v3838 = vmul.f32 %v3756, 0.01
  %v3839 = vmul.f32 %v3757, 0.01
  %v3840 = vmul.f32 %v3758, 0.01
  %v3841 = vmul.f32 %v3759, 0.01
  %v3842 = vmul.f32 %v3760, 0.01
  %v3843 = vmul.f32 %v3761, 0.01
  %v3844 = vmul.f32 %v3762, 0.01
  %v3845 = vmul.f32 %v3763, 0.01
  %v3846 = vmul.f32 %v3764, 0.01
  %v3847 = vmul.f32 %v3765, 0.01
  %v3848 = vmul.f32 %v3766, 0.01
  %v3849 = vmul.f32 %v3767, 0.01
  %v3850 = vmul.f32 %v3768, 0.01
  %v3851 = vmul.f32 %v3769, 0.01
  %v3852 = vmul.f32 %v3770, 0.01
  %v3853 = vmul.f32 %v3771, 0.01
  %v3854 = vmul.f32 %v3772, 0.01
  %v3855 = vmul.f32 %v3773, 0.01
  %v3856 = vsel %vm3774, %v3733, %v3815
  %v3857 = vsel %vm3775, %v3734, %v3816
  %v3858 = vsel %vm3776, %v3735, %v3817
  %v3859 = vsel %vm3777, %v3736, %v3818
  %v3860 = vsel %vm3778, %v3737, %v3819
  %v3861 = vsel %vm3779, %v3738, %v3820
  %v3862 = vsel %vm3780, %v3739, %v3821
  %v3863 = vsel %vm3781, %v3740, %v3822
  %v3864 = vsel %vm3782, %v3741, %v3823
  %v3865 = vsel %vm3783, %v3742, %v3824
  %v3866 = vsel %vm3784, %v3743, %v3825
  %v3867 = vsel %vm3785, %v3744, %v3826
  %v3868 = vsel %vm3786, %v3745, %v3827
  %v3869 = vsel %vm3787, %v3746, %v3828
  %v3870 = vsel %vm3788, %v3747, %v3829
  %v3871 = vsel %vm3789, %v3748, %v3830
  %v3872 = vsel %vm3790, %v3749, %v3831
  %v3873 = vsel %vm3791, %v3750, %v3832
  %v3874 = vsel %vm3792, %v3751, %v3833
  %v3875 = vsel %vm3793, %v3752, %v3834
  %v3876 = vsel %vm3794, %v3753, %v3835
  %v3877 = vsel %vm3795, %v3754, %v3836
  %v3878 = vsel %vm3796, %v3755, %v3837
  %v3879 = vsel %vm3797, %v3756, %v3838
  %v3880 = vsel %vm3798, %v3757, %v3839
  %v3881 = vsel %vm3799, %v3758, %v3840
  %v3882 = vsel %vm3800, %v3759, %v3841
  %v3883 = vsel %vm3801, %v3760, %v3842
  %v3884 = vsel %vm3802, %v3761, %v3843
  %v3885 = vsel %vm3803, %v3762, %v3844
  %v3886 = vsel %vm3804, %v3763, %v3845
  %v3887 = vsel %vm3805, %v3764, %v3846
  %v3888 = vsel %vm3806, %v3765, %v3847
  %v3889 = vsel %vm3807, %v3766, %v3848
  %v3890 = vsel %vm3808, %v3767, %v3849
  %v3891 = vsel %vm3809, %v3768, %v3850
  %v3892 = vsel %vm3810, %v3769, %v3851
  %v3893 = vsel %vm3811, %v3770, %v3852
  %v3894 = vsel %vm3812, %v3771, %v3853
  %v3895 = vsel %vm3813, %v3772, %v3854
  %v3896 = vsel %vm3814, %v3773, %v3855
  %v3897 = vsel %vm1898, %v3856, 0.0
  %v3898 = vsel %vm1899, %v3857, 0.0
  %v3899 = vsel %vm1900, %v3858, 0.0
  %v3900 = vsel %vm1901, %v3859, 0.0
  %v3901 = vsel %vm1902, %v3860, 0.0
  %v3902 = vsel %vm1903, %v3861, 0.0
  %v3903 = vsel %vm1904, %v3862, 0.0
  %v3904 = vsel %vm1905, %v3863, 0.0
  %v3905 = vsel %vm1906, %v3864, 0.0
  %v3906 = vsel %vm1907, %v3865, 0.0
  %v3907 = vsel %vm1908, %v3866, 0.0
  %v3908 = vsel %vm1909, %v3867, 0.0
  %v3909 = vsel %vm1910, %v3868, 0.0
  %v3910 = vsel %vm1911, %v3869, 0.0
  %v3911 = vsel %vm1912, %v3870, 0.0
  %v3912 = vsel %vm1913, %v3871, 0.0
  %v3913 = vsel %vm1914, %v3872, 0.0
  %v3914 = vsel %vm1915, %v3873, 0.0
  %v3915 = vsel %vm1916, %v3874, 0.0
  %v3916 = vsel %vm1917, %v3875, 0.0
  %v3917 = vsel %vm1918, %v3876, 0.0
  %v3918 = vsel %vm1919, %v3877, 0.0
  %v3919 = vsel %vm1920, %v3878, 0.0
  %v3920 = vsel %vm1921, %v3879, 0.0
  %v3921 = vsel %vm1922, %v3880, 0.0
  %v3922 = vsel %vm1923, %v3881, 0.0
  %v3923 = vsel %vm1924, %v3882, 0.0
  %v3924 = vsel %vm1925, %v3883, 0.0
  %v3925 = vsel %vm1926, %v3884, 0.0
  %v3926 = vsel %vm1927, %v3885, 0.0
  %v3927 = vsel %vm1928, %v3886, 0.0
  %v3928 = vsel %vm1929, %v3887, 0.0
  %v3929 = vsel %vm1930, %v3888, 0.0
  %v3930 = vsel %vm1931, %v3889, 0.0
  %v3931 = vsel %vm1932, %v3890, 0.0
  %v3932 = vsel %vm1933, %v3891, 0.0
  %v3933 = vsel %vm1934, %v3892, 0.0
  %v3934 = vsel %vm1935, %v3893, 0.0
  %v3935 = vsel %vm1936, %v3894, 0.0
  %v3936 = vsel %vm1937, %v3895, 0.0
  %v3937 = vsel %vm1938, %v3896, 0.0
  %v3938 = vsel %vm1980, %v3897, 0.0
  %v3939 = vsel %vm1980, %v3898, 0.0
  %v3940 = vadd.f32 %v3938, %v3939
  %v3941 = vsel %vm1980, %v3899, 0.0
  %v3942 = vadd.f32 %v3940, %v3941
  %v3943 = vsel %vm1980, %v3900, 0.0
  %v3944 = vadd.f32 %v3942, %v3943
  %v3945 = vsel %vm1980, %v3901, 0.0
  %v3946 = vadd.f32 %v3944, %v3945
  %v3947 = vsel %vm1980, %v3902, 0.0
  %v3948 = vadd.f32 %v3946, %v3947
  %v3949 = vsel %vm1980, %v3903, 0.0
  %v3950 = vadd.f32 %v3948, %v3949
  %v3951 = vsel %vm1980, %v3904, 0.0
  %v3952 = vadd.f32 %v3950, %v3951
  %v3953 = vsel %vm1980, %v3905, 0.0
  %v3954 = vadd.f32 %v3952, %v3953
  %v3955 = vsel %vm1980, %v3906, 0.0
  %v3956 = vadd.f32 %v3954, %v3955
  %v3957 = vsel %vm1980, %v3907, 0.0
  %v3958 = vadd.f32 %v3956, %v3957
  %v3959 = vsel %vm1980, %v3908, 0.0
  %v3960 = vadd.f32 %v3958, %v3959
  %v3961 = vsel %vm1980, %v3909, 0.0
  %v3962 = vadd.f32 %v3960, %v3961
  %v3963 = vsel %vm1980, %v3910, 0.0
  %v3964 = vadd.f32 %v3962, %v3963
  %v3965 = vsel %vm1980, %v3911, 0.0
  %v3966 = vadd.f32 %v3964, %v3965
  %v3967 = vsel %vm1980, %v3912, 0.0
  %v3968 = vadd.f32 %v3966, %v3967
  %v3969 = vsel %vm1980, %v3913, 0.0
  %v3970 = vadd.f32 %v3968, %v3969
  %v3971 = vsel %vm1980, %v3914, 0.0
  %v3972 = vadd.f32 %v3970, %v3971
  %v3973 = vsel %vm1980, %v3915, 0.0
  %v3974 = vadd.f32 %v3972, %v3973
  %v3975 = vsel %vm1980, %v3916, 0.0
  %v3976 = vadd.f32 %v3974, %v3975
  %v3977 = vsel %vm1980, %v3917, 0.0
  %v3978 = vadd.f32 %v3976, %v3977
  %v3979 = vsel %vm1980, %v3918, 0.0
  %v3980 = vadd.f32 %v3978, %v3979
  %v3981 = vsel %vm1980, %v3919, 0.0
  %v3982 = vadd.f32 %v3980, %v3981
  %v3983 = vsel %vm1980, %v3920, 0.0
  %v3984 = vadd.f32 %v3982, %v3983
  %v3985 = vsel %vm1980, %v3921, 0.0
  %v3986 = vadd.f32 %v3984, %v3985
  %v3987 = vsel %vm1980, %v3922, 0.0
  %v3988 = vadd.f32 %v3986, %v3987
  %v3989 = vsel %vm1980, %v3923, 0.0
  %v3990 = vadd.f32 %v3988, %v3989
  %v3991 = vsel %vm1980, %v3924, 0.0
  %v3992 = vadd.f32 %v3990, %v3991
  %v3993 = vsel %vm1980, %v3925, 0.0
  %v3994 = vadd.f32 %v3992, %v3993
  %v3995 = vsel %vm1980, %v3926, 0.0
  %v3996 = vadd.f32 %v3994, %v3995
  %v3997 = vsel %vm1980, %v3927, 0.0
  %v3998 = vadd.f32 %v3996, %v3997
  %v3999 = vsel %vm1980, %v3928, 0.0
  %v4000 = vadd.f32 %v3998, %v3999
  %v4001 = vsel %vm1980, %v3929, 0.0
  %v4002 = vadd.f32 %v4000, %v4001
  %v4003 = vsel %vm1980, %v3930, 0.0
  %v4004 = vadd.f32 %v4002, %v4003
  %v4005 = vsel %vm1980, %v3931, 0.0
  %v4006 = vadd.f32 %v4004, %v4005
  %v4007 = vsel %vm1980, %v3932, 0.0
  %v4008 = vadd.f32 %v4006, %v4007
  %v4009 = vsel %vm1980, %v3933, 0.0
  %v4010 = vadd.f32 %v4008, %v4009
  %v4011 = vsel %vm1980, %v3934, 0.0
  %v4012 = vadd.f32 %v4010, %v4011
  %v4013 = vsel %vm1980, %v3935, 0.0
  %v4014 = vadd.f32 %v4012, %v4013
  %v4015 = vsel %vm1980, %v3936, 0.0
  %v4016 = vadd.f32 %v4014, %v4015
  %v4017 = vsel %vm1980, %v3937, 0.0
  %v4018 = vadd.f32 %v4016, %v4017
  %v4019 = vrot.slane %v4018, 4
  %v4020 = vadd.f32 %v4018, %v4019
  %v4021 = vrot.slane %v4020, 2
  %v4022 = vadd.f32 %v4020, %v4021
  %v4023 = vrot.slane %v4022, 1
  %v4024 = vadd.f32 %v4022, %v4023
  %v4025 = vmul.f32 %v3897, %v3897
  %v4026 = vmul.f32 %v3898, %v3898
  %v4027 = vmul.f32 %v3899, %v3899
  %v4028 = vmul.f32 %v3900, %v3900
  %v4029 = vmul.f32 %v3901, %v3901
  %v4030 = vmul.f32 %v3902, %v3902
  %v4031 = vmul.f32 %v3903, %v3903
  %v4032 = vmul.f32 %v3904, %v3904
  %v4033 = vmul.f32 %v3905, %v3905
  %v4034 = vmul.f32 %v3906, %v3906
  %v4035 = vmul.f32 %v3907, %v3907
  %v4036 = vmul.f32 %v3908, %v3908
  %v4037 = vmul.f32 %v3909, %v3909
  %v4038 = vmul.f32 %v3910, %v3910
  %v4039 = vmul.f32 %v3911, %v3911
  %v4040 = vmul.f32 %v3912, %v3912
  %v4041 = vmul.f32 %v3913, %v3913
  %v4042 = vmul.f32 %v3914, %v3914
  %v4043 = vmul.f32 %v3915, %v3915
  %v4044 = vmul.f32 %v3916, %v3916
  %v4045 = vmul.f32 %v3917, %v3917
  %v4046 = vmul.f32 %v3918, %v3918
  %v4047 = vmul.f32 %v3919, %v3919
  %v4048 = vmul.f32 %v3920, %v3920
  %v4049 = vmul.f32 %v3921, %v3921
  %v4050 = vmul.f32 %v3922, %v3922
  %v4051 = vmul.f32 %v3923, %v3923
  %v4052 = vmul.f32 %v3924, %v3924
  %v4053 = vmul.f32 %v3925, %v3925
  %v4054 = vmul.f32 %v3926, %v3926
  %v4055 = vmul.f32 %v3927, %v3927
  %v4056 = vmul.f32 %v3928, %v3928
  %v4057 = vmul.f32 %v3929, %v3929
  %v4058 = vmul.f32 %v3930, %v3930
  %v4059 = vmul.f32 %v3931, %v3931
  %v4060 = vmul.f32 %v3932, %v3932
  %v4061 = vmul.f32 %v3933, %v3933
  %v4062 = vmul.f32 %v3934, %v3934
  %v4063 = vmul.f32 %v3935, %v3935
  %v4064 = vmul.f32 %v3936, %v3936
  %v4065 = vmul.f32 %v3937, %v3937
  %v4066 = vsel %vm1980, %v4025, 0.0
  %v4067 = vsel %vm1980, %v4026, 0.0
  %v4068 = vadd.f32 %v4066, %v4067
  %v4069 = vsel %vm1980, %v4027, 0.0
  %v4070 = vadd.f32 %v4068, %v4069
  %v4071 = vsel %vm1980, %v4028, 0.0
  %v4072 = vadd.f32 %v4070, %v4071
  %v4073 = vsel %vm1980, %v4029, 0.0
  %v4074 = vadd.f32 %v4072, %v4073
  %v4075 = vsel %vm1980, %v4030, 0.0
  %v4076 = vadd.f32 %v4074, %v4075
  %v4077 = vsel %vm1980, %v4031, 0.0
  %v4078 = vadd.f32 %v4076, %v4077
  %v4079 = vsel %vm1980, %v4032, 0.0
  %v4080 = vadd.f32 %v4078, %v4079
  %v4081 = vsel %vm1980, %v4033, 0.0
  %v4082 = vadd.f32 %v4080, %v4081
  %v4083 = vsel %vm1980, %v4034, 0.0
  %v4084 = vadd.f32 %v4082, %v4083
  %v4085 = vsel %vm1980, %v4035, 0.0
  %v4086 = vadd.f32 %v4084, %v4085
  %v4087 = vsel %vm1980, %v4036, 0.0
  %v4088 = vadd.f32 %v4086, %v4087
  %v4089 = vsel %vm1980, %v4037, 0.0
  %v4090 = vadd.f32 %v4088, %v4089
  %v4091 = vsel %vm1980, %v4038, 0.0
  %v4092 = vadd.f32 %v4090, %v4091
  %v4093 = vsel %vm1980, %v4039, 0.0
  %v4094 = vadd.f32 %v4092, %v4093
  %v4095 = vsel %vm1980, %v4040, 0.0
  %v4096 = vadd.f32 %v4094, %v4095
  %v4097 = vsel %vm1980, %v4041, 0.0
  %v4098 = vadd.f32 %v4096, %v4097
  %v4099 = vsel %vm1980, %v4042, 0.0
  %v4100 = vadd.f32 %v4098, %v4099
  %v4101 = vsel %vm1980, %v4043, 0.0
  %v4102 = vadd.f32 %v4100, %v4101
  %v4103 = vsel %vm1980, %v4044, 0.0
  %v4104 = vadd.f32 %v4102, %v4103
  %v4105 = vsel %vm1980, %v4045, 0.0
  %v4106 = vadd.f32 %v4104, %v4105
  %v4107 = vsel %vm1980, %v4046, 0.0
  %v4108 = vadd.f32 %v4106, %v4107
  %v4109 = vsel %vm1980, %v4047, 0.0
  %v4110 = vadd.f32 %v4108, %v4109
  %v4111 = vsel %vm1980, %v4048, 0.0
  %v4112 = vadd.f32 %v4110, %v4111
  %v4113 = vsel %vm1980, %v4049, 0.0
  %v4114 = vadd.f32 %v4112, %v4113
  %v4115 = vsel %vm1980, %v4050, 0.0
  %v4116 = vadd.f32 %v4114, %v4115
  %v4117 = vsel %vm1980, %v4051, 0.0
  %v4118 = vadd.f32 %v4116, %v4117
  %v4119 = vsel %vm1980, %v4052, 0.0
  %v4120 = vadd.f32 %v4118, %v4119
  %v4121 = vsel %vm1980, %v4053, 0.0
  %v4122 = vadd.f32 %v4120, %v4121
  %v4123 = vsel %vm1980, %v4054, 0.0
  %v4124 = vadd.f32 %v4122, %v4123
  %v4125 = vsel %vm1980, %v4055, 0.0
  %v4126 = vadd.f32 %v4124, %v4125
  %v4127 = vsel %vm1980, %v4056, 0.0
  %v4128 = vadd.f32 %v4126, %v4127
  %v4129 = vsel %vm1980, %v4057, 0.0
  %v4130 = vadd.f32 %v4128, %v4129
  %v4131 = vsel %vm1980, %v4058, 0.0
  %v4132 = vadd.f32 %v4130, %v4131
  %v4133 = vsel %vm1980, %v4059, 0.0
  %v4134 = vadd.f32 %v4132, %v4133
  %v4135 = vsel %vm1980, %v4060, 0.0
  %v4136 = vadd.f32 %v4134, %v4135
  %v4137 = vsel %vm1980, %v4061, 0.0
  %v4138 = vadd.f32 %v4136, %v4137
  %v4139 = vsel %vm1980, %v4062, 0.0
  %v4140 = vadd.f32 %v4138, %v4139
  %v4141 = vsel %vm1980, %v4063, 0.0
  %v4142 = vadd.f32 %v4140, %v4141
  %v4143 = vsel %vm1980, %v4064, 0.0
  %v4144 = vadd.f32 %v4142, %v4143
  %v4145 = vsel %vm1980, %v4065, 0.0
  %v4146 = vadd.f32 %v4144, %v4145
  %v4147 = vrot.slane %v4146, 4
  %v4148 = vadd.f32 %v4146, %v4147
  %v4149 = vrot.slane %v4148, 2
  %v4150 = vadd.f32 %v4148, %v4149
  %v4151 = vrot.slane %v4150, 1
  %v4152 = vadd.f32 %v4150, %v4151
  %v4153 = vmul.f32 %v4024, 0.00390625
  %v4154 = vmul.f32 %v4153, %v4024
  %v4155 = vsub.f32 %v4152, %v4154
  %v4156 = vmax.f32 %v4155, 0.0
  %v4157 = vmul.f32 %v4156, 0.003921569
  %v4158 = vrsqrt.pop %v4157
  %v4159 = vmul.f32 %v4158, %v4157
  %v4160 = vmul.f32 %v4159, %v4158
  %v4161 = vmul.f32 0.5, %v4160
  %v4162 = vsub.f32 1.5, %v4161
  %v4163 = vmul.f32 %v4158, %v4162
  %v4164 = vmul.f32 %v4157, %v4163
  %vm4165 = vcmp.eq.f32.partialorder %v4157, inf
  %v4166 = vsel %vm4165, %v4157, %v4164
  %vm4167 = vcmp.eq.f32.partialorder %v4157, 0.0
  %v4168 = vand.u32 %v4157, 2147483648
  %v4169 = vsel %vm4167, %v4168, %v4166
  %v4170 = vadd.f32 %v4169, 1e-07
  %v4171 = vrcp.pop %v4170
  %v4172 = vsub.f32 %v3897, %v4153
  %v4173 = vsub.f32 %v3898, %v4153
  %v4174 = vsub.f32 %v3899, %v4153
  %v4175 = vsub.f32 %v3900, %v4153
  %v4176 = vsub.f32 %v3901, %v4153
  %v4177 = vsub.f32 %v3902, %v4153
  %v4178 = vsub.f32 %v3903, %v4153
  %v4179 = vsub.f32 %v3904, %v4153
  %v4180 = vsub.f32 %v3905, %v4153
  %v4181 = vsub.f32 %v3906, %v4153
  %v4182 = vsub.f32 %v3907, %v4153
  %v4183 = vsub.f32 %v3908, %v4153
  %v4184 = vsub.f32 %v3909, %v4153
  %v4185 = vsub.f32 %v3910, %v4153
  %v4186 = vsub.f32 %v3911, %v4153
  %v4187 = vsub.f32 %v3912, %v4153
  %v4188 = vsub.f32 %v3913, %v4153
  %v4189 = vsub.f32 %v3914, %v4153
  %v4190 = vsub.f32 %v3915, %v4153
  %v4191 = vsub.f32 %v3916, %v4153
  %v4192 = vsub.f32 %v3917, %v4153
  %v4193 = vsub.f32 %v3918, %v4153
  %v4194 = vsub.f32 %v3919, %v4153
  %v4195 = vsub.f32 %v3920, %v4153
  %v4196 = vsub.f32 %v3921, %v4153
  %v4197 = vsub.f32 %v3922, %v4153
  %v4198 = vsub.f32 %v3923, %v4153
  %v4199 = vsub.f32 %v3924, %v4153
  %v4200 = vsub.f32 %v3925, %v4153
  %v4201 = vsub.f32 %v3926, %v4153
  %v4202 = vsub.f32 %v3927, %v4153
  %v4203 = vsub.f32 %v3928, %v4153
  %v4204 = vsub.f32 %v3929, %v4153
  %v4205 = vsub.f32 %v3930, %v4153
  %v4206 = vsub.f32 %v3931, %v4153
  %v4207 = vsub.f32 %v3932, %v4153
  %v4208 = vsub.f32 %v3933, %v4153
  %v4209 = vsub.f32 %v3934, %v4153
  %v4210 = vsub.f32 %v3935, %v4153
  %v4211 = vsub.f32 %v3936, %v4153
  %v4212 = vsub.f32 %v3937, %v4153
  %v4213 = vmul.f32 %v4172, %v4171
  %v4214 = vmul.f32 %v4173, %v4171
  %v4215 = vmul.f32 %v4174, %v4171
  %v4216 = vmul.f32 %v4175, %v4171
  %v4217 = vmul.f32 %v4176, %v4171
  %v4218 = vmul.f32 %v4177, %v4171
  %v4219 = vmul.f32 %v4178, %v4171
  %v4220 = vmul.f32 %v4179, %v4171
  %v4221 = vmul.f32 %v4180, %v4171
  %v4222 = vmul.f32 %v4181, %v4171
  %v4223 = vmul.f32 %v4182, %v4171
  %v4224 = vmul.f32 %v4183, %v4171
  %v4225 = vmul.f32 %v4184, %v4171
  %v4226 = vmul.f32 %v4185, %v4171
  %v4227 = vmul.f32 %v4186, %v4171
  %v4228 = vmul.f32 %v4187, %v4171
  %v4229 = vmul.f32 %v4188, %v4171
  %v4230 = vmul.f32 %v4189, %v4171
  %v4231 = vmul.f32 %v4190, %v4171
  %v4232 = vmul.f32 %v4191, %v4171
  %v4233 = vmul.f32 %v4192, %v4171
  %v4234 = vmul.f32 %v4193, %v4171
  %v4235 = vmul.f32 %v4194, %v4171
  %v4236 = vmul.f32 %v4195, %v4171
  %v4237 = vmul.f32 %v4196, %v4171
  %v4238 = vmul.f32 %v4197, %v4171
  %v4239 = vmul.f32 %v4198, %v4171
  %v4240 = vmul.f32 %v4199, %v4171
  %v4241 = vmul.f32 %v4200, %v4171
  %v4242 = vmul.f32 %v4201, %v4171
  %v4243 = vmul.f32 %v4202, %v4171
  %v4244 = vmul.f32 %v4203, %v4171
  %v4245 = vmul.f32 %v4204, %v4171
  %v4246 = vmul.f32 %v4205, %v4171
  %v4247 = vmul.f32 %v4206, %v4171
  %v4248 = vmul.f32 %v4207, %v4171
  %v4249 = vmul.f32 %v4208, %v4171
  %v4250 = vmul.f32 %v4209, %v4171
  %v4251 = vmul.f32 %v4210, %v4171
  %v4252 = vmul.f32 %v4211, %v4171
  %v4253 = vmul.f32 %v4212, %v4171
  %v4254 = vsel %vm1898, %v4213, 0.0
  %v4255 = vsel %vm1899, %v4214, 0.0
  %v4256 = vsel %vm1900, %v4215, 0.0
  %v4257 = vsel %vm1901, %v4216, 0.0
  %v4258 = vsel %vm1902, %v4217, 0.0
  %v4259 = vsel %vm1903, %v4218, 0.0
  %v4260 = vsel %vm1904, %v4219, 0.0
  %v4261 = vsel %vm1905, %v4220, 0.0
  %v4262 = vsel %vm1906, %v4221, 0.0
  %v4263 = vsel %vm1907, %v4222, 0.0
  %v4264 = vsel %vm1908, %v4223, 0.0
  %v4265 = vsel %vm1909, %v4224, 0.0
  %v4266 = vsel %vm1910, %v4225, 0.0
  %v4267 = vsel %vm1911, %v4226, 0.0
  %v4268 = vsel %vm1912, %v4227, 0.0
  %v4269 = vsel %vm1913, %v4228, 0.0
  %v4270 = vsel %vm1914, %v4229, 0.0
  %v4271 = vsel %vm1915, %v4230, 0.0
  %v4272 = vsel %vm1916, %v4231, 0.0
  %v4273 = vsel %vm1917, %v4232, 0.0
  %v4274 = vsel %vm1918, %v4233, 0.0
  %v4275 = vsel %vm1919, %v4234, 0.0
  %v4276 = vsel %vm1920, %v4235, 0.0
  %v4277 = vsel %vm1921, %v4236, 0.0
  %v4278 = vsel %vm1922, %v4237, 0.0
  %v4279 = vsel %vm1923, %v4238, 0.0
  %v4280 = vsel %vm1924, %v4239, 0.0
  %v4281 = vsel %vm1925, %v4240, 0.0
  %v4282 = vsel %vm1926, %v4241, 0.0
  %v4283 = vsel %vm1927, %v4242, 0.0
  %v4284 = vsel %vm1928, %v4243, 0.0
  %v4285 = vsel %vm1929, %v4244, 0.0
  %v4286 = vsel %vm1930, %v4245, 0.0
  %v4287 = vsel %vm1931, %v4246, 0.0
  %v4288 = vsel %vm1932, %v4247, 0.0
  %v4289 = vsel %vm1933, %v4248, 0.0
  %v4290 = vsel %vm1934, %v4249, 0.0
  %v4291 = vsel %vm1935, %v4250, 0.0
  %v4292 = vsel %vm1936, %v4251, 0.0
  %v4293 = vsel %vm1937, %v4252, 0.0
  %v4294 = vsel %vm1938, %v4253, 0.0
  %v4295 = vrot.slane %v4254, 7
  %v4296 = vrot.slane %v4255, 7
  %v4297 = vrot.slane %v4256, 7
  %v4298 = vrot.slane %v4257, 7
  %v4299 = vrot.slane %v4258, 7
  %v4300 = vrot.slane %v4259, 7
  %v4301 = vrot.slane %v4260, 7
  %v4302 = vrot.slane %v4261, 7
  %v4303 = vrot.slane %v4262, 7
  %v4304 = vrot.slane %v4263, 7
  %v4305 = vrot.slane %v4264, 7
  %v4306 = vrot.slane %v4265, 7
  %v4307 = vrot.slane %v4266, 7
  %v4308 = vrot.slane %v4267, 7
  %v4309 = vrot.slane %v4268, 7
  %v4310 = vrot.slane %v4269, 7
  %v4311 = vrot.slane %v4270, 7
  %v4312 = vrot.slane %v4271, 7
  %v4313 = vrot.slane %v4272, 7
  %v4314 = vrot.slane %v4273, 7
  %v4315 = vrot.slane %v4274, 7
  %v4316 = vrot.slane %v4275, 7
  %v4317 = vrot.slane %v4276, 7
  %v4318 = vrot.slane %v4277, 7
  %v4319 = vrot.slane %v4278, 7
  %v4320 = vrot.slane %v4279, 7
  %v4321 = vrot.slane %v4280, 7
  %v4322 = vrot.slane %v4281, 7
  %v4323 = vrot.slane %v4282, 7
  %v4324 = vrot.slane %v4283, 7
  %v4325 = vrot.slane %v4284, 7
  %v4326 = vrot.slane %v4285, 7
  %v4327 = vrot.slane %v4286, 7
  %v4328 = vrot.slane %v4287, 7
  %v4329 = vrot.slane %v4288, 7
  %v4330 = vrot.slane %v4289, 7
  %v4331 = vrot.slane %v4290, 7
  %v4332 = vrot.slane %v4291, 7
  %v4333 = vrot.slane %v4292, 7
  %v4334 = vrot.slane %v4293, 7
  %v4335 = vrot.slane %v4294, 7
  %v4336 = vsel %vm444, %v4334, %v4335
  %v4337 = vsel %vm444, %v4333, %v4334
  %v4338 = vsel %vm444, %v4332, %v4333
  %v4339 = vsel %vm444, %v4331, %v4332
  %v4340 = vsel %vm444, %v4330, %v4331
  %v4341 = vsel %vm444, %v4329, %v4330
  %v4342 = vsel %vm444, %v4328, %v4329
  %v4343 = vsel %vm444, %v4327, %v4328
  %v4344 = vsel %vm444, %v4326, %v4327
  %v4345 = vsel %vm444, %v4325, %v4326
  %v4346 = vsel %vm444, %v4324, %v4325
  %v4347 = vsel %vm444, %v4323, %v4324
  %v4348 = vsel %vm444, %v4322, %v4323
  %v4349 = vsel %vm444, %v4321, %v4322
  %v4350 = vsel %vm444, %v4320, %v4321
  %v4351 = vsel %vm444, %v4319, %v4320
  %v4352 = vsel %vm444, %v4318, %v4319
  %v4353 = vsel %vm444, %v4317, %v4318
  %v4354 = vsel %vm444, %v4316, %v4317
  %v4355 = vsel %vm444, %v4315, %v4316
  %v4356 = vsel %vm444, %v4314, %v4315
  %v4357 = vsel %vm444, %v4313, %v4314
  %v4358 = vsel %vm444, %v4312, %v4313
  %v4359 = vsel %vm444, %v4311, %v4312
  %v4360 = vsel %vm444, %v4310, %v4311
  %v4361 = vsel %vm444, %v4309, %v4310
  %v4362 = vsel %vm444, %v4308, %v4309
  %v4363 = vsel %vm444, %v4307, %v4308
  %v4364 = vsel %vm444, %v4306, %v4307
  %v4365 = vsel %vm444, %v4305, %v4306
  %v4366 = vsel %vm444, %v4304, %v4305
  %v4367 = vsel %vm444, %v4303, %v4304
  %v4368 = vsel %vm444, %v4302, %v4303
  %v4369 = vsel %vm444, %v4301, %v4302
  %v4370 = vsel %vm444, %v4300, %v4301
  %v4371 = vsel %vm444, %v4299, %v4300
  %v4372 = vsel %vm444, %v4298, %v4299
  %v4373 = vsel %vm444, %v4297, %v4298
  %v4374 = vsel %vm444, %v4296, %v4297
  %v4375 = vsel %vm444, %v4295, %v4296
  %v4376 = vsel %vm444, %v4335, %v4295
  %v4377 = vrot.slane %v4254, 1
  %v4378 = vrot.slane %v4255, 1
  %v4379 = vrot.slane %v4256, 1
  %v4380 = vrot.slane %v4257, 1
  %v4381 = vrot.slane %v4258, 1
  %v4382 = vrot.slane %v4259, 1
  %v4383 = vrot.slane %v4260, 1
  %v4384 = vrot.slane %v4261, 1
  %v4385 = vrot.slane %v4262, 1
  %v4386 = vrot.slane %v4263, 1
  %v4387 = vrot.slane %v4264, 1
  %v4388 = vrot.slane %v4265, 1
  %v4389 = vrot.slane %v4266, 1
  %v4390 = vrot.slane %v4267, 1
  %v4391 = vrot.slane %v4268, 1
  %v4392 = vrot.slane %v4269, 1
  %v4393 = vrot.slane %v4270, 1
  %v4394 = vrot.slane %v4271, 1
  %v4395 = vrot.slane %v4272, 1
  %v4396 = vrot.slane %v4273, 1
  %v4397 = vrot.slane %v4274, 1
  %v4398 = vrot.slane %v4275, 1
  %v4399 = vrot.slane %v4276, 1
  %v4400 = vrot.slane %v4277, 1
  %v4401 = vrot.slane %v4278, 1
  %v4402 = vrot.slane %v4279, 1
  %v4403 = vrot.slane %v4280, 1
  %v4404 = vrot.slane %v4281, 1
  %v4405 = vrot.slane %v4282, 1
  %v4406 = vrot.slane %v4283, 1
  %v4407 = vrot.slane %v4284, 1
  %v4408 = vrot.slane %v4285, 1
  %v4409 = vrot.slane %v4286, 1
  %v4410 = vrot.slane %v4287, 1
  %v4411 = vrot.slane %v4288, 1
  %v4412 = vrot.slane %v4289, 1
  %v4413 = vrot.slane %v4290, 1
  %v4414 = vrot.slane %v4291, 1
  %v4415 = vrot.slane %v4292, 1
  %v4416 = vrot.slane %v4293, 1
  %v4417 = vrot.slane %v4294, 1
  %v4418 = vsel %vm527, %v4416, %v4417
  %v4419 = vsel %vm527, %v4415, %v4416
  %v4420 = vsel %vm527, %v4414, %v4415
  %v4421 = vsel %vm527, %v4413, %v4414
  %v4422 = vsel %vm527, %v4412, %v4413
  %v4423 = vsel %vm527, %v4411, %v4412
  %v4424 = vsel %vm527, %v4410, %v4411
  %v4425 = vsel %vm527, %v4409, %v4410
  %v4426 = vsel %vm527, %v4408, %v4409
  %v4427 = vsel %vm527, %v4407, %v4408
  %v4428 = vsel %vm527, %v4406, %v4407
  %v4429 = vsel %vm527, %v4405, %v4406
  %v4430 = vsel %vm527, %v4404, %v4405
  %v4431 = vsel %vm527, %v4403, %v4404
  %v4432 = vsel %vm527, %v4402, %v4403
  %v4433 = vsel %vm527, %v4401, %v4402
  %v4434 = vsel %vm527, %v4400, %v4401
  %v4435 = vsel %vm527, %v4399, %v4400
  %v4436 = vsel %vm527, %v4398, %v4399
  %v4437 = vsel %vm527, %v4397, %v4398
  %v4438 = vsel %vm527, %v4396, %v4397
  %v4439 = vsel %vm527, %v4395, %v4396
  %v4440 = vsel %vm527, %v4394, %v4395
  %v4441 = vsel %vm527, %v4393, %v4394
  %v4442 = vsel %vm527, %v4392, %v4393
  %v4443 = vsel %vm527, %v4391, %v4392
  %v4444 = vsel %vm527, %v4390, %v4391
  %v4445 = vsel %vm527, %v4389, %v4390
  %v4446 = vsel %vm527, %v4388, %v4389
  %v4447 = vsel %vm527, %v4387, %v4388
  %v4448 = vsel %vm527, %v4386, %v4387
  %v4449 = vsel %vm527, %v4385, %v4386
  %v4450 = vsel %vm527, %v4384, %v4385
  %v4451 = vsel %vm527, %v4383, %v4384
  %v4452 = vsel %vm527, %v4382, %v4383
  %v4453 = vsel %vm527, %v4381, %v4382
  %v4454 = vsel %vm527, %v4380, %v4381
  %v4455 = vsel %vm527, %v4379, %v4380
  %v4456 = vsel %vm527, %v4378, %v4379
  %v4457 = vsel %vm527, %v4377, %v4378
  %v4458 = vsel %vm527, %v4417, %v4377
  %4500 = vrot.lane.b32.xlu0 %v4254, 32
  %v4501 = vpop.permute.xlu0 %4500
  %4502 = vrot.lane.b32.xlu0 %v4255, 32
  %v4503 = vpop.permute.xlu0 %4502
  %4504 = vrot.lane.b32.xlu0 %v4256, 32
  %v4505 = vpop.permute.xlu0 %4504
  %4506 = vrot.lane.b32.xlu0 %v4257, 32
  %v4507 = vpop.permute.xlu0 %4506
  %4508 = vrot.lane.b32.xlu0 %v4258, 32
  %v4509 = vpop.permute.xlu0 %4508
  %4510 = vrot.lane.b32.xlu0 %v4259, 32
  %v4511 = vpop.permute.xlu0 %4510
  %4512 = vrot.lane.b32.xlu0 %v4260, 32
  %v4513 = vpop.permute.xlu0 %4512
  %4514 = vrot.lane.b32.xlu0 %v4261, 32
  %v4515 = vpop.permute.xlu0 %4514
  %4516 = vrot.lane.b32.xlu0 %v4262, 32
  %v4517 = vpop.permute.xlu0 %4516
  %4518 = vrot.lane.b32.xlu0 %v4263, 32
  %v4519 = vpop.permute.xlu0 %4518
  %4520 = vrot.lane.b32.xlu0 %v4264, 32
  %v4521 = vpop.permute.xlu0 %4520
  %4522 = vrot.lane.b32.xlu0 %v4265, 32
  %v4523 = vpop.permute.xlu0 %4522
  %4524 = vrot.lane.b32.xlu0 %v4266, 32
  %v4525 = vpop.permute.xlu0 %4524
  %4526 = vrot.lane.b32.xlu0 %v4267, 32
  %v4527 = vpop.permute.xlu0 %4526
  %4528 = vrot.lane.b32.xlu0 %v4268, 32
  %v4529 = vpop.permute.xlu0 %4528
  %4530 = vrot.lane.b32.xlu0 %v4269, 32
  %v4531 = vpop.permute.xlu0 %4530
  %4532 = vrot.lane.b32.xlu0 %v4270, 32
  %v4533 = vpop.permute.xlu0 %4532
  %4534 = vrot.lane.b32.xlu0 %v4271, 32
  %v4535 = vpop.permute.xlu0 %4534
  %4536 = vrot.lane.b32.xlu0 %v4272, 32
  %v4537 = vpop.permute.xlu0 %4536
  %4538 = vrot.lane.b32.xlu0 %v4273, 32
  %v4539 = vpop.permute.xlu0 %4538
  %4540 = vrot.lane.b32.xlu0 %v4274, 32
  %v4541 = vpop.permute.xlu0 %4540
  %4542 = vrot.lane.b32.xlu0 %v4275, 32
  %v4543 = vpop.permute.xlu0 %4542
  %4544 = vrot.lane.b32.xlu0 %v4276, 32
  %v4545 = vpop.permute.xlu0 %4544
  %4546 = vrot.lane.b32.xlu0 %v4277, 32
  %v4547 = vpop.permute.xlu0 %4546
  %4548 = vrot.lane.b32.xlu0 %v4278, 32
  %v4549 = vpop.permute.xlu0 %4548
  %4550 = vrot.lane.b32.xlu0 %v4279, 32
  %v4551 = vpop.permute.xlu0 %4550
  %4552 = vrot.lane.b32.xlu0 %v4280, 32
  %v4553 = vpop.permute.xlu0 %4552
  %4554 = vrot.lane.b32.xlu0 %v4281, 32
  %v4555 = vpop.permute.xlu0 %4554
  %4556 = vrot.lane.b32.xlu0 %v4282, 32
  %v4557 = vpop.permute.xlu0 %4556
  %4558 = vrot.lane.b32.xlu0 %v4283, 32
  %v4559 = vpop.permute.xlu0 %4558
  %4560 = vrot.lane.b32.xlu0 %v4284, 32
  %v4561 = vpop.permute.xlu0 %4560
  %4562 = vrot.lane.b32.xlu0 %v4285, 32
  %v4563 = vpop.permute.xlu0 %4562
  %4564 = vrot.lane.b32.xlu0 %v4286, 32
  %v4565 = vpop.permute.xlu0 %4564
  %4566 = vrot.lane.b32.xlu0 %v4287, 32
  %v4567 = vpop.permute.xlu0 %4566
  %4568 = vrot.lane.b32.xlu0 %v4288, 32
  %v4569 = vpop.permute.xlu0 %4568
  %4570 = vrot.lane.b32.xlu0 %v4289, 32
  %v4571 = vpop.permute.xlu0 %4570
  %4572 = vrot.lane.b32.xlu0 %v4290, 32
  %v4573 = vpop.permute.xlu0 %4572
  %4574 = vrot.lane.b32.xlu0 %v4291, 32
  %v4575 = vpop.permute.xlu0 %4574
  %4576 = vrot.lane.b32.xlu0 %v4292, 32
  %v4577 = vpop.permute.xlu0 %4576
  %4578 = vrot.lane.b32.xlu0 %v4293, 32
  %v4579 = vpop.permute.xlu0 %4578
  %4580 = vrot.lane.b32.xlu0 %v4294, 32
  %v4581 = vpop.permute.xlu0 %4580
  %4664 = vrot.lane.b32.xlu0 %v4457, 64
  %v4665 = vpop.permute.xlu0 %4664
  %4666 = vrot.lane.b32.xlu0 %v4456, 64
  %v4667 = vpop.permute.xlu0 %4666
  %4668 = vrot.lane.b32.xlu0 %v4455, 64
  %v4669 = vpop.permute.xlu0 %4668
  %4670 = vrot.lane.b32.xlu0 %v4454, 64
  %v4671 = vpop.permute.xlu0 %4670
  %4672 = vrot.lane.b32.xlu0 %v4453, 64
  %v4673 = vpop.permute.xlu0 %4672
  %4674 = vrot.lane.b32.xlu0 %v4452, 64
  %v4675 = vpop.permute.xlu0 %4674
  %4676 = vrot.lane.b32.xlu0 %v4451, 64
  %v4677 = vpop.permute.xlu0 %4676
  %4678 = vrot.lane.b32.xlu0 %v4450, 64
  %v4679 = vpop.permute.xlu0 %4678
  %4680 = vrot.lane.b32.xlu0 %v4449, 64
  %v4681 = vpop.permute.xlu0 %4680
  %4682 = vrot.lane.b32.xlu0 %v4448, 64
  %v4683 = vpop.permute.xlu0 %4682
  %4684 = vrot.lane.b32.xlu0 %v4447, 64
  %v4685 = vpop.permute.xlu0 %4684
  %4686 = vrot.lane.b32.xlu0 %v4446, 64
  %v4687 = vpop.permute.xlu0 %4686
  %4688 = vrot.lane.b32.xlu0 %v4445, 64
  %v4689 = vpop.permute.xlu0 %4688
  %4690 = vrot.lane.b32.xlu0 %v4444, 64
  %v4691 = vpop.permute.xlu0 %4690
  %4692 = vrot.lane.b32.xlu0 %v4443, 64
  %v4693 = vpop.permute.xlu0 %4692
  %4694 = vrot.lane.b32.xlu0 %v4442, 64
  %v4695 = vpop.permute.xlu0 %4694
  %4696 = vrot.lane.b32.xlu0 %v4441, 64
  %v4697 = vpop.permute.xlu0 %4696
  %4698 = vrot.lane.b32.xlu0 %v4440, 64
  %v4699 = vpop.permute.xlu0 %4698
  %4700 = vrot.lane.b32.xlu0 %v4439, 64
  %v4701 = vpop.permute.xlu0 %4700
  %4702 = vrot.lane.b32.xlu0 %v4438, 64
  %v4703 = vpop.permute.xlu0 %4702
  %4704 = vrot.lane.b32.xlu0 %v4437, 64
  %v4705 = vpop.permute.xlu0 %4704
  %4706 = vrot.lane.b32.xlu0 %v4436, 64
  %v4707 = vpop.permute.xlu0 %4706
  %4708 = vrot.lane.b32.xlu0 %v4435, 64
  %v4709 = vpop.permute.xlu0 %4708
  %4710 = vrot.lane.b32.xlu0 %v4434, 64
  %v4711 = vpop.permute.xlu0 %4710
  %4712 = vrot.lane.b32.xlu0 %v4433, 64
  %v4713 = vpop.permute.xlu0 %4712
  %4714 = vrot.lane.b32.xlu0 %v4432, 64
  %v4715 = vpop.permute.xlu0 %4714
  %4716 = vrot.lane.b32.xlu0 %v4431, 64
  %v4717 = vpop.permute.xlu0 %4716
  %4718 = vrot.lane.b32.xlu0 %v4430, 64
  %v4719 = vpop.permute.xlu0 %4718
  %4720 = vrot.lane.b32.xlu0 %v4429, 64
  %v4721 = vpop.permute.xlu0 %4720
  %4722 = vrot.lane.b32.xlu0 %v4428, 64
  %v4723 = vpop.permute.xlu0 %4722
  %4724 = vrot.lane.b32.xlu0 %v4427, 64
  %v4725 = vpop.permute.xlu0 %4724
  %4726 = vrot.lane.b32.xlu0 %v4426, 64
  %v4727 = vpop.permute.xlu0 %4726
  %4728 = vrot.lane.b32.xlu0 %v4425, 64
  %v4729 = vpop.permute.xlu0 %4728
  %4730 = vrot.lane.b32.xlu0 %v4424, 64
  %v4731 = vpop.permute.xlu0 %4730
  %4732 = vrot.lane.b32.xlu0 %v4423, 64
  %v4733 = vpop.permute.xlu0 %4732
  %4734 = vrot.lane.b32.xlu0 %v4422, 64
  %v4735 = vpop.permute.xlu0 %4734
  %4736 = vrot.lane.b32.xlu0 %v4421, 64
  %v4737 = vpop.permute.xlu0 %4736
  %4738 = vrot.lane.b32.xlu0 %v4420, 64
  %v4739 = vpop.permute.xlu0 %4738
  %4740 = vrot.lane.b32.xlu0 %v4419, 64
  %v4741 = vpop.permute.xlu0 %4740
  %4742 = vrot.lane.b32.xlu0 %v4418, 64
  %v4743 = vpop.permute.xlu0 %4742
  %4744 = vrot.lane.b32.xlu0 %v4458, 64
  %v4745 = vpop.permute.xlu0 %4744
  %v4787 = vsel %vm1980, %v4376, %v4501
  %v4788 = vsel %vm1980, %v4375, %v4503
  %v4789 = vsel %vm1980, %v4374, %v4505
  %v4790 = vsel %vm1980, %v4373, %v4507
  %v4791 = vsel %vm1980, %v4372, %v4509
  %v4792 = vsel %vm1980, %v4371, %v4511
  %v4793 = vsel %vm1980, %v4370, %v4513
  %v4794 = vsel %vm1980, %v4369, %v4515
  %v4795 = vsel %vm1980, %v4368, %v4517
  %v4796 = vsel %vm1980, %v4367, %v4519
  %v4797 = vsel %vm1980, %v4366, %v4521
  %v4798 = vsel %vm1980, %v4365, %v4523
  %v4799 = vsel %vm1980, %v4364, %v4525
  %v4800 = vsel %vm1980, %v4363, %v4527
  %v4801 = vsel %vm1980, %v4362, %v4529
  %v4802 = vsel %vm1980, %v4361, %v4531
  %v4803 = vsel %vm1980, %v4360, %v4533
  %v4804 = vsel %vm1980, %v4359, %v4535
  %v4805 = vsel %vm1980, %v4358, %v4537
  %v4806 = vsel %vm1980, %v4357, %v4539
  %v4807 = vsel %vm1980, %v4356, %v4541
  %v4808 = vsel %vm1980, %v4355, %v4543
  %v4809 = vsel %vm1980, %v4354, %v4545
  %v4810 = vsel %vm1980, %v4353, %v4547
  %v4811 = vsel %vm1980, %v4352, %v4549
  %v4812 = vsel %vm1980, %v4351, %v4551
  %v4813 = vsel %vm1980, %v4350, %v4553
  %v4814 = vsel %vm1980, %v4349, %v4555
  %v4815 = vsel %vm1980, %v4348, %v4557
  %v4816 = vsel %vm1980, %v4347, %v4559
  %v4817 = vsel %vm1980, %v4346, %v4561
  %v4818 = vsel %vm1980, %v4345, %v4563
  %v4819 = vsel %vm1980, %v4344, %v4565
  %v4820 = vsel %vm1980, %v4343, %v4567
  %v4821 = vsel %vm1980, %v4342, %v4569
  %v4822 = vsel %vm1980, %v4341, %v4571
  %v4823 = vsel %vm1980, %v4340, %v4573
  %v4824 = vsel %vm1980, %v4339, %v4575
  %v4825 = vsel %vm1980, %v4338, %v4577
  %v4826 = vsel %vm1980, %v4337, %v4579
  %v4827 = vsel %vm1980, %v4336, %v4581
  %v4828 = vsel %vm2871, %v4787, %v4665
  %v4829 = vsel %vm2871, %v4788, %v4667
  %v4830 = vsel %vm2871, %v4789, %v4669
  %v4831 = vsel %vm2871, %v4790, %v4671
  %v4832 = vsel %vm2871, %v4791, %v4673
  %v4833 = vsel %vm2871, %v4792, %v4675
  %v4834 = vsel %vm2871, %v4793, %v4677
  %v4835 = vsel %vm2871, %v4794, %v4679
  %v4836 = vsel %vm2871, %v4795, %v4681
  %v4837 = vsel %vm2871, %v4796, %v4683
  %v4838 = vsel %vm2871, %v4797, %v4685
  %v4839 = vsel %vm2871, %v4798, %v4687
  %v4840 = vsel %vm2871, %v4799, %v4689
  %v4841 = vsel %vm2871, %v4800, %v4691
  %v4842 = vsel %vm2871, %v4801, %v4693
  %v4843 = vsel %vm2871, %v4802, %v4695
  %v4844 = vsel %vm2871, %v4803, %v4697
  %v4845 = vsel %vm2871, %v4804, %v4699
  %v4846 = vsel %vm2871, %v4805, %v4701
  %v4847 = vsel %vm2871, %v4806, %v4703
  %v4848 = vsel %vm2871, %v4807, %v4705
  %v4849 = vsel %vm2871, %v4808, %v4707
  %v4850 = vsel %vm2871, %v4809, %v4709
  %v4851 = vsel %vm2871, %v4810, %v4711
  %v4852 = vsel %vm2871, %v4811, %v4713
  %v4853 = vsel %vm2871, %v4812, %v4715
  %v4854 = vsel %vm2871, %v4813, %v4717
  %v4855 = vsel %vm2871, %v4814, %v4719
  %v4856 = vsel %vm2871, %v4815, %v4721
  %v4857 = vsel %vm2871, %v4816, %v4723
  %v4858 = vsel %vm2871, %v4817, %v4725
  %v4859 = vsel %vm2871, %v4818, %v4727
  %v4860 = vsel %vm2871, %v4819, %v4729
  %v4861 = vsel %vm2871, %v4820, %v4731
  %v4862 = vsel %vm2871, %v4821, %v4733
  %v4863 = vsel %vm2871, %v4822, %v4735
  %v4864 = vsel %vm2871, %v4823, %v4737
  %v4865 = vsel %vm2871, %v4824, %v4739
  %v4866 = vsel %vm2871, %v4825, %v4741
  %v4867 = vsel %vm2871, %v4826, %v4743
  %v4868 = vsel %vm2871, %v4827, %v4745
  %v4869 = vpack.c.bf16 %v4829, %v4828
  %v4870 = vpack.c.bf16 %v4831, %v4830
  %v4871 = vpack.c.bf16 %v4833, %v4832
  %v4872 = vpack.c.bf16 %v4835, %v4834
  %v4873 = vpack.c.bf16 %v4837, %v4836
  %v4874 = vpack.c.bf16 %v4839, %v4838
  %v4875 = vpack.c.bf16 %v4841, %v4840
  %v4876 = vpack.c.bf16 %v4843, %v4842
  %v4877 = vpack.c.bf16 %v4845, %v4844
  %v4878 = vpack.c.bf16 %v4847, %v4846
  %v4879 = vpack.c.bf16 %v4849, %v4848
  %v4880 = vpack.c.bf16 %v4851, %v4850
  %v4881 = vpack.c.bf16 %v4853, %v4852
  %v4882 = vpack.c.bf16 %v4855, %v4854
  %v4883 = vpack.c.bf16 %v4857, %v4856
  %v4884 = vpack.c.bf16 %v4859, %v4858
  %v4885 = vpack.c.bf16 %v4861, %v4860
  %v4886 = vpack.c.bf16 %v4863, %v4862
  %v4887 = vpack.c.bf16 %v4865, %v4864
  %v4888 = vpack.c.bf16 %v4867, %v4866
  %v4889 = vpack.c.bf16 %v4868, %v4868
  %v4890 = vld [vmem:[%s6] sm:$0x1]
  %v4891 = vld [vmem:[%s5] sm:$0xf]
  %v4892 = vld [vmem:[%s5 + $0x4] sm:$0xf]
  %v4893 = vld [vmem:[%s5 + $0x8] sm:$0xf]
  %v4894 = vld [vmem:[%s5 + $0xc] sm:$0xf]
  %v4895 = vld [vmem:[%s5 + $0x10] sm:$0xf]
  %v4896 = vld [vmem:[%s5 + $0x14] sm:$0xf]
  %v4897 = vld [vmem:[%s5 + $0x18] sm:$0xf]
  %v4898 = vld [vmem:[%s5 + $0x1c] sm:$0xf]
  %v4899 = vld [vmem:[%s5 + $0x20] sm:$0xf]
  %v4900 = vld [vmem:[%s5 + $0x24] sm:$0xf]
  %v4901 = vld [vmem:[%s5 + $0x28] sm:$0xf]
  %v4902 = vld [vmem:[%s5 + $0x2c] sm:$0xf]
  %v4915 = vunpack.c.l.b16 %v4891
  %v4916 = vunpack.c.l.b16 %v4892
  %v4917 = vunpack.c.l.b16 %v4893
  %v4918 = vunpack.c.l.b16 %v4894
  %v4919 = vunpack.c.l.b16 %v4895
  %v4920 = vunpack.c.l.b16 %v4896
  %v4921 = vunpack.c.l.b16 %v4897
  %v4922 = vunpack.c.l.b16 %v4898
  %v4923 = vunpack.c.l.b16 %v4899
  %v4924 = vunpack.c.l.b16 %v4900
  %v4925 = vunpack.c.l.b16 %v4901
  %v4926 = vunpack.c.l.b16 %v4902
  %v4927 = vpack.c.b16 %v4916, %v4915
  %v4928 = vpack.c.b16 %v4918, %v4917
  %v4929 = vpack.c.b16 %v4920, %v4919
  %v4930 = vpack.c.b16 %v4922, %v4921
  %v4931 = vpack.c.b16 %v4924, %v4923
  %v4932 = vpack.c.b16 %v4926, %v4925
  %v4940 = vsel %vm2983, %v4869, 0
  %v4943 = vsel %vm2983, %v4870, 0
  %v4946 = vsel %vm2983, %v4871, 0
  %v4949 = vsel %vm2983, %v4872, 0
  %v4952 = vsel %vm2983, %v4873, 0
  %v4955 = vsel %vm2983, %v4874, 0
  %v4958 = vsel %vm2983, %v4875, 0
  %v4961 = vsel %vm2983, %v4876, 0
  %v4964 = vsel %vm2983, %v4877, 0
  %v4967 = vsel %vm2983, %v4878, 0
  %v4970 = vsel %vm2983, %v4879, 0
  %v4973 = vsel %vm2983, %v4880, 0
  %v4976 = vsel %vm2983, %v4881, 0
  %v4979 = vsel %vm2983, %v4882, 0
  %v4982 = vsel %vm2983, %v4883, 0
  %v4985 = vsel %vm2983, %v4884, 0
  %v4988 = vsel %vm2983, %v4885, 0
  %v4991 = vsel %vm2983, %v4886, 0
  %v4994 = vsel %vm2983, %v4887, 0
  %v4997 = vsel %vm2983, %v4888, 0
  %v5000 = vsel %vm2983, %v4889, 0
  %5002 = vmatpush.bf16.msra.mxu0 0
  %5003 = vmatpush.bf16.msra.mxu0 0
  %5004 = vmatpush.bf16.msra.mxu0 %v4932
  %5005 = vmatpush.bf16.msra.mxu0 %v4931
  %5006 = vmatpush.bf16.msra.mxu0 %v4930
  %5007 = vmatpush.bf16.msra.mxu0 %v4929
  %5008 = vmatpush.bf16.msra.mxu0 %v4928
  %5009 = vmatpush.bf16.msra.mxu0 %v4927
  %5010 = vmatmul.bf16.gmra.mxu0 %v4940
  %v5011 = vpop.f32.mrf.mxu0
  %v5012 = vadd.f32 0.0, %v5011
  %v5013 = vpop.f32.mrf.mxu0
  %v5014 = vadd.f32 0.0, %v5013
  %5015 = vmatmul.bf16.gmra.mxu0 %v4943
  %v5016 = vpop.f32.mrf.mxu0
  %v5017 = vadd.f32 0.0, %v5016
  %v5018 = vpop.f32.mrf.mxu0
  %v5019 = vadd.f32 0.0, %v5018
  %5020 = vmatmul.bf16.gmra.mxu0 %v4946
  %v5021 = vpop.f32.mrf.mxu0
  %v5022 = vadd.f32 0.0, %v5021
  %v5023 = vpop.f32.mrf.mxu0
  %v5024 = vadd.f32 0.0, %v5023
  %5025 = vmatmul.bf16.gmra.mxu0 %v4949
  %v5026 = vpop.f32.mrf.mxu0
  %v5027 = vadd.f32 0.0, %v5026
  %v5028 = vpop.f32.mrf.mxu0
  %v5029 = vadd.f32 0.0, %v5028
  %5030 = vmatmul.bf16.gmra.mxu0 %v4952
  %v5031 = vpop.f32.mrf.mxu0
  %v5032 = vadd.f32 0.0, %v5031
  %v5033 = vpop.f32.mrf.mxu0
  %v5034 = vadd.f32 0.0, %v5033
  %5035 = vmatmul.bf16.gmra.mxu0 %v4955
  %v5036 = vpop.f32.mrf.mxu0
  %v5037 = vadd.f32 0.0, %v5036
  %v5038 = vpop.f32.mrf.mxu0
  %v5039 = vadd.f32 0.0, %v5038
  %5040 = vmatmul.bf16.gmra.mxu0 %v4958
  %v5041 = vpop.f32.mrf.mxu0
  %v5042 = vadd.f32 0.0, %v5041
  %v5043 = vpop.f32.mrf.mxu0
  %v5044 = vadd.f32 0.0, %v5043
  %5045 = vmatmul.bf16.gmra.mxu0 %v4961
  %v5046 = vpop.f32.mrf.mxu0
  %v5047 = vadd.f32 0.0, %v5046
  %v5048 = vpop.f32.mrf.mxu0
  %v5049 = vadd.f32 0.0, %v5048
  %5050 = vmatmul.bf16.gmra.mxu0 %v4964
  %v5051 = vpop.f32.mrf.mxu0
  %v5052 = vadd.f32 0.0, %v5051
  %v5053 = vpop.f32.mrf.mxu0
  %v5054 = vadd.f32 0.0, %v5053
  %5055 = vmatmul.bf16.gmra.mxu0 %v4967
  %v5056 = vpop.f32.mrf.mxu0
  %v5057 = vadd.f32 0.0, %v5056
  %v5058 = vpop.f32.mrf.mxu0
  %v5059 = vadd.f32 0.0, %v5058
  %5060 = vmatmul.bf16.gmra.mxu0 %v4970
  %v5061 = vpop.f32.mrf.mxu0
  %v5062 = vadd.f32 0.0, %v5061
  %v5063 = vpop.f32.mrf.mxu0
  %v5064 = vadd.f32 0.0, %v5063
  %5065 = vmatmul.bf16.gmra.mxu0 %v4973
  %v5066 = vpop.f32.mrf.mxu0
  %v5067 = vadd.f32 0.0, %v5066
  %v5068 = vpop.f32.mrf.mxu0
  %v5069 = vadd.f32 0.0, %v5068
  %5070 = vmatmul.bf16.gmra.mxu0 %v4976
  %v5071 = vpop.f32.mrf.mxu0
  %v5072 = vadd.f32 0.0, %v5071
  %v5073 = vpop.f32.mrf.mxu0
  %v5074 = vadd.f32 0.0, %v5073
  %5075 = vmatmul.bf16.gmra.mxu0 %v4979
  %v5076 = vpop.f32.mrf.mxu0
  %v5077 = vadd.f32 0.0, %v5076
  %v5078 = vpop.f32.mrf.mxu0
  %v5079 = vadd.f32 0.0, %v5078
  %5080 = vmatmul.bf16.gmra.mxu0 %v4982
  %v5081 = vpop.f32.mrf.mxu0
  %v5082 = vadd.f32 0.0, %v5081
  %v5083 = vpop.f32.mrf.mxu0
  %v5084 = vadd.f32 0.0, %v5083
  %5085 = vmatmul.bf16.gmra.mxu0 %v4985
  %v5086 = vpop.f32.mrf.mxu0
  %v5087 = vadd.f32 0.0, %v5086
  %v5088 = vpop.f32.mrf.mxu0
  %v5089 = vadd.f32 0.0, %v5088
  %5090 = vmatmul.bf16.gmra.mxu0 %v4988
  %v5091 = vpop.f32.mrf.mxu0
  %v5092 = vadd.f32 0.0, %v5091
  %v5093 = vpop.f32.mrf.mxu0
  %v5094 = vadd.f32 0.0, %v5093
  %5095 = vmatmul.bf16.gmra.mxu0 %v4991
  %v5096 = vpop.f32.mrf.mxu0
  %v5097 = vadd.f32 0.0, %v5096
  %v5098 = vpop.f32.mrf.mxu0
  %v5099 = vadd.f32 0.0, %v5098
  %5100 = vmatmul.bf16.gmra.mxu0 %v4994
  %v5101 = vpop.f32.mrf.mxu0
  %v5102 = vadd.f32 0.0, %v5101
  %v5103 = vpop.f32.mrf.mxu0
  %v5104 = vadd.f32 0.0, %v5103
  %5105 = vmatmul.bf16.gmra.mxu0 %v4997
  %v5106 = vpop.f32.mrf.mxu0
  %v5107 = vadd.f32 0.0, %v5106
  %v5108 = vpop.f32.mrf.mxu0
  %v5109 = vadd.f32 0.0, %v5108
  %5110 = vmatmul.bf16.gmra.mxu0 %v5000
  %v5111 = vpop.f32.mrf.mxu0
  %v5112 = vadd.f32 0.0, %v5111
  %v5113 = vpop.f32.mrf.mxu0
  %5114 = vdwg.mxu0
  %v5115 = vrot.slane %v5012, 6
  %v5116 = vrot.slane %v5014, 6
  %v5117 = vrot.slane %v5017, 6
  %v5118 = vrot.slane %v5019, 6
  %v5119 = vrot.slane %v5022, 6
  %v5120 = vrot.slane %v5024, 6
  %v5121 = vrot.slane %v5027, 6
  %v5122 = vrot.slane %v5029, 6
  %v5123 = vrot.slane %v5032, 6
  %v5124 = vrot.slane %v5034, 6
  %v5125 = vrot.slane %v5037, 6
  %v5126 = vrot.slane %v5039, 6
  %v5127 = vrot.slane %v5042, 6
  %v5128 = vrot.slane %v5044, 6
  %v5129 = vrot.slane %v5047, 6
  %v5130 = vrot.slane %v5049, 6
  %v5131 = vrot.slane %v5052, 6
  %v5132 = vrot.slane %v5054, 6
  %v5133 = vrot.slane %v5057, 6
  %v5134 = vrot.slane %v5059, 6
  %v5135 = vrot.slane %v5062, 6
  %v5136 = vrot.slane %v5064, 6
  %v5137 = vrot.slane %v5067, 6
  %v5138 = vrot.slane %v5069, 6
  %v5139 = vrot.slane %v5072, 6
  %v5140 = vrot.slane %v5074, 6
  %v5141 = vrot.slane %v5077, 6
  %v5142 = vrot.slane %v5079, 6
  %v5143 = vrot.slane %v5082, 6
  %v5144 = vrot.slane %v5084, 6
  %v5145 = vrot.slane %v5087, 6
  %v5146 = vrot.slane %v5089, 6
  %v5147 = vrot.slane %v5092, 6
  %v5148 = vrot.slane %v5094, 6
  %v5149 = vrot.slane %v5097, 6
  %v5150 = vrot.slane %v5099, 6
  %v5151 = vrot.slane %v5102, 6
  %v5152 = vrot.slane %v5104, 6
  %v5153 = vrot.slane %v5107, 6
  %v5154 = vrot.slane %v5109, 6
  %v5155 = vrot.slane %v5112, 6
  %v5156 = vsel %vm1235, %v5154, %v5155
  %v5157 = vsel %vm1235, %v5153, %v5154
  %v5158 = vsel %vm1235, %v5152, %v5153
  %v5159 = vsel %vm1235, %v5151, %v5152
  %v5160 = vsel %vm1235, %v5150, %v5151
  %v5161 = vsel %vm1235, %v5149, %v5150
  %v5162 = vsel %vm1235, %v5148, %v5149
  %v5163 = vsel %vm1235, %v5147, %v5148
  %v5164 = vsel %vm1235, %v5146, %v5147
  %v5165 = vsel %vm1235, %v5145, %v5146
  %v5166 = vsel %vm1235, %v5144, %v5145
  %v5167 = vsel %vm1235, %v5143, %v5144
  %v5168 = vsel %vm1235, %v5142, %v5143
  %v5169 = vsel %vm1235, %v5141, %v5142
  %v5170 = vsel %vm1235, %v5140, %v5141
  %v5171 = vsel %vm1235, %v5139, %v5140
  %v5172 = vsel %vm1235, %v5138, %v5139
  %v5173 = vsel %vm1235, %v5137, %v5138
  %v5174 = vsel %vm1235, %v5136, %v5137
  %v5175 = vsel %vm1235, %v5135, %v5136
  %v5176 = vsel %vm1235, %v5134, %v5135
  %v5177 = vsel %vm1235, %v5133, %v5134
  %v5178 = vsel %vm1235, %v5132, %v5133
  %v5179 = vsel %vm1235, %v5131, %v5132
  %v5180 = vsel %vm1235, %v5130, %v5131
  %v5181 = vsel %vm1235, %v5129, %v5130
  %v5182 = vsel %vm1235, %v5128, %v5129
  %v5183 = vsel %vm1235, %v5127, %v5128
  %v5184 = vsel %vm1235, %v5126, %v5127
  %v5185 = vsel %vm1235, %v5125, %v5126
  %v5186 = vsel %vm1235, %v5124, %v5125
  %v5187 = vsel %vm1235, %v5123, %v5124
  %v5188 = vsel %vm1235, %v5122, %v5123
  %v5189 = vsel %vm1235, %v5121, %v5122
  %v5190 = vsel %vm1235, %v5120, %v5121
  %v5191 = vsel %vm1235, %v5119, %v5120
  %v5192 = vsel %vm1235, %v5118, %v5119
  %v5193 = vsel %vm1235, %v5117, %v5118
  %v5194 = vsel %vm1235, %v5116, %v5117
  %v5195 = vsel %vm1235, %v5115, %v5116
  %v5196 = vsel %vm1235, %v5155, %v5115
  %v5198 = vperm.slane %v4890, 0
  %v5200 = vadd.f32 %v5198, %v5157
  %v5201 = vadd.f32 %v5198, %v5156
  %v5202 = vadd.f32 %v5198, %v5196
  %v5203 = vadd.f32 %v5198, %v5195
  %v5204 = vadd.f32 %v5198, %v5194
  %v5205 = vadd.f32 %v5198, %v5193
  %v5206 = vadd.f32 %v5198, %v5192
  %v5207 = vadd.f32 %v5198, %v5191
  %v5208 = vadd.f32 %v5198, %v5190
  %v5209 = vadd.f32 %v5198, %v5189
  %v5210 = vadd.f32 %v5198, %v5188
  %v5211 = vadd.f32 %v5198, %v5187
  %v5212 = vadd.f32 %v5198, %v5186
  %v5213 = vadd.f32 %v5198, %v5185
  %v5214 = vadd.f32 %v5198, %v5184
  %v5215 = vadd.f32 %v5198, %v5183
  %v5216 = vadd.f32 %v5198, %v5182
  %v5217 = vadd.f32 %v5198, %v5181
  %v5218 = vadd.f32 %v5198, %v5180
  %v5219 = vadd.f32 %v5198, %v5179
  %v5220 = vadd.f32 %v5198, %v5178
  %v5221 = vadd.f32 %v5198, %v5177
  %v5222 = vadd.f32 %v5198, %v5176
  %v5223 = vadd.f32 %v5198, %v5175
  %v5224 = vadd.f32 %v5198, %v5174
  %v5225 = vadd.f32 %v5198, %v5173
  %v5226 = vadd.f32 %v5198, %v5172
  %v5227 = vadd.f32 %v5198, %v5171
  %v5228 = vadd.f32 %v5198, %v5170
  %v5229 = vadd.f32 %v5198, %v5169
  %v5230 = vadd.f32 %v5198, %v5168
  %v5231 = vadd.f32 %v5198, %v5167
  %v5232 = vadd.f32 %v5198, %v5166
  %v5233 = vadd.f32 %v5198, %v5165
  %v5234 = vadd.f32 %v5198, %v5164
  %v5235 = vadd.f32 %v5198, %v5163
  %v5236 = vadd.f32 %v5198, %v5162
  %v5237 = vadd.f32 %v5198, %v5161
  %v5238 = vadd.f32 %v5198, %v5160
  %v5239 = vadd.f32 %v5198, %v5159
  %v5240 = vadd.f32 %v5198, %v5158
  %s5241 = scalar_lea.vmem %s5, 48
  %v5242 = vld [vmem:[%s5241] sm:$0xf]
  %v5243 = vld [vmem:[%s5241 + $0x4] sm:$0xf]
  %v5244 = vld [vmem:[%s5241 + $0x8] sm:$0xf]
  %v5245 = vld [vmem:[%s5241 + $0xc] sm:$0xf]
  %v5246 = vld [vmem:[%s5241 + $0x10] sm:$0xf]
  %v5247 = vld [vmem:[%s5241 + $0x14] sm:$0xf]
  %v5248 = vld [vmem:[%s5241 + $0x18] sm:$0xf]
  %v5249 = vld [vmem:[%s5241 + $0x1c] sm:$0xf]
  %v5250 = vld [vmem:[%s5241 + $0x20] sm:$0xf]
  %v5251 = vld [vmem:[%s5241 + $0x24] sm:$0xf]
  %v5252 = vld [vmem:[%s5241 + $0x28] sm:$0xf]
  %v5253 = vld [vmem:[%s5241 + $0x2c] sm:$0xf]
  %v5266 = vunpack.c.l.b16 %v5242
  %v5267 = vunpack.c.l.b16 %v5243
  %v5268 = vunpack.c.l.b16 %v5244
  %v5269 = vunpack.c.l.b16 %v5245
  %v5270 = vunpack.c.l.b16 %v5246
  %v5271 = vunpack.c.l.b16 %v5247
  %v5272 = vunpack.c.l.b16 %v5248
  %v5273 = vunpack.c.l.b16 %v5249
  %v5274 = vunpack.c.l.b16 %v5250
  %v5275 = vunpack.c.l.b16 %v5251
  %v5276 = vunpack.c.l.b16 %v5252
  %v5277 = vunpack.c.l.b16 %v5253
  %v5278 = vpack.c.b16 %v5267, %v5266
  %v5279 = vpack.c.b16 %v5269, %v5268
  %v5280 = vpack.c.b16 %v5271, %v5270
  %v5281 = vpack.c.b16 %v5273, %v5272
  %v5282 = vpack.c.b16 %v5275, %v5274
  %v5283 = vpack.c.b16 %v5277, %v5276
  %5290 = vmatpush.bf16.msra.mxu0 0
  %5291 = vmatpush.bf16.msra.mxu0 0
  %5292 = vmatpush.bf16.msra.mxu0 %v5283
  %5293 = vmatpush.bf16.msra.mxu0 %v5282
  %5294 = vmatpush.bf16.msra.mxu0 %v5281
  %5295 = vmatpush.bf16.msra.mxu0 %v5280
  %5296 = vmatpush.bf16.msra.mxu0 %v5279
  %5297 = vmatpush.bf16.msra.mxu0 %v5278
  %5298 = vmatmul.bf16.gmra.mxu0 %v4940
  %v5299 = vpop.f32.mrf.mxu0
  %v5300 = vadd.f32 0.0, %v5299
  %v5301 = vpop.f32.mrf.mxu0
  %v5302 = vadd.f32 0.0, %v5301
  %5303 = vmatmul.bf16.gmra.mxu0 %v4943
  %v5304 = vpop.f32.mrf.mxu0
  %v5305 = vadd.f32 0.0, %v5304
  %v5306 = vpop.f32.mrf.mxu0
  %v5307 = vadd.f32 0.0, %v5306
  %5308 = vmatmul.bf16.gmra.mxu0 %v4946
  %v5309 = vpop.f32.mrf.mxu0
  %v5310 = vadd.f32 0.0, %v5309
  %v5311 = vpop.f32.mrf.mxu0
  %v5312 = vadd.f32 0.0, %v5311
  %5313 = vmatmul.bf16.gmra.mxu0 %v4949
  %v5314 = vpop.f32.mrf.mxu0
  %v5315 = vadd.f32 0.0, %v5314
  %v5316 = vpop.f32.mrf.mxu0
  %v5317 = vadd.f32 0.0, %v5316
  %5318 = vmatmul.bf16.gmra.mxu0 %v4952
  %v5319 = vpop.f32.mrf.mxu0
  %v5320 = vadd.f32 0.0, %v5319
  %v5321 = vpop.f32.mrf.mxu0
  %v5322 = vadd.f32 0.0, %v5321
  %5323 = vmatmul.bf16.gmra.mxu0 %v4955
  %v5324 = vpop.f32.mrf.mxu0
  %v5325 = vadd.f32 0.0, %v5324
  %v5326 = vpop.f32.mrf.mxu0
  %v5327 = vadd.f32 0.0, %v5326
  %5328 = vmatmul.bf16.gmra.mxu0 %v4958
  %v5329 = vpop.f32.mrf.mxu0
  %v5330 = vadd.f32 0.0, %v5329
  %v5331 = vpop.f32.mrf.mxu0
  %v5332 = vadd.f32 0.0, %v5331
  %5333 = vmatmul.bf16.gmra.mxu0 %v4961
  %v5334 = vpop.f32.mrf.mxu0
  %v5335 = vadd.f32 0.0, %v5334
  %v5336 = vpop.f32.mrf.mxu0
  %v5337 = vadd.f32 0.0, %v5336
  %5338 = vmatmul.bf16.gmra.mxu0 %v4964
  %v5339 = vpop.f32.mrf.mxu0
  %v5340 = vadd.f32 0.0, %v5339
  %v5341 = vpop.f32.mrf.mxu0
  %v5342 = vadd.f32 0.0, %v5341
  %5343 = vmatmul.bf16.gmra.mxu0 %v4967
  %v5344 = vpop.f32.mrf.mxu0
  %v5345 = vadd.f32 0.0, %v5344
  %v5346 = vpop.f32.mrf.mxu0
  %v5347 = vadd.f32 0.0, %v5346
  %5348 = vmatmul.bf16.gmra.mxu0 %v4970
  %v5349 = vpop.f32.mrf.mxu0
  %v5350 = vadd.f32 0.0, %v5349
  %v5351 = vpop.f32.mrf.mxu0
  %v5352 = vadd.f32 0.0, %v5351
  %5353 = vmatmul.bf16.gmra.mxu0 %v4973
  %v5354 = vpop.f32.mrf.mxu0
  %v5355 = vadd.f32 0.0, %v5354
  %v5356 = vpop.f32.mrf.mxu0
  %v5357 = vadd.f32 0.0, %v5356
  %5358 = vmatmul.bf16.gmra.mxu0 %v4976
  %v5359 = vpop.f32.mrf.mxu0
  %v5360 = vadd.f32 0.0, %v5359
  %v5361 = vpop.f32.mrf.mxu0
  %v5362 = vadd.f32 0.0, %v5361
  %5363 = vmatmul.bf16.gmra.mxu0 %v4979
  %v5364 = vpop.f32.mrf.mxu0
  %v5365 = vadd.f32 0.0, %v5364
  %v5366 = vpop.f32.mrf.mxu0
  %v5367 = vadd.f32 0.0, %v5366
  %5368 = vmatmul.bf16.gmra.mxu0 %v4982
  %v5369 = vpop.f32.mrf.mxu0
  %v5370 = vadd.f32 0.0, %v5369
  %v5371 = vpop.f32.mrf.mxu0
  %v5372 = vadd.f32 0.0, %v5371
  %5373 = vmatmul.bf16.gmra.mxu0 %v4985
  %v5374 = vpop.f32.mrf.mxu0
  %v5375 = vadd.f32 0.0, %v5374
  %v5376 = vpop.f32.mrf.mxu0
  %v5377 = vadd.f32 0.0, %v5376
  %5378 = vmatmul.bf16.gmra.mxu0 %v4988
  %v5379 = vpop.f32.mrf.mxu0
  %v5380 = vadd.f32 0.0, %v5379
  %v5381 = vpop.f32.mrf.mxu0
  %v5382 = vadd.f32 0.0, %v5381
  %5383 = vmatmul.bf16.gmra.mxu0 %v4991
  %v5384 = vpop.f32.mrf.mxu0
  %v5385 = vadd.f32 0.0, %v5384
  %v5386 = vpop.f32.mrf.mxu0
  %v5387 = vadd.f32 0.0, %v5386
  %5388 = vmatmul.bf16.gmra.mxu0 %v4994
  %v5389 = vpop.f32.mrf.mxu0
  %v5390 = vadd.f32 0.0, %v5389
  %v5391 = vpop.f32.mrf.mxu0
  %v5392 = vadd.f32 0.0, %v5391
  %5393 = vmatmul.bf16.gmra.mxu0 %v4997
  %v5394 = vpop.f32.mrf.mxu0
  %v5395 = vadd.f32 0.0, %v5394
  %v5396 = vpop.f32.mrf.mxu0
  %v5397 = vadd.f32 0.0, %v5396
  %5398 = vmatmul.bf16.gmra.mxu0 %v5000
  %v5399 = vpop.f32.mrf.mxu0
  %v5400 = vadd.f32 0.0, %v5399
  %v5401 = vpop.f32.mrf.mxu0
  %5402 = vdwg.mxu0
  %v5403 = vadd.f32 %v5200, %v5300
  %v5404 = vadd.f32 %v5201, %v5302
  %v5405 = vadd.f32 %v5202, %v5305
  %v5406 = vadd.f32 %v5203, %v5307
  %v5407 = vadd.f32 %v5204, %v5310
  %v5408 = vadd.f32 %v5205, %v5312
  %v5409 = vadd.f32 %v5206, %v5315
  %v5410 = vadd.f32 %v5207, %v5317
  %v5411 = vadd.f32 %v5208, %v5320
  %v5412 = vadd.f32 %v5209, %v5322
  %v5413 = vadd.f32 %v5210, %v5325
  %v5414 = vadd.f32 %v5211, %v5327
  %v5415 = vadd.f32 %v5212, %v5330
  %v5416 = vadd.f32 %v5213, %v5332
  %v5417 = vadd.f32 %v5214, %v5335
  %v5418 = vadd.f32 %v5215, %v5337
  %v5419 = vadd.f32 %v5216, %v5340
  %v5420 = vadd.f32 %v5217, %v5342
  %v5421 = vadd.f32 %v5218, %v5345
  %v5422 = vadd.f32 %v5219, %v5347
  %v5423 = vadd.f32 %v5220, %v5350
  %v5424 = vadd.f32 %v5221, %v5352
  %v5425 = vadd.f32 %v5222, %v5355
  %v5426 = vadd.f32 %v5223, %v5357
  %v5427 = vadd.f32 %v5224, %v5360
  %v5428 = vadd.f32 %v5225, %v5362
  %v5429 = vadd.f32 %v5226, %v5365
  %v5430 = vadd.f32 %v5227, %v5367
  %v5431 = vadd.f32 %v5228, %v5370
  %v5432 = vadd.f32 %v5229, %v5372
  %v5433 = vadd.f32 %v5230, %v5375
  %v5434 = vadd.f32 %v5231, %v5377
  %v5435 = vadd.f32 %v5232, %v5380
  %v5436 = vadd.f32 %v5233, %v5382
  %v5437 = vadd.f32 %v5234, %v5385
  %v5438 = vadd.f32 %v5235, %v5387
  %v5439 = vadd.f32 %v5236, %v5390
  %v5440 = vadd.f32 %v5237, %v5392
  %v5441 = vadd.f32 %v5238, %v5395
  %v5442 = vadd.f32 %v5239, %v5397
  %v5443 = vadd.f32 %v5240, %v5400
  %s5444 = scalar_lea.vmem %s5, 96
  %v5445 = vld [vmem:[%s5444] sm:$0xf]
  %v5446 = vld [vmem:[%s5444 + $0x4] sm:$0xf]
  %v5447 = vld [vmem:[%s5444 + $0x8] sm:$0xf]
  %v5448 = vld [vmem:[%s5444 + $0xc] sm:$0xf]
  %v5449 = vld [vmem:[%s5444 + $0x10] sm:$0xf]
  %v5450 = vld [vmem:[%s5444 + $0x14] sm:$0xf]
  %v5451 = vld [vmem:[%s5444 + $0x18] sm:$0xf]
  %v5452 = vld [vmem:[%s5444 + $0x1c] sm:$0xf]
  %v5453 = vld [vmem:[%s5444 + $0x20] sm:$0xf]
  %v5454 = vld [vmem:[%s5444 + $0x24] sm:$0xf]
  %v5455 = vld [vmem:[%s5444 + $0x28] sm:$0xf]
  %v5456 = vld [vmem:[%s5444 + $0x2c] sm:$0xf]
  %v5469 = vunpack.c.l.b16 %v5445
  %v5470 = vunpack.c.l.b16 %v5446
  %v5471 = vunpack.c.l.b16 %v5447
  %v5472 = vunpack.c.l.b16 %v5448
  %v5473 = vunpack.c.l.b16 %v5449
  %v5474 = vunpack.c.l.b16 %v5450
  %v5475 = vunpack.c.l.b16 %v5451
  %v5476 = vunpack.c.l.b16 %v5452
  %v5477 = vunpack.c.l.b16 %v5453
  %v5478 = vunpack.c.l.b16 %v5454
  %v5479 = vunpack.c.l.b16 %v5455
  %v5480 = vunpack.c.l.b16 %v5456
  %v5481 = vpack.c.b16 %v5470, %v5469
  %v5482 = vpack.c.b16 %v5472, %v5471
  %v5483 = vpack.c.b16 %v5474, %v5473
  %v5484 = vpack.c.b16 %v5476, %v5475
  %v5485 = vpack.c.b16 %v5478, %v5477
  %v5486 = vpack.c.b16 %v5480, %v5479
  %5493 = vmatpush.bf16.msra.mxu0 0
  %5494 = vmatpush.bf16.msra.mxu0 0
  %5495 = vmatpush.bf16.msra.mxu0 %v5486
  %5496 = vmatpush.bf16.msra.mxu0 %v5485
  %5497 = vmatpush.bf16.msra.mxu0 %v5484
  %5498 = vmatpush.bf16.msra.mxu0 %v5483
  %5499 = vmatpush.bf16.msra.mxu0 %v5482
  %5500 = vmatpush.bf16.msra.mxu0 %v5481
  %5501 = vmatmul.bf16.gmra.mxu0 %v4940
  %v5502 = vpop.f32.mrf.mxu0
  %v5503 = vadd.f32 0.0, %v5502
  %v5504 = vpop.f32.mrf.mxu0
  %v5505 = vadd.f32 0.0, %v5504
  %5506 = vmatmul.bf16.gmra.mxu0 %v4943
  %v5507 = vpop.f32.mrf.mxu0
  %v5508 = vadd.f32 0.0, %v5507
  %v5509 = vpop.f32.mrf.mxu0
  %v5510 = vadd.f32 0.0, %v5509
  %5511 = vmatmul.bf16.gmra.mxu0 %v4946
  %v5512 = vpop.f32.mrf.mxu0
  %v5513 = vadd.f32 0.0, %v5512
  %v5514 = vpop.f32.mrf.mxu0
  %v5515 = vadd.f32 0.0, %v5514
  %5516 = vmatmul.bf16.gmra.mxu0 %v4949
  %v5517 = vpop.f32.mrf.mxu0
  %v5518 = vadd.f32 0.0, %v5517
  %v5519 = vpop.f32.mrf.mxu0
  %v5520 = vadd.f32 0.0, %v5519
  %5521 = vmatmul.bf16.gmra.mxu0 %v4952
  %v5522 = vpop.f32.mrf.mxu0
  %v5523 = vadd.f32 0.0, %v5522
  %v5524 = vpop.f32.mrf.mxu0
  %v5525 = vadd.f32 0.0, %v5524
  %5526 = vmatmul.bf16.gmra.mxu0 %v4955
  %v5527 = vpop.f32.mrf.mxu0
  %v5528 = vadd.f32 0.0, %v5527
  %v5529 = vpop.f32.mrf.mxu0
  %v5530 = vadd.f32 0.0, %v5529
  %5531 = vmatmul.bf16.gmra.mxu0 %v4958
  %v5532 = vpop.f32.mrf.mxu0
  %v5533 = vadd.f32 0.0, %v5532
  %v5534 = vpop.f32.mrf.mxu0
  %v5535 = vadd.f32 0.0, %v5534
  %5536 = vmatmul.bf16.gmra.mxu0 %v4961
  %v5537 = vpop.f32.mrf.mxu0
  %v5538 = vadd.f32 0.0, %v5537
  %v5539 = vpop.f32.mrf.mxu0
  %v5540 = vadd.f32 0.0, %v5539
  %5541 = vmatmul.bf16.gmra.mxu0 %v4964
  %v5542 = vpop.f32.mrf.mxu0
  %v5543 = vadd.f32 0.0, %v5542
  %v5544 = vpop.f32.mrf.mxu0
  %v5545 = vadd.f32 0.0, %v5544
  %5546 = vmatmul.bf16.gmra.mxu0 %v4967
  %v5547 = vpop.f32.mrf.mxu0
  %v5548 = vadd.f32 0.0, %v5547
  %v5549 = vpop.f32.mrf.mxu0
  %v5550 = vadd.f32 0.0, %v5549
  %5551 = vmatmul.bf16.gmra.mxu0 %v4970
  %v5552 = vpop.f32.mrf.mxu0
  %v5553 = vadd.f32 0.0, %v5552
  %v5554 = vpop.f32.mrf.mxu0
  %v5555 = vadd.f32 0.0, %v5554
  %5556 = vmatmul.bf16.gmra.mxu0 %v4973
  %v5557 = vpop.f32.mrf.mxu0
  %v5558 = vadd.f32 0.0, %v5557
  %v5559 = vpop.f32.mrf.mxu0
  %v5560 = vadd.f32 0.0, %v5559
  %5561 = vmatmul.bf16.gmra.mxu0 %v4976
  %v5562 = vpop.f32.mrf.mxu0
  %v5563 = vadd.f32 0.0, %v5562
  %v5564 = vpop.f32.mrf.mxu0
  %v5565 = vadd.f32 0.0, %v5564
  %5566 = vmatmul.bf16.gmra.mxu0 %v4979
  %v5567 = vpop.f32.mrf.mxu0
  %v5568 = vadd.f32 0.0, %v5567
  %v5569 = vpop.f32.mrf.mxu0
  %v5570 = vadd.f32 0.0, %v5569
  %5571 = vmatmul.bf16.gmra.mxu0 %v4982
  %v5572 = vpop.f32.mrf.mxu0
  %v5573 = vadd.f32 0.0, %v5572
  %v5574 = vpop.f32.mrf.mxu0
  %v5575 = vadd.f32 0.0, %v5574
  %5576 = vmatmul.bf16.gmra.mxu0 %v4985
  %v5577 = vpop.f32.mrf.mxu0
  %v5578 = vadd.f32 0.0, %v5577
  %v5579 = vpop.f32.mrf.mxu0
  %v5580 = vadd.f32 0.0, %v5579
  %5581 = vmatmul.bf16.gmra.mxu0 %v4988
  %v5582 = vpop.f32.mrf.mxu0
  %v5583 = vadd.f32 0.0, %v5582
  %v5584 = vpop.f32.mrf.mxu0
  %v5585 = vadd.f32 0.0, %v5584
  %5586 = vmatmul.bf16.gmra.mxu0 %v4991
  %v5587 = vpop.f32.mrf.mxu0
  %v5588 = vadd.f32 0.0, %v5587
  %v5589 = vpop.f32.mrf.mxu0
  %v5590 = vadd.f32 0.0, %v5589
  %5591 = vmatmul.bf16.gmra.mxu0 %v4994
  %v5592 = vpop.f32.mrf.mxu0
  %v5593 = vadd.f32 0.0, %v5592
  %v5594 = vpop.f32.mrf.mxu0
  %v5595 = vadd.f32 0.0, %v5594
  %5596 = vmatmul.bf16.gmra.mxu0 %v4997
  %v5597 = vpop.f32.mrf.mxu0
  %v5598 = vadd.f32 0.0, %v5597
  %v5599 = vpop.f32.mrf.mxu0
  %v5600 = vadd.f32 0.0, %v5599
  %5601 = vmatmul.bf16.gmra.mxu0 %v5000
  %v5602 = vpop.f32.mrf.mxu0
  %v5603 = vadd.f32 0.0, %v5602
  %v5604 = vpop.f32.mrf.mxu0
  %5605 = vdwg.mxu0
  %v5606 = vrot.slane %v5503, 2
  %v5607 = vrot.slane %v5505, 2
  %v5608 = vrot.slane %v5508, 2
  %v5609 = vrot.slane %v5510, 2
  %v5610 = vrot.slane %v5513, 2
  %v5611 = vrot.slane %v5515, 2
  %v5612 = vrot.slane %v5518, 2
  %v5613 = vrot.slane %v5520, 2
  %v5614 = vrot.slane %v5523, 2
  %v5615 = vrot.slane %v5525, 2
  %v5616 = vrot.slane %v5528, 2
  %v5617 = vrot.slane %v5530, 2
  %v5618 = vrot.slane %v5533, 2
  %v5619 = vrot.slane %v5535, 2
  %v5620 = vrot.slane %v5538, 2
  %v5621 = vrot.slane %v5540, 2
  %v5622 = vrot.slane %v5543, 2
  %v5623 = vrot.slane %v5545, 2
  %v5624 = vrot.slane %v5548, 2
  %v5625 = vrot.slane %v5550, 2
  %v5626 = vrot.slane %v5553, 2
  %v5627 = vrot.slane %v5555, 2
  %v5628 = vrot.slane %v5558, 2
  %v5629 = vrot.slane %v5560, 2
  %v5630 = vrot.slane %v5563, 2
  %v5631 = vrot.slane %v5565, 2
  %v5632 = vrot.slane %v5568, 2
  %v5633 = vrot.slane %v5570, 2
  %v5634 = vrot.slane %v5573, 2
  %v5635 = vrot.slane %v5575, 2
  %v5636 = vrot.slane %v5578, 2
  %v5637 = vrot.slane %v5580, 2
  %v5638 = vrot.slane %v5583, 2
  %v5639 = vrot.slane %v5585, 2
  %v5640 = vrot.slane %v5588, 2
  %v5641 = vrot.slane %v5590, 2
  %v5642 = vrot.slane %v5593, 2
  %v5643 = vrot.slane %v5595, 2
  %v5644 = vrot.slane %v5598, 2
  %v5645 = vrot.slane %v5600, 2
  %v5646 = vrot.slane %v5603, 2
  %v5647 = vsel %vm1651, %v5645, %v5646
  %v5648 = vsel %vm1651, %v5644, %v5645
  %v5649 = vsel %vm1651, %v5643, %v5644
  %v5650 = vsel %vm1651, %v5642, %v5643
  %v5651 = vsel %vm1651, %v5641, %v5642
  %v5652 = vsel %vm1651, %v5640, %v5641
  %v5653 = vsel %vm1651, %v5639, %v5640
  %v5654 = vsel %vm1651, %v5638, %v5639
  %v5655 = vsel %vm1651, %v5637, %v5638
  %v5656 = vsel %vm1651, %v5636, %v5637
  %v5657 = vsel %vm1651, %v5635, %v5636
  %v5658 = vsel %vm1651, %v5634, %v5635
  %v5659 = vsel %vm1651, %v5633, %v5634
  %v5660 = vsel %vm1651, %v5632, %v5633
  %v5661 = vsel %vm1651, %v5631, %v5632
  %v5662 = vsel %vm1651, %v5630, %v5631
  %v5663 = vsel %vm1651, %v5629, %v5630
  %v5664 = vsel %vm1651, %v5628, %v5629
  %v5665 = vsel %vm1651, %v5627, %v5628
  %v5666 = vsel %vm1651, %v5626, %v5627
  %v5667 = vsel %vm1651, %v5625, %v5626
  %v5668 = vsel %vm1651, %v5624, %v5625
  %v5669 = vsel %vm1651, %v5623, %v5624
  %v5670 = vsel %vm1651, %v5622, %v5623
  %v5671 = vsel %vm1651, %v5621, %v5622
  %v5672 = vsel %vm1651, %v5620, %v5621
  %v5673 = vsel %vm1651, %v5619, %v5620
  %v5674 = vsel %vm1651, %v5618, %v5619
  %v5675 = vsel %vm1651, %v5617, %v5618
  %v5676 = vsel %vm1651, %v5616, %v5617
  %v5677 = vsel %vm1651, %v5615, %v5616
  %v5678 = vsel %vm1651, %v5614, %v5615
  %v5679 = vsel %vm1651, %v5613, %v5614
  %v5680 = vsel %vm1651, %v5612, %v5613
  %v5681 = vsel %vm1651, %v5611, %v5612
  %v5682 = vsel %vm1651, %v5610, %v5611
  %v5683 = vsel %vm1651, %v5609, %v5610
  %v5684 = vsel %vm1651, %v5608, %v5609
  %v5685 = vsel %vm1651, %v5607, %v5608
  %v5686 = vsel %vm1651, %v5606, %v5607
  %v5687 = vsel %vm1651, %v5646, %v5606
  %v5688 = vadd.f32 %v5403, %v5684
  %v5689 = vadd.f32 %v5404, %v5683
  %v5690 = vadd.f32 %v5405, %v5682
  %v5691 = vadd.f32 %v5406, %v5681
  %v5692 = vadd.f32 %v5407, %v5680
  %v5693 = vadd.f32 %v5408, %v5679
  %v5694 = vadd.f32 %v5409, %v5678
  %v5695 = vadd.f32 %v5410, %v5677
  %v5696 = vadd.f32 %v5411, %v5676
  %v5697 = vadd.f32 %v5412, %v5675
  %v5698 = vadd.f32 %v5413, %v5674
  %v5699 = vadd.f32 %v5414, %v5673
  %v5700 = vadd.f32 %v5415, %v5672
  %v5701 = vadd.f32 %v5416, %v5671
  %v5702 = vadd.f32 %v5417, %v5670
  %v5703 = vadd.f32 %v5418, %v5669
  %v5704 = vadd.f32 %v5419, %v5668
  %v5705 = vadd.f32 %v5420, %v5667
  %v5706 = vadd.f32 %v5421, %v5666
  %v5707 = vadd.f32 %v5422, %v5665
  %v5708 = vadd.f32 %v5423, %v5664
  %v5709 = vadd.f32 %v5424, %v5663
  %v5710 = vadd.f32 %v5425, %v5662
  %v5711 = vadd.f32 %v5426, %v5661
  %v5712 = vadd.f32 %v5427, %v5660
  %v5713 = vadd.f32 %v5428, %v5659
  %v5714 = vadd.f32 %v5429, %v5658
  %v5715 = vadd.f32 %v5430, %v5657
  %v5716 = vadd.f32 %v5431, %v5656
  %v5717 = vadd.f32 %v5432, %v5655
  %v5718 = vadd.f32 %v5433, %v5654
  %v5719 = vadd.f32 %v5434, %v5653
  %v5720 = vadd.f32 %v5435, %v5652
  %v5721 = vadd.f32 %v5436, %v5651
  %v5722 = vadd.f32 %v5437, %v5650
  %v5723 = vadd.f32 %v5438, %v5649
  %v5724 = vadd.f32 %v5439, %v5648
  %v5725 = vadd.f32 %v5440, %v5647
  %v5726 = vadd.f32 %v5441, %v5687
  %v5727 = vadd.f32 %v5442, %v5686
  %v5728 = vadd.f32 %v5443, %v5685
  %vm5729 = vcmp.ge.f32.partialorder %v5688, 0.0
  %vm5730 = vcmp.ge.f32.partialorder %v5689, 0.0
  %vm5731 = vcmp.ge.f32.partialorder %v5690, 0.0
  %vm5732 = vcmp.ge.f32.partialorder %v5691, 0.0
  %vm5733 = vcmp.ge.f32.partialorder %v5692, 0.0
  %vm5734 = vcmp.ge.f32.partialorder %v5693, 0.0
  %vm5735 = vcmp.ge.f32.partialorder %v5694, 0.0
  %vm5736 = vcmp.ge.f32.partialorder %v5695, 0.0
  %vm5737 = vcmp.ge.f32.partialorder %v5696, 0.0
  %vm5738 = vcmp.ge.f32.partialorder %v5697, 0.0
  %vm5739 = vcmp.ge.f32.partialorder %v5698, 0.0
  %vm5740 = vcmp.ge.f32.partialorder %v5699, 0.0
  %vm5741 = vcmp.ge.f32.partialorder %v5700, 0.0
  %vm5742 = vcmp.ge.f32.partialorder %v5701, 0.0
  %vm5743 = vcmp.ge.f32.partialorder %v5702, 0.0
  %vm5744 = vcmp.ge.f32.partialorder %v5703, 0.0
  %vm5745 = vcmp.ge.f32.partialorder %v5704, 0.0
  %vm5746 = vcmp.ge.f32.partialorder %v5705, 0.0
  %vm5747 = vcmp.ge.f32.partialorder %v5706, 0.0
  %vm5748 = vcmp.ge.f32.partialorder %v5707, 0.0
  %vm5749 = vcmp.ge.f32.partialorder %v5708, 0.0
  %vm5750 = vcmp.ge.f32.partialorder %v5709, 0.0
  %vm5751 = vcmp.ge.f32.partialorder %v5710, 0.0
  %vm5752 = vcmp.ge.f32.partialorder %v5711, 0.0
  %vm5753 = vcmp.ge.f32.partialorder %v5712, 0.0
  %vm5754 = vcmp.ge.f32.partialorder %v5713, 0.0
  %vm5755 = vcmp.ge.f32.partialorder %v5714, 0.0
  %vm5756 = vcmp.ge.f32.partialorder %v5715, 0.0
  %vm5757 = vcmp.ge.f32.partialorder %v5716, 0.0
  %vm5758 = vcmp.ge.f32.partialorder %v5717, 0.0
  %vm5759 = vcmp.ge.f32.partialorder %v5718, 0.0
  %vm5760 = vcmp.ge.f32.partialorder %v5719, 0.0
  %vm5761 = vcmp.ge.f32.partialorder %v5720, 0.0
  %vm5762 = vcmp.ge.f32.partialorder %v5721, 0.0
  %vm5763 = vcmp.ge.f32.partialorder %v5722, 0.0
  %vm5764 = vcmp.ge.f32.partialorder %v5723, 0.0
  %vm5765 = vcmp.ge.f32.partialorder %v5724, 0.0
  %vm5766 = vcmp.ge.f32.partialorder %v5725, 0.0
  %vm5767 = vcmp.ge.f32.partialorder %v5726, 0.0
  %vm5768 = vcmp.ge.f32.partialorder %v5727, 0.0
  %vm5769 = vcmp.ge.f32.partialorder %v5728, 0.0
  %v5770 = vmul.f32 %v5688, 0.01
  %v5771 = vmul.f32 %v5689, 0.01
  %v5772 = vmul.f32 %v5690, 0.01
  %v5773 = vmul.f32 %v5691, 0.01
  %v5774 = vmul.f32 %v5692, 0.01
  %v5775 = vmul.f32 %v5693, 0.01
  %v5776 = vmul.f32 %v5694, 0.01
  %v5777 = vmul.f32 %v5695, 0.01
  %v5778 = vmul.f32 %v5696, 0.01
  %v5779 = vmul.f32 %v5697, 0.01
  %v5780 = vmul.f32 %v5698, 0.01
  %v5781 = vmul.f32 %v5699, 0.01
  %v5782 = vmul.f32 %v5700, 0.01
  %v5783 = vmul.f32 %v5701, 0.01
  %v5784 = vmul.f32 %v5702, 0.01
  %v5785 = vmul.f32 %v5703, 0.01
  %v5786 = vmul.f32 %v5704, 0.01
  %v5787 = vmul.f32 %v5705, 0.01
  %v5788 = vmul.f32 %v5706, 0.01
  %v5789 = vmul.f32 %v5707, 0.01
  %v5790 = vmul.f32 %v5708, 0.01
  %v5791 = vmul.f32 %v5709, 0.01
  %v5792 = vmul.f32 %v5710, 0.01
  %v5793 = vmul.f32 %v5711, 0.01
  %v5794 = vmul.f32 %v5712, 0.01
  %v5795 = vmul.f32 %v5713, 0.01
  %v5796 = vmul.f32 %v5714, 0.01
  %v5797 = vmul.f32 %v5715, 0.01
  %v5798 = vmul.f32 %v5716, 0.01
  %v5799 = vmul.f32 %v5717, 0.01
  %v5800 = vmul.f32 %v5718, 0.01
  %v5801 = vmul.f32 %v5719, 0.01
  %v5802 = vmul.f32 %v5720, 0.01
  %v5803 = vmul.f32 %v5721, 0.01
  %v5804 = vmul.f32 %v5722, 0.01
  %v5805 = vmul.f32 %v5723, 0.01
  %v5806 = vmul.f32 %v5724, 0.01
  %v5807 = vmul.f32 %v5725, 0.01
  %v5808 = vmul.f32 %v5726, 0.01
  %v5809 = vmul.f32 %v5727, 0.01
  %v5810 = vmul.f32 %v5728, 0.01
  %v5811 = vsel %vm5729, %v5688, %v5770
  %v5812 = vsel %vm5730, %v5689, %v5771
  %v5813 = vsel %vm5731, %v5690, %v5772
  %v5814 = vsel %vm5732, %v5691, %v5773
  %v5815 = vsel %vm5733, %v5692, %v5774
  %v5816 = vsel %vm5734, %v5693, %v5775
  %v5817 = vsel %vm5735, %v5694, %v5776
  %v5818 = vsel %vm5736, %v5695, %v5777
  %v5819 = vsel %vm5737, %v5696, %v5778
  %v5820 = vsel %vm5738, %v5697, %v5779
  %v5821 = vsel %vm5739, %v5698, %v5780
  %v5822 = vsel %vm5740, %v5699, %v5781
  %v5823 = vsel %vm5741, %v5700, %v5782
  %v5824 = vsel %vm5742, %v5701, %v5783
  %v5825 = vsel %vm5743, %v5702, %v5784
  %v5826 = vsel %vm5744, %v5703, %v5785
  %v5827 = vsel %vm5745, %v5704, %v5786
  %v5828 = vsel %vm5746, %v5705, %v5787
  %v5829 = vsel %vm5747, %v5706, %v5788
  %v5830 = vsel %vm5748, %v5707, %v5789
  %v5831 = vsel %vm5749, %v5708, %v5790
  %v5832 = vsel %vm5750, %v5709, %v5791
  %v5833 = vsel %vm5751, %v5710, %v5792
  %v5834 = vsel %vm5752, %v5711, %v5793
  %v5835 = vsel %vm5753, %v5712, %v5794
  %v5836 = vsel %vm5754, %v5713, %v5795
  %v5837 = vsel %vm5755, %v5714, %v5796
  %v5838 = vsel %vm5756, %v5715, %v5797
  %v5839 = vsel %vm5757, %v5716, %v5798
  %v5840 = vsel %vm5758, %v5717, %v5799
  %v5841 = vsel %vm5759, %v5718, %v5800
  %v5842 = vsel %vm5760, %v5719, %v5801
  %v5843 = vsel %vm5761, %v5720, %v5802
  %v5844 = vsel %vm5762, %v5721, %v5803
  %v5845 = vsel %vm5763, %v5722, %v5804
  %v5846 = vsel %vm5764, %v5723, %v5805
  %v5847 = vsel %vm5765, %v5724, %v5806
  %v5848 = vsel %vm5766, %v5725, %v5807
  %v5849 = vsel %vm5767, %v5726, %v5808
  %v5850 = vsel %vm5768, %v5727, %v5809
  %v5851 = vsel %vm5769, %v5728, %v5810
  %v5852 = vsel %vm1898, %v5811, 0.0
  %v5853 = vsel %vm1899, %v5812, 0.0
  %v5854 = vsel %vm1900, %v5813, 0.0
  %v5855 = vsel %vm1901, %v5814, 0.0
  %v5856 = vsel %vm1902, %v5815, 0.0
  %v5857 = vsel %vm1903, %v5816, 0.0
  %v5858 = vsel %vm1904, %v5817, 0.0
  %v5859 = vsel %vm1905, %v5818, 0.0
  %v5860 = vsel %vm1906, %v5819, 0.0
  %v5861 = vsel %vm1907, %v5820, 0.0
  %v5862 = vsel %vm1908, %v5821, 0.0
  %v5863 = vsel %vm1909, %v5822, 0.0
  %v5864 = vsel %vm1910, %v5823, 0.0
  %v5865 = vsel %vm1911, %v5824, 0.0
  %v5866 = vsel %vm1912, %v5825, 0.0
  %v5867 = vsel %vm1913, %v5826, 0.0
  %v5868 = vsel %vm1914, %v5827, 0.0
  %v5869 = vsel %vm1915, %v5828, 0.0
  %v5870 = vsel %vm1916, %v5829, 0.0
  %v5871 = vsel %vm1917, %v5830, 0.0
  %v5872 = vsel %vm1918, %v5831, 0.0
  %v5873 = vsel %vm1919, %v5832, 0.0
  %v5874 = vsel %vm1920, %v5833, 0.0
  %v5875 = vsel %vm1921, %v5834, 0.0
  %v5876 = vsel %vm1922, %v5835, 0.0
  %v5877 = vsel %vm1923, %v5836, 0.0
  %v5878 = vsel %vm1924, %v5837, 0.0
  %v5879 = vsel %vm1925, %v5838, 0.0
  %v5880 = vsel %vm1926, %v5839, 0.0
  %v5881 = vsel %vm1927, %v5840, 0.0
  %v5882 = vsel %vm1928, %v5841, 0.0
  %v5883 = vsel %vm1929, %v5842, 0.0
  %v5884 = vsel %vm1930, %v5843, 0.0
  %v5885 = vsel %vm1931, %v5844, 0.0
  %v5886 = vsel %vm1932, %v5845, 0.0
  %v5887 = vsel %vm1933, %v5846, 0.0
  %v5888 = vsel %vm1934, %v5847, 0.0
  %v5889 = vsel %vm1935, %v5848, 0.0
  %v5890 = vsel %vm1936, %v5849, 0.0
  %v5891 = vsel %vm1937, %v5850, 0.0
  %v5892 = vsel %vm1938, %v5851, 0.0
  %v5893 = vsel %vm1980, %v5852, 0.0
  %v5894 = vsel %vm1980, %v5853, 0.0
  %v5895 = vadd.f32 %v5893, %v5894
  %v5896 = vsel %vm1980, %v5854, 0.0
  %v5897 = vadd.f32 %v5895, %v5896
  %v5898 = vsel %vm1980, %v5855, 0.0
  %v5899 = vadd.f32 %v5897, %v5898
  %v5900 = vsel %vm1980, %v5856, 0.0
  %v5901 = vadd.f32 %v5899, %v5900
  %v5902 = vsel %vm1980, %v5857, 0.0
  %v5903 = vadd.f32 %v5901, %v5902
  %v5904 = vsel %vm1980, %v5858, 0.0
  %v5905 = vadd.f32 %v5903, %v5904
  %v5906 = vsel %vm1980, %v5859, 0.0
  %v5907 = vadd.f32 %v5905, %v5906
  %v5908 = vsel %vm1980, %v5860, 0.0
  %v5909 = vadd.f32 %v5907, %v5908
  %v5910 = vsel %vm1980, %v5861, 0.0
  %v5911 = vadd.f32 %v5909, %v5910
  %v5912 = vsel %vm1980, %v5862, 0.0
  %v5913 = vadd.f32 %v5911, %v5912
  %v5914 = vsel %vm1980, %v5863, 0.0
  %v5915 = vadd.f32 %v5913, %v5914
  %v5916 = vsel %vm1980, %v5864, 0.0
  %v5917 = vadd.f32 %v5915, %v5916
  %v5918 = vsel %vm1980, %v5865, 0.0
  %v5919 = vadd.f32 %v5917, %v5918
  %v5920 = vsel %vm1980, %v5866, 0.0
  %v5921 = vadd.f32 %v5919, %v5920
  %v5922 = vsel %vm1980, %v5867, 0.0
  %v5923 = vadd.f32 %v5921, %v5922
  %v5924 = vsel %vm1980, %v5868, 0.0
  %v5925 = vadd.f32 %v5923, %v5924
  %v5926 = vsel %vm1980, %v5869, 0.0
  %v5927 = vadd.f32 %v5925, %v5926
  %v5928 = vsel %vm1980, %v5870, 0.0
  %v5929 = vadd.f32 %v5927, %v5928
  %v5930 = vsel %vm1980, %v5871, 0.0
  %v5931 = vadd.f32 %v5929, %v5930
  %v5932 = vsel %vm1980, %v5872, 0.0
  %v5933 = vadd.f32 %v5931, %v5932
  %v5934 = vsel %vm1980, %v5873, 0.0
  %v5935 = vadd.f32 %v5933, %v5934
  %v5936 = vsel %vm1980, %v5874, 0.0
  %v5937 = vadd.f32 %v5935, %v5936
  %v5938 = vsel %vm1980, %v5875, 0.0
  %v5939 = vadd.f32 %v5937, %v5938
  %v5940 = vsel %vm1980, %v5876, 0.0
  %v5941 = vadd.f32 %v5939, %v5940
  %v5942 = vsel %vm1980, %v5877, 0.0
  %v5943 = vadd.f32 %v5941, %v5942
  %v5944 = vsel %vm1980, %v5878, 0.0
  %v5945 = vadd.f32 %v5943, %v5944
  %v5946 = vsel %vm1980, %v5879, 0.0
  %v5947 = vadd.f32 %v5945, %v5946
  %v5948 = vsel %vm1980, %v5880, 0.0
  %v5949 = vadd.f32 %v5947, %v5948
  %v5950 = vsel %vm1980, %v5881, 0.0
  %v5951 = vadd.f32 %v5949, %v5950
  %v5952 = vsel %vm1980, %v5882, 0.0
  %v5953 = vadd.f32 %v5951, %v5952
  %v5954 = vsel %vm1980, %v5883, 0.0
  %v5955 = vadd.f32 %v5953, %v5954
  %v5956 = vsel %vm1980, %v5884, 0.0
  %v5957 = vadd.f32 %v5955, %v5956
  %v5958 = vsel %vm1980, %v5885, 0.0
  %v5959 = vadd.f32 %v5957, %v5958
  %v5960 = vsel %vm1980, %v5886, 0.0
  %v5961 = vadd.f32 %v5959, %v5960
  %v5962 = vsel %vm1980, %v5887, 0.0
  %v5963 = vadd.f32 %v5961, %v5962
  %v5964 = vsel %vm1980, %v5888, 0.0
  %v5965 = vadd.f32 %v5963, %v5964
  %v5966 = vsel %vm1980, %v5889, 0.0
  %v5967 = vadd.f32 %v5965, %v5966
  %v5968 = vsel %vm1980, %v5890, 0.0
  %v5969 = vadd.f32 %v5967, %v5968
  %v5970 = vsel %vm1980, %v5891, 0.0
  %v5971 = vadd.f32 %v5969, %v5970
  %v5972 = vsel %vm1980, %v5892, 0.0
  %v5973 = vadd.f32 %v5971, %v5972
  %v5974 = vrot.slane %v5973, 4
  %v5975 = vadd.f32 %v5973, %v5974
  %v5976 = vrot.slane %v5975, 2
  %v5977 = vadd.f32 %v5975, %v5976
  %v5978 = vrot.slane %v5977, 1
  %v5979 = vadd.f32 %v5977, %v5978
  %v5980 = vmul.f32 %v5852, %v5852
  %v5981 = vmul.f32 %v5853, %v5853
  %v5982 = vmul.f32 %v5854, %v5854
  %v5983 = vmul.f32 %v5855, %v5855
  %v5984 = vmul.f32 %v5856, %v5856
  %v5985 = vmul.f32 %v5857, %v5857
  %v5986 = vmul.f32 %v5858, %v5858
  %v5987 = vmul.f32 %v5859, %v5859
  %v5988 = vmul.f32 %v5860, %v5860
  %v5989 = vmul.f32 %v5861, %v5861
  %v5990 = vmul.f32 %v5862, %v5862
  %v5991 = vmul.f32 %v5863, %v5863
  %v5992 = vmul.f32 %v5864, %v5864
  %v5993 = vmul.f32 %v5865, %v5865
  %v5994 = vmul.f32 %v5866, %v5866
  %v5995 = vmul.f32 %v5867, %v5867
  %v5996 = vmul.f32 %v5868, %v5868
  %v5997 = vmul.f32 %v5869, %v5869
  %v5998 = vmul.f32 %v5870, %v5870
  %v5999 = vmul.f32 %v5871, %v5871
  %v6000 = vmul.f32 %v5872, %v5872
  %v6001 = vmul.f32 %v5873, %v5873
  %v6002 = vmul.f32 %v5874, %v5874
  %v6003 = vmul.f32 %v5875, %v5875
  %v6004 = vmul.f32 %v5876, %v5876
  %v6005 = vmul.f32 %v5877, %v5877
  %v6006 = vmul.f32 %v5878, %v5878
  %v6007 = vmul.f32 %v5879, %v5879
  %v6008 = vmul.f32 %v5880, %v5880
  %v6009 = vmul.f32 %v5881, %v5881
  %v6010 = vmul.f32 %v5882, %v5882
  %v6011 = vmul.f32 %v5883, %v5883
  %v6012 = vmul.f32 %v5884, %v5884
  %v6013 = vmul.f32 %v5885, %v5885
  %v6014 = vmul.f32 %v5886, %v5886
  %v6015 = vmul.f32 %v5887, %v5887
  %v6016 = vmul.f32 %v5888, %v5888
  %v6017 = vmul.f32 %v5889, %v5889
  %v6018 = vmul.f32 %v5890, %v5890
  %v6019 = vmul.f32 %v5891, %v5891
  %v6020 = vmul.f32 %v5892, %v5892
  %v6021 = vsel %vm1980, %v5980, 0.0
  %v6022 = vsel %vm1980, %v5981, 0.0
  %v6023 = vadd.f32 %v6021, %v6022
  %v6024 = vsel %vm1980, %v5982, 0.0
  %v6025 = vadd.f32 %v6023, %v6024
  %v6026 = vsel %vm1980, %v5983, 0.0
  %v6027 = vadd.f32 %v6025, %v6026
  %v6028 = vsel %vm1980, %v5984, 0.0
  %v6029 = vadd.f32 %v6027, %v6028
  %v6030 = vsel %vm1980, %v5985, 0.0
  %v6031 = vadd.f32 %v6029, %v6030
  %v6032 = vsel %vm1980, %v5986, 0.0
  %v6033 = vadd.f32 %v6031, %v6032
  %v6034 = vsel %vm1980, %v5987, 0.0
  %v6035 = vadd.f32 %v6033, %v6034
  %v6036 = vsel %vm1980, %v5988, 0.0
  %v6037 = vadd.f32 %v6035, %v6036
  %v6038 = vsel %vm1980, %v5989, 0.0
  %v6039 = vadd.f32 %v6037, %v6038
  %v6040 = vsel %vm1980, %v5990, 0.0
  %v6041 = vadd.f32 %v6039, %v6040
  %v6042 = vsel %vm1980, %v5991, 0.0
  %v6043 = vadd.f32 %v6041, %v6042
  %v6044 = vsel %vm1980, %v5992, 0.0
  %v6045 = vadd.f32 %v6043, %v6044
  %v6046 = vsel %vm1980, %v5993, 0.0
  %v6047 = vadd.f32 %v6045, %v6046
  %v6048 = vsel %vm1980, %v5994, 0.0
  %v6049 = vadd.f32 %v6047, %v6048
  %v6050 = vsel %vm1980, %v5995, 0.0
  %v6051 = vadd.f32 %v6049, %v6050
  %v6052 = vsel %vm1980, %v5996, 0.0
  %v6053 = vadd.f32 %v6051, %v6052
  %v6054 = vsel %vm1980, %v5997, 0.0
  %v6055 = vadd.f32 %v6053, %v6054
  %v6056 = vsel %vm1980, %v5998, 0.0
  %v6057 = vadd.f32 %v6055, %v6056
  %v6058 = vsel %vm1980, %v5999, 0.0
  %v6059 = vadd.f32 %v6057, %v6058
  %v6060 = vsel %vm1980, %v6000, 0.0
  %v6061 = vadd.f32 %v6059, %v6060
  %v6062 = vsel %vm1980, %v6001, 0.0
  %v6063 = vadd.f32 %v6061, %v6062
  %v6064 = vsel %vm1980, %v6002, 0.0
  %v6065 = vadd.f32 %v6063, %v6064
  %v6066 = vsel %vm1980, %v6003, 0.0
  %v6067 = vadd.f32 %v6065, %v6066
  %v6068 = vsel %vm1980, %v6004, 0.0
  %v6069 = vadd.f32 %v6067, %v6068
  %v6070 = vsel %vm1980, %v6005, 0.0
  %v6071 = vadd.f32 %v6069, %v6070
  %v6072 = vsel %vm1980, %v6006, 0.0
  %v6073 = vadd.f32 %v6071, %v6072
  %v6074 = vsel %vm1980, %v6007, 0.0
  %v6075 = vadd.f32 %v6073, %v6074
  %v6076 = vsel %vm1980, %v6008, 0.0
  %v6077 = vadd.f32 %v6075, %v6076
  %v6078 = vsel %vm1980, %v6009, 0.0
  %v6079 = vadd.f32 %v6077, %v6078
  %v6080 = vsel %vm1980, %v6010, 0.0
  %v6081 = vadd.f32 %v6079, %v6080
  %v6082 = vsel %vm1980, %v6011, 0.0
  %v6083 = vadd.f32 %v6081, %v6082
  %v6084 = vsel %vm1980, %v6012, 0.0
  %v6085 = vadd.f32 %v6083, %v6084
  %v6086 = vsel %vm1980, %v6013, 0.0
  %v6087 = vadd.f32 %v6085, %v6086
  %v6088 = vsel %vm1980, %v6014, 0.0
  %v6089 = vadd.f32 %v6087, %v6088
  %v6090 = vsel %vm1980, %v6015, 0.0
  %v6091 = vadd.f32 %v6089, %v6090
  %v6092 = vsel %vm1980, %v6016, 0.0
  %v6093 = vadd.f32 %v6091, %v6092
  %v6094 = vsel %vm1980, %v6017, 0.0
  %v6095 = vadd.f32 %v6093, %v6094
  %v6096 = vsel %vm1980, %v6018, 0.0
  %v6097 = vadd.f32 %v6095, %v6096
  %v6098 = vsel %vm1980, %v6019, 0.0
  %v6099 = vadd.f32 %v6097, %v6098
  %v6100 = vsel %vm1980, %v6020, 0.0
  %v6101 = vadd.f32 %v6099, %v6100
  %v6102 = vrot.slane %v6101, 4
  %v6103 = vadd.f32 %v6101, %v6102
  %v6104 = vrot.slane %v6103, 2
  %v6105 = vadd.f32 %v6103, %v6104
  %v6106 = vrot.slane %v6105, 1
  %v6107 = vadd.f32 %v6105, %v6106
  %v6108 = vmul.f32 %v5979, 0.00390625
  %v6109 = vmul.f32 %v6108, %v5979
  %v6110 = vsub.f32 %v6107, %v6109
  %v6111 = vmax.f32 %v6110, 0.0
  %v6112 = vmul.f32 %v6111, 0.003921569
  %v6113 = vrsqrt.pop %v6112
  %v6114 = vmul.f32 %v6113, %v6112
  %v6115 = vmul.f32 %v6114, %v6113
  %v6116 = vmul.f32 0.5, %v6115
  %v6117 = vsub.f32 1.5, %v6116
  %v6118 = vmul.f32 %v6113, %v6117
  %v6119 = vmul.f32 %v6112, %v6118
  %vm6120 = vcmp.eq.f32.partialorder %v6112, inf
  %v6121 = vsel %vm6120, %v6112, %v6119
  %vm6122 = vcmp.eq.f32.partialorder %v6112, 0.0
  %v6123 = vand.u32 %v6112, 2147483648
  %v6124 = vsel %vm6122, %v6123, %v6121
  %v6125 = vadd.f32 %v6124, 1e-07
  %v6126 = vrcp.pop %v6125
  %v6127 = vsub.f32 %v5852, %v6108
  %v6128 = vsub.f32 %v5853, %v6108
  %v6129 = vsub.f32 %v5854, %v6108
  %v6130 = vsub.f32 %v5855, %v6108
  %v6131 = vsub.f32 %v5856, %v6108
  %v6132 = vsub.f32 %v5857, %v6108
  %v6133 = vsub.f32 %v5858, %v6108
  %v6134 = vsub.f32 %v5859, %v6108
  %v6135 = vsub.f32 %v5860, %v6108
  %v6136 = vsub.f32 %v5861, %v6108
  %v6137 = vsub.f32 %v5862, %v6108
  %v6138 = vsub.f32 %v5863, %v6108
  %v6139 = vsub.f32 %v5864, %v6108
  %v6140 = vsub.f32 %v5865, %v6108
  %v6141 = vsub.f32 %v5866, %v6108
  %v6142 = vsub.f32 %v5867, %v6108
  %v6143 = vsub.f32 %v5868, %v6108
  %v6144 = vsub.f32 %v5869, %v6108
  %v6145 = vsub.f32 %v5870, %v6108
  %v6146 = vsub.f32 %v5871, %v6108
  %v6147 = vsub.f32 %v5872, %v6108
  %v6148 = vsub.f32 %v5873, %v6108
  %v6149 = vsub.f32 %v5874, %v6108
  %v6150 = vsub.f32 %v5875, %v6108
  %v6151 = vsub.f32 %v5876, %v6108
  %v6152 = vsub.f32 %v5877, %v6108
  %v6153 = vsub.f32 %v5878, %v6108
  %v6154 = vsub.f32 %v5879, %v6108
  %v6155 = vsub.f32 %v5880, %v6108
  %v6156 = vsub.f32 %v5881, %v6108
  %v6157 = vsub.f32 %v5882, %v6108
  %v6158 = vsub.f32 %v5883, %v6108
  %v6159 = vsub.f32 %v5884, %v6108
  %v6160 = vsub.f32 %v5885, %v6108
  %v6161 = vsub.f32 %v5886, %v6108
  %v6162 = vsub.f32 %v5887, %v6108
  %v6163 = vsub.f32 %v5888, %v6108
  %v6164 = vsub.f32 %v5889, %v6108
  %v6165 = vsub.f32 %v5890, %v6108
  %v6166 = vsub.f32 %v5891, %v6108
  %v6167 = vsub.f32 %v5892, %v6108
  %v6168 = vmul.f32 %v6127, %v6126
  %v6169 = vmul.f32 %v6128, %v6126
  %v6170 = vmul.f32 %v6129, %v6126
  %v6171 = vmul.f32 %v6130, %v6126
  %v6172 = vmul.f32 %v6131, %v6126
  %v6173 = vmul.f32 %v6132, %v6126
  %v6174 = vmul.f32 %v6133, %v6126
  %v6175 = vmul.f32 %v6134, %v6126
  %v6176 = vmul.f32 %v6135, %v6126
  %v6177 = vmul.f32 %v6136, %v6126
  %v6178 = vmul.f32 %v6137, %v6126
  %v6179 = vmul.f32 %v6138, %v6126
  %v6180 = vmul.f32 %v6139, %v6126
  %v6181 = vmul.f32 %v6140, %v6126
  %v6182 = vmul.f32 %v6141, %v6126
  %v6183 = vmul.f32 %v6142, %v6126
  %v6184 = vmul.f32 %v6143, %v6126
  %v6185 = vmul.f32 %v6144, %v6126
  %v6186 = vmul.f32 %v6145, %v6126
  %v6187 = vmul.f32 %v6146, %v6126
  %v6188 = vmul.f32 %v6147, %v6126
  %v6189 = vmul.f32 %v6148, %v6126
  %v6190 = vmul.f32 %v6149, %v6126
  %v6191 = vmul.f32 %v6150, %v6126
  %v6192 = vmul.f32 %v6151, %v6126
  %v6193 = vmul.f32 %v6152, %v6126
  %v6194 = vmul.f32 %v6153, %v6126
  %v6195 = vmul.f32 %v6154, %v6126
  %v6196 = vmul.f32 %v6155, %v6126
  %v6197 = vmul.f32 %v6156, %v6126
  %v6198 = vmul.f32 %v6157, %v6126
  %v6199 = vmul.f32 %v6158, %v6126
  %v6200 = vmul.f32 %v6159, %v6126
  %v6201 = vmul.f32 %v6160, %v6126
  %v6202 = vmul.f32 %v6161, %v6126
  %v6203 = vmul.f32 %v6162, %v6126
  %v6204 = vmul.f32 %v6163, %v6126
  %v6205 = vmul.f32 %v6164, %v6126
  %v6206 = vmul.f32 %v6165, %v6126
  %v6207 = vmul.f32 %v6166, %v6126
  %v6208 = vmul.f32 %v6167, %v6126
  %v6209 = vsel %vm1898, %v6168, 0.0
  %v6210 = vsel %vm1899, %v6169, 0.0
  %v6211 = vsel %vm1900, %v6170, 0.0
  %v6212 = vsel %vm1901, %v6171, 0.0
  %v6213 = vsel %vm1902, %v6172, 0.0
  %v6214 = vsel %vm1903, %v6173, 0.0
  %v6215 = vsel %vm1904, %v6174, 0.0
  %v6216 = vsel %vm1905, %v6175, 0.0
  %v6217 = vsel %vm1906, %v6176, 0.0
  %v6218 = vsel %vm1907, %v6177, 0.0
  %v6219 = vsel %vm1908, %v6178, 0.0
  %v6220 = vsel %vm1909, %v6179, 0.0
  %v6221 = vsel %vm1910, %v6180, 0.0
  %v6222 = vsel %vm1911, %v6181, 0.0
  %v6223 = vsel %vm1912, %v6182, 0.0
  %v6224 = vsel %vm1913, %v6183, 0.0
  %v6225 = vsel %vm1914, %v6184, 0.0
  %v6226 = vsel %vm1915, %v6185, 0.0
  %v6227 = vsel %vm1916, %v6186, 0.0
  %v6228 = vsel %vm1917, %v6187, 0.0
  %v6229 = vsel %vm1918, %v6188, 0.0
  %v6230 = vsel %vm1919, %v6189, 0.0
  %v6231 = vsel %vm1920, %v6190, 0.0
  %v6232 = vsel %vm1921, %v6191, 0.0
  %v6233 = vsel %vm1922, %v6192, 0.0
  %v6234 = vsel %vm1923, %v6193, 0.0
  %v6235 = vsel %vm1924, %v6194, 0.0
  %v6236 = vsel %vm1925, %v6195, 0.0
  %v6237 = vsel %vm1926, %v6196, 0.0
  %v6238 = vsel %vm1927, %v6197, 0.0
  %v6239 = vsel %vm1928, %v6198, 0.0
  %v6240 = vsel %vm1929, %v6199, 0.0
  %v6241 = vsel %vm1930, %v6200, 0.0
  %v6242 = vsel %vm1931, %v6201, 0.0
  %v6243 = vsel %vm1932, %v6202, 0.0
  %v6244 = vsel %vm1933, %v6203, 0.0
  %v6245 = vsel %vm1934, %v6204, 0.0
  %v6246 = vsel %vm1935, %v6205, 0.0
  %v6247 = vsel %vm1936, %v6206, 0.0
  %v6248 = vsel %vm1937, %v6207, 0.0
  %v6249 = vsel %vm1938, %v6208, 0.0
  %v6250 = vrot.slane %v6209, 7
  %v6251 = vrot.slane %v6210, 7
  %v6252 = vrot.slane %v6211, 7
  %v6253 = vrot.slane %v6212, 7
  %v6254 = vrot.slane %v6213, 7
  %v6255 = vrot.slane %v6214, 7
  %v6256 = vrot.slane %v6215, 7
  %v6257 = vrot.slane %v6216, 7
  %v6258 = vrot.slane %v6217, 7
  %v6259 = vrot.slane %v6218, 7
  %v6260 = vrot.slane %v6219, 7
  %v6261 = vrot.slane %v6220, 7
  %v6262 = vrot.slane %v6221, 7
  %v6263 = vrot.slane %v6222, 7
  %v6264 = vrot.slane %v6223, 7
  %v6265 = vrot.slane %v6224, 7
  %v6266 = vrot.slane %v6225, 7
  %v6267 = vrot.slane %v6226, 7
  %v6268 = vrot.slane %v6227, 7
  %v6269 = vrot.slane %v6228, 7
  %v6270 = vrot.slane %v6229, 7
  %v6271 = vrot.slane %v6230, 7
  %v6272 = vrot.slane %v6231, 7
  %v6273 = vrot.slane %v6232, 7
  %v6274 = vrot.slane %v6233, 7
  %v6275 = vrot.slane %v6234, 7
  %v6276 = vrot.slane %v6235, 7
  %v6277 = vrot.slane %v6236, 7
  %v6278 = vrot.slane %v6237, 7
  %v6279 = vrot.slane %v6238, 7
  %v6280 = vrot.slane %v6239, 7
  %v6281 = vrot.slane %v6240, 7
  %v6282 = vrot.slane %v6241, 7
  %v6283 = vrot.slane %v6242, 7
  %v6284 = vrot.slane %v6243, 7
  %v6285 = vrot.slane %v6244, 7
  %v6286 = vrot.slane %v6245, 7
  %v6287 = vrot.slane %v6246, 7
  %v6288 = vrot.slane %v6247, 7
  %v6289 = vrot.slane %v6248, 7
  %v6290 = vrot.slane %v6249, 7
  %v6291 = vsel %vm444, %v6289, %v6290
  %v6292 = vsel %vm444, %v6288, %v6289
  %v6293 = vsel %vm444, %v6287, %v6288
  %v6294 = vsel %vm444, %v6286, %v6287
  %v6295 = vsel %vm444, %v6285, %v6286
  %v6296 = vsel %vm444, %v6284, %v6285
  %v6297 = vsel %vm444, %v6283, %v6284
  %v6298 = vsel %vm444, %v6282, %v6283
  %v6299 = vsel %vm444, %v6281, %v6282
  %v6300 = vsel %vm444, %v6280, %v6281
  %v6301 = vsel %vm444, %v6279, %v6280
  %v6302 = vsel %vm444, %v6278, %v6279
  %v6303 = vsel %vm444, %v6277, %v6278
  %v6304 = vsel %vm444, %v6276, %v6277
  %v6305 = vsel %vm444, %v6275, %v6276
  %v6306 = vsel %vm444, %v6274, %v6275
  %v6307 = vsel %vm444, %v6273, %v6274
  %v6308 = vsel %vm444, %v6272, %v6273
  %v6309 = vsel %vm444, %v6271, %v6272
  %v6310 = vsel %vm444, %v6270, %v6271
  %v6311 = vsel %vm444, %v6269, %v6270
  %v6312 = vsel %vm444, %v6268, %v6269
  %v6313 = vsel %vm444, %v6267, %v6268
  %v6314 = vsel %vm444, %v6266, %v6267
  %v6315 = vsel %vm444, %v6265, %v6266
  %v6316 = vsel %vm444, %v6264, %v6265
  %v6317 = vsel %vm444, %v6263, %v6264
  %v6318 = vsel %vm444, %v6262, %v6263
  %v6319 = vsel %vm444, %v6261, %v6262
  %v6320 = vsel %vm444, %v6260, %v6261
  %v6321 = vsel %vm444, %v6259, %v6260
  %v6322 = vsel %vm444, %v6258, %v6259
  %v6323 = vsel %vm444, %v6257, %v6258
  %v6324 = vsel %vm444, %v6256, %v6257
  %v6325 = vsel %vm444, %v6255, %v6256
  %v6326 = vsel %vm444, %v6254, %v6255
  %v6327 = vsel %vm444, %v6253, %v6254
  %v6328 = vsel %vm444, %v6252, %v6253
  %v6329 = vsel %vm444, %v6251, %v6252
  %v6330 = vsel %vm444, %v6250, %v6251
  %v6331 = vsel %vm444, %v6290, %v6250
  %v6332 = vrot.slane %v6209, 1
  %v6333 = vrot.slane %v6210, 1
  %v6334 = vrot.slane %v6211, 1
  %v6335 = vrot.slane %v6212, 1
  %v6336 = vrot.slane %v6213, 1
  %v6337 = vrot.slane %v6214, 1
  %v6338 = vrot.slane %v6215, 1
  %v6339 = vrot.slane %v6216, 1
  %v6340 = vrot.slane %v6217, 1
  %v6341 = vrot.slane %v6218, 1
  %v6342 = vrot.slane %v6219, 1
  %v6343 = vrot.slane %v6220, 1
  %v6344 = vrot.slane %v6221, 1
  %v6345 = vrot.slane %v6222, 1
  %v6346 = vrot.slane %v6223, 1
  %v6347 = vrot.slane %v6224, 1
  %v6348 = vrot.slane %v6225, 1
  %v6349 = vrot.slane %v6226, 1
  %v6350 = vrot.slane %v6227, 1
  %v6351 = vrot.slane %v6228, 1
  %v6352 = vrot.slane %v6229, 1
  %v6353 = vrot.slane %v6230, 1
  %v6354 = vrot.slane %v6231, 1
  %v6355 = vrot.slane %v6232, 1
  %v6356 = vrot.slane %v6233, 1
  %v6357 = vrot.slane %v6234, 1
  %v6358 = vrot.slane %v6235, 1
  %v6359 = vrot.slane %v6236, 1
  %v6360 = vrot.slane %v6237, 1
  %v6361 = vrot.slane %v6238, 1
  %v6362 = vrot.slane %v6239, 1
  %v6363 = vrot.slane %v6240, 1
  %v6364 = vrot.slane %v6241, 1
  %v6365 = vrot.slane %v6242, 1
  %v6366 = vrot.slane %v6243, 1
  %v6367 = vrot.slane %v6244, 1
  %v6368 = vrot.slane %v6245, 1
  %v6369 = vrot.slane %v6246, 1
  %v6370 = vrot.slane %v6247, 1
  %v6371 = vrot.slane %v6248, 1
  %v6372 = vrot.slane %v6249, 1
  %v6373 = vsel %vm527, %v6371, %v6372
  %v6374 = vsel %vm527, %v6370, %v6371
  %v6375 = vsel %vm527, %v6369, %v6370
  %v6376 = vsel %vm527, %v6368, %v6369
  %v6377 = vsel %vm527, %v6367, %v6368
  %v6378 = vsel %vm527, %v6366, %v6367
  %v6379 = vsel %vm527, %v6365, %v6366
  %v6380 = vsel %vm527, %v6364, %v6365
  %v6381 = vsel %vm527, %v6363, %v6364
  %v6382 = vsel %vm527, %v6362, %v6363
  %v6383 = vsel %vm527, %v6361, %v6362
  %v6384 = vsel %vm527, %v6360, %v6361
  %v6385 = vsel %vm527, %v6359, %v6360
  %v6386 = vsel %vm527, %v6358, %v6359
  %v6387 = vsel %vm527, %v6357, %v6358
  %v6388 = vsel %vm527, %v6356, %v6357
  %v6389 = vsel %vm527, %v6355, %v6356
  %v6390 = vsel %vm527, %v6354, %v6355
  %v6391 = vsel %vm527, %v6353, %v6354
  %v6392 = vsel %vm527, %v6352, %v6353
  %v6393 = vsel %vm527, %v6351, %v6352
  %v6394 = vsel %vm527, %v6350, %v6351
  %v6395 = vsel %vm527, %v6349, %v6350
  %v6396 = vsel %vm527, %v6348, %v6349
  %v6397 = vsel %vm527, %v6347, %v6348
  %v6398 = vsel %vm527, %v6346, %v6347
  %v6399 = vsel %vm527, %v6345, %v6346
  %v6400 = vsel %vm527, %v6344, %v6345
  %v6401 = vsel %vm527, %v6343, %v6344
  %v6402 = vsel %vm527, %v6342, %v6343
  %v6403 = vsel %vm527, %v6341, %v6342
  %v6404 = vsel %vm527, %v6340, %v6341
  %v6405 = vsel %vm527, %v6339, %v6340
  %v6406 = vsel %vm527, %v6338, %v6339
  %v6407 = vsel %vm527, %v6337, %v6338
  %v6408 = vsel %vm527, %v6336, %v6337
  %v6409 = vsel %vm527, %v6335, %v6336
  %v6410 = vsel %vm527, %v6334, %v6335
  %v6411 = vsel %vm527, %v6333, %v6334
  %v6412 = vsel %vm527, %v6332, %v6333
  %v6413 = vsel %vm527, %v6372, %v6332
  %6455 = vrot.lane.b32.xlu0 %v6209, 32
  %v6456 = vpop.permute.xlu0 %6455
  %6457 = vrot.lane.b32.xlu0 %v6210, 32
  %v6458 = vpop.permute.xlu0 %6457
  %6459 = vrot.lane.b32.xlu0 %v6211, 32
  %v6460 = vpop.permute.xlu0 %6459
  %6461 = vrot.lane.b32.xlu0 %v6212, 32
  %v6462 = vpop.permute.xlu0 %6461
  %6463 = vrot.lane.b32.xlu0 %v6213, 32
  %v6464 = vpop.permute.xlu0 %6463
  %6465 = vrot.lane.b32.xlu0 %v6214, 32
  %v6466 = vpop.permute.xlu0 %6465
  %6467 = vrot.lane.b32.xlu0 %v6215, 32
  %v6468 = vpop.permute.xlu0 %6467
  %6469 = vrot.lane.b32.xlu0 %v6216, 32
  %v6470 = vpop.permute.xlu0 %6469
  %6471 = vrot.lane.b32.xlu0 %v6217, 32
  %v6472 = vpop.permute.xlu0 %6471
  %6473 = vrot.lane.b32.xlu0 %v6218, 32
  %v6474 = vpop.permute.xlu0 %6473
  %6475 = vrot.lane.b32.xlu0 %v6219, 32
  %v6476 = vpop.permute.xlu0 %6475
  %6477 = vrot.lane.b32.xlu0 %v6220, 32
  %v6478 = vpop.permute.xlu0 %6477
  %6479 = vrot.lane.b32.xlu0 %v6221, 32
  %v6480 = vpop.permute.xlu0 %6479
  %6481 = vrot.lane.b32.xlu0 %v6222, 32
  %v6482 = vpop.permute.xlu0 %6481
  %6483 = vrot.lane.b32.xlu0 %v6223, 32
  %v6484 = vpop.permute.xlu0 %6483
  %6485 = vrot.lane.b32.xlu0 %v6224, 32
  %v6486 = vpop.permute.xlu0 %6485
  %6487 = vrot.lane.b32.xlu0 %v6225, 32
  %v6488 = vpop.permute.xlu0 %6487
  %6489 = vrot.lane.b32.xlu0 %v6226, 32
  %v6490 = vpop.permute.xlu0 %6489
  %6491 = vrot.lane.b32.xlu0 %v6227, 32
  %v6492 = vpop.permute.xlu0 %6491
  %6493 = vrot.lane.b32.xlu0 %v6228, 32
  %v6494 = vpop.permute.xlu0 %6493
  %6495 = vrot.lane.b32.xlu0 %v6229, 32
  %v6496 = vpop.permute.xlu0 %6495
  %6497 = vrot.lane.b32.xlu0 %v6230, 32
  %v6498 = vpop.permute.xlu0 %6497
  %6499 = vrot.lane.b32.xlu0 %v6231, 32
  %v6500 = vpop.permute.xlu0 %6499
  %6501 = vrot.lane.b32.xlu0 %v6232, 32
  %v6502 = vpop.permute.xlu0 %6501
  %6503 = vrot.lane.b32.xlu0 %v6233, 32
  %v6504 = vpop.permute.xlu0 %6503
  %6505 = vrot.lane.b32.xlu0 %v6234, 32
  %v6506 = vpop.permute.xlu0 %6505
  %6507 = vrot.lane.b32.xlu0 %v6235, 32
  %v6508 = vpop.permute.xlu0 %6507
  %6509 = vrot.lane.b32.xlu0 %v6236, 32
  %v6510 = vpop.permute.xlu0 %6509
  %6511 = vrot.lane.b32.xlu0 %v6237, 32
  %v6512 = vpop.permute.xlu0 %6511
  %6513 = vrot.lane.b32.xlu0 %v6238, 32
  %v6514 = vpop.permute.xlu0 %6513
  %6515 = vrot.lane.b32.xlu0 %v6239, 32
  %v6516 = vpop.permute.xlu0 %6515
  %6517 = vrot.lane.b32.xlu0 %v6240, 32
  %v6518 = vpop.permute.xlu0 %6517
  %6519 = vrot.lane.b32.xlu0 %v6241, 32
  %v6520 = vpop.permute.xlu0 %6519
  %6521 = vrot.lane.b32.xlu0 %v6242, 32
  %v6522 = vpop.permute.xlu0 %6521
  %6523 = vrot.lane.b32.xlu0 %v6243, 32
  %v6524 = vpop.permute.xlu0 %6523
  %6525 = vrot.lane.b32.xlu0 %v6244, 32
  %v6526 = vpop.permute.xlu0 %6525
  %6527 = vrot.lane.b32.xlu0 %v6245, 32
  %v6528 = vpop.permute.xlu0 %6527
  %6529 = vrot.lane.b32.xlu0 %v6246, 32
  %v6530 = vpop.permute.xlu0 %6529
  %6531 = vrot.lane.b32.xlu0 %v6247, 32
  %v6532 = vpop.permute.xlu0 %6531
  %6533 = vrot.lane.b32.xlu0 %v6248, 32
  %v6534 = vpop.permute.xlu0 %6533
  %6535 = vrot.lane.b32.xlu0 %v6249, 32
  %v6536 = vpop.permute.xlu0 %6535
  %6619 = vrot.lane.b32.xlu0 %v6412, 64
  %v6620 = vpop.permute.xlu0 %6619
  %6621 = vrot.lane.b32.xlu0 %v6411, 64
  %v6622 = vpop.permute.xlu0 %6621
  %6623 = vrot.lane.b32.xlu0 %v6410, 64
  %v6624 = vpop.permute.xlu0 %6623
  %6625 = vrot.lane.b32.xlu0 %v6409, 64
  %v6626 = vpop.permute.xlu0 %6625
  %6627 = vrot.lane.b32.xlu0 %v6408, 64
  %v6628 = vpop.permute.xlu0 %6627
  %6629 = vrot.lane.b32.xlu0 %v6407, 64
  %v6630 = vpop.permute.xlu0 %6629
  %6631 = vrot.lane.b32.xlu0 %v6406, 64
  %v6632 = vpop.permute.xlu0 %6631
  %6633 = vrot.lane.b32.xlu0 %v6405, 64
  %v6634 = vpop.permute.xlu0 %6633
  %6635 = vrot.lane.b32.xlu0 %v6404, 64
  %v6636 = vpop.permute.xlu0 %6635
  %6637 = vrot.lane.b32.xlu0 %v6403, 64
  %v6638 = vpop.permute.xlu0 %6637
  %6639 = vrot.lane.b32.xlu0 %v6402, 64
  %v6640 = vpop.permute.xlu0 %6639
  %6641 = vrot.lane.b32.xlu0 %v6401, 64
  %v6642 = vpop.permute.xlu0 %6641
  %6643 = vrot.lane.b32.xlu0 %v6400, 64
  %v6644 = vpop.permute.xlu0 %6643
  %6645 = vrot.lane.b32.xlu0 %v6399, 64
  %v6646 = vpop.permute.xlu0 %6645
  %6647 = vrot.lane.b32.xlu0 %v6398, 64
  %v6648 = vpop.permute.xlu0 %6647
  %6649 = vrot.lane.b32.xlu0 %v6397, 64
  %v6650 = vpop.permute.xlu0 %6649
  %6651 = vrot.lane.b32.xlu0 %v6396, 64
  %v6652 = vpop.permute.xlu0 %6651
  %6653 = vrot.lane.b32.xlu0 %v6395, 64
  %v6654 = vpop.permute.xlu0 %6653
  %6655 = vrot.lane.b32.xlu0 %v6394, 64
  %v6656 = vpop.permute.xlu0 %6655
  %6657 = vrot.lane.b32.xlu0 %v6393, 64
  %v6658 = vpop.permute.xlu0 %6657
  %6659 = vrot.lane.b32.xlu0 %v6392, 64
  %v6660 = vpop.permute.xlu0 %6659
  %6661 = vrot.lane.b32.xlu0 %v6391, 64
  %v6662 = vpop.permute.xlu0 %6661
  %6663 = vrot.lane.b32.xlu0 %v6390, 64
  %v6664 = vpop.permute.xlu0 %6663
  %6665 = vrot.lane.b32.xlu0 %v6389, 64
  %v6666 = vpop.permute.xlu0 %6665
  %6667 = vrot.lane.b32.xlu0 %v6388, 64
  %v6668 = vpop.permute.xlu0 %6667
  %6669 = vrot.lane.b32.xlu0 %v6387, 64
  %v6670 = vpop.permute.xlu0 %6669
  %6671 = vrot.lane.b32.xlu0 %v6386, 64
  %v6672 = vpop.permute.xlu0 %6671
  %6673 = vrot.lane.b32.xlu0 %v6385, 64
  %v6674 = vpop.permute.xlu0 %6673
  %6675 = vrot.lane.b32.xlu0 %v6384, 64
  %v6676 = vpop.permute.xlu0 %6675
  %6677 = vrot.lane.b32.xlu0 %v6383, 64
  %v6678 = vpop.permute.xlu0 %6677
  %6679 = vrot.lane.b32.xlu0 %v6382, 64
  %v6680 = vpop.permute.xlu0 %6679
  %6681 = vrot.lane.b32.xlu0 %v6381, 64
  %v6682 = vpop.permute.xlu0 %6681
  %6683 = vrot.lane.b32.xlu0 %v6380, 64
  %v6684 = vpop.permute.xlu0 %6683
  %6685 = vrot.lane.b32.xlu0 %v6379, 64
  %v6686 = vpop.permute.xlu0 %6685
  %6687 = vrot.lane.b32.xlu0 %v6378, 64
  %v6688 = vpop.permute.xlu0 %6687
  %6689 = vrot.lane.b32.xlu0 %v6377, 64
  %v6690 = vpop.permute.xlu0 %6689
  %6691 = vrot.lane.b32.xlu0 %v6376, 64
  %v6692 = vpop.permute.xlu0 %6691
  %6693 = vrot.lane.b32.xlu0 %v6375, 64
  %v6694 = vpop.permute.xlu0 %6693
  %6695 = vrot.lane.b32.xlu0 %v6374, 64
  %v6696 = vpop.permute.xlu0 %6695
  %6697 = vrot.lane.b32.xlu0 %v6373, 64
  %v6698 = vpop.permute.xlu0 %6697
  %6699 = vrot.lane.b32.xlu0 %v6413, 64
  %v6700 = vpop.permute.xlu0 %6699
  %v6742 = vsel %vm1980, %v6331, %v6456
  %v6743 = vsel %vm1980, %v6330, %v6458
  %v6744 = vsel %vm1980, %v6329, %v6460
  %v6745 = vsel %vm1980, %v6328, %v6462
  %v6746 = vsel %vm1980, %v6327, %v6464
  %v6747 = vsel %vm1980, %v6326, %v6466
  %v6748 = vsel %vm1980, %v6325, %v6468
  %v6749 = vsel %vm1980, %v6324, %v6470
  %v6750 = vsel %vm1980, %v6323, %v6472
  %v6751 = vsel %vm1980, %v6322, %v6474
  %v6752 = vsel %vm1980, %v6321, %v6476
  %v6753 = vsel %vm1980, %v6320, %v6478
  %v6754 = vsel %vm1980, %v6319, %v6480
  %v6755 = vsel %vm1980, %v6318, %v6482
  %v6756 = vsel %vm1980, %v6317, %v6484
  %v6757 = vsel %vm1980, %v6316, %v6486
  %v6758 = vsel %vm1980, %v6315, %v6488
  %v6759 = vsel %vm1980, %v6314, %v6490
  %v6760 = vsel %vm1980, %v6313, %v6492
  %v6761 = vsel %vm1980, %v6312, %v6494
  %v6762 = vsel %vm1980, %v6311, %v6496
  %v6763 = vsel %vm1980, %v6310, %v6498
  %v6764 = vsel %vm1980, %v6309, %v6500
  %v6765 = vsel %vm1980, %v6308, %v6502
  %v6766 = vsel %vm1980, %v6307, %v6504
  %v6767 = vsel %vm1980, %v6306, %v6506
  %v6768 = vsel %vm1980, %v6305, %v6508
  %v6769 = vsel %vm1980, %v6304, %v6510
  %v6770 = vsel %vm1980, %v6303, %v6512
  %v6771 = vsel %vm1980, %v6302, %v6514
  %v6772 = vsel %vm1980, %v6301, %v6516
  %v6773 = vsel %vm1980, %v6300, %v6518
  %v6774 = vsel %vm1980, %v6299, %v6520
  %v6775 = vsel %vm1980, %v6298, %v6522
  %v6776 = vsel %vm1980, %v6297, %v6524
  %v6777 = vsel %vm1980, %v6296, %v6526
  %v6778 = vsel %vm1980, %v6295, %v6528
  %v6779 = vsel %vm1980, %v6294, %v6530
  %v6780 = vsel %vm1980, %v6293, %v6532
  %v6781 = vsel %vm1980, %v6292, %v6534
  %v6782 = vsel %vm1980, %v6291, %v6536
  %v6783 = vsel %vm2871, %v6742, %v6620
  %v6784 = vsel %vm2871, %v6743, %v6622
  %v6785 = vsel %vm2871, %v6744, %v6624
  %v6786 = vsel %vm2871, %v6745, %v6626
  %v6787 = vsel %vm2871, %v6746, %v6628
  %v6788 = vsel %vm2871, %v6747, %v6630
  %v6789 = vsel %vm2871, %v6748, %v6632
  %v6790 = vsel %vm2871, %v6749, %v6634
  %v6791 = vsel %vm2871, %v6750, %v6636
  %v6792 = vsel %vm2871, %v6751, %v6638
  %v6793 = vsel %vm2871, %v6752, %v6640
  %v6794 = vsel %vm2871, %v6753, %v6642
  %v6795 = vsel %vm2871, %v6754, %v6644
  %v6796 = vsel %vm2871, %v6755, %v6646
  %v6797 = vsel %vm2871, %v6756, %v6648
  %v6798 = vsel %vm2871, %v6757, %v6650
  %v6799 = vsel %vm2871, %v6758, %v6652
  %v6800 = vsel %vm2871, %v6759, %v6654
  %v6801 = vsel %vm2871, %v6760, %v6656
  %v6802 = vsel %vm2871, %v6761, %v6658
  %v6803 = vsel %vm2871, %v6762, %v6660
  %v6804 = vsel %vm2871, %v6763, %v6662
  %v6805 = vsel %vm2871, %v6764, %v6664
  %v6806 = vsel %vm2871, %v6765, %v6666
  %v6807 = vsel %vm2871, %v6766, %v6668
  %v6808 = vsel %vm2871, %v6767, %v6670
  %v6809 = vsel %vm2871, %v6768, %v6672
  %v6810 = vsel %vm2871, %v6769, %v6674
  %v6811 = vsel %vm2871, %v6770, %v6676
  %v6812 = vsel %vm2871, %v6771, %v6678
  %v6813 = vsel %vm2871, %v6772, %v6680
  %v6814 = vsel %vm2871, %v6773, %v6682
  %v6815 = vsel %vm2871, %v6774, %v6684
  %v6816 = vsel %vm2871, %v6775, %v6686
  %v6817 = vsel %vm2871, %v6776, %v6688
  %v6818 = vsel %vm2871, %v6777, %v6690
  %v6819 = vsel %vm2871, %v6778, %v6692
  %v6820 = vsel %vm2871, %v6779, %v6694
  %v6821 = vsel %vm2871, %v6780, %v6696
  %v6822 = vsel %vm2871, %v6781, %v6698
  %v6823 = vsel %vm2871, %v6782, %v6700
  %v6824 = vpack.c.bf16 %v6784, %v6783
  %v6825 = vpack.c.bf16 %v6786, %v6785
  %v6826 = vpack.c.bf16 %v6788, %v6787
  %v6827 = vpack.c.bf16 %v6790, %v6789
  %v6828 = vpack.c.bf16 %v6792, %v6791
  %v6829 = vpack.c.bf16 %v6794, %v6793
  %v6830 = vpack.c.bf16 %v6796, %v6795
  %v6831 = vpack.c.bf16 %v6798, %v6797
  %v6832 = vpack.c.bf16 %v6800, %v6799
  %v6833 = vpack.c.bf16 %v6802, %v6801
  %v6834 = vpack.c.bf16 %v6804, %v6803
  %v6835 = vpack.c.bf16 %v6806, %v6805
  %v6836 = vpack.c.bf16 %v6808, %v6807
  %v6837 = vpack.c.bf16 %v6810, %v6809
  %v6838 = vpack.c.bf16 %v6812, %v6811
  %v6839 = vpack.c.bf16 %v6814, %v6813
  %v6840 = vpack.c.bf16 %v6816, %v6815
  %v6841 = vpack.c.bf16 %v6818, %v6817
  %v6842 = vpack.c.bf16 %v6820, %v6819
  %v6843 = vpack.c.bf16 %v6822, %v6821
  %v6844 = vpack.c.bf16 %v6823, %v6823
  %v6845 = vld [vmem:[%s8] sm:$0x1]
  %v6846 = vld [vmem:[%s7] sm:$0xf]
  %v6847 = vld [vmem:[%s7 + $0x4] sm:$0xf]
  %v6848 = vld [vmem:[%s7 + $0x8] sm:$0xf]
  %v6849 = vld [vmem:[%s7 + $0xc] sm:$0xf]
  %v6850 = vld [vmem:[%s7 + $0x10] sm:$0xf]
  %v6851 = vld [vmem:[%s7 + $0x14] sm:$0xf]
  %v6852 = vld [vmem:[%s7 + $0x18] sm:$0xf]
  %v6853 = vld [vmem:[%s7 + $0x1c] sm:$0xf]
  %v6854 = vld [vmem:[%s7 + $0x20] sm:$0xf]
  %v6855 = vld [vmem:[%s7 + $0x24] sm:$0xf]
  %v6856 = vld [vmem:[%s7 + $0x28] sm:$0xf]
  %v6857 = vld [vmem:[%s7 + $0x2c] sm:$0xf]
  %v6870 = vunpack.c.l.b16 %v6846
  %v6871 = vunpack.c.l.b16 %v6847
  %v6872 = vunpack.c.l.b16 %v6848
  %v6873 = vunpack.c.l.b16 %v6849
  %v6874 = vunpack.c.l.b16 %v6850
  %v6875 = vunpack.c.l.b16 %v6851
  %v6876 = vunpack.c.l.b16 %v6852
  %v6877 = vunpack.c.l.b16 %v6853
  %v6878 = vunpack.c.l.b16 %v6854
  %v6879 = vunpack.c.l.b16 %v6855
  %v6880 = vunpack.c.l.b16 %v6856
  %v6881 = vunpack.c.l.b16 %v6857
  %v6882 = vpack.c.b16 %v6871, %v6870
  %v6883 = vpack.c.b16 %v6873, %v6872
  %v6884 = vpack.c.b16 %v6875, %v6874
  %v6885 = vpack.c.b16 %v6877, %v6876
  %v6886 = vpack.c.b16 %v6879, %v6878
  %v6887 = vpack.c.b16 %v6881, %v6880
  %v6895 = vsel %vm2983, %v6824, 0
  %v6898 = vsel %vm2983, %v6825, 0
  %v6901 = vsel %vm2983, %v6826, 0
  %v6904 = vsel %vm2983, %v6827, 0
  %v6907 = vsel %vm2983, %v6828, 0
  %v6910 = vsel %vm2983, %v6829, 0
  %v6913 = vsel %vm2983, %v6830, 0
  %v6916 = vsel %vm2983, %v6831, 0
  %v6919 = vsel %vm2983, %v6832, 0
  %v6922 = vsel %vm2983, %v6833, 0
  %v6925 = vsel %vm2983, %v6834, 0
  %v6928 = vsel %vm2983, %v6835, 0
  %v6931 = vsel %vm2983, %v6836, 0
  %v6934 = vsel %vm2983, %v6837, 0
  %v6937 = vsel %vm2983, %v6838, 0
  %v6940 = vsel %vm2983, %v6839, 0
  %v6943 = vsel %vm2983, %v6840, 0
  %v6946 = vsel %vm2983, %v6841, 0
  %v6949 = vsel %vm2983, %v6842, 0
  %v6952 = vsel %vm2983, %v6843, 0
  %v6955 = vsel %vm2983, %v6844, 0
  %6957 = vmatpush.bf16.msra.mxu0 0
  %6958 = vmatpush.bf16.msra.mxu0 0
  %6959 = vmatpush.bf16.msra.mxu0 %v6887
  %6960 = vmatpush.bf16.msra.mxu0 %v6886
  %6961 = vmatpush.bf16.msra.mxu0 %v6885
  %6962 = vmatpush.bf16.msra.mxu0 %v6884
  %6963 = vmatpush.bf16.msra.mxu0 %v6883
  %6964 = vmatpush.bf16.msra.mxu0 %v6882
  %6965 = vmatmul.bf16.gmra.mxu0 %v6895
  %v6966 = vpop.f32.mrf.mxu0
  %v6967 = vadd.f32 0.0, %v6966
  %v6968 = vpop.f32.mrf.mxu0
  %v6969 = vadd.f32 0.0, %v6968
  %6970 = vmatmul.bf16.gmra.mxu0 %v6898
  %v6971 = vpop.f32.mrf.mxu0
  %v6972 = vadd.f32 0.0, %v6971
  %v6973 = vpop.f32.mrf.mxu0
  %v6974 = vadd.f32 0.0, %v6973
  %6975 = vmatmul.bf16.gmra.mxu0 %v6901
  %v6976 = vpop.f32.mrf.mxu0
  %v6977 = vadd.f32 0.0, %v6976
  %v6978 = vpop.f32.mrf.mxu0
  %v6979 = vadd.f32 0.0, %v6978
  %6980 = vmatmul.bf16.gmra.mxu0 %v6904
  %v6981 = vpop.f32.mrf.mxu0
  %v6982 = vadd.f32 0.0, %v6981
  %v6983 = vpop.f32.mrf.mxu0
  %v6984 = vadd.f32 0.0, %v6983
  %6985 = vmatmul.bf16.gmra.mxu0 %v6907
  %v6986 = vpop.f32.mrf.mxu0
  %v6987 = vadd.f32 0.0, %v6986
  %v6988 = vpop.f32.mrf.mxu0
  %v6989 = vadd.f32 0.0, %v6988
  %6990 = vmatmul.bf16.gmra.mxu0 %v6910
  %v6991 = vpop.f32.mrf.mxu0
  %v6992 = vadd.f32 0.0, %v6991
  %v6993 = vpop.f32.mrf.mxu0
  %v6994 = vadd.f32 0.0, %v6993
  %6995 = vmatmul.bf16.gmra.mxu0 %v6913
  %v6996 = vpop.f32.mrf.mxu0
  %v6997 = vadd.f32 0.0, %v6996
  %v6998 = vpop.f32.mrf.mxu0
  %v6999 = vadd.f32 0.0, %v6998
  %7000 = vmatmul.bf16.gmra.mxu0 %v6916
  %v7001 = vpop.f32.mrf.mxu0
  %v7002 = vadd.f32 0.0, %v7001
  %v7003 = vpop.f32.mrf.mxu0
  %v7004 = vadd.f32 0.0, %v7003
  %7005 = vmatmul.bf16.gmra.mxu0 %v6919
  %v7006 = vpop.f32.mrf.mxu0
  %v7007 = vadd.f32 0.0, %v7006
  %v7008 = vpop.f32.mrf.mxu0
  %v7009 = vadd.f32 0.0, %v7008
  %7010 = vmatmul.bf16.gmra.mxu0 %v6922
  %v7011 = vpop.f32.mrf.mxu0
  %v7012 = vadd.f32 0.0, %v7011
  %v7013 = vpop.f32.mrf.mxu0
  %v7014 = vadd.f32 0.0, %v7013
  %7015 = vmatmul.bf16.gmra.mxu0 %v6925
  %v7016 = vpop.f32.mrf.mxu0
  %v7017 = vadd.f32 0.0, %v7016
  %v7018 = vpop.f32.mrf.mxu0
  %v7019 = vadd.f32 0.0, %v7018
  %7020 = vmatmul.bf16.gmra.mxu0 %v6928
  %v7021 = vpop.f32.mrf.mxu0
  %v7022 = vadd.f32 0.0, %v7021
  %v7023 = vpop.f32.mrf.mxu0
  %v7024 = vadd.f32 0.0, %v7023
  %7025 = vmatmul.bf16.gmra.mxu0 %v6931
  %v7026 = vpop.f32.mrf.mxu0
  %v7027 = vadd.f32 0.0, %v7026
  %v7028 = vpop.f32.mrf.mxu0
  %v7029 = vadd.f32 0.0, %v7028
  %7030 = vmatmul.bf16.gmra.mxu0 %v6934
  %v7031 = vpop.f32.mrf.mxu0
  %v7032 = vadd.f32 0.0, %v7031
  %v7033 = vpop.f32.mrf.mxu0
  %v7034 = vadd.f32 0.0, %v7033
  %7035 = vmatmul.bf16.gmra.mxu0 %v6937
  %v7036 = vpop.f32.mrf.mxu0
  %v7037 = vadd.f32 0.0, %v7036
  %v7038 = vpop.f32.mrf.mxu0
  %v7039 = vadd.f32 0.0, %v7038
  %7040 = vmatmul.bf16.gmra.mxu0 %v6940
  %v7041 = vpop.f32.mrf.mxu0
  %v7042 = vadd.f32 0.0, %v7041
  %v7043 = vpop.f32.mrf.mxu0
  %v7044 = vadd.f32 0.0, %v7043
  %7045 = vmatmul.bf16.gmra.mxu0 %v6943
  %v7046 = vpop.f32.mrf.mxu0
  %v7047 = vadd.f32 0.0, %v7046
  %v7048 = vpop.f32.mrf.mxu0
  %v7049 = vadd.f32 0.0, %v7048
  %7050 = vmatmul.bf16.gmra.mxu0 %v6946
  %v7051 = vpop.f32.mrf.mxu0
  %v7052 = vadd.f32 0.0, %v7051
  %v7053 = vpop.f32.mrf.mxu0
  %v7054 = vadd.f32 0.0, %v7053
  %7055 = vmatmul.bf16.gmra.mxu0 %v6949
  %v7056 = vpop.f32.mrf.mxu0
  %v7057 = vadd.f32 0.0, %v7056
  %v7058 = vpop.f32.mrf.mxu0
  %v7059 = vadd.f32 0.0, %v7058
  %7060 = vmatmul.bf16.gmra.mxu0 %v6952
  %v7061 = vpop.f32.mrf.mxu0
  %v7062 = vadd.f32 0.0, %v7061
  %v7063 = vpop.f32.mrf.mxu0
  %v7064 = vadd.f32 0.0, %v7063
  %7065 = vmatmul.bf16.gmra.mxu0 %v6955
  %v7066 = vpop.f32.mrf.mxu0
  %v7067 = vadd.f32 0.0, %v7066
  %v7068 = vpop.f32.mrf.mxu0
  %7069 = vdwg.mxu0
  %v7070 = vrot.slane %v6967, 6
  %v7071 = vrot.slane %v6969, 6
  %v7072 = vrot.slane %v6972, 6
  %v7073 = vrot.slane %v6974, 6
  %v7074 = vrot.slane %v6977, 6
  %v7075 = vrot.slane %v6979, 6
  %v7076 = vrot.slane %v6982, 6
  %v7077 = vrot.slane %v6984, 6
  %v7078 = vrot.slane %v6987, 6
  %v7079 = vrot.slane %v6989, 6
  %v7080 = vrot.slane %v6992, 6
  %v7081 = vrot.slane %v6994, 6
  %v7082 = vrot.slane %v6997, 6
  %v7083 = vrot.slane %v6999, 6
  %v7084 = vrot.slane %v7002, 6
  %v7085 = vrot.slane %v7004, 6
  %v7086 = vrot.slane %v7007, 6
  %v7087 = vrot.slane %v7009, 6
  %v7088 = vrot.slane %v7012, 6
  %v7089 = vrot.slane %v7014, 6
  %v7090 = vrot.slane %v7017, 6
  %v7091 = vrot.slane %v7019, 6
  %v7092 = vrot.slane %v7022, 6
  %v7093 = vrot.slane %v7024, 6
  %v7094 = vrot.slane %v7027, 6
  %v7095 = vrot.slane %v7029, 6
  %v7096 = vrot.slane %v7032, 6
  %v7097 = vrot.slane %v7034, 6
  %v7098 = vrot.slane %v7037, 6
  %v7099 = vrot.slane %v7039, 6
  %v7100 = vrot.slane %v7042, 6
  %v7101 = vrot.slane %v7044, 6
  %v7102 = vrot.slane %v7047, 6
  %v7103 = vrot.slane %v7049, 6
  %v7104 = vrot.slane %v7052, 6
  %v7105 = vrot.slane %v7054, 6
  %v7106 = vrot.slane %v7057, 6
  %v7107 = vrot.slane %v7059, 6
  %v7108 = vrot.slane %v7062, 6
  %v7109 = vrot.slane %v7064, 6
  %v7110 = vrot.slane %v7067, 6
  %v7111 = vsel %vm1235, %v7109, %v7110
  %v7112 = vsel %vm1235, %v7108, %v7109
  %v7113 = vsel %vm1235, %v7107, %v7108
  %v7114 = vsel %vm1235, %v7106, %v7107
  %v7115 = vsel %vm1235, %v7105, %v7106
  %v7116 = vsel %vm1235, %v7104, %v7105
  %v7117 = vsel %vm1235, %v7103, %v7104
  %v7118 = vsel %vm1235, %v7102, %v7103
  %v7119 = vsel %vm1235, %v7101, %v7102
  %v7120 = vsel %vm1235, %v7100, %v7101
  %v7121 = vsel %vm1235, %v7099, %v7100
  %v7122 = vsel %vm1235, %v7098, %v7099
  %v7123 = vsel %vm1235, %v7097, %v7098
  %v7124 = vsel %vm1235, %v7096, %v7097
  %v7125 = vsel %vm1235, %v7095, %v7096
  %v7126 = vsel %vm1235, %v7094, %v7095
  %v7127 = vsel %vm1235, %v7093, %v7094
  %v7128 = vsel %vm1235, %v7092, %v7093
  %v7129 = vsel %vm1235, %v7091, %v7092
  %v7130 = vsel %vm1235, %v7090, %v7091
  %v7131 = vsel %vm1235, %v7089, %v7090
  %v7132 = vsel %vm1235, %v7088, %v7089
  %v7133 = vsel %vm1235, %v7087, %v7088
  %v7134 = vsel %vm1235, %v7086, %v7087
  %v7135 = vsel %vm1235, %v7085, %v7086
  %v7136 = vsel %vm1235, %v7084, %v7085
  %v7137 = vsel %vm1235, %v7083, %v7084
  %v7138 = vsel %vm1235, %v7082, %v7083
  %v7139 = vsel %vm1235, %v7081, %v7082
  %v7140 = vsel %vm1235, %v7080, %v7081
  %v7141 = vsel %vm1235, %v7079, %v7080
  %v7142 = vsel %vm1235, %v7078, %v7079
  %v7143 = vsel %vm1235, %v7077, %v7078
  %v7144 = vsel %vm1235, %v7076, %v7077
  %v7145 = vsel %vm1235, %v7075, %v7076
  %v7146 = vsel %vm1235, %v7074, %v7075
  %v7147 = vsel %vm1235, %v7073, %v7074
  %v7148 = vsel %vm1235, %v7072, %v7073
  %v7149 = vsel %vm1235, %v7071, %v7072
  %v7150 = vsel %vm1235, %v7070, %v7071
  %v7151 = vsel %vm1235, %v7110, %v7070
  %v7153 = vperm.slane %v6845, 0
  %v7155 = vadd.f32 %v7153, %v7112
  %v7156 = vadd.f32 %v7153, %v7111
  %v7157 = vadd.f32 %v7153, %v7151
  %v7158 = vadd.f32 %v7153, %v7150
  %v7159 = vadd.f32 %v7153, %v7149
  %v7160 = vadd.f32 %v7153, %v7148
  %v7161 = vadd.f32 %v7153, %v7147
  %v7162 = vadd.f32 %v7153, %v7146
  %v7163 = vadd.f32 %v7153, %v7145
  %v7164 = vadd.f32 %v7153, %v7144
  %v7165 = vadd.f32 %v7153, %v7143
  %v7166 = vadd.f32 %v7153, %v7142
  %v7167 = vadd.f32 %v7153, %v7141
  %v7168 = vadd.f32 %v7153, %v7140
  %v7169 = vadd.f32 %v7153, %v7139
  %v7170 = vadd.f32 %v7153, %v7138
  %v7171 = vadd.f32 %v7153, %v7137
  %v7172 = vadd.f32 %v7153, %v7136
  %v7173 = vadd.f32 %v7153, %v7135
  %v7174 = vadd.f32 %v7153, %v7134
  %v7175 = vadd.f32 %v7153, %v7133
  %v7176 = vadd.f32 %v7153, %v7132
  %v7177 = vadd.f32 %v7153, %v7131
  %v7178 = vadd.f32 %v7153, %v7130
  %v7179 = vadd.f32 %v7153, %v7129
  %v7180 = vadd.f32 %v7153, %v7128
  %v7181 = vadd.f32 %v7153, %v7127
  %v7182 = vadd.f32 %v7153, %v7126
  %v7183 = vadd.f32 %v7153, %v7125
  %v7184 = vadd.f32 %v7153, %v7124
  %v7185 = vadd.f32 %v7153, %v7123
  %v7186 = vadd.f32 %v7153, %v7122
  %v7187 = vadd.f32 %v7153, %v7121
  %v7188 = vadd.f32 %v7153, %v7120
  %v7189 = vadd.f32 %v7153, %v7119
  %v7190 = vadd.f32 %v7153, %v7118
  %v7191 = vadd.f32 %v7153, %v7117
  %v7192 = vadd.f32 %v7153, %v7116
  %v7193 = vadd.f32 %v7153, %v7115
  %v7194 = vadd.f32 %v7153, %v7114
  %v7195 = vadd.f32 %v7153, %v7113
  %s7196 = scalar_lea.vmem %s7, 48
  %v7197 = vld [vmem:[%s7196] sm:$0xf]
  %v7198 = vld [vmem:[%s7196 + $0x4] sm:$0xf]
  %v7199 = vld [vmem:[%s7196 + $0x8] sm:$0xf]
  %v7200 = vld [vmem:[%s7196 + $0xc] sm:$0xf]
  %v7201 = vld [vmem:[%s7196 + $0x10] sm:$0xf]
  %v7202 = vld [vmem:[%s7196 + $0x14] sm:$0xf]
  %v7203 = vld [vmem:[%s7196 + $0x18] sm:$0xf]
  %v7204 = vld [vmem:[%s7196 + $0x1c] sm:$0xf]
  %v7205 = vld [vmem:[%s7196 + $0x20] sm:$0xf]
  %v7206 = vld [vmem:[%s7196 + $0x24] sm:$0xf]
  %v7207 = vld [vmem:[%s7196 + $0x28] sm:$0xf]
  %v7208 = vld [vmem:[%s7196 + $0x2c] sm:$0xf]
  %v7221 = vunpack.c.l.b16 %v7197
  %v7222 = vunpack.c.l.b16 %v7198
  %v7223 = vunpack.c.l.b16 %v7199
  %v7224 = vunpack.c.l.b16 %v7200
  %v7225 = vunpack.c.l.b16 %v7201
  %v7226 = vunpack.c.l.b16 %v7202
  %v7227 = vunpack.c.l.b16 %v7203
  %v7228 = vunpack.c.l.b16 %v7204
  %v7229 = vunpack.c.l.b16 %v7205
  %v7230 = vunpack.c.l.b16 %v7206
  %v7231 = vunpack.c.l.b16 %v7207
  %v7232 = vunpack.c.l.b16 %v7208
  %v7233 = vpack.c.b16 %v7222, %v7221
  %v7234 = vpack.c.b16 %v7224, %v7223
  %v7235 = vpack.c.b16 %v7226, %v7225
  %v7236 = vpack.c.b16 %v7228, %v7227
  %v7237 = vpack.c.b16 %v7230, %v7229
  %v7238 = vpack.c.b16 %v7232, %v7231
  %7245 = vmatpush.bf16.msra.mxu0 0
  %7246 = vmatpush.bf16.msra.mxu0 0
  %7247 = vmatpush.bf16.msra.mxu0 %v7238
  %7248 = vmatpush.bf16.msra.mxu0 %v7237
  %7249 = vmatpush.bf16.msra.mxu0 %v7236
  %7250 = vmatpush.bf16.msra.mxu0 %v7235
  %7251 = vmatpush.bf16.msra.mxu0 %v7234
  %7252 = vmatpush.bf16.msra.mxu0 %v7233
  %7253 = vmatmul.bf16.gmra.mxu0 %v6895
  %v7254 = vpop.f32.mrf.mxu0
  %v7255 = vadd.f32 0.0, %v7254
  %v7256 = vpop.f32.mrf.mxu0
  %v7257 = vadd.f32 0.0, %v7256
  %7258 = vmatmul.bf16.gmra.mxu0 %v6898
  %v7259 = vpop.f32.mrf.mxu0
  %v7260 = vadd.f32 0.0, %v7259
  %v7261 = vpop.f32.mrf.mxu0
  %v7262 = vadd.f32 0.0, %v7261
  %7263 = vmatmul.bf16.gmra.mxu0 %v6901
  %v7264 = vpop.f32.mrf.mxu0
  %v7265 = vadd.f32 0.0, %v7264
  %v7266 = vpop.f32.mrf.mxu0
  %v7267 = vadd.f32 0.0, %v7266
  %7268 = vmatmul.bf16.gmra.mxu0 %v6904
  %v7269 = vpop.f32.mrf.mxu0
  %v7270 = vadd.f32 0.0, %v7269
  %v7271 = vpop.f32.mrf.mxu0
  %v7272 = vadd.f32 0.0, %v7271
  %7273 = vmatmul.bf16.gmra.mxu0 %v6907
  %v7274 = vpop.f32.mrf.mxu0
  %v7275 = vadd.f32 0.0, %v7274
  %v7276 = vpop.f32.mrf.mxu0
  %v7277 = vadd.f32 0.0, %v7276
  %7278 = vmatmul.bf16.gmra.mxu0 %v6910
  %v7279 = vpop.f32.mrf.mxu0
  %v7280 = vadd.f32 0.0, %v7279
  %v7281 = vpop.f32.mrf.mxu0
  %v7282 = vadd.f32 0.0, %v7281
  %7283 = vmatmul.bf16.gmra.mxu0 %v6913
  %v7284 = vpop.f32.mrf.mxu0
  %v7285 = vadd.f32 0.0, %v7284
  %v7286 = vpop.f32.mrf.mxu0
  %v7287 = vadd.f32 0.0, %v7286
  %7288 = vmatmul.bf16.gmra.mxu0 %v6916
  %v7289 = vpop.f32.mrf.mxu0
  %v7290 = vadd.f32 0.0, %v7289
  %v7291 = vpop.f32.mrf.mxu0
  %v7292 = vadd.f32 0.0, %v7291
  %7293 = vmatmul.bf16.gmra.mxu0 %v6919
  %v7294 = vpop.f32.mrf.mxu0
  %v7295 = vadd.f32 0.0, %v7294
  %v7296 = vpop.f32.mrf.mxu0
  %v7297 = vadd.f32 0.0, %v7296
  %7298 = vmatmul.bf16.gmra.mxu0 %v6922
  %v7299 = vpop.f32.mrf.mxu0
  %v7300 = vadd.f32 0.0, %v7299
  %v7301 = vpop.f32.mrf.mxu0
  %v7302 = vadd.f32 0.0, %v7301
  %7303 = vmatmul.bf16.gmra.mxu0 %v6925
  %v7304 = vpop.f32.mrf.mxu0
  %v7305 = vadd.f32 0.0, %v7304
  %v7306 = vpop.f32.mrf.mxu0
  %v7307 = vadd.f32 0.0, %v7306
  %7308 = vmatmul.bf16.gmra.mxu0 %v6928
  %v7309 = vpop.f32.mrf.mxu0
  %v7310 = vadd.f32 0.0, %v7309
  %v7311 = vpop.f32.mrf.mxu0
  %v7312 = vadd.f32 0.0, %v7311
  %7313 = vmatmul.bf16.gmra.mxu0 %v6931
  %v7314 = vpop.f32.mrf.mxu0
  %v7315 = vadd.f32 0.0, %v7314
  %v7316 = vpop.f32.mrf.mxu0
  %v7317 = vadd.f32 0.0, %v7316
  %7318 = vmatmul.bf16.gmra.mxu0 %v6934
  %v7319 = vpop.f32.mrf.mxu0
  %v7320 = vadd.f32 0.0, %v7319
  %v7321 = vpop.f32.mrf.mxu0
  %v7322 = vadd.f32 0.0, %v7321
  %7323 = vmatmul.bf16.gmra.mxu0 %v6937
  %v7324 = vpop.f32.mrf.mxu0
  %v7325 = vadd.f32 0.0, %v7324
  %v7326 = vpop.f32.mrf.mxu0
  %v7327 = vadd.f32 0.0, %v7326
  %7328 = vmatmul.bf16.gmra.mxu0 %v6940
  %v7329 = vpop.f32.mrf.mxu0
  %v7330 = vadd.f32 0.0, %v7329
  %v7331 = vpop.f32.mrf.mxu0
  %v7332 = vadd.f32 0.0, %v7331
  %7333 = vmatmul.bf16.gmra.mxu0 %v6943
  %v7334 = vpop.f32.mrf.mxu0
  %v7335 = vadd.f32 0.0, %v7334
  %v7336 = vpop.f32.mrf.mxu0
  %v7337 = vadd.f32 0.0, %v7336
  %7338 = vmatmul.bf16.gmra.mxu0 %v6946
  %v7339 = vpop.f32.mrf.mxu0
  %v7340 = vadd.f32 0.0, %v7339
  %v7341 = vpop.f32.mrf.mxu0
  %v7342 = vadd.f32 0.0, %v7341
  %7343 = vmatmul.bf16.gmra.mxu0 %v6949
  %v7344 = vpop.f32.mrf.mxu0
  %v7345 = vadd.f32 0.0, %v7344
  %v7346 = vpop.f32.mrf.mxu0
  %v7347 = vadd.f32 0.0, %v7346
  %7348 = vmatmul.bf16.gmra.mxu0 %v6952
  %v7349 = vpop.f32.mrf.mxu0
  %v7350 = vadd.f32 0.0, %v7349
  %v7351 = vpop.f32.mrf.mxu0
  %v7352 = vadd.f32 0.0, %v7351
  %7353 = vmatmul.bf16.gmra.mxu0 %v6955
  %v7354 = vpop.f32.mrf.mxu0
  %v7355 = vadd.f32 0.0, %v7354
  %v7356 = vpop.f32.mrf.mxu0
  %7357 = vdwg.mxu0
  %v7358 = vadd.f32 %v7155, %v7255
  %v7359 = vadd.f32 %v7156, %v7257
  %v7360 = vadd.f32 %v7157, %v7260
  %v7361 = vadd.f32 %v7158, %v7262
  %v7362 = vadd.f32 %v7159, %v7265
  %v7363 = vadd.f32 %v7160, %v7267
  %v7364 = vadd.f32 %v7161, %v7270
  %v7365 = vadd.f32 %v7162, %v7272
  %v7366 = vadd.f32 %v7163, %v7275
  %v7367 = vadd.f32 %v7164, %v7277
  %v7368 = vadd.f32 %v7165, %v7280
  %v7369 = vadd.f32 %v7166, %v7282
  %v7370 = vadd.f32 %v7167, %v7285
  %v7371 = vadd.f32 %v7168, %v7287
  %v7372 = vadd.f32 %v7169, %v7290
  %v7373 = vadd.f32 %v7170, %v7292
  %v7374 = vadd.f32 %v7171, %v7295
  %v7375 = vadd.f32 %v7172, %v7297
  %v7376 = vadd.f32 %v7173, %v7300
  %v7377 = vadd.f32 %v7174, %v7302
  %v7378 = vadd.f32 %v7175, %v7305
  %v7379 = vadd.f32 %v7176, %v7307
  %v7380 = vadd.f32 %v7177, %v7310
  %v7381 = vadd.f32 %v7178, %v7312
  %v7382 = vadd.f32 %v7179, %v7315
  %v7383 = vadd.f32 %v7180, %v7317
  %v7384 = vadd.f32 %v7181, %v7320
  %v7385 = vadd.f32 %v7182, %v7322
  %v7386 = vadd.f32 %v7183, %v7325
  %v7387 = vadd.f32 %v7184, %v7327
  %v7388 = vadd.f32 %v7185, %v7330
  %v7389 = vadd.f32 %v7186, %v7332
  %v7390 = vadd.f32 %v7187, %v7335
  %v7391 = vadd.f32 %v7188, %v7337
  %v7392 = vadd.f32 %v7189, %v7340
  %v7393 = vadd.f32 %v7190, %v7342
  %v7394 = vadd.f32 %v7191, %v7345
  %v7395 = vadd.f32 %v7192, %v7347
  %v7396 = vadd.f32 %v7193, %v7350
  %v7397 = vadd.f32 %v7194, %v7352
  %v7398 = vadd.f32 %v7195, %v7355
  %s7399 = scalar_lea.vmem %s7, 96
  %v7400 = vld [vmem:[%s7399] sm:$0xf]
  %v7401 = vld [vmem:[%s7399 + $0x4] sm:$0xf]
  %v7402 = vld [vmem:[%s7399 + $0x8] sm:$0xf]
  %v7403 = vld [vmem:[%s7399 + $0xc] sm:$0xf]
  %v7404 = vld [vmem:[%s7399 + $0x10] sm:$0xf]
  %v7405 = vld [vmem:[%s7399 + $0x14] sm:$0xf]
  %v7406 = vld [vmem:[%s7399 + $0x18] sm:$0xf]
  %v7407 = vld [vmem:[%s7399 + $0x1c] sm:$0xf]
  %v7408 = vld [vmem:[%s7399 + $0x20] sm:$0xf]
  %v7409 = vld [vmem:[%s7399 + $0x24] sm:$0xf]
  %v7410 = vld [vmem:[%s7399 + $0x28] sm:$0xf]
  %v7411 = vld [vmem:[%s7399 + $0x2c] sm:$0xf]
  %v7424 = vunpack.c.l.b16 %v7400
  %v7425 = vunpack.c.l.b16 %v7401
  %v7426 = vunpack.c.l.b16 %v7402
  %v7427 = vunpack.c.l.b16 %v7403
  %v7428 = vunpack.c.l.b16 %v7404
  %v7429 = vunpack.c.l.b16 %v7405
  %v7430 = vunpack.c.l.b16 %v7406
  %v7431 = vunpack.c.l.b16 %v7407
  %v7432 = vunpack.c.l.b16 %v7408
  %v7433 = vunpack.c.l.b16 %v7409
  %v7434 = vunpack.c.l.b16 %v7410
  %v7435 = vunpack.c.l.b16 %v7411
  %v7436 = vpack.c.b16 %v7425, %v7424
  %v7437 = vpack.c.b16 %v7427, %v7426
  %v7438 = vpack.c.b16 %v7429, %v7428
  %v7439 = vpack.c.b16 %v7431, %v7430
  %v7440 = vpack.c.b16 %v7433, %v7432
  %v7441 = vpack.c.b16 %v7435, %v7434
  %7448 = vmatpush.bf16.msra.mxu0 0
  %7449 = vmatpush.bf16.msra.mxu0 0
  %7450 = vmatpush.bf16.msra.mxu0 %v7441
  %7451 = vmatpush.bf16.msra.mxu0 %v7440
  %7452 = vmatpush.bf16.msra.mxu0 %v7439
  %7453 = vmatpush.bf16.msra.mxu0 %v7438
  %7454 = vmatpush.bf16.msra.mxu0 %v7437
  %7455 = vmatpush.bf16.msra.mxu0 %v7436
  %7456 = vmatmul.bf16.gmra.mxu0 %v6895
  %v7457 = vpop.f32.mrf.mxu0
  %v7458 = vadd.f32 0.0, %v7457
  %v7459 = vpop.f32.mrf.mxu0
  %v7460 = vadd.f32 0.0, %v7459
  %7461 = vmatmul.bf16.gmra.mxu0 %v6898
  %v7462 = vpop.f32.mrf.mxu0
  %v7463 = vadd.f32 0.0, %v7462
  %v7464 = vpop.f32.mrf.mxu0
  %v7465 = vadd.f32 0.0, %v7464
  %7466 = vmatmul.bf16.gmra.mxu0 %v6901
  %v7467 = vpop.f32.mrf.mxu0
  %v7468 = vadd.f32 0.0, %v7467
  %v7469 = vpop.f32.mrf.mxu0
  %v7470 = vadd.f32 0.0, %v7469
  %7471 = vmatmul.bf16.gmra.mxu0 %v6904
  %v7472 = vpop.f32.mrf.mxu0
  %v7473 = vadd.f32 0.0, %v7472
  %v7474 = vpop.f32.mrf.mxu0
  %v7475 = vadd.f32 0.0, %v7474
  %7476 = vmatmul.bf16.gmra.mxu0 %v6907
  %v7477 = vpop.f32.mrf.mxu0
  %v7478 = vadd.f32 0.0, %v7477
  %v7479 = vpop.f32.mrf.mxu0
  %v7480 = vadd.f32 0.0, %v7479
  %7481 = vmatmul.bf16.gmra.mxu0 %v6910
  %v7482 = vpop.f32.mrf.mxu0
  %v7483 = vadd.f32 0.0, %v7482
  %v7484 = vpop.f32.mrf.mxu0
  %v7485 = vadd.f32 0.0, %v7484
  %7486 = vmatmul.bf16.gmra.mxu0 %v6913
  %v7487 = vpop.f32.mrf.mxu0
  %v7488 = vadd.f32 0.0, %v7487
  %v7489 = vpop.f32.mrf.mxu0
  %v7490 = vadd.f32 0.0, %v7489
  %7491 = vmatmul.bf16.gmra.mxu0 %v6916
  %v7492 = vpop.f32.mrf.mxu0
  %v7493 = vadd.f32 0.0, %v7492
  %v7494 = vpop.f32.mrf.mxu0
  %v7495 = vadd.f32 0.0, %v7494
  %7496 = vmatmul.bf16.gmra.mxu0 %v6919
  %v7497 = vpop.f32.mrf.mxu0
  %v7498 = vadd.f32 0.0, %v7497
  %v7499 = vpop.f32.mrf.mxu0
  %v7500 = vadd.f32 0.0, %v7499
  %7501 = vmatmul.bf16.gmra.mxu0 %v6922
  %v7502 = vpop.f32.mrf.mxu0
  %v7503 = vadd.f32 0.0, %v7502
  %v7504 = vpop.f32.mrf.mxu0
  %v7505 = vadd.f32 0.0, %v7504
  %7506 = vmatmul.bf16.gmra.mxu0 %v6925
  %v7507 = vpop.f32.mrf.mxu0
  %v7508 = vadd.f32 0.0, %v7507
  %v7509 = vpop.f32.mrf.mxu0
  %v7510 = vadd.f32 0.0, %v7509
  %7511 = vmatmul.bf16.gmra.mxu0 %v6928
  %v7512 = vpop.f32.mrf.mxu0
  %v7513 = vadd.f32 0.0, %v7512
  %v7514 = vpop.f32.mrf.mxu0
  %v7515 = vadd.f32 0.0, %v7514
  %7516 = vmatmul.bf16.gmra.mxu0 %v6931
  %v7517 = vpop.f32.mrf.mxu0
  %v7518 = vadd.f32 0.0, %v7517
  %v7519 = vpop.f32.mrf.mxu0
  %v7520 = vadd.f32 0.0, %v7519
  %7521 = vmatmul.bf16.gmra.mxu0 %v6934
  %v7522 = vpop.f32.mrf.mxu0
  %v7523 = vadd.f32 0.0, %v7522
  %v7524 = vpop.f32.mrf.mxu0
  %v7525 = vadd.f32 0.0, %v7524
  %7526 = vmatmul.bf16.gmra.mxu0 %v6937
  %v7527 = vpop.f32.mrf.mxu0
  %v7528 = vadd.f32 0.0, %v7527
  %v7529 = vpop.f32.mrf.mxu0
  %v7530 = vadd.f32 0.0, %v7529
  %7531 = vmatmul.bf16.gmra.mxu0 %v6940
  %v7532 = vpop.f32.mrf.mxu0
  %v7533 = vadd.f32 0.0, %v7532
  %v7534 = vpop.f32.mrf.mxu0
  %v7535 = vadd.f32 0.0, %v7534
  %7536 = vmatmul.bf16.gmra.mxu0 %v6943
  %v7537 = vpop.f32.mrf.mxu0
  %v7538 = vadd.f32 0.0, %v7537
  %v7539 = vpop.f32.mrf.mxu0
  %v7540 = vadd.f32 0.0, %v7539
  %7541 = vmatmul.bf16.gmra.mxu0 %v6946
  %v7542 = vpop.f32.mrf.mxu0
  %v7543 = vadd.f32 0.0, %v7542
  %v7544 = vpop.f32.mrf.mxu0
  %v7545 = vadd.f32 0.0, %v7544
  %7546 = vmatmul.bf16.gmra.mxu0 %v6949
  %v7547 = vpop.f32.mrf.mxu0
  %v7548 = vadd.f32 0.0, %v7547
  %v7549 = vpop.f32.mrf.mxu0
  %v7550 = vadd.f32 0.0, %v7549
  %7551 = vmatmul.bf16.gmra.mxu0 %v6952
  %v7552 = vpop.f32.mrf.mxu0
  %v7553 = vadd.f32 0.0, %v7552
  %v7554 = vpop.f32.mrf.mxu0
  %v7555 = vadd.f32 0.0, %v7554
  %7556 = vmatmul.bf16.gmra.mxu0 %v6955
  %v7557 = vpop.f32.mrf.mxu0
  %v7558 = vadd.f32 0.0, %v7557
  %v7559 = vpop.f32.mrf.mxu0
  %7560 = vdwg.mxu0
  %v7561 = vrot.slane %v7458, 2
  %v7562 = vrot.slane %v7460, 2
  %v7563 = vrot.slane %v7463, 2
  %v7564 = vrot.slane %v7465, 2
  %v7565 = vrot.slane %v7468, 2
  %v7566 = vrot.slane %v7470, 2
  %v7567 = vrot.slane %v7473, 2
  %v7568 = vrot.slane %v7475, 2
  %v7569 = vrot.slane %v7478, 2
  %v7570 = vrot.slane %v7480, 2
  %v7571 = vrot.slane %v7483, 2
  %v7572 = vrot.slane %v7485, 2
  %v7573 = vrot.slane %v7488, 2
  %v7574 = vrot.slane %v7490, 2
  %v7575 = vrot.slane %v7493, 2
  %v7576 = vrot.slane %v7495, 2
  %v7577 = vrot.slane %v7498, 2
  %v7578 = vrot.slane %v7500, 2
  %v7579 = vrot.slane %v7503, 2
  %v7580 = vrot.slane %v7505, 2
  %v7581 = vrot.slane %v7508, 2
  %v7582 = vrot.slane %v7510, 2
  %v7583 = vrot.slane %v7513, 2
  %v7584 = vrot.slane %v7515, 2
  %v7585 = vrot.slane %v7518, 2
  %v7586 = vrot.slane %v7520, 2
  %v7587 = vrot.slane %v7523, 2
  %v7588 = vrot.slane %v7525, 2
  %v7589 = vrot.slane %v7528, 2
  %v7590 = vrot.slane %v7530, 2
  %v7591 = vrot.slane %v7533, 2
  %v7592 = vrot.slane %v7535, 2
  %v7593 = vrot.slane %v7538, 2
  %v7594 = vrot.slane %v7540, 2
  %v7595 = vrot.slane %v7543, 2
  %v7596 = vrot.slane %v7545, 2
  %v7597 = vrot.slane %v7548, 2
  %v7598 = vrot.slane %v7550, 2
  %v7599 = vrot.slane %v7553, 2
  %v7600 = vrot.slane %v7555, 2
  %v7601 = vrot.slane %v7558, 2
  %v7602 = vsel %vm1651, %v7600, %v7601
  %v7603 = vsel %vm1651, %v7599, %v7600
  %v7604 = vsel %vm1651, %v7598, %v7599
  %v7605 = vsel %vm1651, %v7597, %v7598
  %v7606 = vsel %vm1651, %v7596, %v7597
  %v7607 = vsel %vm1651, %v7595, %v7596
  %v7608 = vsel %vm1651, %v7594, %v7595
  %v7609 = vsel %vm1651, %v7593, %v7594
  %v7610 = vsel %vm1651, %v7592, %v7593
  %v7611 = vsel %vm1651, %v7591, %v7592
  %v7612 = vsel %vm1651, %v7590, %v7591
  %v7613 = vsel %vm1651, %v7589, %v7590
  %v7614 = vsel %vm1651, %v7588, %v7589
  %v7615 = vsel %vm1651, %v7587, %v7588
  %v7616 = vsel %vm1651, %v7586, %v7587
  %v7617 = vsel %vm1651, %v7585, %v7586
  %v7618 = vsel %vm1651, %v7584, %v7585
  %v7619 = vsel %vm1651, %v7583, %v7584
  %v7620 = vsel %vm1651, %v7582, %v7583
  %v7621 = vsel %vm1651, %v7581, %v7582
  %v7622 = vsel %vm1651, %v7580, %v7581
  %v7623 = vsel %vm1651, %v7579, %v7580
  %v7624 = vsel %vm1651, %v7578, %v7579
  %v7625 = vsel %vm1651, %v7577, %v7578
  %v7626 = vsel %vm1651, %v7576, %v7577
  %v7627 = vsel %vm1651, %v7575, %v7576
  %v7628 = vsel %vm1651, %v7574, %v7575
  %v7629 = vsel %vm1651, %v7573, %v7574
  %v7630 = vsel %vm1651, %v7572, %v7573
  %v7631 = vsel %vm1651, %v7571, %v7572
  %v7632 = vsel %vm1651, %v7570, %v7571
  %v7633 = vsel %vm1651, %v7569, %v7570
  %v7634 = vsel %vm1651, %v7568, %v7569
  %v7635 = vsel %vm1651, %v7567, %v7568
  %v7636 = vsel %vm1651, %v7566, %v7567
  %v7637 = vsel %vm1651, %v7565, %v7566
  %v7638 = vsel %vm1651, %v7564, %v7565
  %v7639 = vsel %vm1651, %v7563, %v7564
  %v7640 = vsel %vm1651, %v7562, %v7563
  %v7641 = vsel %vm1651, %v7561, %v7562
  %v7642 = vsel %vm1651, %v7601, %v7561
  %v7643 = vadd.f32 %v7358, %v7639
  %v7644 = vadd.f32 %v7359, %v7638
  %v7645 = vadd.f32 %v7360, %v7637
  %v7646 = vadd.f32 %v7361, %v7636
  %v7647 = vadd.f32 %v7362, %v7635
  %v7648 = vadd.f32 %v7363, %v7634
  %v7649 = vadd.f32 %v7364, %v7633
  %v7650 = vadd.f32 %v7365, %v7632
  %v7651 = vadd.f32 %v7366, %v7631
  %v7652 = vadd.f32 %v7367, %v7630
  %v7653 = vadd.f32 %v7368, %v7629
  %v7654 = vadd.f32 %v7369, %v7628
  %v7655 = vadd.f32 %v7370, %v7627
  %v7656 = vadd.f32 %v7371, %v7626
  %v7657 = vadd.f32 %v7372, %v7625
  %v7658 = vadd.f32 %v7373, %v7624
  %v7659 = vadd.f32 %v7374, %v7623
  %v7660 = vadd.f32 %v7375, %v7622
  %v7661 = vadd.f32 %v7376, %v7621
  %v7662 = vadd.f32 %v7377, %v7620
  %v7663 = vadd.f32 %v7378, %v7619
  %v7664 = vadd.f32 %v7379, %v7618
  %v7665 = vadd.f32 %v7380, %v7617
  %v7666 = vadd.f32 %v7381, %v7616
  %v7667 = vadd.f32 %v7382, %v7615
  %v7668 = vadd.f32 %v7383, %v7614
  %v7669 = vadd.f32 %v7384, %v7613
  %v7670 = vadd.f32 %v7385, %v7612
  %v7671 = vadd.f32 %v7386, %v7611
  %v7672 = vadd.f32 %v7387, %v7610
  %v7673 = vadd.f32 %v7388, %v7609
  %v7674 = vadd.f32 %v7389, %v7608
  %v7675 = vadd.f32 %v7390, %v7607
  %v7676 = vadd.f32 %v7391, %v7606
  %v7677 = vadd.f32 %v7392, %v7605
  %v7678 = vadd.f32 %v7393, %v7604
  %v7679 = vadd.f32 %v7394, %v7603
  %v7680 = vadd.f32 %v7395, %v7602
  %v7681 = vadd.f32 %v7396, %v7642
  %v7682 = vadd.f32 %v7397, %v7641
  %v7683 = vadd.f32 %v7398, %v7640
  %7684 = vst.msk [vmem:[%s9] sm:$0xff] %vm939, %v7643
  %7685 = vst.msk [vmem:[%s9 + $0x8] sm:$0xff] %vm939, %v7644
  %7686 = vst.msk [vmem:[%s9 + $0x10] sm:$0xff] %vm939, %v7645
  %7687 = vst.msk [vmem:[%s9 + $0x18] sm:$0xff] %vm939, %v7646
  %7688 = vst.msk [vmem:[%s9 + $0x20] sm:$0xff] %vm939, %v7647
  %7689 = vst.msk [vmem:[%s9 + $0x28] sm:$0xff] %vm939, %v7648
  %7690 = vst.msk [vmem:[%s9 + $0x30] sm:$0xff] %vm939, %v7649
  %7691 = vst.msk [vmem:[%s9 + $0x38] sm:$0xff] %vm939, %v7650
  %7692 = vst.msk [vmem:[%s9 + $0x40] sm:$0xff] %vm939, %v7651
  %7693 = vst.msk [vmem:[%s9 + $0x48] sm:$0xff] %vm939, %v7652
  %7694 = vst.msk [vmem:[%s9 + $0x50] sm:$0xff] %vm939, %v7653
  %7695 = vst.msk [vmem:[%s9 + $0x58] sm:$0xff] %vm939, %v7654
  %7696 = vst.msk [vmem:[%s9 + $0x60] sm:$0xff] %vm939, %v7655
  %7697 = vst.msk [vmem:[%s9 + $0x68] sm:$0xff] %vm939, %v7656
  %7698 = vst.msk [vmem:[%s9 + $0x70] sm:$0xff] %vm939, %v7657
  %7699 = vst.msk [vmem:[%s9 + $0x78] sm:$0xff] %vm939, %v7658
  %7700 = vst.msk [vmem:[%s9 + $0x80] sm:$0xff] %vm939, %v7659
  %7701 = vst.msk [vmem:[%s9 + $0x88] sm:$0xff] %vm939, %v7660
  %7702 = vst.msk [vmem:[%s9 + $0x90] sm:$0xff] %vm939, %v7661
  %7703 = vst.msk [vmem:[%s9 + $0x98] sm:$0xff] %vm939, %v7662
  %7704 = vst.msk [vmem:[%s9 + $0xa0] sm:$0xff] %vm939, %v7663
  %7705 = vst.msk [vmem:[%s9 + $0xa8] sm:$0xff] %vm939, %v7664
  %7706 = vst.msk [vmem:[%s9 + $0xb0] sm:$0xff] %vm939, %v7665
  %7707 = vst.msk [vmem:[%s9 + $0xb8] sm:$0xff] %vm939, %v7666
  %7708 = vst.msk [vmem:[%s9 + $0xc0] sm:$0xff] %vm939, %v7667
  %7709 = vst.msk [vmem:[%s9 + $0xc8] sm:$0xff] %vm939, %v7668
  %7710 = vst.msk [vmem:[%s9 + $0xd0] sm:$0xff] %vm939, %v7669
  %7711 = vst.msk [vmem:[%s9 + $0xd8] sm:$0xff] %vm939, %v7670
  %7712 = vst.msk [vmem:[%s9 + $0xe0] sm:$0xff] %vm939, %v7671
  %7713 = vst.msk [vmem:[%s9 + $0xe8] sm:$0xff] %vm939, %v7672
  %7714 = vst.msk [vmem:[%s9 + $0xf0] sm:$0xff] %vm939, %v7673
  %7715 = vst.msk [vmem:[%s9 + $0xf8] sm:$0xff] %vm939, %v7674
  %7716 = vst.msk [vmem:[%s9 + $0x100] sm:$0xff] %vm939, %v7675
  %7717 = vst.msk [vmem:[%s9 + $0x108] sm:$0xff] %vm939, %v7676
  %7718 = vst.msk [vmem:[%s9 + $0x110] sm:$0xff] %vm939, %v7677
  %7719 = vst.msk [vmem:[%s9 + $0x118] sm:$0xff] %vm939, %v7678
  %7720 = vst.msk [vmem:[%s9 + $0x120] sm:$0xff] %vm939, %v7679
  %7721 = vst.msk [vmem:[%s9 + $0x128] sm:$0xff] %vm939, %v7680
  %7722 = vst.msk [vmem:[%s9 + $0x130] sm:$0xff] %vm939, %v7681
  %7723 = vst.msk [vmem:[%s9 + $0x138] sm:$0xff] %vm939, %v7682
  %7724 = vst.msk [vmem:[%s9 + $0x140] sm:$0xff] %vm939, %v7683
  // Predicated region
  $region38: #{basic_decoder_forward.1} parent=0 // pred_check
    _
  $region39: #{basic_decoder_forward.1} parent=0 // pred_check_branch
    %7726 = sbr.rel (0) target = $region41
  $region40: #{basic_decoder_forward.1} parent=0 // pred_region
    _
  $region41: #{basic_decoder_forward.1} parent=0 // pred_fallthru
    _
  // Predicated region
  $region42: #{basic_decoder_forward.1} parent=0 // pred_check
    _
  $region43: #{basic_decoder_forward.1} parent=0 // pred_check_branch
    %7728 = sbr.rel (0) target = $region45
  $region44: #{basic_decoder_forward.1} parent=0 // pred_region
    _
  $region45: #{basic_decoder_forward.1} parent=0 // pred_fallthru
    _

</llo_original>
